<compile_context>
chip_gen: v7x
topology: tpu7x:2x2x1
jax: 0.10.0
libtpu: 0.0.40
codegen_flags: <defaults>
</compile_context>

<pallas_src>
import functools

import jax
import jax.numpy as jnp
from jax.experimental import pallas as pl
from jax.experimental.pallas import tpu as pltpu

LN_EPS = 1e-5
LANE = 128


def _layernorm_relu(h, gamma, beta, inv_d):
    """LayerNorm (f32, single-pass statistics) + ReLU, variance clamped >= 0."""
    s = jnp.sum(h, axis=-1, keepdims=True)
    ss = jnp.sum(h * h, axis=-1, keepdims=True)
    mean = s * inv_d
    # E[x^2] - E[x]^2 can go slightly negative from f32 rounding; clamp so
    # rsqrt never sees a negative argument.
    var = jnp.maximum(ss * inv_d - mean * mean, 0.0)
    hn = (h - mean) * jax.lax.rsqrt(var + LN_EPS)
    return jnp.maximum(hn * gamma + beta, 0.0)


def mlp_block_kernel(
    x_ref,
    w0_ref, b0_ref, g0_ref, be0_ref,
    w1_ref, b1_ref, g1_ref, be1_ref,
    w2_ref, b2_ref, g2_ref, be2_ref,
    wfs_ref, bfs_ref,
    out_ref,
    *,
    hidden_size,
):
    inv_h = jnp.float32(1.0 / hidden_size)

    # bf16 operands for the MXU; accumulation stays f32.
    x_bf = x_ref[...].astype(jnp.bfloat16)

    # Layer 0: Linear(in_pad -> hidden) + LayerNorm + ReLU (+ Dropout=identity)
    h = jnp.dot(x_bf, w0_ref[...], preferred_element_type=jnp.float32) + b0_ref[...]
    h = _layernorm_relu(h, g0_ref[...], be0_ref[...], inv_h)

    # Middle layer 1: Linear(hidden -> hidden) + LN + ReLU
    h = jnp.dot(h.astype(jnp.bfloat16), w1_ref[...],
                preferred_element_type=jnp.float32) + b1_ref[...]
    h = _layernorm_relu(h, g1_ref[...], be1_ref[...], inv_h)

    # Middle layer 2: Linear(hidden -> hidden) + LN + ReLU
    h = jnp.dot(h.astype(jnp.bfloat16), w2_ref[...],
                preferred_element_type=jnp.float32) + b2_ref[...]
    h = _layernorm_relu(h, g2_ref[...], be2_ref[...], inv_h)

    # Fused final + skip projection: one K = (hidden + in_pad) matmul on the
    # MXU instead of two short-K matmuls.  Both halves are lane-aligned
    # (multiples of 128), so the lane-axis concat is cheap.
    lhs = jnp.concatenate([h.astype(jnp.bfloat16), x_bf], axis=-1)
    y = jnp.dot(lhs, wfs_ref[...], preferred_element_type=jnp.float32) + bfs_ref[...]

    out_ref[...] = y.astype(out_ref.dtype)


def mlp_block_forward(x, params, *, tile_rows=256):
    """x: [N, input_size] float32; params: dict of weights (see init_params)."""
    n, in_size = x.shape
    hidden = params["w0"].shape[1]
    out_size = params["w3"].shape[1]

    # --- K padding: pad input features to the 128-lane width.  The padded x
    # columns are zero and the padded w0/ws rows are zero, so the matmuls are
    # numerically unchanged while MXU occupancy / load alignment improve. ---
    in_pad = max(LANE, pl.cdiv(in_size, LANE) * LANE)
    if in_pad != in_size:
        x = jnp.pad(x, ((0, 0), (0, in_pad - in_size)))
        w0 = jnp.pad(params["w0"], ((0, in_pad - in_size), (0, 0)))
        ws = jnp.pad(params["ws"], ((0, in_pad - in_size), (0, 0)))
    else:
        w0, ws = params["w0"], params["ws"]

    # --- Fuse final projection + skip projection into one matmul. ---
    wfs = jnp.concatenate([params["w3"], ws], axis=0)     # (hidden + in_pad, out)
    bfs = params["b3"] + params["bs"]                      # (1, out)

    # Row tile: large tiles amortize per-grid-step overhead and keep the MXU
    # weight-stationary over more LHS rows.  Demo N is chosen so the grid
    # still has >= 4 steps (v7x megacore row split).
    tn = min(tile_rows, n)
    if tn >= 8:
        tn -= tn % 8
    grid = (pl.cdiv(n, tn),)

    args = (
        x,
        w0, params["b0"], params["g0"], params["be0"],
        params["w1"], params["b1"], params["g1"], params["be1"],
        params["w2"], params["b2"], params["g2"], params["be2"],
        wfs, bfs,
    )

    flops = 2 * n * (in_pad * hidden
                     + 2 * hidden * hidden
                     + (hidden + in_pad) * out_size)
    bytes_accessed = sum(int(a.size) * a.dtype.itemsize for a in args) \
        + n * out_size * 4
    cost = pl.CostEstimate(
        flops=flops,
        transcendentals=3 * n,            # one rsqrt per row per LayerNorm
        bytes_accessed=int(bytes_accessed),
    )

    kernel = functools.partial(mlp_block_kernel, hidden_size=hidden)

    def build(single_buffer_weights):
        if single_buffer_weights:
            # Constant-index weights/biases/LN params: single-buffer so they
            # occupy 1x (not 2x) their size in VMEM.
            def resident(a):
                return pl.BlockSpec(a.shape, lambda i: (0, 0),
                                    pipeline_mode=pl.Buffered(1))
        else:
            def resident(a):
                return pl.BlockSpec(a.shape, lambda i: (0, 0))

        in_specs = [pl.BlockSpec((tn, in_pad), lambda i: (i, 0))]
        in_specs += [resident(a) for a in args[1:]]
        out_specs = pl.BlockSpec((tn, out_size), lambda i: (i, 0))

        # VMEM budget: actual requirement + headroom, capped below the chip's
        # capacity (generation-aware) rather than hard-coding 64 MiB.
        wbuf = 1 if single_buffer_weights else 2
        resident_bytes = wbuf * sum(int(a.size) * a.dtype.itemsize
                                    for a in args[1:])
        tile_bytes = 2 * tn * in_pad * 4 + 2 * tn * out_size * 4  # dbl-buffered x/out
        scratch_bytes = 8 * tn * max(hidden, out_size, in_pad) * 4  # temporaries
        required = resident_bytes + tile_bytes + scratch_bytes
        try:
            capacity = pltpu.get_tpu_info().vmem_capacity_bytes
        except Exception:
            capacity = 64 * 1024 * 1024   # conservative: v7x per-TC VMEM
        vmem_limit = int(min(max(2 * required, 16 * 1024 * 1024),
                             capacity - 16 * 1024 * 1024))

        return pl.pallas_call(
            kernel,
            out_shape=jax.ShapeDtypeStruct((n, out_size), jnp.float32),
            grid=grid,
            in_specs=in_specs,
            out_specs=out_specs,
            compiler_params=pltpu.CompilerParams(
                dimension_semantics=("parallel",),   # shard row tiles across TCs
                vmem_limit_bytes=vmem_limit,
            ),
            cost_estimate=cost,
        )

    try:
        out = build(True)(*args)
        return jax.block_until_ready(out)
    except Exception:
        # pipeline_mode=pl.Buffered(1) not supported by this JAX version ->
        # fall back to default double-buffered resident weights (harmless at
        # these sizes).
        out = build(False)(*args)
        return jax.block_until_ready(out)


def init_params(key, input_size, output_size, hidden_size):
    """Deterministic synthetic init (roughly matches PyTorch uniform scaling).

    Linear weights stored pre-transposed as [in, out] in bf16 (MXU operands);
    biases / LN params as [1, dim] f32 for clean broadcasting in the kernel."""
    ks = jax.random.split(key, 10)

    def lin(k, fan_in, fan_out):
        bound = 1.0 / jnp.sqrt(fan_in)
        kw, kb = jax.random.split(k)
        w = jax.random.uniform(kw, (fan_in, fan_out), jnp.float32, -bound, bound)
        b = jax.random.uniform(kb, (1, fan_out), jnp.float32, -bound, bound)
        return w.astype(jnp.bfloat16), b

    p = {}
    p["w0"], p["b0"] = lin(ks[0], input_size, hidden_size)
    p["g0"], p["be0"] = (jnp.ones((1, hidden_size), jnp.float32),
                         jnp.zeros((1, hidden_size), jnp.float32))
    p["w1"], p["b1"] = lin(ks[1], hidden_size, hidden_size)
    p["g1"], p["be1"] = (jnp.ones((1, hidden_size), jnp.float32),
                         jnp.zeros((1, hidden_size), jnp.float32))
    p["w2"], p["b2"] = lin(ks[2], hidden_size, hidden_size)
    p["g2"], p["be2"] = (jnp.ones((1, hidden_size), jnp.float32),
                         jnp.zeros((1, hidden_size), jnp.float32))
    p["w3"], p["b3"] = lin(ks[3], hidden_size, output_size)
    p["ws"], p["bs"] = lin(ks[4], input_size, output_size)
    return p


def reference_forward(x, p):
    """Pure-JAX reference (eval-mode dropout, two-pass LayerNorm) with the
    same bf16-operand / f32-accumulation matmul recipe."""
    def ln_relu(h, g, b):
        m = h.mean(-1, keepdims=True)
        v = ((h - m) ** 2).mean(-1, keepdims=True)
        return jnp.maximum((h - m) / jnp.sqrt(v + LN_EPS) * g + b, 0.0)

    def mm(a, w, b):
        return jnp.dot(a.astype(jnp.bfloat16), w,
                       preferred_element_type=jnp.float32) + b

    h = ln_relu(mm(x, p["w0"], p["b0"]), p["g0"], p["be0"])
    h = ln_relu(mm(h, p["w1"], p["b1"]), p["g1"], p["be1"])
    h = ln_relu(mm(h, p["w2"], p["b2"]), p["g2"], p["be2"])
    y = mm(h, p["w3"], p["b3"])
    return mm(x, p["ws"], p["bs"]) + y


if __name__ == "__main__":
    # Lane/sublane-aligned demo shapes: hidden / output multiples of 128,
    # input padded to 128 inside the wrapper, row tile 256 (multiple of 8),
    # N = 1024 -> 4 grid steps (>= 4 and even, so v7x megacore can split rows).
    INPUT_SIZE, OUTPUT_SIZE, HIDDEN, N = 64, 128, 128, 1024

    key = jax.random.PRNGKey(0)
    kx, kp = jax.random.split(key)
    x = jax.random.normal(kx, (N, INPUT_SIZE), dtype=jnp.float32)
    params = init_params(kp, INPUT_SIZE, OUTPUT_SIZE, HIDDEN)

    out = mlp_block_forward(x, params, tile_rows=256)
    out = jax.block_until_ready(out)

    ref = reference_forward(x, params)
    assert out.shape == (N, OUTPUT_SIZE)
    max_err = float(jnp.max(jnp.abs(out - ref)))
    assert jnp.allclose(out, ref, atol=5e-3, rtol=5e-3), \
        f"mismatch vs reference (max abs err {max_err})"

    print("KERNEL_OK")
</pallas_src>

<mosaic_0001>
module attributes {stable_mosaic.version = 11 : i64} {
  func.func @mlp_block_kernel(%arg0: i32, %arg1: memref<256x128xf32, #tpu.memory_space<vmem>>, %arg2: memref<128x128xbf16, #tpu.memory_space<vmem>>, %arg3: memref<1x128xf32, #tpu.memory_space<vmem>>, %arg4: memref<1x128xf32, #tpu.memory_space<vmem>>, %arg5: memref<1x128xf32, #tpu.memory_space<vmem>>, %arg6: memref<128x128xbf16, #tpu.memory_space<vmem>>, %arg7: memref<1x128xf32, #tpu.memory_space<vmem>>, %arg8: memref<1x128xf32, #tpu.memory_space<vmem>>, %arg9: memref<1x128xf32, #tpu.memory_space<vmem>>, %arg10: memref<128x128xbf16, #tpu.memory_space<vmem>>, %arg11: memref<1x128xf32, #tpu.memory_space<vmem>>, %arg12: memref<1x128xf32, #tpu.memory_space<vmem>>, %arg13: memref<1x128xf32, #tpu.memory_space<vmem>>, %arg14: memref<256x128xbf16, #tpu.memory_space<vmem>>, %arg15: memref<1x128xf32, #tpu.memory_space<vmem>>, %arg16: memref<256x128xf32, #tpu.memory_space<vmem>>) attributes {dimension_semantics = [#tpu.dimension_semantics<parallel>], iteration_bounds = array<i64: 4>, scalar_prefetch = 0 : i64, scratch_operands = 0 : i64, tpu.core_type = #tpu.core_type<tc>, window_params = [{transform_indices = @transform_0, window_bounds = array<i64: 256, 128>}, {pipeline_mode = #tpu.pipeline_mode<synchronous>, transform_indices = @transform_1, window_bounds = array<i64: 128, 128>}, {pipeline_mode = #tpu.pipeline_mode<synchronous>, transform_indices = @transform_2, window_bounds = array<i64: 1, 128>}, {pipeline_mode = #tpu.pipeline_mode<synchronous>, transform_indices = @transform_3, window_bounds = array<i64: 1, 128>}, {pipeline_mode = #tpu.pipeline_mode<synchronous>, transform_indices = @transform_4, window_bounds = array<i64: 1, 128>}, {pipeline_mode = #tpu.pipeline_mode<synchronous>, transform_indices = @transform_5, window_bounds = array<i64: 128, 128>}, {pipeline_mode = #tpu.pipeline_mode<synchronous>, transform_indices = @transform_6, window_bounds = array<i64: 1, 128>}, {pipeline_mode = #tpu.pipeline_mode<synchronous>, transform_indices = @transform_7, window_bounds = array<i64: 1, 128>}, {pipeline_mode = #tpu.pipeline_mode<synchronous>, transform_indices = @transform_8, window_bounds = array<i64: 1, 128>}, {pipeline_mode = #tpu.pipeline_mode<synchronous>, transform_indices = @transform_9, window_bounds = array<i64: 128, 128>}, {pipeline_mode = #tpu.pipeline_mode<synchronous>, transform_indices = @transform_10, window_bounds = array<i64: 1, 128>}, {pipeline_mode = #tpu.pipeline_mode<synchronous>, transform_indices = @transform_11, window_bounds = array<i64: 1, 128>}, {pipeline_mode = #tpu.pipeline_mode<synchronous>, transform_indices = @transform_12, window_bounds = array<i64: 1, 128>}, {pipeline_mode = #tpu.pipeline_mode<synchronous>, transform_indices = @transform_13, window_bounds = array<i64: 256, 128>}, {pipeline_mode = #tpu.pipeline_mode<synchronous>, transform_indices = @transform_14, window_bounds = array<i64: 1, 128>}, {transform_indices = @transform_15, window_bounds = array<i64: 256, 128>}]} {
    %c0 = arith.constant 0 : index
    %c0_0 = arith.constant 0 : index
    %0 = vector.load %arg1[%c0, %c0_0] : memref<256x128xf32, #tpu.memory_space<vmem>>, vector<256x128xf32>
    %1 = arith.truncf %0 : vector<256x128xf32> to vector<256x128xbf16>
    %c0_1 = arith.constant 0 : index
    %c0_2 = arith.constant 0 : index
    %2 = vector.load %arg2[%c0_1, %c0_2] : memref<128x128xbf16, #tpu.memory_space<vmem>>, vector<128x128xbf16>
    %cst = arith.constant dense<0.000000e+00> : vector<256x128xf32>
    %3 = tpu.matmul %1, %2, %cst {dimension_numbers = #tpu.dot_dimension_numbers<[1], [0], [0], [1], [0, 0, 1, 1], [], []>} : vector<256x128xbf16>, vector<128x128xbf16>, vector<256x128xf32> -> vector<256x128xf32>
    %c0_3 = arith.constant 0 : index
    %c0_4 = arith.constant 0 : index
    %4 = vector.load %arg3[%c0_3, %c0_4] : memref<1x128xf32, #tpu.memory_space<vmem>>, vector<1x128xf32>
    %5 = vector.broadcast %4 : vector<1x128xf32> to vector<256x128xf32>
    %6 = arith.addf %3, %5 : vector<256x128xf32>
    %c0_5 = arith.constant 0 : index
    %c0_6 = arith.constant 0 : index
    %7 = vector.load %arg4[%c0_5, %c0_6] : memref<1x128xf32, #tpu.memory_space<vmem>>, vector<1x128xf32>
    %c0_7 = arith.constant 0 : index
    %c0_8 = arith.constant 0 : index
    %8 = vector.load %arg5[%c0_7, %c0_8] : memref<1x128xf32, #tpu.memory_space<vmem>>, vector<1x128xf32>
    %cst_9 = arith.constant dense<0.000000e+00> : vector<256xf32>
    %9 = vector.multi_reduction <add>, %6, %cst_9 [1] : vector<256x128xf32> to vector<256xf32>
    %10 = vector.shape_cast %9 : vector<256xf32> to vector<256x1xf32>
    %11 = arith.mulf %6, %6 : vector<256x128xf32>
    %cst_10 = arith.constant dense<0.000000e+00> : vector<256xf32>
    %12 = vector.multi_reduction <add>, %11, %cst_10 [1] : vector<256x128xf32> to vector<256xf32>
    %13 = vector.shape_cast %12 : vector<256xf32> to vector<256x1xf32>
    %cst_11 = arith.constant 7.812500e-03 : f32
    %14 = vector.broadcast %cst_11 : f32 to vector<256x1xf32>
    %15 = arith.mulf %10, %14 : vector<256x1xf32>
    %cst_12 = arith.constant 7.812500e-03 : f32
    %16 = vector.broadcast %cst_12 : f32 to vector<256x1xf32>
    %17 = arith.mulf %13, %16 : vector<256x1xf32>
    %18 = arith.mulf %15, %15 : vector<256x1xf32>
    %19 = arith.subf %17, %18 : vector<256x1xf32>
    %cst_13 = arith.constant 0.000000e+00 : f32
    %20 = vector.broadcast %cst_13 : f32 to vector<256x1xf32>
    %21 = arith.maximumf %19, %20 : vector<256x1xf32>
    %22 = vector.broadcast %15 : vector<256x1xf32> to vector<256x128xf32>
    %23 = arith.subf %6, %22 : vector<256x128xf32>
    %cst_14 = arith.constant 9.99999974E-6 : f32
    %24 = vector.broadcast %cst_14 : f32 to vector<256x1xf32>
    %25 = arith.addf %21, %24 : vector<256x1xf32>
    %26 = math.rsqrt %25 : vector<256x1xf32>
    %27 = vector.broadcast %26 : vector<256x1xf32> to vector<256x128xf32>
    %28 = arith.mulf %23, %27 : vector<256x128xf32>
    %29 = vector.broadcast %7 : vector<1x128xf32> to vector<256x128xf32>
    %30 = arith.mulf %28, %29 : vector<256x128xf32>
    %31 = vector.broadcast %8 : vector<1x128xf32> to vector<256x128xf32>
    %32 = arith.addf %30, %31 : vector<256x128xf32>
    %cst_15 = arith.constant 0.000000e+00 : f32
    %33 = vector.broadcast %cst_15 : f32 to vector<256x128xf32>
    %34 = arith.maximumf %32, %33 : vector<256x128xf32>
    %35 = arith.truncf %34 : vector<256x128xf32> to vector<256x128xbf16>
    %c0_16 = arith.constant 0 : index
    %c0_17 = arith.constant 0 : index
    %36 = vector.load %arg6[%c0_16, %c0_17] : memref<128x128xbf16, #tpu.memory_space<vmem>>, vector<128x128xbf16>
    %cst_18 = arith.constant dense<0.000000e+00> : vector<256x128xf32>
    %37 = tpu.matmul %35, %36, %cst_18 {dimension_numbers = #tpu.dot_dimension_numbers<[1], [0], [0], [1], [0, 0, 1, 1], [], []>} : vector<256x128xbf16>, vector<128x128xbf16>, vector<256x128xf32> -> vector<256x128xf32>
    %c0_19 = arith.constant 0 : index
    %c0_20 = arith.constant 0 : index
    %38 = vector.load %arg7[%c0_19, %c0_20] : memref<1x128xf32, #tpu.memory_space<vmem>>, vector<1x128xf32>
    %39 = vector.broadcast %38 : vector<1x128xf32> to vector<256x128xf32>
    %40 = arith.addf %37, %39 : vector<256x128xf32>
    %c0_21 = arith.constant 0 : index
    %c0_22 = arith.constant 0 : index
    %41 = vector.load %arg8[%c0_21, %c0_22] : memref<1x128xf32, #tpu.memory_space<vmem>>, vector<1x128xf32>
    %c0_23 = arith.constant 0 : index
    %c0_24 = arith.constant 0 : index
    %42 = vector.load %arg9[%c0_23, %c0_24] : memref<1x128xf32, #tpu.memory_space<vmem>>, vector<1x128xf32>
    %cst_25 = arith.constant dense<0.000000e+00> : vector<256xf32>
    %43 = vector.multi_reduction <add>, %40, %cst_25 [1] : vector<256x128xf32> to vector<256xf32>
    %44 = vector.shape_cast %43 : vector<256xf32> to vector<256x1xf32>
    %45 = arith.mulf %40, %40 : vector<256x128xf32>
    %cst_26 = arith.constant dense<0.000000e+00> : vector<256xf32>
    %46 = vector.multi_reduction <add>, %45, %cst_26 [1] : vector<256x128xf32> to vector<256xf32>
    %47 = vector.shape_cast %46 : vector<256xf32> to vector<256x1xf32>
    %cst_27 = arith.constant 7.812500e-03 : f32
    %48 = vector.broadcast %cst_27 : f32 to vector<256x1xf32>
    %49 = arith.mulf %44, %48 : vector<256x1xf32>
    %cst_28 = arith.constant 7.812500e-03 : f32
    %50 = vector.broadcast %cst_28 : f32 to vector<256x1xf32>
    %51 = arith.mulf %47, %50 : vector<256x1xf32>
    %52 = arith.mulf %49, %49 : vector<256x1xf32>
    %53 = arith.subf %51, %52 : vector<256x1xf32>
    %cst_29 = arith.constant 0.000000e+00 : f32
    %54 = vector.broadcast %cst_29 : f32 to vector<256x1xf32>
    %55 = arith.maximumf %53, %54 : vector<256x1xf32>
    %56 = vector.broadcast %49 : vector<256x1xf32> to vector<256x128xf32>
    %57 = arith.subf %40, %56 : vector<256x128xf32>
    %cst_30 = arith.constant 9.99999974E-6 : f32
    %58 = vector.broadcast %cst_30 : f32 to vector<256x1xf32>
    %59 = arith.addf %55, %58 : vector<256x1xf32>
    %60 = math.rsqrt %59 : vector<256x1xf32>
    %61 = vector.broadcast %60 : vector<256x1xf32> to vector<256x128xf32>
    %62 = arith.mulf %57, %61 : vector<256x128xf32>
    %63 = vector.broadcast %41 : vector<1x128xf32> to vector<256x128xf32>
    %64 = arith.mulf %62, %63 : vector<256x128xf32>
    %65 = vector.broadcast %42 : vector<1x128xf32> to vector<256x128xf32>
    %66 = arith.addf %64, %65 : vector<256x128xf32>
    %cst_31 = arith.constant 0.000000e+00 : f32
    %67 = vector.broadcast %cst_31 : f32 to vector<256x128xf32>
    %68 = arith.maximumf %66, %67 : vector<256x128xf32>
    %69 = arith.truncf %68 : vector<256x128xf32> to vector<256x128xbf16>
    %c0_32 = arith.constant 0 : index
    %c0_33 = arith.constant 0 : index
    %70 = vector.load %arg10[%c0_32, %c0_33] : memref<128x128xbf16, #tpu.memory_space<vmem>>, vector<128x128xbf16>
    %cst_34 = arith.constant dense<0.000000e+00> : vector<256x128xf32>
    %71 = tpu.matmul %69, %70, %cst_34 {dimension_numbers = #tpu.dot_dimension_numbers<[1], [0], [0], [1], [0, 0, 1, 1], [], []>} : vector<256x128xbf16>, vector<128x128xbf16>, vector<256x128xf32> -> vector<256x128xf32>
    %c0_35 = arith.constant 0 : index
    %c0_36 = arith.constant 0 : index
    %72 = vector.load %arg11[%c0_35, %c0_36] : memref<1x128xf32, #tpu.memory_space<vmem>>, vector<1x128xf32>
    %73 = vector.broadcast %72 : vector<1x128xf32> to vector<256x128xf32>
    %74 = arith.addf %71, %73 : vector<256x128xf32>
    %c0_37 = arith.constant 0 : index
    %c0_38 = arith.constant 0 : index
    %75 = vector.load %arg12[%c0_37, %c0_38] : memref<1x128xf32, #tpu.memory_space<vmem>>, vector<1x128xf32>
    %c0_39 = arith.constant 0 : index
    %c0_40 = arith.constant 0 : index
    %76 = vector.load %arg13[%c0_39, %c0_40] : memref<1x128xf32, #tpu.memory_space<vmem>>, vector<1x128xf32>
    %cst_41 = arith.constant dense<0.000000e+00> : vector<256xf32>
    %77 = vector.multi_reduction <add>, %74, %cst_41 [1] : vector<256x128xf32> to vector<256xf32>
    %78 = vector.shape_cast %77 : vector<256xf32> to vector<256x1xf32>
    %79 = arith.mulf %74, %74 : vector<256x128xf32>
    %cst_42 = arith.constant dense<0.000000e+00> : vector<256xf32>
    %80 = vector.multi_reduction <add>, %79, %cst_42 [1] : vector<256x128xf32> to vector<256xf32>
    %81 = vector.shape_cast %80 : vector<256xf32> to vector<256x1xf32>
    %cst_43 = arith.constant 7.812500e-03 : f32
    %82 = vector.broadcast %cst_43 : f32 to vector<256x1xf32>
    %83 = arith.mulf %78, %82 : vector<256x1xf32>
    %cst_44 = arith.constant 7.812500e-03 : f32
    %84 = vector.broadcast %cst_44 : f32 to vector<256x1xf32>
    %85 = arith.mulf %81, %84 : vector<256x1xf32>
    %86 = arith.mulf %83, %83 : vector<256x1xf32>
    %87 = arith.subf %85, %86 : vector<256x1xf32>
    %cst_45 = arith.constant 0.000000e+00 : f32
    %88 = vector.broadcast %cst_45 : f32 to vector<256x1xf32>
    %89 = arith.maximumf %87, %88 : vector<256x1xf32>
    %90 = vector.broadcast %83 : vector<256x1xf32> to vector<256x128xf32>
    %91 = arith.subf %74, %90 : vector<256x128xf32>
    %cst_46 = arith.constant 9.99999974E-6 : f32
    %92 = vector.broadcast %cst_46 : f32 to vector<256x1xf32>
    %93 = arith.addf %89, %92 : vector<256x1xf32>
    %94 = math.rsqrt %93 : vector<256x1xf32>
    %95 = vector.broadcast %94 : vector<256x1xf32> to vector<256x128xf32>
    %96 = arith.mulf %91, %95 : vector<256x128xf32>
    %97 = vector.broadcast %75 : vector<1x128xf32> to vector<256x128xf32>
    %98 = arith.mulf %96, %97 : vector<256x128xf32>
    %99 = vector.broadcast %76 : vector<1x128xf32> to vector<256x128xf32>
    %100 = arith.addf %98, %99 : vector<256x128xf32>
    %cst_47 = arith.constant 0.000000e+00 : f32
    %101 = vector.broadcast %cst_47 : f32 to vector<256x128xf32>
    %102 = arith.maximumf %100, %101 : vector<256x128xf32>
    %103 = arith.truncf %102 : vector<256x128xf32> to vector<256x128xbf16>
    %104 = tpu.concatenate %103, %1 in 1 : vector<256x128xbf16>, vector<256x128xbf16> -> vector<256x256xbf16>
    %c0_48 = arith.constant 0 : index
    %c0_49 = arith.constant 0 : index
    %105 = vector.load %arg14[%c0_48, %c0_49] : memref<256x128xbf16, #tpu.memory_space<vmem>>, vector<256x128xbf16>
    %cst_50 = arith.constant dense<0.000000e+00> : vector<256x128xf32>
    %106 = tpu.matmul %104, %105, %cst_50 {dimension_numbers = #tpu.dot_dimension_numbers<[1], [0], [0], [1], [0, 0, 1, 1], [], []>} : vector<256x256xbf16>, vector<256x128xbf16>, vector<256x128xf32> -> vector<256x128xf32>
    %c0_51 = arith.constant 0 : index
    %c0_52 = arith.constant 0 : index
    %107 = vector.load %arg15[%c0_51, %c0_52] : memref<1x128xf32, #tpu.memory_space<vmem>>, vector<1x128xf32>
    %108 = vector.broadcast %107 : vector<1x128xf32> to vector<256x128xf32>
    %109 = arith.addf %106, %108 : vector<256x128xf32>
    %c0_53 = arith.constant 0 : index
    %c0_54 = arith.constant 0 : index
    %110 = vector.load %arg16[%c0_53, %c0_54] : memref<256x128xf32, #tpu.memory_space<vmem>>, vector<256x128xf32>
    tpu.vector_store %arg16[%c0_53, %c0_54], %109 {strides = array<i32>} : memref<256x128xf32, #tpu.memory_space<vmem>>, vector<256x128xf32>,
    return
  }
  func.func @transform_0(%arg0: i32) -> (i32, i32) {
    %c0_i32 = arith.constant 0 : i32
    %c0_i32_0 = arith.constant 0 : i32
    return %arg0, %c0_i32 : i32, i32
  }
  func.func @transform_1(%arg0: i32) -> (i32, i32) {
    %c0_i32 = arith.constant 0 : i32
    %c0_i32_0 = arith.constant 0 : i32
    %c0_i32_1 = arith.constant 0 : i32
    return %c0_i32, %c0_i32_0 : i32, i32
  }
  func.func @transform_2(%arg0: i32) -> (i32, i32) {
    %c0_i32 = arith.constant 0 : i32
    %c0_i32_0 = arith.constant 0 : i32
    %c0_i32_1 = arith.constant 0 : i32
    return %c0_i32, %c0_i32_0 : i32, i32
  }
  func.func @transform_3(%arg0: i32) -> (i32, i32) {
    %c0_i32 = arith.constant 0 : i32
    %c0_i32_0 = arith.constant 0 : i32
    %c0_i32_1 = arith.constant 0 : i32
    return %c0_i32, %c0_i32_0 : i32, i32
  }
  func.func @transform_4(%arg0: i32) -> (i32, i32) {
    %c0_i32 = arith.constant 0 : i32
    %c0_i32_0 = arith.constant 0 : i32
    %c0_i32_1 = arith.constant 0 : i32
    return %c0_i32, %c0_i32_0 : i32, i32
  }
  func.func @transform_5(%arg0: i32) -> (i32, i32) {
    %c0_i32 = arith.constant 0 : i32
    %c0_i32_0 = arith.constant 0 : i32
    %c0_i32_1 = arith.constant 0 : i32
    return %c0_i32, %c0_i32_0 : i32, i32
  }
  func.func @transform_6(%arg0: i32) -> (i32, i32) {
    %c0_i32 = arith.constant 0 : i32
    %c0_i32_0 = arith.constant 0 : i32
    %c0_i32_1 = arith.constant 0 : i32
    return %c0_i32, %c0_i32_0 : i32, i32
  }
  func.func @transform_7(%arg0: i32) -> (i32, i32) {
    %c0_i32 = arith.constant 0 : i32
    %c0_i32_0 = arith.constant 0 : i32
    %c0_i32_1 = arith.constant 0 : i32
    return %c0_i32, %c0_i32_0 : i32, i32
  }
  func.func @transform_8(%arg0: i32) -> (i32, i32) {
    %c0_i32 = arith.constant 0 : i32
    %c0_i32_0 = arith.constant 0 : i32
    %c0_i32_1 = arith.constant 0 : i32
    return %c0_i32, %c0_i32_0 : i32, i32
  }
  func.func @transform_9(%arg0: i32) -> (i32, i32) {
    %c0_i32 = arith.constant 0 : i32
    %c0_i32_0 = arith.constant 0 : i32
    %c0_i32_1 = arith.constant 0 : i32
    return %c0_i32, %c0_i32_0 : i32, i32
  }
  func.func @transform_10(%arg0: i32) -> (i32, i32) {
    %c0_i32 = arith.constant 0 : i32
    %c0_i32_0 = arith.constant 0 : i32
    %c0_i32_1 = arith.constant 0 : i32
    return %c0_i32, %c0_i32_0 : i32, i32
  }
  func.func @transform_11(%arg0: i32) -> (i32, i32) {
    %c0_i32 = arith.constant 0 : i32
    %c0_i32_0 = arith.constant 0 : i32
    %c0_i32_1 = arith.constant 0 : i32
    return %c0_i32, %c0_i32_0 : i32, i32
  }
  func.func @transform_12(%arg0: i32) -> (i32, i32) {
    %c0_i32 = arith.constant 0 : i32
    %c0_i32_0 = arith.constant 0 : i32
    %c0_i32_1 = arith.constant 0 : i32
    return %c0_i32, %c0_i32_0 : i32, i32
  }
  func.func @transform_13(%arg0: i32) -> (i32, i32) {
    %c0_i32 = arith.constant 0 : i32
    %c0_i32_0 = arith.constant 0 : i32
    %c0_i32_1 = arith.constant 0 : i32
    return %c0_i32, %c0_i32_0 : i32, i32
  }
  func.func @transform_14(%arg0: i32) -> (i32, i32) {
    %c0_i32 = arith.constant 0 : i32
    %c0_i32_0 = arith.constant 0 : i32
    %c0_i32_1 = arith.constant 0 : i32
    return %c0_i32, %c0_i32_0 : i32, i32
  }
  func.func @transform_15(%arg0: i32) -> (i32, i32) {
    %c0_i32 = arith.constant 0 : i32
    %c0_i32_0 = arith.constant 0 : i32
    return %arg0, %c0_i32 : i32, i32
  }
}

module attributes {stable_mosaic.version = 11 : i64} {
  func.func @mlp_block_kernel(%arg0: i32, %arg1: memref<256x128xf32, #tpu.memory_space<vmem>>, %arg2: memref<128x128xbf16, #tpu.memory_space<vmem>>, %arg3: memref<1x128xf32, #tpu.memory_space<vmem>>, %arg4: memref<1x128xf32, #tpu.memory_space<vmem>>, %arg5: memref<1x128xf32, #tpu.memory_space<vmem>>, %arg6: memref<128x128xbf16, #tpu.memory_space<vmem>>, %arg7: memref<1x128xf32, #tpu.memory_space<vmem>>, %arg8: memref<1x128xf32, #tpu.memory_space<vmem>>, %arg9: memref<1x128xf32, #tpu.memory_space<vmem>>, %arg10: memref<128x128xbf16, #tpu.memory_space<vmem>>, %arg11: memref<1x128xf32, #tpu.memory_space<vmem>>, %arg12: memref<1x128xf32, #tpu.memory_space<vmem>>, %arg13: memref<1x128xf32, #tpu.memory_space<vmem>>, %arg14: memref<256x128xbf16, #tpu.memory_space<vmem>>, %arg15: memref<1x128xf32, #tpu.memory_space<vmem>>, %arg16: memref<256x128xf32, #tpu.memory_space<vmem>>) attributes {dimension_semantics = [#tpu.dimension_semantics<parallel>], iteration_bounds = array<i64: 4>, scalar_prefetch = 0 : i64, scratch_operands = 0 : i64, tpu.core_type = #tpu.core_type<tc>, window_params = [{transform_indices = @transform_0, window_bounds = array<i64: 256, 128>}, {pipeline_mode = #tpu.pipeline_mode<synchronous>, transform_indices = @transform_1, window_bounds = array<i64: 128, 128>}, {pipeline_mode = #tpu.pipeline_mode<synchronous>, transform_indices = @transform_2, window_bounds = array<i64: 1, 128>}, {pipeline_mode = #tpu.pipeline_mode<synchronous>, transform_indices = @transform_3, window_bounds = array<i64: 1, 128>}, {pipeline_mode = #tpu.pipeline_mode<synchronous>, transform_indices = @transform_4, window_bounds = array<i64: 1, 128>}, {pipeline_mode = #tpu.pipeline_mode<synchronous>, transform_indices = @transform_5, window_bounds = array<i64: 128, 128>}, {pipeline_mode = #tpu.pipeline_mode<synchronous>, transform_indices = @transform_6, window_bounds = array<i64: 1, 128>}, {pipeline_mode = #tpu.pipeline_mode<synchronous>, transform_indices = @transform_7, window_bounds = array<i64: 1, 128>}, {pipeline_mode = #tpu.pipeline_mode<synchronous>, transform_indices = @transform_8, window_bounds = array<i64: 1, 128>}, {pipeline_mode = #tpu.pipeline_mode<synchronous>, transform_indices = @transform_9, window_bounds = array<i64: 128, 128>}, {pipeline_mode = #tpu.pipeline_mode<synchronous>, transform_indices = @transform_10, window_bounds = array<i64: 1, 128>}, {pipeline_mode = #tpu.pipeline_mode<synchronous>, transform_indices = @transform_11, window_bounds = array<i64: 1, 128>}, {pipeline_mode = #tpu.pipeline_mode<synchronous>, transform_indices = @transform_12, window_bounds = array<i64: 1, 128>}, {pipeline_mode = #tpu.pipeline_mode<synchronous>, transform_indices = @transform_13, window_bounds = array<i64: 256, 128>}, {pipeline_mode = #tpu.pipeline_mode<synchronous>, transform_indices = @transform_14, window_bounds = array<i64: 1, 128>}, {transform_indices = @transform_15, window_bounds = array<i64: 256, 128>}]} {
    %c0 = arith.constant 0 : index
    %c0_0 = arith.constant 0 : index
    %0 = vector.load %arg1[%c0, %c0_0] : memref<256x128xf32, #tpu.memory_space<vmem>>, vector<256x128xf32>
    %1 = arith.truncf %0 : vector<256x128xf32> to vector<256x128xbf16>
    %c0_1 = arith.constant 0 : index
    %c0_2 = arith.constant 0 : index
    %2 = vector.load %arg2[%c0_1, %c0_2] : memref<128x128xbf16, #tpu.memory_space<vmem>>, vector<128x128xbf16>
    %cst = arith.constant dense<0.000000e+00> : vector<256x128xf32>
    %3 = tpu.matmul %1, %2, %cst {dimension_numbers = #tpu.dot_dimension_numbers<[1], [0], [0], [1], [0, 0, 1, 1], [], []>} : vector<256x128xbf16>, vector<128x128xbf16>, vector<256x128xf32> -> vector<256x128xf32>
    %c0_3 = arith.constant 0 : index
    %c0_4 = arith.constant 0 : index
    %4 = vector.load %arg3[%c0_3, %c0_4] : memref<1x128xf32, #tpu.memory_space<vmem>>, vector<1x128xf32>
    %5 = vector.broadcast %4 : vector<1x128xf32> to vector<256x128xf32>
    %6 = arith.addf %3, %5 : vector<256x128xf32>
    %c0_5 = arith.constant 0 : index
    %c0_6 = arith.constant 0 : index
    %7 = vector.load %arg4[%c0_5, %c0_6] : memref<1x128xf32, #tpu.memory_space<vmem>>, vector<1x128xf32>
    %c0_7 = arith.constant 0 : index
    %c0_8 = arith.constant 0 : index
    %8 = vector.load %arg5[%c0_7, %c0_8] : memref<1x128xf32, #tpu.memory_space<vmem>>, vector<1x128xf32>
    %cst_9 = arith.constant dense<0.000000e+00> : vector<256xf32>
    %9 = vector.multi_reduction <add>, %6, %cst_9 [1] : vector<256x128xf32> to vector<256xf32>
    %10 = vector.shape_cast %9 : vector<256xf32> to vector<256x1xf32>
    %11 = arith.mulf %6, %6 : vector<256x128xf32>
    %cst_10 = arith.constant dense<0.000000e+00> : vector<256xf32>
    %12 = vector.multi_reduction <add>, %11, %cst_10 [1] : vector<256x128xf32> to vector<256xf32>
    %13 = vector.shape_cast %12 : vector<256xf32> to vector<256x1xf32>
    %cst_11 = arith.constant 7.812500e-03 : f32
    %14 = vector.broadcast %cst_11 : f32 to vector<256x1xf32>
    %15 = arith.mulf %10, %14 : vector<256x1xf32>
    %cst_12 = arith.constant 7.812500e-03 : f32
    %16 = vector.broadcast %cst_12 : f32 to vector<256x1xf32>
    %17 = arith.mulf %13, %16 : vector<256x1xf32>
    %18 = arith.mulf %15, %15 : vector<256x1xf32>
    %19 = arith.subf %17, %18 : vector<256x1xf32>
    %cst_13 = arith.constant 0.000000e+00 : f32
    %20 = vector.broadcast %cst_13 : f32 to vector<256x1xf32>
    %21 = arith.maximumf %19, %20 : vector<256x1xf32>
    %22 = vector.broadcast %15 : vector<256x1xf32> to vector<256x128xf32>
    %23 = arith.subf %6, %22 : vector<256x128xf32>
    %cst_14 = arith.constant 9.99999974E-6 : f32
    %24 = vector.broadcast %cst_14 : f32 to vector<256x1xf32>
    %25 = arith.addf %21, %24 : vector<256x1xf32>
    %26 = math.rsqrt %25 : vector<256x1xf32>
    %27 = vector.broadcast %26 : vector<256x1xf32> to vector<256x128xf32>
    %28 = arith.mulf %23, %27 : vector<256x128xf32>
    %29 = vector.broadcast %7 : vector<1x128xf32> to vector<256x128xf32>
    %30 = arith.mulf %28, %29 : vector<256x128xf32>
    %31 = vector.broadcast %8 : vector<1x128xf32> to vector<256x128xf32>
    %32 = arith.addf %30, %31 : vector<256x128xf32>
    %cst_15 = arith.constant 0.000000e+00 : f32
    %33 = vector.broadcast %cst_15 : f32 to vector<256x128xf32>
    %34 = arith.maximumf %32, %33 : vector<256x128xf32>
    %35 = arith.truncf %34 : vector<256x128xf32> to vector<256x128xbf16>
    %c0_16 = arith.constant 0 : index
    %c0_17 = arith.constant 0 : index
    %36 = vector.load %arg6[%c0_16, %c0_17] : memref<128x128xbf16, #tpu.memory_space<vmem>>, vector<128x128xbf16>
    %cst_18 = arith.constant dense<0.000000e+00> : vector<256x128xf32>
    %37 = tpu.matmul %35, %36, %cst_18 {dimension_numbers = #tpu.dot_dimension_numbers<[1], [0], [0], [1], [0, 0, 1, 1], [], []>} : vector<256x128xbf16>, vector<128x128xbf16>, vector<256x128xf32> -> vector<256x128xf32>
    %c0_19 = arith.constant 0 : index
    %c0_20 = arith.constant 0 : index
    %38 = vector.load %arg7[%c0_19, %c0_20] : memref<1x128xf32, #tpu.memory_space<vmem>>, vector<1x128xf32>
    %39 = vector.broadcast %38 : vector<1x128xf32> to vector<256x128xf32>
    %40 = arith.addf %37, %39 : vector<256x128xf32>
    %c0_21 = arith.constant 0 : index
    %c0_22 = arith.constant 0 : index
    %41 = vector.load %arg8[%c0_21, %c0_22] : memref<1x128xf32, #tpu.memory_space<vmem>>, vector<1x128xf32>
    %c0_23 = arith.constant 0 : index
    %c0_24 = arith.constant 0 : index
    %42 = vector.load %arg9[%c0_23, %c0_24] : memref<1x128xf32, #tpu.memory_space<vmem>>, vector<1x128xf32>
    %cst_25 = arith.constant dense<0.000000e+00> : vector<256xf32>
    %43 = vector.multi_reduction <add>, %40, %cst_25 [1] : vector<256x128xf32> to vector<256xf32>
    %44 = vector.shape_cast %43 : vector<256xf32> to vector<256x1xf32>
    %45 = arith.mulf %40, %40 : vector<256x128xf32>
    %cst_26 = arith.constant dense<0.000000e+00> : vector<256xf32>
    %46 = vector.multi_reduction <add>, %45, %cst_26 [1] : vector<256x128xf32> to vector<256xf32>
    %47 = vector.shape_cast %46 : vector<256xf32> to vector<256x1xf32>
    %cst_27 = arith.constant 7.812500e-03 : f32
    %48 = vector.broadcast %cst_27 : f32 to vector<256x1xf32>
    %49 = arith.mulf %44, %48 : vector<256x1xf32>
    %cst_28 = arith.constant 7.812500e-03 : f32
    %50 = vector.broadcast %cst_28 : f32 to vector<256x1xf32>
    %51 = arith.mulf %47, %50 : vector<256x1xf32>
    %52 = arith.mulf %49, %49 : vector<256x1xf32>
    %53 = arith.subf %51, %52 : vector<256x1xf32>
    %cst_29 = arith.constant 0.000000e+00 : f32
    %54 = vector.broadcast %cst_29 : f32 to vector<256x1xf32>
    %55 = arith.maximumf %53, %54 : vector<256x1xf32>
    %56 = vector.broadcast %49 : vector<256x1xf32> to vector<256x128xf32>
    %57 = arith.subf %40, %56 : vector<256x128xf32>
    %cst_30 = arith.constant 9.99999974E-6 : f32
    %58 = vector.broadcast %cst_30 : f32 to vector<256x1xf32>
    %59 = arith.addf %55, %58 : vector<256x1xf32>
    %60 = math.rsqrt %59 : vector<256x1xf32>
    %61 = vector.broadcast %60 : vector<256x1xf32> to vector<256x128xf32>
    %62 = arith.mulf %57, %61 : vector<256x128xf32>
    %63 = vector.broadcast %41 : vector<1x128xf32> to vector<256x128xf32>
    %64 = arith.mulf %62, %63 : vector<256x128xf32>
    %65 = vector.broadcast %42 : vector<1x128xf32> to vector<256x128xf32>
    %66 = arith.addf %64, %65 : vector<256x128xf32>
    %cst_31 = arith.constant 0.000000e+00 : f32
    %67 = vector.broadcast %cst_31 : f32 to vector<256x128xf32>
    %68 = arith.maximumf %66, %67 : vector<256x128xf32>
    %69 = arith.truncf %68 : vector<256x128xf32> to vector<256x128xbf16>
    %c0_32 = arith.constant 0 : index
    %c0_33 = arith.constant 0 : index
    %70 = vector.load %arg10[%c0_32, %c0_33] : memref<128x128xbf16, #tpu.memory_space<vmem>>, vector<128x128xbf16>
    %cst_34 = arith.constant dense<0.000000e+00> : vector<256x128xf32>
    %71 = tpu.matmul %69, %70, %cst_34 {dimension_numbers = #tpu.dot_dimension_numbers<[1], [0], [0], [1], [0, 0, 1, 1], [], []>} : vector<256x128xbf16>, vector<128x128xbf16>, vector<256x128xf32> -> vector<256x128xf32>
    %c0_35 = arith.constant 0 : index
    %c0_36 = arith.constant 0 : index
    %72 = vector.load %arg11[%c0_35, %c0_36] : memref<1x128xf32, #tpu.memory_space<vmem>>, vector<1x128xf32>
    %73 = vector.broadcast %72 : vector<1x128xf32> to vector<256x128xf32>
    %74 = arith.addf %71, %73 : vector<256x128xf32>
    %c0_37 = arith.constant 0 : index
    %c0_38 = arith.constant 0 : index
    %75 = vector.load %arg12[%c0_37, %c0_38] : memref<1x128xf32, #tpu.memory_space<vmem>>, vector<1x128xf32>
    %c0_39 = arith.constant 0 : index
    %c0_40 = arith.constant 0 : index
    %76 = vector.load %arg13[%c0_39, %c0_40] : memref<1x128xf32, #tpu.memory_space<vmem>>, vector<1x128xf32>
    %cst_41 = arith.constant dense<0.000000e+00> : vector<256xf32>
    %77 = vector.multi_reduction <add>, %74, %cst_41 [1] : vector<256x128xf32> to vector<256xf32>
    %78 = vector.shape_cast %77 : vector<256xf32> to vector<256x1xf32>
    %79 = arith.mulf %74, %74 : vector<256x128xf32>
    %cst_42 = arith.constant dense<0.000000e+00> : vector<256xf32>
    %80 = vector.multi_reduction <add>, %79, %cst_42 [1] : vector<256x128xf32> to vector<256xf32>
    %81 = vector.shape_cast %80 : vector<256xf32> to vector<256x1xf32>
    %cst_43 = arith.constant 7.812500e-03 : f32
    %82 = vector.broadcast %cst_43 : f32 to vector<256x1xf32>
    %83 = arith.mulf %78, %82 : vector<256x1xf32>
    %cst_44 = arith.constant 7.812500e-03 : f32
    %84 = vector.broadcast %cst_44 : f32 to vector<256x1xf32>
    %85 = arith.mulf %81, %84 : vector<256x1xf32>
    %86 = arith.mulf %83, %83 : vector<256x1xf32>
    %87 = arith.subf %85, %86 : vector<256x1xf32>
    %cst_45 = arith.constant 0.000000e+00 : f32
    %88 = vector.broadcast %cst_45 : f32 to vector<256x1xf32>
    %89 = arith.maximumf %87, %88 : vector<256x1xf32>
    %90 = vector.broadcast %83 : vector<256x1xf32> to vector<256x128xf32>
    %91 = arith.subf %74, %90 : vector<256x128xf32>
    %cst_46 = arith.constant 9.99999974E-6 : f32
    %92 = vector.broadcast %cst_46 : f32 to vector<256x1xf32>
    %93 = arith.addf %89, %92 : vector<256x1xf32>
    %94 = math.rsqrt %93 : vector<256x1xf32>
    %95 = vector.broadcast %94 : vector<256x1xf32> to vector<256x128xf32>
    %96 = arith.mulf %91, %95 : vector<256x128xf32>
    %97 = vector.broadcast %75 : vector<1x128xf32> to vector<256x128xf32>
    %98 = arith.mulf %96, %97 : vector<256x128xf32>
    %99 = vector.broadcast %76 : vector<1x128xf32> to vector<256x128xf32>
    %100 = arith.addf %98, %99 : vector<256x128xf32>
    %cst_47 = arith.constant 0.000000e+00 : f32
    %101 = vector.broadcast %cst_47 : f32 to vector<256x128xf32>
    %102 = arith.maximumf %100, %101 : vector<256x128xf32>
    %103 = arith.truncf %102 : vector<256x128xf32> to vector<256x128xbf16>
    %104 = tpu.concatenate %103, %1 in 1 : vector<256x128xbf16>, vector<256x128xbf16> -> vector<256x256xbf16>
    %c0_48 = arith.constant 0 : index
    %c0_49 = arith.constant 0 : index
    %105 = vector.load %arg14[%c0_48, %c0_49] : memref<256x128xbf16, #tpu.memory_space<vmem>>, vector<256x128xbf16>
    %cst_50 = arith.constant dense<0.000000e+00> : vector<256x128xf32>
    %106 = tpu.matmul %104, %105, %cst_50 {dimension_numbers = #tpu.dot_dimension_numbers<[1], [0], [0], [1], [0, 0, 1, 1], [], []>} : vector<256x256xbf16>, vector<256x128xbf16>, vector<256x128xf32> -> vector<256x128xf32>
    %c0_51 = arith.constant 0 : index
    %c0_52 = arith.constant 0 : index
    %107 = vector.load %arg15[%c0_51, %c0_52] : memref<1x128xf32, #tpu.memory_space<vmem>>, vector<1x128xf32>
    %108 = vector.broadcast %107 : vector<1x128xf32> to vector<256x128xf32>
    %109 = arith.addf %106, %108 : vector<256x128xf32>
    %c0_53 = arith.constant 0 : index
    %c0_54 = arith.constant 0 : index
    %110 = vector.load %arg16[%c0_53, %c0_54] : memref<256x128xf32, #tpu.memory_space<vmem>>, vector<256x128xf32>
    tpu.vector_store %arg16[%c0_53, %c0_54], %109 {strides = array<i32>} : memref<256x128xf32, #tpu.memory_space<vmem>>, vector<256x128xf32>,
    return
  }
  func.func @transform_0(%arg0: i32) -> (i32, i32) {
    %c0_i32 = arith.constant 0 : i32
    %c0_i32_0 = arith.constant 0 : i32
    return %arg0, %c0_i32 : i32, i32
  }
  func.func @transform_1(%arg0: i32) -> (i32, i32) {
    %c0_i32 = arith.constant 0 : i32
    %c0_i32_0 = arith.constant 0 : i32
    %c0_i32_1 = arith.constant 0 : i32
    return %c0_i32, %c0_i32_0 : i32, i32
  }
  func.func @transform_2(%arg0: i32) -> (i32, i32) {
    %c0_i32 = arith.constant 0 : i32
    %c0_i32_0 = arith.constant 0 : i32
    %c0_i32_1 = arith.constant 0 : i32
    return %c0_i32, %c0_i32_0 : i32, i32
  }
  func.func @transform_3(%arg0: i32) -> (i32, i32) {
    %c0_i32 = arith.constant 0 : i32
    %c0_i32_0 = arith.constant 0 : i32
    %c0_i32_1 = arith.constant 0 : i32
    return %c0_i32, %c0_i32_0 : i32, i32
  }
  func.func @transform_4(%arg0: i32) -> (i32, i32) {
    %c0_i32 = arith.constant 0 : i32
    %c0_i32_0 = arith.constant 0 : i32
    %c0_i32_1 = arith.constant 0 : i32
    return %c0_i32, %c0_i32_0 : i32, i32
  }
  func.func @transform_5(%arg0: i32) -> (i32, i32) {
    %c0_i32 = arith.constant 0 : i32
    %c0_i32_0 = arith.constant 0 : i32
    %c0_i32_1 = arith.constant 0 : i32
    return %c0_i32, %c0_i32_0 : i32, i32
  }
  func.func @transform_6(%arg0: i32) -> (i32, i32) {
    %c0_i32 = arith.constant 0 : i32
    %c0_i32_0 = arith.constant 0 : i32
    %c0_i32_1 = arith.constant 0 : i32
    return %c0_i32, %c0_i32_0 : i32, i32
  }
  func.func @transform_7(%arg0: i32) -> (i32, i32) {
    %c0_i32 = arith.constant 0 : i32
    %c0_i32_0 = arith.constant 0 : i32
    %c0_i32_1 = arith.constant 0 : i32
    return %c0_i32, %c0_i32_0 : i32, i32
  }
  func.func @transform_8(%arg0: i32) -> (i32, i32) {
    %c0_i32 = arith.constant 0 : i32
    %c0_i32_0 = arith.constant 0 : i32
    %c0_i32_1 = arith.constant 0 : i32
    return %c0_i32, %c0_i32_0 : i32, i32
  }
  func.func @transform_9(%arg0: i32) -> (i32, i32) {
    %c0_i32 = arith.constant 0 : i32
    %c0_i32_0 = arith.constant 0 : i32
    %c0_i32_1 = arith.constant 0 : i32
    return %c0_i32, %c0_i32_0 : i32, i32
  }
  func.func @transform_10(%arg0: i32) -> (i32, i32) {
    %c0_i32 = arith.constant 0 : i32
    %c0_i32_0 = arith.constant 0 : i32
    %c0_i32_1 = arith.constant 0 : i32
    return %c0_i32, %c0_i32_0 : i32, i32
  }
  func.func @transform_11(%arg0: i32) -> (i32, i32) {
    %c0_i32 = arith.constant 0 : i32
    %c0_i32_0 = arith.constant 0 : i32
    %c0_i32_1 = arith.constant 0 : i32
    return %c0_i32, %c0_i32_0 : i32, i32
  }
  func.func @transform_12(%arg0: i32) -> (i32, i32) {
    %c0_i32 = arith.constant 0 : i32
    %c0_i32_0 = arith.constant 0 : i32
    %c0_i32_1 = arith.constant 0 : i32
    return %c0_i32, %c0_i32_0 : i32, i32
  }
  func.func @transform_13(%arg0: i32) -> (i32, i32) {
    %c0_i32 = arith.constant 0 : i32
    %c0_i32_0 = arith.constant 0 : i32
    %c0_i32_1 = arith.constant 0 : i32
    return %c0_i32, %c0_i32_0 : i32, i32
  }
  func.func @transform_14(%arg0: i32) -> (i32, i32) {
    %c0_i32 = arith.constant 0 : i32
    %c0_i32_0 = arith.constant 0 : i32
    %c0_i32_1 = arith.constant 0 : i32
    return %c0_i32, %c0_i32_0 : i32, i32
  }
  func.func @transform_15(%arg0: i32) -> (i32, i32) {
    %c0_i32 = arith.constant 0 : i32
    %c0_i32_0 = arith.constant 0 : i32
    return %arg0, %c0_i32 : i32, i32
  }
}

</mosaic_0001>

<llo_original>
// kernel: tpu_custom_call.1
$region0: #{tpu_custom_call.1}
  #allocation0 [shape = 'u32[]', space=smem, size = 0x4, offset = 0x4, fixed_abs, tag = 'smem constant byte address 0x4 - core index']
  #allocation1 [shape = 'u32[144,128]{1,0:T(1,128)}', space=vmem, size = 0x12000, scoped, tag = 'internal scratch']
  %s0 = inlined_call_operand.hbm [shape: f32[1024,128], index: 0, kind: input, shape index: {}]
  %s1 = inlined_call_operand.hbm [shape: bf16[128,128], index: 1, kind: input, shape index: {}]
  %s2 = inlined_call_operand.vmem [shape: f32[1,128], index: 2, kind: input, shape index: {}]
  %s3 = inlined_call_operand.vmem [shape: f32[1,128], index: 3, kind: input, shape index: {}]
  %s4 = inlined_call_operand.vmem [shape: f32[1,128], index: 4, kind: input, shape index: {}]
  %s5 = inlined_call_operand.hbm [shape: bf16[128,128], index: 5, kind: input, shape index: {}]
  %s6 = inlined_call_operand.vmem [shape: f32[1,128], index: 6, kind: input, shape index: {}]
  %s7 = inlined_call_operand.vmem [shape: f32[1,128], index: 7, kind: input, shape index: {}]
  %s8 = inlined_call_operand.vmem [shape: f32[1,128], index: 8, kind: input, shape index: {}]
  %s9 = inlined_call_operand.hbm [shape: bf16[128,128], index: 9, kind: input, shape index: {}]
  %s10 = inlined_call_operand.vmem [shape: f32[1,128], index: 10, kind: input, shape index: {}]
  %s11 = inlined_call_operand.vmem [shape: f32[1,128], index: 11, kind: input, shape index: {}]
  %s12 = inlined_call_operand.vmem [shape: f32[1,128], index: 12, kind: input, shape index: {}]
  %s13 = inlined_call_operand.hbm [shape: bf16[256,128], index: 13, kind: input, shape index: {}]
  %s14 = inlined_call_operand.vmem [shape: f32[1,128], index: 14, kind: input, shape index: {}]
  %s15 = inlined_call_operand.hbm [shape: f32[1024,128], index: 15, kind: output, shape index: {}]
  %s16 = sld [smem:[#allocation0]]
  $region113: #{tpu_custom_call.1} parent=0
    _
  %s18 = ssub.s32 1, %s16
  %s19 = scalar_select 0, %s18, %s16
  $region1: #{tpu_custom_call.1} parent=0
    #allocation2 [shape = 'u8[262144]{0}', space=vmem, size = 0x40000, scoped, tag = 'input window, operand 0']
    #allocation3 [shape = 's32[2]{0}', space=sflag, size = 0x8, scoped, tag = 'scoped memory for tpu_custom_call.1']
    #allocation4 [shape = 's32[2]{0}', space=sflag, size = 0x8, scoped, tag = 'scoped memory for tpu_custom_call.1']
    #allocation5 [shape = 'u8[32768]{0}', space=vmem, size = 0x8000, scoped, tag = 'input window, operand 1, single buffered']
    #allocation6 [shape = 's32[1]{0}', space=sflag, size = 0x4, scoped, tag = 'scoped memory for tpu_custom_call.1']
    #allocation7 [shape = 'u8[32768]{0}', space=vmem, size = 0x8000, scoped, tag = 'input window, operand 5, single buffered']
    #allocation8 [shape = 'u8[32768]{0}', space=vmem, size = 0x8000, scoped, tag = 'input window, operand 9, single buffered']
    #allocation9 [shape = 's32[1]{0}', space=sflag, size = 0x4, scoped, tag = 'scoped memory for tpu_custom_call.1']
    #allocation10 [shape = 'u8[65536]{0}', space=vmem, size = 0x10000, scoped, tag = 'input window, operand 13, single buffered']
    #allocation11 [shape = 'u8[262144]{0}', space=vmem, size = 0x40000, scoped, tag = 'output window, operand 0']
    %20 = vsyncpa [#allocation3], 0
    %s21 = scalar_lea.sflag [#allocation3], 1
    %22 = vsyncpa %s21, 0
    %23 = vsyncpa [#allocation6], 0
    %24 = vsyncpa [#allocation9], 0
    %25 = vsyncpa [#allocation4], 0
    %s26 = scalar_lea.sflag [#allocation4], 1
    %27 = vsyncpa %s26, 0
    loop: start=0, step=1, limit=6
    $region2: #{tpu_custom_call.1} parent=1 // loop_pre_header
      _
    $region3: #{tpu_custom_call.1} parent=1 // loop_header
      %s29 = sphi 0, %s33
      %p30 = scmp.ge.s32.totalorder %s29, 6
      %s39 = sphi 0, %s41
      %s42 = sphi 0, %s39
      %s43 = sphi 0, %s42
      %s59 = sphi 0, %s43
      %s63 = sphi 0, %s63
      %s65 = sphi 0, %s63
      %s66 = sphi 0, %s65
      %s80 = sphi 0, %s66
      %s84 = sphi 0, %s84
      %s86 = sphi 0, %s84
      %s87 = sphi 0, %s86
      %s101 = sphi 0, %s87
      %s105 = sphi 0, %s105
      %s107 = sphi 0, %s105
      %s108 = sphi 0, %s107
      %s122 = sphi 0, %s108
      %s126 = sphi 0, %s126
      %s128 = sphi 0, %s126
      %s129 = sphi 0, %s128
      %s143 = sphi 0, %s129
      %s147 = sphi 0, %s147
      %s149 = sphi 0, %s147
      %s150 = sphi 0, %s149
      %s164 = sphi 0, %s150
      %s168 = sphi 0, %s168
      %s170 = sphi 0, %s168
      %s171 = sphi 0, %s170
      %s185 = sphi 0, %s171
      %s189 = sphi 0, %s189
      %s191 = sphi 0, %s189
      %s192 = sphi 0, %s191
      %s206 = sphi 0, %s192
      %s210 = sphi 0, %s210
      %s212 = sphi 0, %s210
      %s213 = sphi 0, %s212
      %s227 = sphi 0, %s213
      %s231 = sphi 0, %s231
      %s233 = sphi 0, %s231
      %s234 = sphi 0, %s233
      %s248 = sphi 0, %s234
      %s252 = sphi 0, %s252
      %s254 = sphi 0, %s252
      %s255 = sphi 0, %s254
      %s269 = sphi 0, %s255
      %s273 = sphi 0, %s273
      %s275 = sphi 0, %s273
      %s276 = sphi 0, %s275
      %s290 = sphi 0, %s276
      %s294 = sphi 0, %s294
      %s296 = sphi 0, %s294
      %s297 = sphi 0, %s296
      %s311 = sphi 0, %s297
      %s315 = sphi 0, %s315
      %s317 = sphi 0, %s315
      %s318 = sphi 0, %s317
      %s332 = sphi 0, %s318
      %s336 = sphi 0, %s336
      %s338 = sphi 0, %s336
      %s339 = sphi 0, %s338
      %s353 = sphi 0, %s339
      %s359 = sphi 0, %s361
      %s362 = sphi 0, %s359
      %s363 = sphi 0, %s362
      %s379 = sphi 0, %s363
    $region4: #{tpu_custom_call.1} parent=1 // loop_header_branch
      %32 = sbr.rel (%p30) target = $region8
    $region5: #{tpu_custom_call.1} parent=1 // loop_body
      %s34 = ssub.s32 %s29, 1
      %s35 = ssub.s32 %s29, 2
      %s36 = sadd.s32 %s29, 1
      %s37 = ssub.s32 %s29, %s36
      %p38 = scmp.eq.s32.totalorder %s37, 0
      %s40 = sadd.s32 %s39, 1
      %s41 = scalar_select %p38, %s39, %s40
      %p44 = pneg %p38
      %p45 = scmp.eq.s32.totalorder %s29, 3
      %p46 = por %p44, %p45
      %p47 = scmp.ne.s32.totalorder %s39, %s42
      %p48 = scmp.eq.s32.totalorder %s29, 0
      %p49 = por %p47, %p48
      %p50 = scmp.ne.s32.totalorder %s39, %s42
      %p51 = scmp.eq.s32.totalorder %s34, 3
      %p52 = por %p50, %p51
      %p53 = scmp.ne.s32.totalorder %s42, %s43
      %p54 = scmp.eq.s32.totalorder %s34, 0
      %p55 = por %p53, %p54
      %p56 = scmp.ne.s32.totalorder %s42, %s43
      %p57 = scmp.eq.s32.totalorder %s35, 3
      %p58 = por %p56, %p57
      %p60 = scmp.ne.s32.totalorder %s43, %s59
      %p61 = scmp.eq.s32.totalorder %s35, 0
      %p62 = por %p60, %p61
      %s64 = sadd.s32 %s63, 1
      %p67 = scmp.eq.s32.totalorder %s29, 3
      %p68 = scmp.ne.s32.totalorder %s63, %s65
      %p69 = scmp.eq.s32.totalorder %s29, 0
      %p70 = por %p68, %p69
      %p71 = scmp.ne.s32.totalorder %s63, %s65
      %p72 = scmp.eq.s32.totalorder %s34, 3
      %p73 = por %p71, %p72
      %p74 = scmp.ne.s32.totalorder %s65, %s66
      %p75 = scmp.eq.s32.totalorder %s34, 0
      %p76 = por %p74, %p75
      %p77 = scmp.ne.s32.totalorder %s65, %s66
      %p78 = scmp.eq.s32.totalorder %s35, 3
      %p79 = por %p77, %p78
      %p81 = scmp.ne.s32.totalorder %s66, %s80
      %p82 = scmp.eq.s32.totalorder %s35, 0
      %p83 = por %p81, %p82
      %s85 = sadd.s32 %s84, 1
      %p88 = scmp.eq.s32.totalorder %s29, 3
      %p89 = scmp.ne.s32.totalorder %s84, %s86
      %p90 = scmp.eq.s32.totalorder %s29, 0
      %p91 = por %p89, %p90
      %p92 = scmp.ne.s32.totalorder %s84, %s86
      %p93 = scmp.eq.s32.totalorder %s34, 3
      %p94 = por %p92, %p93
      %p95 = scmp.ne.s32.totalorder %s86, %s87
      %p96 = scmp.eq.s32.totalorder %s34, 0
      %p97 = por %p95, %p96
      %p98 = scmp.ne.s32.totalorder %s86, %s87
      %p99 = scmp.eq.s32.totalorder %s35, 3
      %p100 = por %p98, %p99
      %p102 = scmp.ne.s32.totalorder %s87, %s101
      %p103 = scmp.eq.s32.totalorder %s35, 0
      %p104 = por %p102, %p103
      %s106 = sadd.s32 %s105, 1
      %p109 = scmp.eq.s32.totalorder %s29, 3
      %p110 = scmp.ne.s32.totalorder %s105, %s107
      %p111 = scmp.eq.s32.totalorder %s29, 0
      %p112 = por %p110, %p111
      %p113 = scmp.ne.s32.totalorder %s105, %s107
      %p114 = scmp.eq.s32.totalorder %s34, 3
      %p115 = por %p113, %p114
      %p116 = scmp.ne.s32.totalorder %s107, %s108
      %p117 = scmp.eq.s32.totalorder %s34, 0
      %p118 = por %p116, %p117
      %p119 = scmp.ne.s32.totalorder %s107, %s108
      %p120 = scmp.eq.s32.totalorder %s35, 3
      %p121 = por %p119, %p120
      %p123 = scmp.ne.s32.totalorder %s108, %s122
      %p124 = scmp.eq.s32.totalorder %s35, 0
      %p125 = por %p123, %p124
      %s127 = sadd.s32 %s126, 1
      %p130 = scmp.eq.s32.totalorder %s29, 3
      %p131 = scmp.ne.s32.totalorder %s126, %s128
      %p132 = scmp.eq.s32.totalorder %s29, 0
      %p133 = por %p131, %p132
      %p134 = scmp.ne.s32.totalorder %s126, %s128
      %p135 = scmp.eq.s32.totalorder %s34, 3
      %p136 = por %p134, %p135
      %p137 = scmp.ne.s32.totalorder %s128, %s129
      %p138 = scmp.eq.s32.totalorder %s34, 0
      %p139 = por %p137, %p138
      %p140 = scmp.ne.s32.totalorder %s128, %s129
      %p141 = scmp.eq.s32.totalorder %s35, 3
      %p142 = por %p140, %p141
      %p144 = scmp.ne.s32.totalorder %s129, %s143
      %p145 = scmp.eq.s32.totalorder %s35, 0
      %p146 = por %p144, %p145
      %s148 = sadd.s32 %s147, 1
      %p151 = scmp.eq.s32.totalorder %s29, 3
      %p152 = scmp.ne.s32.totalorder %s147, %s149
      %p153 = scmp.eq.s32.totalorder %s29, 0
      %p154 = por %p152, %p153
      %p155 = scmp.ne.s32.totalorder %s147, %s149
      %p156 = scmp.eq.s32.totalorder %s34, 3
      %p157 = por %p155, %p156
      %p158 = scmp.ne.s32.totalorder %s149, %s150
      %p159 = scmp.eq.s32.totalorder %s34, 0
      %p160 = por %p158, %p159
      %p161 = scmp.ne.s32.totalorder %s149, %s150
      %p162 = scmp.eq.s32.totalorder %s35, 3
      %p163 = por %p161, %p162
      %p165 = scmp.ne.s32.totalorder %s150, %s164
      %p166 = scmp.eq.s32.totalorder %s35, 0
      %p167 = por %p165, %p166
      %s169 = sadd.s32 %s168, 1
      %p172 = scmp.eq.s32.totalorder %s29, 3
      %p173 = scmp.ne.s32.totalorder %s168, %s170
      %p174 = scmp.eq.s32.totalorder %s29, 0
      %p175 = por %p173, %p174
      %p176 = scmp.ne.s32.totalorder %s168, %s170
      %p177 = scmp.eq.s32.totalorder %s34, 3
      %p178 = por %p176, %p177
      %p179 = scmp.ne.s32.totalorder %s170, %s171
      %p180 = scmp.eq.s32.totalorder %s34, 0
      %p181 = por %p179, %p180
      %p182 = scmp.ne.s32.totalorder %s170, %s171
      %p183 = scmp.eq.s32.totalorder %s35, 3
      %p184 = por %p182, %p183
      %p186 = scmp.ne.s32.totalorder %s171, %s185
      %p187 = scmp.eq.s32.totalorder %s35, 0
      %p188 = por %p186, %p187
      %s190 = sadd.s32 %s189, 1
      %p193 = scmp.eq.s32.totalorder %s29, 3
      %p194 = scmp.ne.s32.totalorder %s189, %s191
      %p195 = scmp.eq.s32.totalorder %s29, 0
      %p196 = por %p194, %p195
      %p197 = scmp.ne.s32.totalorder %s189, %s191
      %p198 = scmp.eq.s32.totalorder %s34, 3
      %p199 = por %p197, %p198
      %p200 = scmp.ne.s32.totalorder %s191, %s192
      %p201 = scmp.eq.s32.totalorder %s34, 0
      %p202 = por %p200, %p201
      %p203 = scmp.ne.s32.totalorder %s191, %s192
      %p204 = scmp.eq.s32.totalorder %s35, 3
      %p205 = por %p203, %p204
      %p207 = scmp.ne.s32.totalorder %s192, %s206
      %p208 = scmp.eq.s32.totalorder %s35, 0
      %p209 = por %p207, %p208
      %s211 = sadd.s32 %s210, 1
      %p214 = scmp.eq.s32.totalorder %s29, 3
      %p215 = scmp.ne.s32.totalorder %s210, %s212
      %p216 = scmp.eq.s32.totalorder %s29, 0
      %p217 = por %p215, %p216
      %p218 = scmp.ne.s32.totalorder %s210, %s212
      %p219 = scmp.eq.s32.totalorder %s34, 3
      %p220 = por %p218, %p219
      %p221 = scmp.ne.s32.totalorder %s212, %s213
      %p222 = scmp.eq.s32.totalorder %s34, 0
      %p223 = por %p221, %p222
      %p224 = scmp.ne.s32.totalorder %s212, %s213
      %p225 = scmp.eq.s32.totalorder %s35, 3
      %p226 = por %p224, %p225
      %p228 = scmp.ne.s32.totalorder %s213, %s227
      %p229 = scmp.eq.s32.totalorder %s35, 0
      %p230 = por %p228, %p229
      %s232 = sadd.s32 %s231, 1
      %p235 = scmp.eq.s32.totalorder %s29, 3
      %p236 = scmp.ne.s32.totalorder %s231, %s233
      %p237 = scmp.eq.s32.totalorder %s29, 0
      %p238 = por %p236, %p237
      %p239 = scmp.ne.s32.totalorder %s231, %s233
      %p240 = scmp.eq.s32.totalorder %s34, 3
      %p241 = por %p239, %p240
      %p242 = scmp.ne.s32.totalorder %s233, %s234
      %p243 = scmp.eq.s32.totalorder %s34, 0
      %p244 = por %p242, %p243
      %p245 = scmp.ne.s32.totalorder %s233, %s234
      %p246 = scmp.eq.s32.totalorder %s35, 3
      %p247 = por %p245, %p246
      %p249 = scmp.ne.s32.totalorder %s234, %s248
      %p250 = scmp.eq.s32.totalorder %s35, 0
      %p251 = por %p249, %p250
      %s253 = sadd.s32 %s252, 1
      %p256 = scmp.eq.s32.totalorder %s29, 3
      %p257 = scmp.ne.s32.totalorder %s252, %s254
      %p258 = scmp.eq.s32.totalorder %s29, 0
      %p259 = por %p257, %p258
      %p260 = scmp.ne.s32.totalorder %s252, %s254
      %p261 = scmp.eq.s32.totalorder %s34, 3
      %p262 = por %p260, %p261
      %p263 = scmp.ne.s32.totalorder %s254, %s255
      %p264 = scmp.eq.s32.totalorder %s34, 0
      %p265 = por %p263, %p264
      %p266 = scmp.ne.s32.totalorder %s254, %s255
      %p267 = scmp.eq.s32.totalorder %s35, 3
      %p268 = por %p266, %p267
      %p270 = scmp.ne.s32.totalorder %s255, %s269
      %p271 = scmp.eq.s32.totalorder %s35, 0
      %p272 = por %p270, %p271
      %s274 = sadd.s32 %s273, 1
      %p277 = scmp.eq.s32.totalorder %s29, 3
      %p278 = scmp.ne.s32.totalorder %s273, %s275
      %p279 = scmp.eq.s32.totalorder %s29, 0
      %p280 = por %p278, %p279
      %p281 = scmp.ne.s32.totalorder %s273, %s275
      %p282 = scmp.eq.s32.totalorder %s34, 3
      %p283 = por %p281, %p282
      %p284 = scmp.ne.s32.totalorder %s275, %s276
      %p285 = scmp.eq.s32.totalorder %s34, 0
      %p286 = por %p284, %p285
      %p287 = scmp.ne.s32.totalorder %s275, %s276
      %p288 = scmp.eq.s32.totalorder %s35, 3
      %p289 = por %p287, %p288
      %p291 = scmp.ne.s32.totalorder %s276, %s290
      %p292 = scmp.eq.s32.totalorder %s35, 0
      %p293 = por %p291, %p292
      %s295 = sadd.s32 %s294, 1
      %p298 = scmp.eq.s32.totalorder %s29, 3
      %p299 = scmp.ne.s32.totalorder %s294, %s296
      %p300 = scmp.eq.s32.totalorder %s29, 0
      %p301 = por %p299, %p300
      %p302 = scmp.ne.s32.totalorder %s294, %s296
      %p303 = scmp.eq.s32.totalorder %s34, 3
      %p304 = por %p302, %p303
      %p305 = scmp.ne.s32.totalorder %s296, %s297
      %p306 = scmp.eq.s32.totalorder %s34, 0
      %p307 = por %p305, %p306
      %p308 = scmp.ne.s32.totalorder %s296, %s297
      %p309 = scmp.eq.s32.totalorder %s35, 3
      %p310 = por %p308, %p309
      %p312 = scmp.ne.s32.totalorder %s297, %s311
      %p313 = scmp.eq.s32.totalorder %s35, 0
      %p314 = por %p312, %p313
      %s316 = sadd.s32 %s315, 1
      %p319 = scmp.eq.s32.totalorder %s29, 3
      %p320 = scmp.ne.s32.totalorder %s315, %s317
      %p321 = scmp.eq.s32.totalorder %s29, 0
      %p322 = por %p320, %p321
      %p323 = scmp.ne.s32.totalorder %s315, %s317
      %p324 = scmp.eq.s32.totalorder %s34, 3
      %p325 = por %p323, %p324
      %p326 = scmp.ne.s32.totalorder %s317, %s318
      %p327 = scmp.eq.s32.totalorder %s34, 0
      %p328 = por %p326, %p327
      %p329 = scmp.ne.s32.totalorder %s317, %s318
      %p330 = scmp.eq.s32.totalorder %s35, 3
      %p331 = por %p329, %p330
      %p333 = scmp.ne.s32.totalorder %s318, %s332
      %p334 = scmp.eq.s32.totalorder %s35, 0
      %p335 = por %p333, %p334
      %s337 = sadd.s32 %s336, 1
      %p340 = scmp.eq.s32.totalorder %s29, 3
      %p341 = scmp.ne.s32.totalorder %s336, %s338
      %p342 = scmp.eq.s32.totalorder %s29, 0
      %p343 = por %p341, %p342
      %p344 = scmp.ne.s32.totalorder %s336, %s338
      %p345 = scmp.eq.s32.totalorder %s34, 3
      %p346 = por %p344, %p345
      %p347 = scmp.ne.s32.totalorder %s338, %s339
      %p348 = scmp.eq.s32.totalorder %s34, 0
      %p349 = por %p347, %p348
      %p350 = scmp.ne.s32.totalorder %s338, %s339
      %p351 = scmp.eq.s32.totalorder %s35, 3
      %p352 = por %p350, %p351
      %p354 = scmp.ne.s32.totalorder %s339, %s353
      %p355 = scmp.eq.s32.totalorder %s35, 0
      %p356 = por %p354, %p355
      %s357 = ssub.s32 %s29, %s36
      %p358 = scmp.eq.s32.totalorder %s357, 0
      %s360 = sadd.s32 %s359, 1
      %s361 = scalar_select %p358, %s359, %s360
      %p364 = pneg %p358
      %p365 = scmp.eq.s32.totalorder %s29, 3
      %p366 = por %p364, %p365
      %p367 = scmp.ne.s32.totalorder %s359, %s362
      %p368 = scmp.eq.s32.totalorder %s29, 0
      %p369 = por %p367, %p368
      %p370 = scmp.ne.s32.totalorder %s359, %s362
      %p371 = scmp.eq.s32.totalorder %s34, 3
      %p372 = por %p370, %p371
      %p373 = scmp.ne.s32.totalorder %s362, %s363
      %p374 = scmp.eq.s32.totalorder %s34, 0
      %p375 = por %p373, %p374
      %p376 = scmp.ne.s32.totalorder %s362, %s363
      %p377 = scmp.eq.s32.totalorder %s35, 3
      %p378 = por %p376, %p377
      %p380 = scmp.ne.s32.totalorder %s363, %s379
      %p381 = scmp.eq.s32.totalorder %s35, 0
      %p382 = por %p380, %p381
      %p383 = scmp.le.s32.totalorder 1, %s29
      %p384 = scmp.lt.s32.totalorder %s29, 5
      %p385 = pnand %p383, %p384
      %p386 = pneg %p385
      // Predicated region
      $region9: #{tpu_custom_call.1} parent=5 // pred_check
        _
      $region10: #{tpu_custom_call.1} parent=5 // pred_check_branch
        %388 = sbr.rel (%p385) target = $region12
      $region11: #{tpu_custom_call.1} parent=5 // pred_region
        %s389 = ssub.s32 %s29, 1
        // Predicated region
        $region13: #{tpu_custom_call.1} parent=11 // pred_check
          %p390 = pneg %p76
        $region14: #{tpu_custom_call.1} parent=11 // pred_check_branch
          %392 = sbr.rel (%p390) target = $region16
        $region15: #{tpu_custom_call.1} parent=11 // pred_region
          %s394 = ssub.s32 1024, 1024
          %395 = vsyncadd [#allocation6], %s394
          %s396 = sshll.u32 [#allocation5], 4
          %s397 = int_to_ptr.vmem [resolvable:$true] %s396
          %402 = dma.hbm_to_vmem [thread:$0]  %s1, 1024, %s397, [#allocation6], 64, 64, 4
        $region16: #{tpu_custom_call.1} parent=11 // pred_fallthru
          _
        // Predicated region
        $region17: #{tpu_custom_call.1} parent=11 // pred_check
          %p403 = pneg %p97
        $region18: #{tpu_custom_call.1} parent=11 // pred_check_branch
          %405 = sbr.rel (%p403) target = $region20
        $region19: #{tpu_custom_call.1} parent=11 // pred_region
          _
        $region20: #{tpu_custom_call.1} parent=11 // pred_fallthru
          _
        // Predicated region
        $region21: #{tpu_custom_call.1} parent=11 // pred_check
          %p406 = pneg %p118
        $region22: #{tpu_custom_call.1} parent=11 // pred_check_branch
          %408 = sbr.rel (%p406) target = $region24
        $region23: #{tpu_custom_call.1} parent=11 // pred_region
          _
        $region24: #{tpu_custom_call.1} parent=11 // pred_fallthru
          _
        // Predicated region
        $region25: #{tpu_custom_call.1} parent=11 // pred_check
          %p409 = pneg %p139
        $region26: #{tpu_custom_call.1} parent=11 // pred_check_branch
          %411 = sbr.rel (%p409) target = $region28
        $region27: #{tpu_custom_call.1} parent=11 // pred_region
          _
        $region28: #{tpu_custom_call.1} parent=11 // pred_fallthru
          _
        // Predicated region
        $region29: #{tpu_custom_call.1} parent=11 // pred_check
          %p412 = pneg %p160
        $region30: #{tpu_custom_call.1} parent=11 // pred_check_branch
          %414 = sbr.rel (%p412) target = $region32
        $region31: #{tpu_custom_call.1} parent=11 // pred_region
          %s416 = ssub.s32 1024, 1024
          %417 = vsyncadd [#allocation6], %s416
          %s418 = sshll.u32 [#allocation7], 4
          %s419 = int_to_ptr.vmem [resolvable:$true] %s418
          %424 = dma.hbm_to_vmem [thread:$0]  %s5, 1024, %s419, [#allocation6], 64, 64, 4
        $region32: #{tpu_custom_call.1} parent=11 // pred_fallthru
          _
        // Predicated region
        $region33: #{tpu_custom_call.1} parent=11 // pred_check
          %p425 = pneg %p181
        $region34: #{tpu_custom_call.1} parent=11 // pred_check_branch
          %427 = sbr.rel (%p425) target = $region36
        $region35: #{tpu_custom_call.1} parent=11 // pred_region
          _
        $region36: #{tpu_custom_call.1} parent=11 // pred_fallthru
          _
        // Predicated region
        $region37: #{tpu_custom_call.1} parent=11 // pred_check
          %p428 = pneg %p202
        $region38: #{tpu_custom_call.1} parent=11 // pred_check_branch
          %430 = sbr.rel (%p428) target = $region40
        $region39: #{tpu_custom_call.1} parent=11 // pred_region
          _
        $region40: #{tpu_custom_call.1} parent=11 // pred_fallthru
          _
        // Predicated region
        $region41: #{tpu_custom_call.1} parent=11 // pred_check
          %p431 = pneg %p223
        $region42: #{tpu_custom_call.1} parent=11 // pred_check_branch
          %433 = sbr.rel (%p431) target = $region44
        $region43: #{tpu_custom_call.1} parent=11 // pred_region
          _
        $region44: #{tpu_custom_call.1} parent=11 // pred_fallthru
          _
        // Predicated region
        $region45: #{tpu_custom_call.1} parent=11 // pred_check
          %p434 = pneg %p244
        $region46: #{tpu_custom_call.1} parent=11 // pred_check_branch
          %436 = sbr.rel (%p434) target = $region48
        $region47: #{tpu_custom_call.1} parent=11 // pred_region
          %s438 = ssub.s32 1024, 1024
          %439 = vsyncadd [#allocation9], %s438
          %s440 = sshll.u32 [#allocation8], 4
          %s441 = int_to_ptr.vmem [resolvable:$true] %s440
          %446 = dma.hbm_to_vmem [thread:$0]  %s9, 1024, %s441, [#allocation9], 64, 64, 4
        $region48: #{tpu_custom_call.1} parent=11 // pred_fallthru
          _
        // Predicated region
        $region49: #{tpu_custom_call.1} parent=11 // pred_check
          %p447 = pneg %p265
        $region50: #{tpu_custom_call.1} parent=11 // pred_check_branch
          %449 = sbr.rel (%p447) target = $region52
        $region51: #{tpu_custom_call.1} parent=11 // pred_region
          _
        $region52: #{tpu_custom_call.1} parent=11 // pred_fallthru
          _
        // Predicated region
        $region53: #{tpu_custom_call.1} parent=11 // pred_check
          %p450 = pneg %p286
        $region54: #{tpu_custom_call.1} parent=11 // pred_check_branch
          %452 = sbr.rel (%p450) target = $region56
        $region55: #{tpu_custom_call.1} parent=11 // pred_region
          _
        $region56: #{tpu_custom_call.1} parent=11 // pred_fallthru
          _
        // Predicated region
        $region57: #{tpu_custom_call.1} parent=11 // pred_check
          %p453 = pneg %p307
        $region58: #{tpu_custom_call.1} parent=11 // pred_check_branch
          %455 = sbr.rel (%p453) target = $region60
        $region59: #{tpu_custom_call.1} parent=11 // pred_region
          _
        $region60: #{tpu_custom_call.1} parent=11 // pred_fallthru
          _
        // Predicated region
        $region61: #{tpu_custom_call.1} parent=11 // pred_check
          %p456 = pneg %p328
        $region62: #{tpu_custom_call.1} parent=11 // pred_check_branch
          %458 = sbr.rel (%p456) target = $region64
        $region63: #{tpu_custom_call.1} parent=11 // pred_region
          %s460 = ssub.s32 2048, 2048
          %461 = vsyncadd [#allocation9], %s460
          %s462 = sshll.u32 [#allocation10], 4
          %s463 = int_to_ptr.vmem [resolvable:$true] %s462
          %468 = dma.hbm_to_vmem [thread:$0]  %s13, 2048, %s463, [#allocation9], 64, 64, 4
        $region64: #{tpu_custom_call.1} parent=11 // pred_fallthru
          _
        // Predicated region
        $region65: #{tpu_custom_call.1} parent=11 // pred_check
          %p469 = pneg %p349
        $region66: #{tpu_custom_call.1} parent=11 // pred_check_branch
          %471 = sbr.rel (%p469) target = $region68
        $region67: #{tpu_custom_call.1} parent=11 // pred_region
          _
        $region68: #{tpu_custom_call.1} parent=11 // pred_fallthru
          _
      $region12: #{tpu_custom_call.1} parent=5 // pred_fallthru
        _
      %p472 = scmp.lt.s32.totalorder %s29, 4
      // Predicated region
      $region69: #{tpu_custom_call.1} parent=5 // pred_check
        %p473 = pneg %p472
      $region70: #{tpu_custom_call.1} parent=5 // pred_check_branch
        %475 = sbr.rel (%p473) target = $region72
      $region71: #{tpu_custom_call.1} parent=5 // pred_region
        // Predicated region
        $region73: #{tpu_custom_call.1} parent=71 // pred_check
          %p476 = pneg %p49
        $region74: #{tpu_custom_call.1} parent=71 // pred_check_branch
          %478 = sbr.rel (%p476) target = $region76
        $region75: #{tpu_custom_call.1} parent=71 // pred_region
          %s479 = sand.u32 %s39, 1
          %s480 = scalar_lea.sflag [#allocation3], %s479
          %s481 = sand.u32 %s39, 1
          %s482 = smul.addr %s481, 256
          %s483 = scalar_lea.vmem [#allocation2], %s482
          %s484 = smul.u32 32, %s29
          %s486 = ssub.s32 4096, 4096
          %487 = vsyncadd %s480, %s486
          %s488 = smul.addr %s484, 128
          %s489 = scalar_lea.hbm %s0, %s488
          %s490 = sshll.u32 %s483, 4
          %s491 = int_to_ptr.vmem [resolvable:$true] %s490
          %496 = dma.hbm_to_vmem [thread:$0]  %s489, 4096, %s491, %s480, 128, 128, 8
        $region76: #{tpu_custom_call.1} parent=71 // pred_fallthru
          _
      $region72: #{tpu_custom_call.1} parent=5 // pred_fallthru
        _
      %p497 = scmp.le.s32.totalorder 1, %s29
      %p498 = scmp.lt.s32.totalorder %s29, 5
      %p499 = pnand %p497, %p498
      %p500 = pneg %p499
      // Predicated region
      $region77: #{tpu_custom_call.1} parent=5 // pred_check
        _
      $region78: #{tpu_custom_call.1} parent=5 // pred_check_branch
        %502 = sbr.rel (%p499) target = $region80
      $region79: #{tpu_custom_call.1} parent=5 // pred_region
        %s503 = ssub.s32 %s29, 1
        %s504 = sand.u32 %s42, 1
        %s505 = scalar_lea.sflag [#allocation3], %s504
        %s506 = sand.u32 %s42, 1
        %s507 = smul.addr %s506, 256
        %s508 = scalar_lea.vmem [#allocation2], %s507
        // Predicated region
        $region81: #{tpu_custom_call.1} parent=79 // pred_check
          %p509 = pneg %p55
        $region82: #{tpu_custom_call.1} parent=79 // pred_check_branch
          %511 = sbr.rel (%p509) target = $region84
        $region83: #{tpu_custom_call.1} parent=79 // pred_region
          %512 = dma.done %s505, 4096
        $region84: #{tpu_custom_call.1} parent=79 // pred_fallthru
          _
        // Predicated region
        $region85: #{tpu_custom_call.1} parent=79 // pred_check
          %p513 = pneg %p76
        $region86: #{tpu_custom_call.1} parent=79 // pred_check_branch
          %515 = sbr.rel (%p513) target = $region88
        $region87: #{tpu_custom_call.1} parent=79 // pred_region
          %516 = dma.done [#allocation6], 1024
        $region88: #{tpu_custom_call.1} parent=79 // pred_fallthru
          _
        // Predicated region
        $region89: #{tpu_custom_call.1} parent=79 // pred_check
          %p517 = pneg %p160
        $region90: #{tpu_custom_call.1} parent=79 // pred_check_branch
          %519 = sbr.rel (%p517) target = $region92
        $region91: #{tpu_custom_call.1} parent=79 // pred_region
          %520 = dma.done [#allocation6], 1024
        $region92: #{tpu_custom_call.1} parent=79 // pred_fallthru
          _
        // Predicated region
        $region93: #{tpu_custom_call.1} parent=79 // pred_check
          %p521 = pneg %p244
        $region94: #{tpu_custom_call.1} parent=79 // pred_check_branch
          %523 = sbr.rel (%p521) target = $region96
        $region95: #{tpu_custom_call.1} parent=79 // pred_region
          %524 = dma.done [#allocation9], 1024
        $region96: #{tpu_custom_call.1} parent=79 // pred_fallthru
          _
        // Predicated region
        $region97: #{tpu_custom_call.1} parent=79 // pred_check
          %p525 = pneg %p328
        $region98: #{tpu_custom_call.1} parent=79 // pred_check_branch
          %527 = sbr.rel (%p525) target = $region100
        $region99: #{tpu_custom_call.1} parent=79 // pred_region
          %528 = dma.done [#allocation9], 2048
        $region100: #{tpu_custom_call.1} parent=79 // pred_fallthru
          _
        %s529 = sand.u32 %s42, 1
        %s530 = scalar_lea.sflag [#allocation3], %s529
        %s531 = sand.u32 %s42, 1
        %s532 = smul.addr %s531, 256
        %s533 = scalar_lea.vmem [#allocation2], %s532
        %p534 = pneg %p55
        %p535 = pneg %p52
        %p536 = pneg %p76
        %p537 = pneg %p73
        %p538 = pneg %p97
        %p539 = pneg %p94
        %p540 = pneg %p118
        %p541 = pneg %p115
        %p542 = pneg %p139
        %p543 = pneg %p136
        %p544 = pneg %p160
        %p545 = pneg %p157
        %p546 = pneg %p181
        %p547 = pneg %p178
        %p548 = pneg %p202
        %p549 = pneg %p199
        %p550 = pneg %p223
        %p551 = pneg %p220
        %p552 = pneg %p244
        %p553 = pneg %p241
        %p554 = pneg %p265
        %p555 = pneg %p262
        %p556 = pneg %p286
        %p557 = pneg %p283
        %p558 = pneg %p307
        %p559 = pneg %p304
        %p560 = pneg %p328
        %p561 = pneg %p325
        %p562 = pneg %p349
        %p563 = pneg %p346
        %p564 = pneg %p375
        %p565 = pneg %p372
        %s566 = sand.u32 %s362, 1
        %s567 = scalar_lea.sflag [#allocation4], %s566
        %s568 = sand.u32 %s362, 1
        %s569 = smul.addr %s568, 256
        %s570 = scalar_lea.vmem [#allocation11], %s569
        %s571 = smul.u32 32, %s34
        %s572 = smul.u32 32, %s34
        %v574 = vld [vmem:[%s508] sm:$0xff]
        %v575 = vld [vmem:[%s508 + $0x8] sm:$0xff]
        %v576 = vld [vmem:[%s508 + $0x10] sm:$0xff]
        %v577 = vld [vmem:[%s508 + $0x18] sm:$0xff]
        %v578 = vld [vmem:[%s508 + $0x20] sm:$0xff]
        %v579 = vld [vmem:[%s508 + $0x28] sm:$0xff]
        %v580 = vld [vmem:[%s508 + $0x30] sm:$0xff]
        %v581 = vld [vmem:[%s508 + $0x38] sm:$0xff]
        %v582 = vld [vmem:[%s508 + $0x40] sm:$0xff]
        %v583 = vld [vmem:[%s508 + $0x48] sm:$0xff]
        %v584 = vld [vmem:[%s508 + $0x50] sm:$0xff]
        %v585 = vld [vmem:[%s508 + $0x58] sm:$0xff]
        %v586 = vld [vmem:[%s508 + $0x60] sm:$0xff]
        %v587 = vld [vmem:[%s508 + $0x68] sm:$0xff]
        %v588 = vld [vmem:[%s508 + $0x70] sm:$0xff]
        %v589 = vld [vmem:[%s508 + $0x78] sm:$0xff]
        %v590 = vld [vmem:[%s508 + $0x80] sm:$0xff]
        %v591 = vld [vmem:[%s508 + $0x88] sm:$0xff]
        %v592 = vld [vmem:[%s508 + $0x90] sm:$0xff]
        %v593 = vld [vmem:[%s508 + $0x98] sm:$0xff]
        %v594 = vld [vmem:[%s508 + $0xa0] sm:$0xff]
        %v595 = vld [vmem:[%s508 + $0xa8] sm:$0xff]
        %v596 = vld [vmem:[%s508 + $0xb0] sm:$0xff]
        %v597 = vld [vmem:[%s508 + $0xb8] sm:$0xff]
        %v598 = vld [vmem:[%s508 + $0xc0] sm:$0xff]
        %v599 = vld [vmem:[%s508 + $0xc8] sm:$0xff]
        %v600 = vld [vmem:[%s508 + $0xd0] sm:$0xff]
        %v601 = vld [vmem:[%s508 + $0xd8] sm:$0xff]
        %v602 = vld [vmem:[%s508 + $0xe0] sm:$0xff]
        %v603 = vld [vmem:[%s508 + $0xe8] sm:$0xff]
        %v604 = vld [vmem:[%s508 + $0xf0] sm:$0xff]
        %v605 = vld [vmem:[%s508 + $0xf8] sm:$0xff]
        %v606 = vpack.c.bf16 %v575, %v574
        %v607 = vpack.c.bf16 %v577, %v576
        %v608 = vpack.c.bf16 %v579, %v578
        %v609 = vpack.c.bf16 %v581, %v580
        %v610 = vpack.c.bf16 %v583, %v582
        %v611 = vpack.c.bf16 %v585, %v584
        %v612 = vpack.c.bf16 %v587, %v586
        %v613 = vpack.c.bf16 %v589, %v588
        %v614 = vpack.c.bf16 %v591, %v590
        %v615 = vpack.c.bf16 %v593, %v592
        %v616 = vpack.c.bf16 %v595, %v594
        %v617 = vpack.c.bf16 %v597, %v596
        %v618 = vpack.c.bf16 %v599, %v598
        %v619 = vpack.c.bf16 %v601, %v600
        %v620 = vpack.c.bf16 %v603, %v602
        %v621 = vpack.c.bf16 %v605, %v604
        %v622 = vld [vmem:[#allocation5] sm:$0xf]
        %v623 = vld [vmem:[#allocation5 + $0x4] sm:$0xf]
        %v624 = vld [vmem:[#allocation5 + $0x8] sm:$0xf]
        %v625 = vld [vmem:[#allocation5 + $0xc] sm:$0xf]
        %v626 = vld [vmem:[#allocation5 + $0x10] sm:$0xf]
        %v627 = vld [vmem:[#allocation5 + $0x14] sm:$0xf]
        %v628 = vld [vmem:[#allocation5 + $0x18] sm:$0xf]
        %v629 = vld [vmem:[#allocation5 + $0x1c] sm:$0xf]
        %v630 = vld [vmem:[#allocation5 + $0x20] sm:$0xf]
        %v631 = vld [vmem:[#allocation5 + $0x24] sm:$0xf]
        %v632 = vld [vmem:[#allocation5 + $0x28] sm:$0xf]
        %v633 = vld [vmem:[#allocation5 + $0x2c] sm:$0xf]
        %v634 = vld [vmem:[#allocation5 + $0x30] sm:$0xf]
        %v635 = vld [vmem:[#allocation5 + $0x34] sm:$0xf]
        %v636 = vld [vmem:[#allocation5 + $0x38] sm:$0xf]
        %v637 = vld [vmem:[#allocation5 + $0x3c] sm:$0xf]
        %v638 = vld [vmem:[%s2] sm:$0x1]
        %v640 = vlaneseq
        %v641 = vshrl.u32 %v640, 7
        %v642 = vsub.s32 0, %v641
        %v643 = vrot.slane %v638, %v642
        %v661 = vunpack.c.l.b16 %v622
        %v662 = vunpack.c.l.b16 %v623
        %v663 = vunpack.c.l.b16 %v624
        %v664 = vunpack.c.l.b16 %v625
        %v665 = vunpack.c.l.b16 %v626
        %v666 = vunpack.c.l.b16 %v627
        %v667 = vunpack.c.l.b16 %v628
        %v668 = vunpack.c.l.b16 %v629
        %v669 = vunpack.c.l.b16 %v630
        %v670 = vunpack.c.l.b16 %v631
        %v671 = vunpack.c.l.b16 %v632
        %v672 = vunpack.c.l.b16 %v633
        %v673 = vunpack.c.l.b16 %v634
        %v674 = vunpack.c.l.b16 %v635
        %v675 = vunpack.c.l.b16 %v636
        %v676 = vunpack.c.l.b16 %v637
        %v677 = vpack.c.b16 %v662, %v661
        %v678 = vpack.c.b16 %v664, %v663
        %v679 = vpack.c.b16 %v666, %v665
        %v680 = vpack.c.b16 %v668, %v667
        %v681 = vpack.c.b16 %v670, %v669
        %v682 = vpack.c.b16 %v672, %v671
        %v683 = vpack.c.b16 %v674, %v673
        %v684 = vpack.c.b16 %v676, %v675
        %693 = vmatprep.subr.bf16.mxu0 0
        %694 = vmatpush1.bf16.msra.mxu0 %v677
        %695 = vmatprep.subr.bf16.mxu0 0
        %696 = vmatpush1.bf16.msra.mxu0 %v678
        %697 = vmatprep.subr.bf16.mxu0 0
        %698 = vmatpush1.bf16.msra.mxu0 %v679
        %699 = vmatprep.subr.bf16.mxu0 0
        %700 = vmatpush1.bf16.msra.mxu0 %v680
        %701 = vmatprep.subr.bf16.mxu0 0
        %702 = vmatpush1.bf16.msra.mxu0 %v681
        %703 = vmatprep.subr.bf16.mxu0 0
        %704 = vmatpush1.bf16.msra.mxu0 %v682
        %705 = vmatprep.subr.bf16.mxu0 0
        %706 = vmatpush1.bf16.msra.mxu0 %v683
        %707 = vmatprep.subr.bf16.mxu0 0
        %708 = vmatpush1.bf16.msra.mxu0 %v684
        %709 = vmatprep.subr.bf16.mxu0 0
        %710 = vmatpush1.bf16.msra.mxu0 0
        %711 = vmatprep.subr.bf16.mxu0 0
        %712 = vmatpush1.bf16.msra.mxu0 0
        %713 = vmatprep.subr.bf16.mxu0 0
        %714 = vmatpush1.bf16.msra.mxu0 0
        %715 = vmatprep.subr.bf16.mxu0 0
        %716 = vmatpush1.bf16.msra.mxu0 0
        %717 = vmatprep.subr.bf16.mxu0 0
        %718 = vmatpush1.bf16.msra.mxu0 0
        %719 = vmatprep.subr.bf16.mxu0 0
        %720 = vmatpush1.bf16.msra.mxu0 0
        %721 = vmatprep.subr.bf16.mxu0 0
        %722 = vmatpush1.bf16.msra.mxu0 0
        %723 = vmatprep.subr.bf16.mxu0 0
        %724 = vmatpush1.bf16.msra.mxu0 0
        %725 = vmatprep.mubr.bf16.mxu0 0
        %726 = vmatmul.mubr.bf16.gmra.mrb[0].mxu0 %v606
        %v727 = vpop.f32.mrb[0].mxu0
        %v728 = vadd.f32 %v643, %v727
        %v729 = vpop.f32.mrb[0].mxu0
        %v730 = vpop.f32.mrb[0].mxu0
        %v731 = vadd.f32 %v643, %v730
        %v732 = vpop.f32.mrb[0].mxu0
        %733 = vmatprep.mubr.bf16.mxu0 0
        %734 = vmatmul.mubr.bf16.gmra.mrb[0].mxu0 %v607
        %v735 = vpop.f32.mrb[0].mxu0
        %v736 = vadd.f32 %v643, %v735
        %v737 = vpop.f32.mrb[0].mxu0
        %v738 = vpop.f32.mrb[0].mxu0
        %v739 = vadd.f32 %v643, %v738
        %v740 = vpop.f32.mrb[0].mxu0
        %741 = vmatprep.mubr.bf16.mxu0 0
        %742 = vmatmul.mubr.bf16.gmra.mrb[0].mxu0 %v608
        %v743 = vpop.f32.mrb[0].mxu0
        %v744 = vadd.f32 %v643, %v743
        %v745 = vpop.f32.mrb[0].mxu0
        %v746 = vpop.f32.mrb[0].mxu0
        %v747 = vadd.f32 %v643, %v746
        %v748 = vpop.f32.mrb[0].mxu0
        %749 = vmatprep.mubr.bf16.mxu0 0
        %750 = vmatmul.mubr.bf16.gmra.mrb[0].mxu0 %v609
        %v751 = vpop.f32.mrb[0].mxu0
        %v752 = vadd.f32 %v643, %v751
        %v753 = vpop.f32.mrb[0].mxu0
        %v754 = vpop.f32.mrb[0].mxu0
        %v755 = vadd.f32 %v643, %v754
        %v756 = vpop.f32.mrb[0].mxu0
        %757 = vmatprep.mubr.bf16.mxu0 0
        %758 = vmatmul.mubr.bf16.gmra.mrb[0].mxu0 %v610
        %v759 = vpop.f32.mrb[0].mxu0
        %v760 = vadd.f32 %v643, %v759
        %v761 = vpop.f32.mrb[0].mxu0
        %v762 = vpop.f32.mrb[0].mxu0
        %v763 = vadd.f32 %v643, %v762
        %v764 = vpop.f32.mrb[0].mxu0
        %765 = vmatprep.mubr.bf16.mxu0 0
        %766 = vmatmul.mubr.bf16.gmra.mrb[0].mxu0 %v611
        %v767 = vpop.f32.mrb[0].mxu0
        %v768 = vadd.f32 %v643, %v767
        %v769 = vpop.f32.mrb[0].mxu0
        %v770 = vpop.f32.mrb[0].mxu0
        %v771 = vadd.f32 %v643, %v770
        %v772 = vpop.f32.mrb[0].mxu0
        %773 = vmatprep.mubr.bf16.mxu0 0
        %774 = vmatmul.mubr.bf16.gmra.mrb[0].mxu0 %v612
        %v775 = vpop.f32.mrb[0].mxu0
        %v776 = vadd.f32 %v643, %v775
        %v777 = vpop.f32.mrb[0].mxu0
        %v778 = vpop.f32.mrb[0].mxu0
        %v779 = vadd.f32 %v643, %v778
        %v780 = vpop.f32.mrb[0].mxu0
        %781 = vmatprep.mubr.bf16.mxu0 0
        %782 = vmatmul.mubr.bf16.gmra.mrb[0].mxu0 %v613
        %v783 = vpop.f32.mrb[0].mxu0
        %v784 = vadd.f32 %v643, %v783
        %v785 = vpop.f32.mrb[0].mxu0
        %v786 = vpop.f32.mrb[0].mxu0
        %v787 = vadd.f32 %v643, %v786
        %v788 = vpop.f32.mrb[0].mxu0
        %789 = vmatprep.mubr.bf16.mxu0 0
        %790 = vmatmul.mubr.bf16.gmra.mrb[0].mxu0 %v614
        %v791 = vpop.f32.mrb[0].mxu0
        %v792 = vadd.f32 %v643, %v791
        %v793 = vpop.f32.mrb[0].mxu0
        %v794 = vpop.f32.mrb[0].mxu0
        %v795 = vadd.f32 %v643, %v794
        %v796 = vpop.f32.mrb[0].mxu0
        %797 = vmatprep.mubr.bf16.mxu0 0
        %798 = vmatmul.mubr.bf16.gmra.mrb[0].mxu0 %v615
        %v799 = vpop.f32.mrb[0].mxu0
        %v800 = vadd.f32 %v643, %v799
        %v801 = vpop.f32.mrb[0].mxu0
        %v802 = vpop.f32.mrb[0].mxu0
        %v803 = vadd.f32 %v643, %v802
        %v804 = vpop.f32.mrb[0].mxu0
        %805 = vmatprep.mubr.bf16.mxu0 0
        %806 = vmatmul.mubr.bf16.gmra.mrb[0].mxu0 %v616
        %v807 = vpop.f32.mrb[0].mxu0
        %v808 = vadd.f32 %v643, %v807
        %v809 = vpop.f32.mrb[0].mxu0
        %v810 = vpop.f32.mrb[0].mxu0
        %v811 = vadd.f32 %v643, %v810
        %v812 = vpop.f32.mrb[0].mxu0
        %813 = vmatprep.mubr.bf16.mxu0 0
        %814 = vmatmul.mubr.bf16.gmra.mrb[0].mxu0 %v617
        %v815 = vpop.f32.mrb[0].mxu0
        %v816 = vadd.f32 %v643, %v815
        %v817 = vpop.f32.mrb[0].mxu0
        %v818 = vpop.f32.mrb[0].mxu0
        %v819 = vadd.f32 %v643, %v818
        %v820 = vpop.f32.mrb[0].mxu0
        %821 = vmatprep.mubr.bf16.mxu0 0
        %822 = vmatmul.mubr.bf16.gmra.mrb[0].mxu0 %v618
        %v823 = vpop.f32.mrb[0].mxu0
        %v824 = vadd.f32 %v643, %v823
        %v825 = vpop.f32.mrb[0].mxu0
        %v826 = vpop.f32.mrb[0].mxu0
        %v827 = vadd.f32 %v643, %v826
        %v828 = vpop.f32.mrb[0].mxu0
        %829 = vmatprep.mubr.bf16.mxu0 0
        %830 = vmatmul.mubr.bf16.gmra.mrb[0].mxu0 %v619
        %v831 = vpop.f32.mrb[0].mxu0
        %v832 = vadd.f32 %v643, %v831
        %v833 = vpop.f32.mrb[0].mxu0
        %v834 = vpop.f32.mrb[0].mxu0
        %v835 = vadd.f32 %v643, %v834
        %v836 = vpop.f32.mrb[0].mxu0
        %837 = vmatprep.mubr.bf16.mxu0 0
        %838 = vmatmul.mubr.bf16.gmra.mrb[0].mxu0 %v620
        %v839 = vpop.f32.mrb[0].mxu0
        %v840 = vadd.f32 %v643, %v839
        %v841 = vpop.f32.mrb[0].mxu0
        %v842 = vpop.f32.mrb[0].mxu0
        %v843 = vadd.f32 %v643, %v842
        %v844 = vpop.f32.mrb[0].mxu0
        %845 = vmatprep.mubr.bf16.mxu0 0
        %846 = vmatmul.mubr.bf16.gmra.mrb[0].mxu0 %v621
        %v847 = vpop.f32.mrb[0].mxu0
        %v848 = vadd.f32 %v643, %v847
        %v849 = vpop.f32.mrb[0].mxu0
        %v850 = vpop.f32.mrb[0].mxu0
        %v851 = vadd.f32 %v643, %v850
        %v852 = vpop.f32.mrb[0].mxu0
        %853 = vdwg.mxu0
        %v854 = vld [vmem:[%s3] sm:$0x1]
        %v855 = vld [vmem:[%s4] sm:$0x1]
        %856 = vadd.xlane.f32.xlu0 %v728
        %v857 = vpop.xlane.xlu0 %856
        %858 = vadd.xlane.f32.xlu0 %v731
        %v859 = vpop.xlane.xlu0 %858
        %860 = vadd.xlane.f32.xlu0 %v736
        %v861 = vpop.xlane.xlu0 %860
        %862 = vadd.xlane.f32.xlu0 %v739
        %v863 = vpop.xlane.xlu0 %862
        %864 = vadd.xlane.f32.xlu0 %v744
        %v865 = vpop.xlane.xlu0 %864
        %866 = vadd.xlane.f32.xlu0 %v747
        %v867 = vpop.xlane.xlu0 %866
        %868 = vadd.xlane.f32.xlu0 %v752
        %v869 = vpop.xlane.xlu0 %868
        %870 = vadd.xlane.f32.xlu0 %v755
        %v871 = vpop.xlane.xlu0 %870
        %872 = vadd.xlane.f32.xlu0 %v760
        %v873 = vpop.xlane.xlu0 %872
        %874 = vadd.xlane.f32.xlu0 %v763
        %v875 = vpop.xlane.xlu0 %874
        %876 = vadd.xlane.f32.xlu0 %v768
        %v877 = vpop.xlane.xlu0 %876
        %878 = vadd.xlane.f32.xlu0 %v771
        %v879 = vpop.xlane.xlu0 %878
        %880 = vadd.xlane.f32.xlu0 %v776
        %v881 = vpop.xlane.xlu0 %880
        %882 = vadd.xlane.f32.xlu0 %v779
        %v883 = vpop.xlane.xlu0 %882
        %884 = vadd.xlane.f32.xlu0 %v784
        %v885 = vpop.xlane.xlu0 %884
        %886 = vadd.xlane.f32.xlu0 %v787
        %v887 = vpop.xlane.xlu0 %886
        %888 = vadd.xlane.f32.xlu0 %v792
        %v889 = vpop.xlane.xlu0 %888
        %890 = vadd.xlane.f32.xlu0 %v795
        %v891 = vpop.xlane.xlu0 %890
        %892 = vadd.xlane.f32.xlu0 %v800
        %v893 = vpop.xlane.xlu0 %892
        %894 = vadd.xlane.f32.xlu0 %v803
        %v895 = vpop.xlane.xlu0 %894
        %896 = vadd.xlane.f32.xlu0 %v808
        %v897 = vpop.xlane.xlu0 %896
        %898 = vadd.xlane.f32.xlu0 %v811
        %v899 = vpop.xlane.xlu0 %898
        %900 = vadd.xlane.f32.xlu0 %v816
        %v901 = vpop.xlane.xlu0 %900
        %902 = vadd.xlane.f32.xlu0 %v819
        %v903 = vpop.xlane.xlu0 %902
        %904 = vadd.xlane.f32.xlu0 %v824
        %v905 = vpop.xlane.xlu0 %904
        %906 = vadd.xlane.f32.xlu0 %v827
        %v907 = vpop.xlane.xlu0 %906
        %908 = vadd.xlane.f32.xlu0 %v832
        %v909 = vpop.xlane.xlu0 %908
        %910 = vadd.xlane.f32.xlu0 %v835
        %v911 = vpop.xlane.xlu0 %910
        %912 = vadd.xlane.f32.xlu0 %v840
        %v913 = vpop.xlane.xlu0 %912
        %914 = vadd.xlane.f32.xlu0 %v843
        %v915 = vpop.xlane.xlu0 %914
        %916 = vadd.xlane.f32.xlu0 %v848
        %v917 = vpop.xlane.xlu0 %916
        %918 = vadd.xlane.f32.xlu0 %v851
        %v919 = vpop.xlane.xlu0 %918
        %v920 = vmul.f32 %v728, %v728
        %v921 = vmul.f32 %v731, %v731
        %v922 = vmul.f32 %v736, %v736
        %v923 = vmul.f32 %v739, %v739
        %v924 = vmul.f32 %v744, %v744
        %v925 = vmul.f32 %v747, %v747
        %v926 = vmul.f32 %v752, %v752
        %v927 = vmul.f32 %v755, %v755
        %v928 = vmul.f32 %v760, %v760
        %v929 = vmul.f32 %v763, %v763
        %v930 = vmul.f32 %v768, %v768
        %v931 = vmul.f32 %v771, %v771
        %v932 = vmul.f32 %v776, %v776
        %v933 = vmul.f32 %v779, %v779
        %v934 = vmul.f32 %v784, %v784
        %v935 = vmul.f32 %v787, %v787
        %v936 = vmul.f32 %v792, %v792
        %v937 = vmul.f32 %v795, %v795
        %v938 = vmul.f32 %v800, %v800
        %v939 = vmul.f32 %v803, %v803
        %v940 = vmul.f32 %v808, %v808
        %v941 = vmul.f32 %v811, %v811
        %v942 = vmul.f32 %v816, %v816
        %v943 = vmul.f32 %v819, %v819
        %v944 = vmul.f32 %v824, %v824
        %v945 = vmul.f32 %v827, %v827
        %v946 = vmul.f32 %v832, %v832
        %v947 = vmul.f32 %v835, %v835
        %v948 = vmul.f32 %v840, %v840
        %v949 = vmul.f32 %v843, %v843
        %v950 = vmul.f32 %v848, %v848
        %v951 = vmul.f32 %v851, %v851
        %952 = vadd.xlane.f32.xlu0 %v920
        %v953 = vpop.xlane.xlu0 %952
        %954 = vadd.xlane.f32.xlu0 %v921
        %v955 = vpop.xlane.xlu0 %954
        %956 = vadd.xlane.f32.xlu0 %v922
        %v957 = vpop.xlane.xlu0 %956
        %958 = vadd.xlane.f32.xlu0 %v923
        %v959 = vpop.xlane.xlu0 %958
        %960 = vadd.xlane.f32.xlu0 %v924
        %v961 = vpop.xlane.xlu0 %960
        %962 = vadd.xlane.f32.xlu0 %v925
        %v963 = vpop.xlane.xlu0 %962
        %964 = vadd.xlane.f32.xlu0 %v926
        %v965 = vpop.xlane.xlu0 %964
        %966 = vadd.xlane.f32.xlu0 %v927
        %v967 = vpop.xlane.xlu0 %966
        %968 = vadd.xlane.f32.xlu0 %v928
        %v969 = vpop.xlane.xlu0 %968
        %970 = vadd.xlane.f32.xlu0 %v929
        %v971 = vpop.xlane.xlu0 %970
        %972 = vadd.xlane.f32.xlu0 %v930
        %v973 = vpop.xlane.xlu0 %972
        %974 = vadd.xlane.f32.xlu0 %v931
        %v975 = vpop.xlane.xlu0 %974
        %976 = vadd.xlane.f32.xlu0 %v932
        %v977 = vpop.xlane.xlu0 %976
        %978 = vadd.xlane.f32.xlu0 %v933
        %v979 = vpop.xlane.xlu0 %978
        %980 = vadd.xlane.f32.xlu0 %v934
        %v981 = vpop.xlane.xlu0 %980
        %982 = vadd.xlane.f32.xlu0 %v935
        %v983 = vpop.xlane.xlu0 %982
        %984 = vadd.xlane.f32.xlu0 %v936
        %v985 = vpop.xlane.xlu0 %984
        %986 = vadd.xlane.f32.xlu0 %v937
        %v987 = vpop.xlane.xlu0 %986
        %988 = vadd.xlane.f32.xlu0 %v938
        %v989 = vpop.xlane.xlu0 %988
        %990 = vadd.xlane.f32.xlu0 %v939
        %v991 = vpop.xlane.xlu0 %990
        %992 = vadd.xlane.f32.xlu0 %v940
        %v993 = vpop.xlane.xlu0 %992
        %994 = vadd.xlane.f32.xlu0 %v941
        %v995 = vpop.xlane.xlu0 %994
        %996 = vadd.xlane.f32.xlu0 %v942
        %v997 = vpop.xlane.xlu0 %996
        %998 = vadd.xlane.f32.xlu0 %v943
        %v999 = vpop.xlane.xlu0 %998
        %1000 = vadd.xlane.f32.xlu0 %v944
        %v1001 = vpop.xlane.xlu0 %1000
        %1002 = vadd.xlane.f32.xlu0 %v945
        %v1003 = vpop.xlane.xlu0 %1002
        %1004 = vadd.xlane.f32.xlu0 %v946
        %v1005 = vpop.xlane.xlu0 %1004
        %1006 = vadd.xlane.f32.xlu0 %v947
        %v1007 = vpop.xlane.xlu0 %1006
        %1008 = vadd.xlane.f32.xlu0 %v948
        %v1009 = vpop.xlane.xlu0 %1008
        %1010 = vadd.xlane.f32.xlu0 %v949
        %v1011 = vpop.xlane.xlu0 %1010
        %1012 = vadd.xlane.f32.xlu0 %v950
        %v1013 = vpop.xlane.xlu0 %1012
        %1014 = vadd.xlane.f32.xlu0 %v951
        %v1015 = vpop.xlane.xlu0 %1014
        %v1016 = vmul.f32 %v857, 0.0078125
        %v1017 = vmul.f32 %v859, 0.0078125
        %v1018 = vmul.f32 %v861, 0.0078125
        %v1019 = vmul.f32 %v863, 0.0078125
        %v1020 = vmul.f32 %v865, 0.0078125
        %v1021 = vmul.f32 %v867, 0.0078125
        %v1022 = vmul.f32 %v869, 0.0078125
        %v1023 = vmul.f32 %v871, 0.0078125
        %v1024 = vmul.f32 %v873, 0.0078125
        %v1025 = vmul.f32 %v875, 0.0078125
        %v1026 = vmul.f32 %v877, 0.0078125
        %v1027 = vmul.f32 %v879, 0.0078125
        %v1028 = vmul.f32 %v881, 0.0078125
        %v1029 = vmul.f32 %v883, 0.0078125
        %v1030 = vmul.f32 %v885, 0.0078125
        %v1031 = vmul.f32 %v887, 0.0078125
        %v1032 = vmul.f32 %v889, 0.0078125
        %v1033 = vmul.f32 %v891, 0.0078125
        %v1034 = vmul.f32 %v893, 0.0078125
        %v1035 = vmul.f32 %v895, 0.0078125
        %v1036 = vmul.f32 %v897, 0.0078125
        %v1037 = vmul.f32 %v899, 0.0078125
        %v1038 = vmul.f32 %v901, 0.0078125
        %v1039 = vmul.f32 %v903, 0.0078125
        %v1040 = vmul.f32 %v905, 0.0078125
        %v1041 = vmul.f32 %v907, 0.0078125
        %v1042 = vmul.f32 %v909, 0.0078125
        %v1043 = vmul.f32 %v911, 0.0078125
        %v1044 = vmul.f32 %v913, 0.0078125
        %v1045 = vmul.f32 %v915, 0.0078125
        %v1046 = vmul.f32 %v917, 0.0078125
        %v1047 = vmul.f32 %v919, 0.0078125
        %v1048 = vmul.f32 %v953, 0.0078125
        %v1049 = vmul.f32 %v955, 0.0078125
        %v1050 = vmul.f32 %v957, 0.0078125
        %v1051 = vmul.f32 %v959, 0.0078125
        %v1052 = vmul.f32 %v961, 0.0078125
        %v1053 = vmul.f32 %v963, 0.0078125
        %v1054 = vmul.f32 %v965, 0.0078125
        %v1055 = vmul.f32 %v967, 0.0078125
        %v1056 = vmul.f32 %v969, 0.0078125
        %v1057 = vmul.f32 %v971, 0.0078125
        %v1058 = vmul.f32 %v973, 0.0078125
        %v1059 = vmul.f32 %v975, 0.0078125
        %v1060 = vmul.f32 %v977, 0.0078125
        %v1061 = vmul.f32 %v979, 0.0078125
        %v1062 = vmul.f32 %v981, 0.0078125
        %v1063 = vmul.f32 %v983, 0.0078125
        %v1064 = vmul.f32 %v985, 0.0078125
        %v1065 = vmul.f32 %v987, 0.0078125
        %v1066 = vmul.f32 %v989, 0.0078125
        %v1067 = vmul.f32 %v991, 0.0078125
        %v1068 = vmul.f32 %v993, 0.0078125
        %v1069 = vmul.f32 %v995, 0.0078125
        %v1070 = vmul.f32 %v997, 0.0078125
        %v1071 = vmul.f32 %v999, 0.0078125
        %v1072 = vmul.f32 %v1001, 0.0078125
        %v1073 = vmul.f32 %v1003, 0.0078125
        %v1074 = vmul.f32 %v1005, 0.0078125
        %v1075 = vmul.f32 %v1007, 0.0078125
        %v1076 = vmul.f32 %v1009, 0.0078125
        %v1077 = vmul.f32 %v1011, 0.0078125
        %v1078 = vmul.f32 %v1013, 0.0078125
        %v1079 = vmul.f32 %v1015, 0.0078125
        %v1080 = vmul.f32 %v1016, %v1016
        %v1081 = vmul.f32 %v1017, %v1017
        %v1082 = vmul.f32 %v1018, %v1018
        %v1083 = vmul.f32 %v1019, %v1019
        %v1084 = vmul.f32 %v1020, %v1020
        %v1085 = vmul.f32 %v1021, %v1021
        %v1086 = vmul.f32 %v1022, %v1022
        %v1087 = vmul.f32 %v1023, %v1023
        %v1088 = vmul.f32 %v1024, %v1024
        %v1089 = vmul.f32 %v1025, %v1025
        %v1090 = vmul.f32 %v1026, %v1026
        %v1091 = vmul.f32 %v1027, %v1027
        %v1092 = vmul.f32 %v1028, %v1028
        %v1093 = vmul.f32 %v1029, %v1029
        %v1094 = vmul.f32 %v1030, %v1030
        %v1095 = vmul.f32 %v1031, %v1031
        %v1096 = vmul.f32 %v1032, %v1032
        %v1097 = vmul.f32 %v1033, %v1033
        %v1098 = vmul.f32 %v1034, %v1034
        %v1099 = vmul.f32 %v1035, %v1035
        %v1100 = vmul.f32 %v1036, %v1036
        %v1101 = vmul.f32 %v1037, %v1037
        %v1102 = vmul.f32 %v1038, %v1038
        %v1103 = vmul.f32 %v1039, %v1039
        %v1104 = vmul.f32 %v1040, %v1040
        %v1105 = vmul.f32 %v1041, %v1041
        %v1106 = vmul.f32 %v1042, %v1042
        %v1107 = vmul.f32 %v1043, %v1043
        %v1108 = vmul.f32 %v1044, %v1044
        %v1109 = vmul.f32 %v1045, %v1045
        %v1110 = vmul.f32 %v1046, %v1046
        %v1111 = vmul.f32 %v1047, %v1047
        %v1112 = vsub.f32 %v1048, %v1080
        %v1113 = vsub.f32 %v1049, %v1081
        %v1114 = vsub.f32 %v1050, %v1082
        %v1115 = vsub.f32 %v1051, %v1083
        %v1116 = vsub.f32 %v1052, %v1084
        %v1117 = vsub.f32 %v1053, %v1085
        %v1118 = vsub.f32 %v1054, %v1086
        %v1119 = vsub.f32 %v1055, %v1087
        %v1120 = vsub.f32 %v1056, %v1088
        %v1121 = vsub.f32 %v1057, %v1089
        %v1122 = vsub.f32 %v1058, %v1090
        %v1123 = vsub.f32 %v1059, %v1091
        %v1124 = vsub.f32 %v1060, %v1092
        %v1125 = vsub.f32 %v1061, %v1093
        %v1126 = vsub.f32 %v1062, %v1094
        %v1127 = vsub.f32 %v1063, %v1095
        %v1128 = vsub.f32 %v1064, %v1096
        %v1129 = vsub.f32 %v1065, %v1097
        %v1130 = vsub.f32 %v1066, %v1098
        %v1131 = vsub.f32 %v1067, %v1099
        %v1132 = vsub.f32 %v1068, %v1100
        %v1133 = vsub.f32 %v1069, %v1101
        %v1134 = vsub.f32 %v1070, %v1102
        %v1135 = vsub.f32 %v1071, %v1103
        %v1136 = vsub.f32 %v1072, %v1104
        %v1137 = vsub.f32 %v1073, %v1105
        %v1138 = vsub.f32 %v1074, %v1106
        %v1139 = vsub.f32 %v1075, %v1107
        %v1140 = vsub.f32 %v1076, %v1108
        %v1141 = vsub.f32 %v1077, %v1109
        %v1142 = vsub.f32 %v1078, %v1110
        %v1143 = vsub.f32 %v1079, %v1111
        %v1144 = vmax.f32 %v1112, 0.0
        %v1145 = vmax.f32 %v1113, 0.0
        %v1146 = vmax.f32 %v1114, 0.0
        %v1147 = vmax.f32 %v1115, 0.0
        %v1148 = vmax.f32 %v1116, 0.0
        %v1149 = vmax.f32 %v1117, 0.0
        %v1150 = vmax.f32 %v1118, 0.0
        %v1151 = vmax.f32 %v1119, 0.0
        %v1152 = vmax.f32 %v1120, 0.0
        %v1153 = vmax.f32 %v1121, 0.0
        %v1154 = vmax.f32 %v1122, 0.0
        %v1155 = vmax.f32 %v1123, 0.0
        %v1156 = vmax.f32 %v1124, 0.0
        %v1157 = vmax.f32 %v1125, 0.0
        %v1158 = vmax.f32 %v1126, 0.0
        %v1159 = vmax.f32 %v1127, 0.0
        %v1160 = vmax.f32 %v1128, 0.0
        %v1161 = vmax.f32 %v1129, 0.0
        %v1162 = vmax.f32 %v1130, 0.0
        %v1163 = vmax.f32 %v1131, 0.0
        %v1164 = vmax.f32 %v1132, 0.0
        %v1165 = vmax.f32 %v1133, 0.0
        %v1166 = vmax.f32 %v1134, 0.0
        %v1167 = vmax.f32 %v1135, 0.0
        %v1168 = vmax.f32 %v1136, 0.0
        %v1169 = vmax.f32 %v1137, 0.0
        %v1170 = vmax.f32 %v1138, 0.0
        %v1171 = vmax.f32 %v1139, 0.0
        %v1172 = vmax.f32 %v1140, 0.0
        %v1173 = vmax.f32 %v1141, 0.0
        %v1174 = vmax.f32 %v1142, 0.0
        %v1175 = vmax.f32 %v1143, 0.0
        %v1176 = vsub.f32 %v728, %v1016
        %v1177 = vsub.f32 %v731, %v1017
        %v1178 = vsub.f32 %v736, %v1018
        %v1179 = vsub.f32 %v739, %v1019
        %v1180 = vsub.f32 %v744, %v1020
        %v1181 = vsub.f32 %v747, %v1021
        %v1182 = vsub.f32 %v752, %v1022
        %v1183 = vsub.f32 %v755, %v1023
        %v1184 = vsub.f32 %v760, %v1024
        %v1185 = vsub.f32 %v763, %v1025
        %v1186 = vsub.f32 %v768, %v1026
        %v1187 = vsub.f32 %v771, %v1027
        %v1188 = vsub.f32 %v776, %v1028
        %v1189 = vsub.f32 %v779, %v1029
        %v1190 = vsub.f32 %v784, %v1030
        %v1191 = vsub.f32 %v787, %v1031
        %v1192 = vsub.f32 %v792, %v1032
        %v1193 = vsub.f32 %v795, %v1033
        %v1194 = vsub.f32 %v800, %v1034
        %v1195 = vsub.f32 %v803, %v1035
        %v1196 = vsub.f32 %v808, %v1036
        %v1197 = vsub.f32 %v811, %v1037
        %v1198 = vsub.f32 %v816, %v1038
        %v1199 = vsub.f32 %v819, %v1039
        %v1200 = vsub.f32 %v824, %v1040
        %v1201 = vsub.f32 %v827, %v1041
        %v1202 = vsub.f32 %v832, %v1042
        %v1203 = vsub.f32 %v835, %v1043
        %v1204 = vsub.f32 %v840, %v1044
        %v1205 = vsub.f32 %v843, %v1045
        %v1206 = vsub.f32 %v848, %v1046
        %v1207 = vsub.f32 %v851, %v1047
        %v1208 = vadd.f32 %v1144, 1e-05
        %v1209 = vadd.f32 %v1145, 1e-05
        %v1210 = vadd.f32 %v1146, 1e-05
        %v1211 = vadd.f32 %v1147, 1e-05
        %v1212 = vadd.f32 %v1148, 1e-05
        %v1213 = vadd.f32 %v1149, 1e-05
        %v1214 = vadd.f32 %v1150, 1e-05
        %v1215 = vadd.f32 %v1151, 1e-05
        %v1216 = vadd.f32 %v1152, 1e-05
        %v1217 = vadd.f32 %v1153, 1e-05
        %v1218 = vadd.f32 %v1154, 1e-05
        %v1219 = vadd.f32 %v1155, 1e-05
        %v1220 = vadd.f32 %v1156, 1e-05
        %v1221 = vadd.f32 %v1157, 1e-05
        %v1222 = vadd.f32 %v1158, 1e-05
        %v1223 = vadd.f32 %v1159, 1e-05
        %v1224 = vadd.f32 %v1160, 1e-05
        %v1225 = vadd.f32 %v1161, 1e-05
        %v1226 = vadd.f32 %v1162, 1e-05
        %v1227 = vadd.f32 %v1163, 1e-05
        %v1228 = vadd.f32 %v1164, 1e-05
        %v1229 = vadd.f32 %v1165, 1e-05
        %v1230 = vadd.f32 %v1166, 1e-05
        %v1231 = vadd.f32 %v1167, 1e-05
        %v1232 = vadd.f32 %v1168, 1e-05
        %v1233 = vadd.f32 %v1169, 1e-05
        %v1234 = vadd.f32 %v1170, 1e-05
        %v1235 = vadd.f32 %v1171, 1e-05
        %v1236 = vadd.f32 %v1172, 1e-05
        %v1237 = vadd.f32 %v1173, 1e-05
        %v1238 = vadd.f32 %v1174, 1e-05
        %v1239 = vadd.f32 %v1175, 1e-05
        %v1240 = vrsqrt.pop %v1208
        %v1241 = vrsqrt.pop %v1209
        %v1242 = vrsqrt.pop %v1210
        %v1243 = vrsqrt.pop %v1211
        %v1244 = vrsqrt.pop %v1212
        %v1245 = vrsqrt.pop %v1213
        %v1246 = vrsqrt.pop %v1214
        %v1247 = vrsqrt.pop %v1215
        %v1248 = vrsqrt.pop %v1216
        %v1249 = vrsqrt.pop %v1217
        %v1250 = vrsqrt.pop %v1218
        %v1251 = vrsqrt.pop %v1219
        %v1252 = vrsqrt.pop %v1220
        %v1253 = vrsqrt.pop %v1221
        %v1254 = vrsqrt.pop %v1222
        %v1255 = vrsqrt.pop %v1223
        %v1256 = vrsqrt.pop %v1224
        %v1257 = vrsqrt.pop %v1225
        %v1258 = vrsqrt.pop %v1226
        %v1259 = vrsqrt.pop %v1227
        %v1260 = vrsqrt.pop %v1228
        %v1261 = vrsqrt.pop %v1229
        %v1262 = vrsqrt.pop %v1230
        %v1263 = vrsqrt.pop %v1231
        %v1264 = vrsqrt.pop %v1232
        %v1265 = vrsqrt.pop %v1233
        %v1266 = vrsqrt.pop %v1234
        %v1267 = vrsqrt.pop %v1235
        %v1268 = vrsqrt.pop %v1236
        %v1269 = vrsqrt.pop %v1237
        %v1270 = vrsqrt.pop %v1238
        %v1271 = vrsqrt.pop %v1239
        %v1272 = vmul.f32 %v1176, %v1240
        %v1273 = vmul.f32 %v1177, %v1241
        %v1274 = vmul.f32 %v1178, %v1242
        %v1275 = vmul.f32 %v1179, %v1243
        %v1276 = vmul.f32 %v1180, %v1244
        %v1277 = vmul.f32 %v1181, %v1245
        %v1278 = vmul.f32 %v1182, %v1246
        %v1279 = vmul.f32 %v1183, %v1247
        %v1280 = vmul.f32 %v1184, %v1248
        %v1281 = vmul.f32 %v1185, %v1249
        %v1282 = vmul.f32 %v1186, %v1250
        %v1283 = vmul.f32 %v1187, %v1251
        %v1284 = vmul.f32 %v1188, %v1252
        %v1285 = vmul.f32 %v1189, %v1253
        %v1286 = vmul.f32 %v1190, %v1254
        %v1287 = vmul.f32 %v1191, %v1255
        %v1288 = vmul.f32 %v1192, %v1256
        %v1289 = vmul.f32 %v1193, %v1257
        %v1290 = vmul.f32 %v1194, %v1258
        %v1291 = vmul.f32 %v1195, %v1259
        %v1292 = vmul.f32 %v1196, %v1260
        %v1293 = vmul.f32 %v1197, %v1261
        %v1294 = vmul.f32 %v1198, %v1262
        %v1295 = vmul.f32 %v1199, %v1263
        %v1296 = vmul.f32 %v1200, %v1264
        %v1297 = vmul.f32 %v1201, %v1265
        %v1298 = vmul.f32 %v1202, %v1266
        %v1299 = vmul.f32 %v1203, %v1267
        %v1300 = vmul.f32 %v1204, %v1268
        %v1301 = vmul.f32 %v1205, %v1269
        %v1302 = vmul.f32 %v1206, %v1270
        %v1303 = vmul.f32 %v1207, %v1271
        %v1305 = vlaneseq
        %v1306 = vshrl.u32 %v1305, 7
        %v1307 = vsub.s32 0, %v1306
        %v1308 = vrot.slane %v854, %v1307
        %v1310 = vmul.f32 %v1272, %v1308
        %v1311 = vmul.f32 %v1273, %v1308
        %v1312 = vmul.f32 %v1274, %v1308
        %v1313 = vmul.f32 %v1275, %v1308
        %v1314 = vmul.f32 %v1276, %v1308
        %v1315 = vmul.f32 %v1277, %v1308
        %v1316 = vmul.f32 %v1278, %v1308
        %v1317 = vmul.f32 %v1279, %v1308
        %v1318 = vmul.f32 %v1280, %v1308
        %v1319 = vmul.f32 %v1281, %v1308
        %v1320 = vmul.f32 %v1282, %v1308
        %v1321 = vmul.f32 %v1283, %v1308
        %v1322 = vmul.f32 %v1284, %v1308
        %v1323 = vmul.f32 %v1285, %v1308
        %v1324 = vmul.f32 %v1286, %v1308
        %v1325 = vmul.f32 %v1287, %v1308
        %v1326 = vmul.f32 %v1288, %v1308
        %v1327 = vmul.f32 %v1289, %v1308
        %v1328 = vmul.f32 %v1290, %v1308
        %v1329 = vmul.f32 %v1291, %v1308
        %v1330 = vmul.f32 %v1292, %v1308
        %v1331 = vmul.f32 %v1293, %v1308
        %v1332 = vmul.f32 %v1294, %v1308
        %v1333 = vmul.f32 %v1295, %v1308
        %v1334 = vmul.f32 %v1296, %v1308
        %v1335 = vmul.f32 %v1297, %v1308
        %v1336 = vmul.f32 %v1298, %v1308
        %v1337 = vmul.f32 %v1299, %v1308
        %v1338 = vmul.f32 %v1300, %v1308
        %v1339 = vmul.f32 %v1301, %v1308
        %v1340 = vmul.f32 %v1302, %v1308
        %v1341 = vmul.f32 %v1303, %v1308
        %v1343 = vlaneseq
        %v1344 = vshrl.u32 %v1343, 7
        %v1345 = vsub.s32 0, %v1344
        %v1346 = vrot.slane %v855, %v1345
        %v1348 = vadd.f32 %v1310, %v1346
        %v1349 = vadd.f32 %v1311, %v1346
        %v1350 = vadd.f32 %v1312, %v1346
        %v1351 = vadd.f32 %v1313, %v1346
        %v1352 = vadd.f32 %v1314, %v1346
        %v1353 = vadd.f32 %v1315, %v1346
        %v1354 = vadd.f32 %v1316, %v1346
        %v1355 = vadd.f32 %v1317, %v1346
        %v1356 = vadd.f32 %v1318, %v1346
        %v1357 = vadd.f32 %v1319, %v1346
        %v1358 = vadd.f32 %v1320, %v1346
        %v1359 = vadd.f32 %v1321, %v1346
        %v1360 = vadd.f32 %v1322, %v1346
        %v1361 = vadd.f32 %v1323, %v1346
        %v1362 = vadd.f32 %v1324, %v1346
        %v1363 = vadd.f32 %v1325, %v1346
        %v1364 = vadd.f32 %v1326, %v1346
        %v1365 = vadd.f32 %v1327, %v1346
        %v1366 = vadd.f32 %v1328, %v1346
        %v1367 = vadd.f32 %v1329, %v1346
        %v1368 = vadd.f32 %v1330, %v1346
        %v1369 = vadd.f32 %v1331, %v1346
        %v1370 = vadd.f32 %v1332, %v1346
        %v1371 = vadd.f32 %v1333, %v1346
        %v1372 = vadd.f32 %v1334, %v1346
        %v1373 = vadd.f32 %v1335, %v1346
        %v1374 = vadd.f32 %v1336, %v1346
        %v1375 = vadd.f32 %v1337, %v1346
        %v1376 = vadd.f32 %v1338, %v1346
        %v1377 = vadd.f32 %v1339, %v1346
        %v1378 = vadd.f32 %v1340, %v1346
        %v1379 = vadd.f32 %v1341, %v1346
        %v1380 = vmax.f32 %v1348, 0.0
        %v1381 = vmax.f32 %v1349, 0.0
        %v1382 = vmax.f32 %v1350, 0.0
        %v1383 = vmax.f32 %v1351, 0.0
        %v1384 = vmax.f32 %v1352, 0.0
        %v1385 = vmax.f32 %v1353, 0.0
        %v1386 = vmax.f32 %v1354, 0.0
        %v1387 = vmax.f32 %v1355, 0.0
        %v1388 = vmax.f32 %v1356, 0.0
        %v1389 = vmax.f32 %v1357, 0.0
        %v1390 = vmax.f32 %v1358, 0.0
        %v1391 = vmax.f32 %v1359, 0.0
        %v1392 = vmax.f32 %v1360, 0.0
        %v1393 = vmax.f32 %v1361, 0.0
        %v1394 = vmax.f32 %v1362, 0.0
        %v1395 = vmax.f32 %v1363, 0.0
        %v1396 = vmax.f32 %v1364, 0.0
        %v1397 = vmax.f32 %v1365, 0.0
        %v1398 = vmax.f32 %v1366, 0.0
        %v1399 = vmax.f32 %v1367, 0.0
        %v1400 = vmax.f32 %v1368, 0.0
        %v1401 = vmax.f32 %v1369, 0.0
        %v1402 = vmax.f32 %v1370, 0.0
        %v1403 = vmax.f32 %v1371, 0.0
        %v1404 = vmax.f32 %v1372, 0.0
        %v1405 = vmax.f32 %v1373, 0.0
        %v1406 = vmax.f32 %v1374, 0.0
        %v1407 = vmax.f32 %v1375, 0.0
        %v1408 = vmax.f32 %v1376, 0.0
        %v1409 = vmax.f32 %v1377, 0.0
        %v1410 = vmax.f32 %v1378, 0.0
        %v1411 = vmax.f32 %v1379, 0.0
        %v1412 = vpack.c.bf16 %v1381, %v1380
        %v1413 = vpack.c.bf16 %v1383, %v1382
        %v1414 = vpack.c.bf16 %v1385, %v1384
        %v1415 = vpack.c.bf16 %v1387, %v1386
        %v1416 = vpack.c.bf16 %v1389, %v1388
        %v1417 = vpack.c.bf16 %v1391, %v1390
        %v1418 = vpack.c.bf16 %v1393, %v1392
        %v1419 = vpack.c.bf16 %v1395, %v1394
        %v1420 = vpack.c.bf16 %v1397, %v1396
        %v1421 = vpack.c.bf16 %v1399, %v1398
        %v1422 = vpack.c.bf16 %v1401, %v1400
        %v1423 = vpack.c.bf16 %v1403, %v1402
        %v1424 = vpack.c.bf16 %v1405, %v1404
        %v1425 = vpack.c.bf16 %v1407, %v1406
        %v1426 = vpack.c.bf16 %v1409, %v1408
        %v1427 = vpack.c.bf16 %v1411, %v1410
        %v1428 = vld [vmem:[#allocation7] sm:$0xf]
        %v1429 = vld [vmem:[#allocation7 + $0x4] sm:$0xf]
        %v1430 = vld [vmem:[#allocation7 + $0x8] sm:$0xf]
        %v1431 = vld [vmem:[#allocation7 + $0xc] sm:$0xf]
        %v1432 = vld [vmem:[#allocation7 + $0x10] sm:$0xf]
        %v1433 = vld [vmem:[#allocation7 + $0x14] sm:$0xf]
        %v1434 = vld [vmem:[#allocation7 + $0x18] sm:$0xf]
        %v1435 = vld [vmem:[#allocation7 + $0x1c] sm:$0xf]
        %v1436 = vld [vmem:[#allocation7 + $0x20] sm:$0xf]
        %v1437 = vld [vmem:[#allocation7 + $0x24] sm:$0xf]
        %v1438 = vld [vmem:[#allocation7 + $0x28] sm:$0xf]
        %v1439 = vld [vmem:[#allocation7 + $0x2c] sm:$0xf]
        %v1440 = vld [vmem:[#allocation7 + $0x30] sm:$0xf]
        %v1441 = vld [vmem:[#allocation7 + $0x34] sm:$0xf]
        %v1442 = vld [vmem:[#allocation7 + $0x38] sm:$0xf]
        %v1443 = vld [vmem:[#allocation7 + $0x3c] sm:$0xf]
        %v1444 = vld [vmem:[%s6] sm:$0x1]
        %v1446 = vlaneseq
        %v1447 = vshrl.u32 %v1446, 7
        %v1448 = vsub.s32 0, %v1447
        %v1449 = vrot.slane %v1444, %v1448
        %v1467 = vunpack.c.l.b16 %v1428
        %v1468 = vunpack.c.l.b16 %v1429
        %v1469 = vunpack.c.l.b16 %v1430
        %v1470 = vunpack.c.l.b16 %v1431
        %v1471 = vunpack.c.l.b16 %v1432
        %v1472 = vunpack.c.l.b16 %v1433
        %v1473 = vunpack.c.l.b16 %v1434
        %v1474 = vunpack.c.l.b16 %v1435
        %v1475 = vunpack.c.l.b16 %v1436
        %v1476 = vunpack.c.l.b16 %v1437
        %v1477 = vunpack.c.l.b16 %v1438
        %v1478 = vunpack.c.l.b16 %v1439
        %v1479 = vunpack.c.l.b16 %v1440
        %v1480 = vunpack.c.l.b16 %v1441
        %v1481 = vunpack.c.l.b16 %v1442
        %v1482 = vunpack.c.l.b16 %v1443
        %v1483 = vpack.c.b16 %v1468, %v1467
        %v1484 = vpack.c.b16 %v1470, %v1469
        %v1485 = vpack.c.b16 %v1472, %v1471
        %v1486 = vpack.c.b16 %v1474, %v1473
        %v1487 = vpack.c.b16 %v1476, %v1475
        %v1488 = vpack.c.b16 %v1478, %v1477
        %v1489 = vpack.c.b16 %v1480, %v1479
        %v1490 = vpack.c.b16 %v1482, %v1481
        %1499 = vmatprep.subr.bf16.mxu0 0
        %1500 = vmatpush1.bf16.msra.mxu0 %v1483
        %1501 = vmatprep.subr.bf16.mxu0 0
        %1502 = vmatpush1.bf16.msra.mxu0 %v1484
        %1503 = vmatprep.subr.bf16.mxu0 0
        %1504 = vmatpush1.bf16.msra.mxu0 %v1485
        %1505 = vmatprep.subr.bf16.mxu0 0
        %1506 = vmatpush1.bf16.msra.mxu0 %v1486
        %1507 = vmatprep.subr.bf16.mxu0 0
        %1508 = vmatpush1.bf16.msra.mxu0 %v1487
        %1509 = vmatprep.subr.bf16.mxu0 0
        %1510 = vmatpush1.bf16.msra.mxu0 %v1488
        %1511 = vmatprep.subr.bf16.mxu0 0
        %1512 = vmatpush1.bf16.msra.mxu0 %v1489
        %1513 = vmatprep.subr.bf16.mxu0 0
        %1514 = vmatpush1.bf16.msra.mxu0 %v1490
        %1515 = vmatprep.subr.bf16.mxu0 0
        %1516 = vmatpush1.bf16.msra.mxu0 0
        %1517 = vmatprep.subr.bf16.mxu0 0
        %1518 = vmatpush1.bf16.msra.mxu0 0
        %1519 = vmatprep.subr.bf16.mxu0 0
        %1520 = vmatpush1.bf16.msra.mxu0 0
        %1521 = vmatprep.subr.bf16.mxu0 0
        %1522 = vmatpush1.bf16.msra.mxu0 0
        %1523 = vmatprep.subr.bf16.mxu0 0
        %1524 = vmatpush1.bf16.msra.mxu0 0
        %1525 = vmatprep.subr.bf16.mxu0 0
        %1526 = vmatpush1.bf16.msra.mxu0 0
        %1527 = vmatprep.subr.bf16.mxu0 0
        %1528 = vmatpush1.bf16.msra.mxu0 0
        %1529 = vmatprep.subr.bf16.mxu0 0
        %1530 = vmatpush1.bf16.msra.mxu0 0
        %1531 = vmatprep.mubr.bf16.mxu0 0
        %1532 = vmatmul.mubr.bf16.gmra.mrb[0].mxu0 %v1412
        %v1533 = vpop.f32.mrb[0].mxu0
        %v1534 = vadd.f32 %v1449, %v1533
        %v1535 = vpop.f32.mrb[0].mxu0
        %v1536 = vpop.f32.mrb[0].mxu0
        %v1537 = vadd.f32 %v1449, %v1536
        %v1538 = vpop.f32.mrb[0].mxu0
        %1539 = vmatprep.mubr.bf16.mxu0 0
        %1540 = vmatmul.mubr.bf16.gmra.mrb[0].mxu0 %v1413
        %v1541 = vpop.f32.mrb[0].mxu0
        %v1542 = vadd.f32 %v1449, %v1541
        %v1543 = vpop.f32.mrb[0].mxu0
        %v1544 = vpop.f32.mrb[0].mxu0
        %v1545 = vadd.f32 %v1449, %v1544
        %v1546 = vpop.f32.mrb[0].mxu0
        %1547 = vmatprep.mubr.bf16.mxu0 0
        %1548 = vmatmul.mubr.bf16.gmra.mrb[0].mxu0 %v1414
        %v1549 = vpop.f32.mrb[0].mxu0
        %v1550 = vadd.f32 %v1449, %v1549
        %v1551 = vpop.f32.mrb[0].mxu0
        %v1552 = vpop.f32.mrb[0].mxu0
        %v1553 = vadd.f32 %v1449, %v1552
        %v1554 = vpop.f32.mrb[0].mxu0
        %1555 = vmatprep.mubr.bf16.mxu0 0
        %1556 = vmatmul.mubr.bf16.gmra.mrb[0].mxu0 %v1415
        %v1557 = vpop.f32.mrb[0].mxu0
        %v1558 = vadd.f32 %v1449, %v1557
        %v1559 = vpop.f32.mrb[0].mxu0
        %v1560 = vpop.f32.mrb[0].mxu0
        %v1561 = vadd.f32 %v1449, %v1560
        %v1562 = vpop.f32.mrb[0].mxu0
        %1563 = vmatprep.mubr.bf16.mxu0 0
        %1564 = vmatmul.mubr.bf16.gmra.mrb[0].mxu0 %v1416
        %v1565 = vpop.f32.mrb[0].mxu0
        %v1566 = vadd.f32 %v1449, %v1565
        %v1567 = vpop.f32.mrb[0].mxu0
        %v1568 = vpop.f32.mrb[0].mxu0
        %v1569 = vadd.f32 %v1449, %v1568
        %v1570 = vpop.f32.mrb[0].mxu0
        %1571 = vmatprep.mubr.bf16.mxu0 0
        %1572 = vmatmul.mubr.bf16.gmra.mrb[0].mxu0 %v1417
        %v1573 = vpop.f32.mrb[0].mxu0
        %v1574 = vadd.f32 %v1449, %v1573
        %v1575 = vpop.f32.mrb[0].mxu0
        %v1576 = vpop.f32.mrb[0].mxu0
        %v1577 = vadd.f32 %v1449, %v1576
        %v1578 = vpop.f32.mrb[0].mxu0
        %1579 = vmatprep.mubr.bf16.mxu0 0
        %1580 = vmatmul.mubr.bf16.gmra.mrb[0].mxu0 %v1418
        %v1581 = vpop.f32.mrb[0].mxu0
        %v1582 = vadd.f32 %v1449, %v1581
        %v1583 = vpop.f32.mrb[0].mxu0
        %v1584 = vpop.f32.mrb[0].mxu0
        %v1585 = vadd.f32 %v1449, %v1584
        %v1586 = vpop.f32.mrb[0].mxu0
        %1587 = vmatprep.mubr.bf16.mxu0 0
        %1588 = vmatmul.mubr.bf16.gmra.mrb[0].mxu0 %v1419
        %v1589 = vpop.f32.mrb[0].mxu0
        %v1590 = vadd.f32 %v1449, %v1589
        %v1591 = vpop.f32.mrb[0].mxu0
        %v1592 = vpop.f32.mrb[0].mxu0
        %v1593 = vadd.f32 %v1449, %v1592
        %v1594 = vpop.f32.mrb[0].mxu0
        %1595 = vmatprep.mubr.bf16.mxu0 0
        %1596 = vmatmul.mubr.bf16.gmra.mrb[0].mxu0 %v1420
        %v1597 = vpop.f32.mrb[0].mxu0
        %v1598 = vadd.f32 %v1449, %v1597
        %v1599 = vpop.f32.mrb[0].mxu0
        %v1600 = vpop.f32.mrb[0].mxu0
        %v1601 = vadd.f32 %v1449, %v1600
        %v1602 = vpop.f32.mrb[0].mxu0
        %1603 = vmatprep.mubr.bf16.mxu0 0
        %1604 = vmatmul.mubr.bf16.gmra.mrb[0].mxu0 %v1421
        %v1605 = vpop.f32.mrb[0].mxu0
        %v1606 = vadd.f32 %v1449, %v1605
        %v1607 = vpop.f32.mrb[0].mxu0
        %v1608 = vpop.f32.mrb[0].mxu0
        %v1609 = vadd.f32 %v1449, %v1608
        %v1610 = vpop.f32.mrb[0].mxu0
        %1611 = vmatprep.mubr.bf16.mxu0 0
        %1612 = vmatmul.mubr.bf16.gmra.mrb[0].mxu0 %v1422
        %v1613 = vpop.f32.mrb[0].mxu0
        %v1614 = vadd.f32 %v1449, %v1613
        %v1615 = vpop.f32.mrb[0].mxu0
        %v1616 = vpop.f32.mrb[0].mxu0
        %v1617 = vadd.f32 %v1449, %v1616
        %v1618 = vpop.f32.mrb[0].mxu0
        %1619 = vmatprep.mubr.bf16.mxu0 0
        %1620 = vmatmul.mubr.bf16.gmra.mrb[0].mxu0 %v1423
        %v1621 = vpop.f32.mrb[0].mxu0
        %v1622 = vadd.f32 %v1449, %v1621
        %v1623 = vpop.f32.mrb[0].mxu0
        %v1624 = vpop.f32.mrb[0].mxu0
        %v1625 = vadd.f32 %v1449, %v1624
        %v1626 = vpop.f32.mrb[0].mxu0
        %1627 = vmatprep.mubr.bf16.mxu0 0
        %1628 = vmatmul.mubr.bf16.gmra.mrb[0].mxu0 %v1424
        %v1629 = vpop.f32.mrb[0].mxu0
        %v1630 = vadd.f32 %v1449, %v1629
        %v1631 = vpop.f32.mrb[0].mxu0
        %v1632 = vpop.f32.mrb[0].mxu0
        %v1633 = vadd.f32 %v1449, %v1632
        %v1634 = vpop.f32.mrb[0].mxu0
        %1635 = vmatprep.mubr.bf16.mxu0 0
        %1636 = vmatmul.mubr.bf16.gmra.mrb[0].mxu0 %v1425
        %v1637 = vpop.f32.mrb[0].mxu0
        %v1638 = vadd.f32 %v1449, %v1637
        %v1639 = vpop.f32.mrb[0].mxu0
        %v1640 = vpop.f32.mrb[0].mxu0
        %v1641 = vadd.f32 %v1449, %v1640
        %v1642 = vpop.f32.mrb[0].mxu0
        %1643 = vmatprep.mubr.bf16.mxu0 0
        %1644 = vmatmul.mubr.bf16.gmra.mrb[0].mxu0 %v1426
        %v1645 = vpop.f32.mrb[0].mxu0
        %v1646 = vadd.f32 %v1449, %v1645
        %v1647 = vpop.f32.mrb[0].mxu0
        %v1648 = vpop.f32.mrb[0].mxu0
        %v1649 = vadd.f32 %v1449, %v1648
        %v1650 = vpop.f32.mrb[0].mxu0
        %1651 = vmatprep.mubr.bf16.mxu0 0
        %1652 = vmatmul.mubr.bf16.gmra.mrb[0].mxu0 %v1427
        %v1653 = vpop.f32.mrb[0].mxu0
        %v1654 = vadd.f32 %v1449, %v1653
        %v1655 = vpop.f32.mrb[0].mxu0
        %v1656 = vpop.f32.mrb[0].mxu0
        %v1657 = vadd.f32 %v1449, %v1656
        %v1658 = vpop.f32.mrb[0].mxu0
        %1659 = vdwg.mxu0
        %v1660 = vld [vmem:[%s7] sm:$0x1]
        %v1661 = vld [vmem:[%s8] sm:$0x1]
        %1662 = vadd.xlane.f32.xlu0 %v1534
        %v1663 = vpop.xlane.xlu0 %1662
        %1664 = vadd.xlane.f32.xlu0 %v1537
        %v1665 = vpop.xlane.xlu0 %1664
        %1666 = vadd.xlane.f32.xlu0 %v1542
        %v1667 = vpop.xlane.xlu0 %1666
        %1668 = vadd.xlane.f32.xlu0 %v1545
        %v1669 = vpop.xlane.xlu0 %1668
        %1670 = vadd.xlane.f32.xlu0 %v1550
        %v1671 = vpop.xlane.xlu0 %1670
        %1672 = vadd.xlane.f32.xlu0 %v1553
        %v1673 = vpop.xlane.xlu0 %1672
        %1674 = vadd.xlane.f32.xlu0 %v1558
        %v1675 = vpop.xlane.xlu0 %1674
        %1676 = vadd.xlane.f32.xlu0 %v1561
        %v1677 = vpop.xlane.xlu0 %1676
        %1678 = vadd.xlane.f32.xlu0 %v1566
        %v1679 = vpop.xlane.xlu0 %1678
        %1680 = vadd.xlane.f32.xlu0 %v1569
        %v1681 = vpop.xlane.xlu0 %1680
        %1682 = vadd.xlane.f32.xlu0 %v1574
        %v1683 = vpop.xlane.xlu0 %1682
        %1684 = vadd.xlane.f32.xlu0 %v1577
        %v1685 = vpop.xlane.xlu0 %1684
        %1686 = vadd.xlane.f32.xlu0 %v1582
        %v1687 = vpop.xlane.xlu0 %1686
        %1688 = vadd.xlane.f32.xlu0 %v1585
        %v1689 = vpop.xlane.xlu0 %1688
        %1690 = vadd.xlane.f32.xlu0 %v1590
        %v1691 = vpop.xlane.xlu0 %1690
        %1692 = vadd.xlane.f32.xlu0 %v1593
        %v1693 = vpop.xlane.xlu0 %1692
        %1694 = vadd.xlane.f32.xlu0 %v1598
        %v1695 = vpop.xlane.xlu0 %1694
        %1696 = vadd.xlane.f32.xlu0 %v1601
        %v1697 = vpop.xlane.xlu0 %1696
        %1698 = vadd.xlane.f32.xlu0 %v1606
        %v1699 = vpop.xlane.xlu0 %1698
        %1700 = vadd.xlane.f32.xlu0 %v1609
        %v1701 = vpop.xlane.xlu0 %1700
        %1702 = vadd.xlane.f32.xlu0 %v1614
        %v1703 = vpop.xlane.xlu0 %1702
        %1704 = vadd.xlane.f32.xlu0 %v1617
        %v1705 = vpop.xlane.xlu0 %1704
        %1706 = vadd.xlane.f32.xlu0 %v1622
        %v1707 = vpop.xlane.xlu0 %1706
        %1708 = vadd.xlane.f32.xlu0 %v1625
        %v1709 = vpop.xlane.xlu0 %1708
        %1710 = vadd.xlane.f32.xlu0 %v1630
        %v1711 = vpop.xlane.xlu0 %1710
        %1712 = vadd.xlane.f32.xlu0 %v1633
        %v1713 = vpop.xlane.xlu0 %1712
        %1714 = vadd.xlane.f32.xlu0 %v1638
        %v1715 = vpop.xlane.xlu0 %1714
        %1716 = vadd.xlane.f32.xlu0 %v1641
        %v1717 = vpop.xlane.xlu0 %1716
        %1718 = vadd.xlane.f32.xlu0 %v1646
        %v1719 = vpop.xlane.xlu0 %1718
        %1720 = vadd.xlane.f32.xlu0 %v1649
        %v1721 = vpop.xlane.xlu0 %1720
        %1722 = vadd.xlane.f32.xlu0 %v1654
        %v1723 = vpop.xlane.xlu0 %1722
        %1724 = vadd.xlane.f32.xlu0 %v1657
        %v1725 = vpop.xlane.xlu0 %1724
        %v1726 = vmul.f32 %v1534, %v1534
        %v1727 = vmul.f32 %v1537, %v1537
        %v1728 = vmul.f32 %v1542, %v1542
        %v1729 = vmul.f32 %v1545, %v1545
        %v1730 = vmul.f32 %v1550, %v1550
        %v1731 = vmul.f32 %v1553, %v1553
        %v1732 = vmul.f32 %v1558, %v1558
        %v1733 = vmul.f32 %v1561, %v1561
        %v1734 = vmul.f32 %v1566, %v1566
        %v1735 = vmul.f32 %v1569, %v1569
        %v1736 = vmul.f32 %v1574, %v1574
        %v1737 = vmul.f32 %v1577, %v1577
        %v1738 = vmul.f32 %v1582, %v1582
        %v1739 = vmul.f32 %v1585, %v1585
        %v1740 = vmul.f32 %v1590, %v1590
        %v1741 = vmul.f32 %v1593, %v1593
        %v1742 = vmul.f32 %v1598, %v1598
        %v1743 = vmul.f32 %v1601, %v1601
        %v1744 = vmul.f32 %v1606, %v1606
        %v1745 = vmul.f32 %v1609, %v1609
        %v1746 = vmul.f32 %v1614, %v1614
        %v1747 = vmul.f32 %v1617, %v1617
        %v1748 = vmul.f32 %v1622, %v1622
        %v1749 = vmul.f32 %v1625, %v1625
        %v1750 = vmul.f32 %v1630, %v1630
        %v1751 = vmul.f32 %v1633, %v1633
        %v1752 = vmul.f32 %v1638, %v1638
        %v1753 = vmul.f32 %v1641, %v1641
        %v1754 = vmul.f32 %v1646, %v1646
        %v1755 = vmul.f32 %v1649, %v1649
        %v1756 = vmul.f32 %v1654, %v1654
        %v1757 = vmul.f32 %v1657, %v1657
        %1758 = vadd.xlane.f32.xlu0 %v1726
        %v1759 = vpop.xlane.xlu0 %1758
        %1760 = vadd.xlane.f32.xlu0 %v1727
        %v1761 = vpop.xlane.xlu0 %1760
        %1762 = vadd.xlane.f32.xlu0 %v1728
        %v1763 = vpop.xlane.xlu0 %1762
        %1764 = vadd.xlane.f32.xlu0 %v1729
        %v1765 = vpop.xlane.xlu0 %1764
        %1766 = vadd.xlane.f32.xlu0 %v1730
        %v1767 = vpop.xlane.xlu0 %1766
        %1768 = vadd.xlane.f32.xlu0 %v1731
        %v1769 = vpop.xlane.xlu0 %1768
        %1770 = vadd.xlane.f32.xlu0 %v1732
        %v1771 = vpop.xlane.xlu0 %1770
        %1772 = vadd.xlane.f32.xlu0 %v1733
        %v1773 = vpop.xlane.xlu0 %1772
        %1774 = vadd.xlane.f32.xlu0 %v1734
        %v1775 = vpop.xlane.xlu0 %1774
        %1776 = vadd.xlane.f32.xlu0 %v1735
        %v1777 = vpop.xlane.xlu0 %1776
        %1778 = vadd.xlane.f32.xlu0 %v1736
        %v1779 = vpop.xlane.xlu0 %1778
        %1780 = vadd.xlane.f32.xlu0 %v1737
        %v1781 = vpop.xlane.xlu0 %1780
        %1782 = vadd.xlane.f32.xlu0 %v1738
        %v1783 = vpop.xlane.xlu0 %1782
        %1784 = vadd.xlane.f32.xlu0 %v1739
        %v1785 = vpop.xlane.xlu0 %1784
        %1786 = vadd.xlane.f32.xlu0 %v1740
        %v1787 = vpop.xlane.xlu0 %1786
        %1788 = vadd.xlane.f32.xlu0 %v1741
        %v1789 = vpop.xlane.xlu0 %1788
        %1790 = vadd.xlane.f32.xlu0 %v1742
        %v1791 = vpop.xlane.xlu0 %1790
        %1792 = vadd.xlane.f32.xlu0 %v1743
        %v1793 = vpop.xlane.xlu0 %1792
        %1794 = vadd.xlane.f32.xlu0 %v1744
        %v1795 = vpop.xlane.xlu0 %1794
        %1796 = vadd.xlane.f32.xlu0 %v1745
        %v1797 = vpop.xlane.xlu0 %1796
        %1798 = vadd.xlane.f32.xlu0 %v1746
        %v1799 = vpop.xlane.xlu0 %1798
        %1800 = vadd.xlane.f32.xlu0 %v1747
        %v1801 = vpop.xlane.xlu0 %1800
        %1802 = vadd.xlane.f32.xlu0 %v1748
        %v1803 = vpop.xlane.xlu0 %1802
        %1804 = vadd.xlane.f32.xlu0 %v1749
        %v1805 = vpop.xlane.xlu0 %1804
        %1806 = vadd.xlane.f32.xlu0 %v1750
        %v1807 = vpop.xlane.xlu0 %1806
        %1808 = vadd.xlane.f32.xlu0 %v1751
        %v1809 = vpop.xlane.xlu0 %1808
        %1810 = vadd.xlane.f32.xlu0 %v1752
        %v1811 = vpop.xlane.xlu0 %1810
        %1812 = vadd.xlane.f32.xlu0 %v1753
        %v1813 = vpop.xlane.xlu0 %1812
        %1814 = vadd.xlane.f32.xlu0 %v1754
        %v1815 = vpop.xlane.xlu0 %1814
        %1816 = vadd.xlane.f32.xlu0 %v1755
        %v1817 = vpop.xlane.xlu0 %1816
        %1818 = vadd.xlane.f32.xlu0 %v1756
        %v1819 = vpop.xlane.xlu0 %1818
        %1820 = vadd.xlane.f32.xlu0 %v1757
        %v1821 = vpop.xlane.xlu0 %1820
        %v1822 = vmul.f32 %v1663, 0.0078125
        %v1823 = vmul.f32 %v1665, 0.0078125
        %v1824 = vmul.f32 %v1667, 0.0078125
        %v1825 = vmul.f32 %v1669, 0.0078125
        %v1826 = vmul.f32 %v1671, 0.0078125
        %v1827 = vmul.f32 %v1673, 0.0078125
        %v1828 = vmul.f32 %v1675, 0.0078125
        %v1829 = vmul.f32 %v1677, 0.0078125
        %v1830 = vmul.f32 %v1679, 0.0078125
        %v1831 = vmul.f32 %v1681, 0.0078125
        %v1832 = vmul.f32 %v1683, 0.0078125
        %v1833 = vmul.f32 %v1685, 0.0078125
        %v1834 = vmul.f32 %v1687, 0.0078125
        %v1835 = vmul.f32 %v1689, 0.0078125
        %v1836 = vmul.f32 %v1691, 0.0078125
        %v1837 = vmul.f32 %v1693, 0.0078125
        %v1838 = vmul.f32 %v1695, 0.0078125
        %v1839 = vmul.f32 %v1697, 0.0078125
        %v1840 = vmul.f32 %v1699, 0.0078125
        %v1841 = vmul.f32 %v1701, 0.0078125
        %v1842 = vmul.f32 %v1703, 0.0078125
        %v1843 = vmul.f32 %v1705, 0.0078125
        %v1844 = vmul.f32 %v1707, 0.0078125
        %v1845 = vmul.f32 %v1709, 0.0078125
        %v1846 = vmul.f32 %v1711, 0.0078125
        %v1847 = vmul.f32 %v1713, 0.0078125
        %v1848 = vmul.f32 %v1715, 0.0078125
        %v1849 = vmul.f32 %v1717, 0.0078125
        %v1850 = vmul.f32 %v1719, 0.0078125
        %v1851 = vmul.f32 %v1721, 0.0078125
        %v1852 = vmul.f32 %v1723, 0.0078125
        %v1853 = vmul.f32 %v1725, 0.0078125
        %v1854 = vmul.f32 %v1759, 0.0078125
        %v1855 = vmul.f32 %v1761, 0.0078125
        %v1856 = vmul.f32 %v1763, 0.0078125
        %v1857 = vmul.f32 %v1765, 0.0078125
        %v1858 = vmul.f32 %v1767, 0.0078125
        %v1859 = vmul.f32 %v1769, 0.0078125
        %v1860 = vmul.f32 %v1771, 0.0078125
        %v1861 = vmul.f32 %v1773, 0.0078125
        %v1862 = vmul.f32 %v1775, 0.0078125
        %v1863 = vmul.f32 %v1777, 0.0078125
        %v1864 = vmul.f32 %v1779, 0.0078125
        %v1865 = vmul.f32 %v1781, 0.0078125
        %v1866 = vmul.f32 %v1783, 0.0078125
        %v1867 = vmul.f32 %v1785, 0.0078125
        %v1868 = vmul.f32 %v1787, 0.0078125
        %v1869 = vmul.f32 %v1789, 0.0078125
        %v1870 = vmul.f32 %v1791, 0.0078125
        %v1871 = vmul.f32 %v1793, 0.0078125
        %v1872 = vmul.f32 %v1795, 0.0078125
        %v1873 = vmul.f32 %v1797, 0.0078125
        %v1874 = vmul.f32 %v1799, 0.0078125
        %v1875 = vmul.f32 %v1801, 0.0078125
        %v1876 = vmul.f32 %v1803, 0.0078125
        %v1877 = vmul.f32 %v1805, 0.0078125
        %v1878 = vmul.f32 %v1807, 0.0078125
        %v1879 = vmul.f32 %v1809, 0.0078125
        %v1880 = vmul.f32 %v1811, 0.0078125
        %v1881 = vmul.f32 %v1813, 0.0078125
        %v1882 = vmul.f32 %v1815, 0.0078125
        %v1883 = vmul.f32 %v1817, 0.0078125
        %v1884 = vmul.f32 %v1819, 0.0078125
        %v1885 = vmul.f32 %v1821, 0.0078125
        %v1886 = vmul.f32 %v1822, %v1822
        %v1887 = vmul.f32 %v1823, %v1823
        %v1888 = vmul.f32 %v1824, %v1824
        %v1889 = vmul.f32 %v1825, %v1825
        %v1890 = vmul.f32 %v1826, %v1826
        %v1891 = vmul.f32 %v1827, %v1827
        %v1892 = vmul.f32 %v1828, %v1828
        %v1893 = vmul.f32 %v1829, %v1829
        %v1894 = vmul.f32 %v1830, %v1830
        %v1895 = vmul.f32 %v1831, %v1831
        %v1896 = vmul.f32 %v1832, %v1832
        %v1897 = vmul.f32 %v1833, %v1833
        %v1898 = vmul.f32 %v1834, %v1834
        %v1899 = vmul.f32 %v1835, %v1835
        %v1900 = vmul.f32 %v1836, %v1836
        %v1901 = vmul.f32 %v1837, %v1837
        %v1902 = vmul.f32 %v1838, %v1838
        %v1903 = vmul.f32 %v1839, %v1839
        %v1904 = vmul.f32 %v1840, %v1840
        %v1905 = vmul.f32 %v1841, %v1841
        %v1906 = vmul.f32 %v1842, %v1842
        %v1907 = vmul.f32 %v1843, %v1843
        %v1908 = vmul.f32 %v1844, %v1844
        %v1909 = vmul.f32 %v1845, %v1845
        %v1910 = vmul.f32 %v1846, %v1846
        %v1911 = vmul.f32 %v1847, %v1847
        %v1912 = vmul.f32 %v1848, %v1848
        %v1913 = vmul.f32 %v1849, %v1849
        %v1914 = vmul.f32 %v1850, %v1850
        %v1915 = vmul.f32 %v1851, %v1851
        %v1916 = vmul.f32 %v1852, %v1852
        %v1917 = vmul.f32 %v1853, %v1853
        %v1918 = vsub.f32 %v1854, %v1886
        %v1919 = vsub.f32 %v1855, %v1887
        %v1920 = vsub.f32 %v1856, %v1888
        %v1921 = vsub.f32 %v1857, %v1889
        %v1922 = vsub.f32 %v1858, %v1890
        %v1923 = vsub.f32 %v1859, %v1891
        %v1924 = vsub.f32 %v1860, %v1892
        %v1925 = vsub.f32 %v1861, %v1893
        %v1926 = vsub.f32 %v1862, %v1894
        %v1927 = vsub.f32 %v1863, %v1895
        %v1928 = vsub.f32 %v1864, %v1896
        %v1929 = vsub.f32 %v1865, %v1897
        %v1930 = vsub.f32 %v1866, %v1898
        %v1931 = vsub.f32 %v1867, %v1899
        %v1932 = vsub.f32 %v1868, %v1900
        %v1933 = vsub.f32 %v1869, %v1901
        %v1934 = vsub.f32 %v1870, %v1902
        %v1935 = vsub.f32 %v1871, %v1903
        %v1936 = vsub.f32 %v1872, %v1904
        %v1937 = vsub.f32 %v1873, %v1905
        %v1938 = vsub.f32 %v1874, %v1906
        %v1939 = vsub.f32 %v1875, %v1907
        %v1940 = vsub.f32 %v1876, %v1908
        %v1941 = vsub.f32 %v1877, %v1909
        %v1942 = vsub.f32 %v1878, %v1910
        %v1943 = vsub.f32 %v1879, %v1911
        %v1944 = vsub.f32 %v1880, %v1912
        %v1945 = vsub.f32 %v1881, %v1913
        %v1946 = vsub.f32 %v1882, %v1914
        %v1947 = vsub.f32 %v1883, %v1915
        %v1948 = vsub.f32 %v1884, %v1916
        %v1949 = vsub.f32 %v1885, %v1917
        %v1950 = vmax.f32 %v1918, 0.0
        %v1951 = vmax.f32 %v1919, 0.0
        %v1952 = vmax.f32 %v1920, 0.0
        %v1953 = vmax.f32 %v1921, 0.0
        %v1954 = vmax.f32 %v1922, 0.0
        %v1955 = vmax.f32 %v1923, 0.0
        %v1956 = vmax.f32 %v1924, 0.0
        %v1957 = vmax.f32 %v1925, 0.0
        %v1958 = vmax.f32 %v1926, 0.0
        %v1959 = vmax.f32 %v1927, 0.0
        %v1960 = vmax.f32 %v1928, 0.0
        %v1961 = vmax.f32 %v1929, 0.0
        %v1962 = vmax.f32 %v1930, 0.0
        %v1963 = vmax.f32 %v1931, 0.0
        %v1964 = vmax.f32 %v1932, 0.0
        %v1965 = vmax.f32 %v1933, 0.0
        %v1966 = vmax.f32 %v1934, 0.0
        %v1967 = vmax.f32 %v1935, 0.0
        %v1968 = vmax.f32 %v1936, 0.0
        %v1969 = vmax.f32 %v1937, 0.0
        %v1970 = vmax.f32 %v1938, 0.0
        %v1971 = vmax.f32 %v1939, 0.0
        %v1972 = vmax.f32 %v1940, 0.0
        %v1973 = vmax.f32 %v1941, 0.0
        %v1974 = vmax.f32 %v1942, 0.0
        %v1975 = vmax.f32 %v1943, 0.0
        %v1976 = vmax.f32 %v1944, 0.0
        %v1977 = vmax.f32 %v1945, 0.0
        %v1978 = vmax.f32 %v1946, 0.0
        %v1979 = vmax.f32 %v1947, 0.0
        %v1980 = vmax.f32 %v1948, 0.0
        %v1981 = vmax.f32 %v1949, 0.0
        %v1982 = vsub.f32 %v1534, %v1822
        %v1983 = vsub.f32 %v1537, %v1823
        %v1984 = vsub.f32 %v1542, %v1824
        %v1985 = vsub.f32 %v1545, %v1825
        %v1986 = vsub.f32 %v1550, %v1826
        %v1987 = vsub.f32 %v1553, %v1827
        %v1988 = vsub.f32 %v1558, %v1828
        %v1989 = vsub.f32 %v1561, %v1829
        %v1990 = vsub.f32 %v1566, %v1830
        %v1991 = vsub.f32 %v1569, %v1831
        %v1992 = vsub.f32 %v1574, %v1832
        %v1993 = vsub.f32 %v1577, %v1833
        %v1994 = vsub.f32 %v1582, %v1834
        %v1995 = vsub.f32 %v1585, %v1835
        %v1996 = vsub.f32 %v1590, %v1836
        %v1997 = vsub.f32 %v1593, %v1837
        %v1998 = vsub.f32 %v1598, %v1838
        %v1999 = vsub.f32 %v1601, %v1839
        %v2000 = vsub.f32 %v1606, %v1840
        %v2001 = vsub.f32 %v1609, %v1841
        %v2002 = vsub.f32 %v1614, %v1842
        %v2003 = vsub.f32 %v1617, %v1843
        %v2004 = vsub.f32 %v1622, %v1844
        %v2005 = vsub.f32 %v1625, %v1845
        %v2006 = vsub.f32 %v1630, %v1846
        %v2007 = vsub.f32 %v1633, %v1847
        %v2008 = vsub.f32 %v1638, %v1848
        %v2009 = vsub.f32 %v1641, %v1849
        %v2010 = vsub.f32 %v1646, %v1850
        %v2011 = vsub.f32 %v1649, %v1851
        %v2012 = vsub.f32 %v1654, %v1852
        %v2013 = vsub.f32 %v1657, %v1853
        %v2014 = vadd.f32 %v1950, 1e-05
        %v2015 = vadd.f32 %v1951, 1e-05
        %v2016 = vadd.f32 %v1952, 1e-05
        %v2017 = vadd.f32 %v1953, 1e-05
        %v2018 = vadd.f32 %v1954, 1e-05
        %v2019 = vadd.f32 %v1955, 1e-05
        %v2020 = vadd.f32 %v1956, 1e-05
        %v2021 = vadd.f32 %v1957, 1e-05
        %v2022 = vadd.f32 %v1958, 1e-05
        %v2023 = vadd.f32 %v1959, 1e-05
        %v2024 = vadd.f32 %v1960, 1e-05
        %v2025 = vadd.f32 %v1961, 1e-05
        %v2026 = vadd.f32 %v1962, 1e-05
        %v2027 = vadd.f32 %v1963, 1e-05
        %v2028 = vadd.f32 %v1964, 1e-05
        %v2029 = vadd.f32 %v1965, 1e-05
        %v2030 = vadd.f32 %v1966, 1e-05
        %v2031 = vadd.f32 %v1967, 1e-05
        %v2032 = vadd.f32 %v1968, 1e-05
        %v2033 = vadd.f32 %v1969, 1e-05
        %v2034 = vadd.f32 %v1970, 1e-05
        %v2035 = vadd.f32 %v1971, 1e-05
        %v2036 = vadd.f32 %v1972, 1e-05
        %v2037 = vadd.f32 %v1973, 1e-05
        %v2038 = vadd.f32 %v1974, 1e-05
        %v2039 = vadd.f32 %v1975, 1e-05
        %v2040 = vadd.f32 %v1976, 1e-05
        %v2041 = vadd.f32 %v1977, 1e-05
        %v2042 = vadd.f32 %v1978, 1e-05
        %v2043 = vadd.f32 %v1979, 1e-05
        %v2044 = vadd.f32 %v1980, 1e-05
        %v2045 = vadd.f32 %v1981, 1e-05
        %v2046 = vrsqrt.pop %v2014
        %v2047 = vrsqrt.pop %v2015
        %v2048 = vrsqrt.pop %v2016
        %v2049 = vrsqrt.pop %v2017
        %v2050 = vrsqrt.pop %v2018
        %v2051 = vrsqrt.pop %v2019
        %v2052 = vrsqrt.pop %v2020
        %v2053 = vrsqrt.pop %v2021
        %v2054 = vrsqrt.pop %v2022
        %v2055 = vrsqrt.pop %v2023
        %v2056 = vrsqrt.pop %v2024
        %v2057 = vrsqrt.pop %v2025
        %v2058 = vrsqrt.pop %v2026
        %v2059 = vrsqrt.pop %v2027
        %v2060 = vrsqrt.pop %v2028
        %v2061 = vrsqrt.pop %v2029
        %v2062 = vrsqrt.pop %v2030
        %v2063 = vrsqrt.pop %v2031
        %v2064 = vrsqrt.pop %v2032
        %v2065 = vrsqrt.pop %v2033
        %v2066 = vrsqrt.pop %v2034
        %v2067 = vrsqrt.pop %v2035
        %v2068 = vrsqrt.pop %v2036
        %v2069 = vrsqrt.pop %v2037
        %v2070 = vrsqrt.pop %v2038
        %v2071 = vrsqrt.pop %v2039
        %v2072 = vrsqrt.pop %v2040
        %v2073 = vrsqrt.pop %v2041
        %v2074 = vrsqrt.pop %v2042
        %v2075 = vrsqrt.pop %v2043
        %v2076 = vrsqrt.pop %v2044
        %v2077 = vrsqrt.pop %v2045
        %v2078 = vmul.f32 %v1982, %v2046
        %v2079 = vmul.f32 %v1983, %v2047
        %v2080 = vmul.f32 %v1984, %v2048
        %v2081 = vmul.f32 %v1985, %v2049
        %v2082 = vmul.f32 %v1986, %v2050
        %v2083 = vmul.f32 %v1987, %v2051
        %v2084 = vmul.f32 %v1988, %v2052
        %v2085 = vmul.f32 %v1989, %v2053
        %v2086 = vmul.f32 %v1990, %v2054
        %v2087 = vmul.f32 %v1991, %v2055
        %v2088 = vmul.f32 %v1992, %v2056
        %v2089 = vmul.f32 %v1993, %v2057
        %v2090 = vmul.f32 %v1994, %v2058
        %v2091 = vmul.f32 %v1995, %v2059
        %v2092 = vmul.f32 %v1996, %v2060
        %v2093 = vmul.f32 %v1997, %v2061
        %v2094 = vmul.f32 %v1998, %v2062
        %v2095 = vmul.f32 %v1999, %v2063
        %v2096 = vmul.f32 %v2000, %v2064
        %v2097 = vmul.f32 %v2001, %v2065
        %v2098 = vmul.f32 %v2002, %v2066
        %v2099 = vmul.f32 %v2003, %v2067
        %v2100 = vmul.f32 %v2004, %v2068
        %v2101 = vmul.f32 %v2005, %v2069
        %v2102 = vmul.f32 %v2006, %v2070
        %v2103 = vmul.f32 %v2007, %v2071
        %v2104 = vmul.f32 %v2008, %v2072
        %v2105 = vmul.f32 %v2009, %v2073
        %v2106 = vmul.f32 %v2010, %v2074
        %v2107 = vmul.f32 %v2011, %v2075
        %v2108 = vmul.f32 %v2012, %v2076
        %v2109 = vmul.f32 %v2013, %v2077
        %v2111 = vlaneseq
        %v2112 = vshrl.u32 %v2111, 7
        %v2113 = vsub.s32 0, %v2112
        %v2114 = vrot.slane %v1660, %v2113
        %v2116 = vmul.f32 %v2078, %v2114
        %v2117 = vmul.f32 %v2079, %v2114
        %v2118 = vmul.f32 %v2080, %v2114
        %v2119 = vmul.f32 %v2081, %v2114
        %v2120 = vmul.f32 %v2082, %v2114
        %v2121 = vmul.f32 %v2083, %v2114
        %v2122 = vmul.f32 %v2084, %v2114
        %v2123 = vmul.f32 %v2085, %v2114
        %v2124 = vmul.f32 %v2086, %v2114
        %v2125 = vmul.f32 %v2087, %v2114
        %v2126 = vmul.f32 %v2088, %v2114
        %v2127 = vmul.f32 %v2089, %v2114
        %v2128 = vmul.f32 %v2090, %v2114
        %v2129 = vmul.f32 %v2091, %v2114
        %v2130 = vmul.f32 %v2092, %v2114
        %v2131 = vmul.f32 %v2093, %v2114
        %v2132 = vmul.f32 %v2094, %v2114
        %v2133 = vmul.f32 %v2095, %v2114
        %v2134 = vmul.f32 %v2096, %v2114
        %v2135 = vmul.f32 %v2097, %v2114
        %v2136 = vmul.f32 %v2098, %v2114
        %v2137 = vmul.f32 %v2099, %v2114
        %v2138 = vmul.f32 %v2100, %v2114
        %v2139 = vmul.f32 %v2101, %v2114
        %v2140 = vmul.f32 %v2102, %v2114
        %v2141 = vmul.f32 %v2103, %v2114
        %v2142 = vmul.f32 %v2104, %v2114
        %v2143 = vmul.f32 %v2105, %v2114
        %v2144 = vmul.f32 %v2106, %v2114
        %v2145 = vmul.f32 %v2107, %v2114
        %v2146 = vmul.f32 %v2108, %v2114
        %v2147 = vmul.f32 %v2109, %v2114
        %v2149 = vlaneseq
        %v2150 = vshrl.u32 %v2149, 7
        %v2151 = vsub.s32 0, %v2150
        %v2152 = vrot.slane %v1661, %v2151
        %v2154 = vadd.f32 %v2116, %v2152
        %v2155 = vadd.f32 %v2117, %v2152
        %v2156 = vadd.f32 %v2118, %v2152
        %v2157 = vadd.f32 %v2119, %v2152
        %v2158 = vadd.f32 %v2120, %v2152
        %v2159 = vadd.f32 %v2121, %v2152
        %v2160 = vadd.f32 %v2122, %v2152
        %v2161 = vadd.f32 %v2123, %v2152
        %v2162 = vadd.f32 %v2124, %v2152
        %v2163 = vadd.f32 %v2125, %v2152
        %v2164 = vadd.f32 %v2126, %v2152
        %v2165 = vadd.f32 %v2127, %v2152
        %v2166 = vadd.f32 %v2128, %v2152
        %v2167 = vadd.f32 %v2129, %v2152
        %v2168 = vadd.f32 %v2130, %v2152
        %v2169 = vadd.f32 %v2131, %v2152
        %v2170 = vadd.f32 %v2132, %v2152
        %v2171 = vadd.f32 %v2133, %v2152
        %v2172 = vadd.f32 %v2134, %v2152
        %v2173 = vadd.f32 %v2135, %v2152
        %v2174 = vadd.f32 %v2136, %v2152
        %v2175 = vadd.f32 %v2137, %v2152
        %v2176 = vadd.f32 %v2138, %v2152
        %v2177 = vadd.f32 %v2139, %v2152
        %v2178 = vadd.f32 %v2140, %v2152
        %v2179 = vadd.f32 %v2141, %v2152
        %v2180 = vadd.f32 %v2142, %v2152
        %v2181 = vadd.f32 %v2143, %v2152
        %v2182 = vadd.f32 %v2144, %v2152
        %v2183 = vadd.f32 %v2145, %v2152
        %v2184 = vadd.f32 %v2146, %v2152
        %v2185 = vadd.f32 %v2147, %v2152
        %v2186 = vmax.f32 %v2154, 0.0
        %v2187 = vmax.f32 %v2155, 0.0
        %v2188 = vmax.f32 %v2156, 0.0
        %v2189 = vmax.f32 %v2157, 0.0
        %v2190 = vmax.f32 %v2158, 0.0
        %v2191 = vmax.f32 %v2159, 0.0
        %v2192 = vmax.f32 %v2160, 0.0
        %v2193 = vmax.f32 %v2161, 0.0
        %v2194 = vmax.f32 %v2162, 0.0
        %v2195 = vmax.f32 %v2163, 0.0
        %v2196 = vmax.f32 %v2164, 0.0
        %v2197 = vmax.f32 %v2165, 0.0
        %v2198 = vmax.f32 %v2166, 0.0
        %v2199 = vmax.f32 %v2167, 0.0
        %v2200 = vmax.f32 %v2168, 0.0
        %v2201 = vmax.f32 %v2169, 0.0
        %v2202 = vmax.f32 %v2170, 0.0
        %v2203 = vmax.f32 %v2171, 0.0
        %v2204 = vmax.f32 %v2172, 0.0
        %v2205 = vmax.f32 %v2173, 0.0
        %v2206 = vmax.f32 %v2174, 0.0
        %v2207 = vmax.f32 %v2175, 0.0
        %v2208 = vmax.f32 %v2176, 0.0
        %v2209 = vmax.f32 %v2177, 0.0
        %v2210 = vmax.f32 %v2178, 0.0
        %v2211 = vmax.f32 %v2179, 0.0
        %v2212 = vmax.f32 %v2180, 0.0
        %v2213 = vmax.f32 %v2181, 0.0
        %v2214 = vmax.f32 %v2182, 0.0
        %v2215 = vmax.f32 %v2183, 0.0
        %v2216 = vmax.f32 %v2184, 0.0
        %v2217 = vmax.f32 %v2185, 0.0
        %v2218 = vpack.c.bf16 %v2187, %v2186
        %v2219 = vpack.c.bf16 %v2189, %v2188
        %v2220 = vpack.c.bf16 %v2191, %v2190
        %v2221 = vpack.c.bf16 %v2193, %v2192
        %v2222 = vpack.c.bf16 %v2195, %v2194
        %v2223 = vpack.c.bf16 %v2197, %v2196
        %v2224 = vpack.c.bf16 %v2199, %v2198
        %v2225 = vpack.c.bf16 %v2201, %v2200
        %v2226 = vpack.c.bf16 %v2203, %v2202
        %v2227 = vpack.c.bf16 %v2205, %v2204
        %v2228 = vpack.c.bf16 %v2207, %v2206
        %v2229 = vpack.c.bf16 %v2209, %v2208
        %v2230 = vpack.c.bf16 %v2211, %v2210
        %v2231 = vpack.c.bf16 %v2213, %v2212
        %v2232 = vpack.c.bf16 %v2215, %v2214
        %v2233 = vpack.c.bf16 %v2217, %v2216
        %v2234 = vld [vmem:[#allocation8] sm:$0xf]
        %v2235 = vld [vmem:[#allocation8 + $0x4] sm:$0xf]
        %v2236 = vld [vmem:[#allocation8 + $0x8] sm:$0xf]
        %v2237 = vld [vmem:[#allocation8 + $0xc] sm:$0xf]
        %v2238 = vld [vmem:[#allocation8 + $0x10] sm:$0xf]
        %v2239 = vld [vmem:[#allocation8 + $0x14] sm:$0xf]
        %v2240 = vld [vmem:[#allocation8 + $0x18] sm:$0xf]
        %v2241 = vld [vmem:[#allocation8 + $0x1c] sm:$0xf]
        %v2242 = vld [vmem:[#allocation8 + $0x20] sm:$0xf]
        %v2243 = vld [vmem:[#allocation8 + $0x24] sm:$0xf]
        %v2244 = vld [vmem:[#allocation8 + $0x28] sm:$0xf]
        %v2245 = vld [vmem:[#allocation8 + $0x2c] sm:$0xf]
        %v2246 = vld [vmem:[#allocation8 + $0x30] sm:$0xf]
        %v2247 = vld [vmem:[#allocation8 + $0x34] sm:$0xf]
        %v2248 = vld [vmem:[#allocation8 + $0x38] sm:$0xf]
        %v2249 = vld [vmem:[#allocation8 + $0x3c] sm:$0xf]
        %v2250 = vld [vmem:[%s10] sm:$0x1]
        %v2252 = vlaneseq
        %v2253 = vshrl.u32 %v2252, 7
        %v2254 = vsub.s32 0, %v2253
        %v2255 = vrot.slane %v2250, %v2254
        %v2273 = vunpack.c.l.b16 %v2234
        %v2274 = vunpack.c.l.b16 %v2235
        %v2275 = vunpack.c.l.b16 %v2236
        %v2276 = vunpack.c.l.b16 %v2237
        %v2277 = vunpack.c.l.b16 %v2238
        %v2278 = vunpack.c.l.b16 %v2239
        %v2279 = vunpack.c.l.b16 %v2240
        %v2280 = vunpack.c.l.b16 %v2241
        %v2281 = vunpack.c.l.b16 %v2242
        %v2282 = vunpack.c.l.b16 %v2243
        %v2283 = vunpack.c.l.b16 %v2244
        %v2284 = vunpack.c.l.b16 %v2245
        %v2285 = vunpack.c.l.b16 %v2246
        %v2286 = vunpack.c.l.b16 %v2247
        %v2287 = vunpack.c.l.b16 %v2248
        %v2288 = vunpack.c.l.b16 %v2249
        %v2289 = vpack.c.b16 %v2274, %v2273
        %v2290 = vpack.c.b16 %v2276, %v2275
        %v2291 = vpack.c.b16 %v2278, %v2277
        %v2292 = vpack.c.b16 %v2280, %v2279
        %v2293 = vpack.c.b16 %v2282, %v2281
        %v2294 = vpack.c.b16 %v2284, %v2283
        %v2295 = vpack.c.b16 %v2286, %v2285
        %v2296 = vpack.c.b16 %v2288, %v2287
        %2305 = vmatprep.subr.bf16.mxu0 0
        %2306 = vmatpush1.bf16.msra.mxu0 %v2289
        %2307 = vmatprep.subr.bf16.mxu0 0
        %2308 = vmatpush1.bf16.msra.mxu0 %v2290
        %2309 = vmatprep.subr.bf16.mxu0 0
        %2310 = vmatpush1.bf16.msra.mxu0 %v2291
        %2311 = vmatprep.subr.bf16.mxu0 0
        %2312 = vmatpush1.bf16.msra.mxu0 %v2292
        %2313 = vmatprep.subr.bf16.mxu0 0
        %2314 = vmatpush1.bf16.msra.mxu0 %v2293
        %2315 = vmatprep.subr.bf16.mxu0 0
        %2316 = vmatpush1.bf16.msra.mxu0 %v2294
        %2317 = vmatprep.subr.bf16.mxu0 0
        %2318 = vmatpush1.bf16.msra.mxu0 %v2295
        %2319 = vmatprep.subr.bf16.mxu0 0
        %2320 = vmatpush1.bf16.msra.mxu0 %v2296
        %2321 = vmatprep.subr.bf16.mxu0 0
        %2322 = vmatpush1.bf16.msra.mxu0 0
        %2323 = vmatprep.subr.bf16.mxu0 0
        %2324 = vmatpush1.bf16.msra.mxu0 0
        %2325 = vmatprep.subr.bf16.mxu0 0
        %2326 = vmatpush1.bf16.msra.mxu0 0
        %2327 = vmatprep.subr.bf16.mxu0 0
        %2328 = vmatpush1.bf16.msra.mxu0 0
        %2329 = vmatprep.subr.bf16.mxu0 0
        %2330 = vmatpush1.bf16.msra.mxu0 0
        %2331 = vmatprep.subr.bf16.mxu0 0
        %2332 = vmatpush1.bf16.msra.mxu0 0
        %2333 = vmatprep.subr.bf16.mxu0 0
        %2334 = vmatpush1.bf16.msra.mxu0 0
        %2335 = vmatprep.subr.bf16.mxu0 0
        %2336 = vmatpush1.bf16.msra.mxu0 0
        %2337 = vmatprep.mubr.bf16.mxu0 0
        %2338 = vmatmul.mubr.bf16.gmra.mrb[0].mxu0 %v2218
        %v2339 = vpop.f32.mrb[0].mxu0
        %v2340 = vadd.f32 %v2255, %v2339
        %v2341 = vpop.f32.mrb[0].mxu0
        %v2342 = vpop.f32.mrb[0].mxu0
        %v2343 = vadd.f32 %v2255, %v2342
        %v2344 = vpop.f32.mrb[0].mxu0
        %2345 = vmatprep.mubr.bf16.mxu0 0
        %2346 = vmatmul.mubr.bf16.gmra.mrb[0].mxu0 %v2219
        %v2347 = vpop.f32.mrb[0].mxu0
        %v2348 = vadd.f32 %v2255, %v2347
        %v2349 = vpop.f32.mrb[0].mxu0
        %v2350 = vpop.f32.mrb[0].mxu0
        %v2351 = vadd.f32 %v2255, %v2350
        %v2352 = vpop.f32.mrb[0].mxu0
        %2353 = vmatprep.mubr.bf16.mxu0 0
        %2354 = vmatmul.mubr.bf16.gmra.mrb[0].mxu0 %v2220
        %v2355 = vpop.f32.mrb[0].mxu0
        %v2356 = vadd.f32 %v2255, %v2355
        %v2357 = vpop.f32.mrb[0].mxu0
        %v2358 = vpop.f32.mrb[0].mxu0
        %v2359 = vadd.f32 %v2255, %v2358
        %v2360 = vpop.f32.mrb[0].mxu0
        %2361 = vmatprep.mubr.bf16.mxu0 0
        %2362 = vmatmul.mubr.bf16.gmra.mrb[0].mxu0 %v2221
        %v2363 = vpop.f32.mrb[0].mxu0
        %v2364 = vadd.f32 %v2255, %v2363
        %v2365 = vpop.f32.mrb[0].mxu0
        %v2366 = vpop.f32.mrb[0].mxu0
        %v2367 = vadd.f32 %v2255, %v2366
        %v2368 = vpop.f32.mrb[0].mxu0
        %2369 = vmatprep.mubr.bf16.mxu0 0
        %2370 = vmatmul.mubr.bf16.gmra.mrb[0].mxu0 %v2222
        %v2371 = vpop.f32.mrb[0].mxu0
        %v2372 = vadd.f32 %v2255, %v2371
        %v2373 = vpop.f32.mrb[0].mxu0
        %v2374 = vpop.f32.mrb[0].mxu0
        %v2375 = vadd.f32 %v2255, %v2374
        %v2376 = vpop.f32.mrb[0].mxu0
        %2377 = vmatprep.mubr.bf16.mxu0 0
        %2378 = vmatmul.mubr.bf16.gmra.mrb[0].mxu0 %v2223
        %v2379 = vpop.f32.mrb[0].mxu0
        %v2380 = vadd.f32 %v2255, %v2379
        %v2381 = vpop.f32.mrb[0].mxu0
        %v2382 = vpop.f32.mrb[0].mxu0
        %v2383 = vadd.f32 %v2255, %v2382
        %v2384 = vpop.f32.mrb[0].mxu0
        %2385 = vmatprep.mubr.bf16.mxu0 0
        %2386 = vmatmul.mubr.bf16.gmra.mrb[0].mxu0 %v2224
        %v2387 = vpop.f32.mrb[0].mxu0
        %v2388 = vadd.f32 %v2255, %v2387
        %v2389 = vpop.f32.mrb[0].mxu0
        %v2390 = vpop.f32.mrb[0].mxu0
        %v2391 = vadd.f32 %v2255, %v2390
        %v2392 = vpop.f32.mrb[0].mxu0
        %2393 = vmatprep.mubr.bf16.mxu0 0
        %2394 = vmatmul.mubr.bf16.gmra.mrb[0].mxu0 %v2225
        %v2395 = vpop.f32.mrb[0].mxu0
        %v2396 = vadd.f32 %v2255, %v2395
        %v2397 = vpop.f32.mrb[0].mxu0
        %v2398 = vpop.f32.mrb[0].mxu0
        %v2399 = vadd.f32 %v2255, %v2398
        %v2400 = vpop.f32.mrb[0].mxu0
        %2401 = vmatprep.mubr.bf16.mxu0 0
        %2402 = vmatmul.mubr.bf16.gmra.mrb[0].mxu0 %v2226
        %v2403 = vpop.f32.mrb[0].mxu0
        %v2404 = vadd.f32 %v2255, %v2403
        %v2405 = vpop.f32.mrb[0].mxu0
        %v2406 = vpop.f32.mrb[0].mxu0
        %v2407 = vadd.f32 %v2255, %v2406
        %v2408 = vpop.f32.mrb[0].mxu0
        %2409 = vmatprep.mubr.bf16.mxu0 0
        %2410 = vmatmul.mubr.bf16.gmra.mrb[0].mxu0 %v2227
        %v2411 = vpop.f32.mrb[0].mxu0
        %v2412 = vadd.f32 %v2255, %v2411
        %v2413 = vpop.f32.mrb[0].mxu0
        %v2414 = vpop.f32.mrb[0].mxu0
        %v2415 = vadd.f32 %v2255, %v2414
        %v2416 = vpop.f32.mrb[0].mxu0
        %2417 = vmatprep.mubr.bf16.mxu0 0
        %2418 = vmatmul.mubr.bf16.gmra.mrb[0].mxu0 %v2228
        %v2419 = vpop.f32.mrb[0].mxu0
        %v2420 = vadd.f32 %v2255, %v2419
        %v2421 = vpop.f32.mrb[0].mxu0
        %v2422 = vpop.f32.mrb[0].mxu0
        %v2423 = vadd.f32 %v2255, %v2422
        %v2424 = vpop.f32.mrb[0].mxu0
        %2425 = vmatprep.mubr.bf16.mxu0 0
        %2426 = vmatmul.mubr.bf16.gmra.mrb[0].mxu0 %v2229
        %v2427 = vpop.f32.mrb[0].mxu0
        %v2428 = vadd.f32 %v2255, %v2427
        %v2429 = vpop.f32.mrb[0].mxu0
        %v2430 = vpop.f32.mrb[0].mxu0
        %v2431 = vadd.f32 %v2255, %v2430
        %v2432 = vpop.f32.mrb[0].mxu0
        %2433 = vmatprep.mubr.bf16.mxu0 0
        %2434 = vmatmul.mubr.bf16.gmra.mrb[0].mxu0 %v2230
        %v2435 = vpop.f32.mrb[0].mxu0
        %v2436 = vadd.f32 %v2255, %v2435
        %v2437 = vpop.f32.mrb[0].mxu0
        %v2438 = vpop.f32.mrb[0].mxu0
        %v2439 = vadd.f32 %v2255, %v2438
        %v2440 = vpop.f32.mrb[0].mxu0
        %2441 = vmatprep.mubr.bf16.mxu0 0
        %2442 = vmatmul.mubr.bf16.gmra.mrb[0].mxu0 %v2231
        %v2443 = vpop.f32.mrb[0].mxu0
        %v2444 = vadd.f32 %v2255, %v2443
        %v2445 = vpop.f32.mrb[0].mxu0
        %v2446 = vpop.f32.mrb[0].mxu0
        %v2447 = vadd.f32 %v2255, %v2446
        %v2448 = vpop.f32.mrb[0].mxu0
        %2449 = vmatprep.mubr.bf16.mxu0 0
        %2450 = vmatmul.mubr.bf16.gmra.mrb[0].mxu0 %v2232
        %v2451 = vpop.f32.mrb[0].mxu0
        %v2452 = vadd.f32 %v2255, %v2451
        %v2453 = vpop.f32.mrb[0].mxu0
        %v2454 = vpop.f32.mrb[0].mxu0
        %v2455 = vadd.f32 %v2255, %v2454
        %v2456 = vpop.f32.mrb[0].mxu0
        %2457 = vmatprep.mubr.bf16.mxu0 0
        %2458 = vmatmul.mubr.bf16.gmra.mrb[0].mxu0 %v2233
        %v2459 = vpop.f32.mrb[0].mxu0
        %v2460 = vadd.f32 %v2255, %v2459
        %v2461 = vpop.f32.mrb[0].mxu0
        %v2462 = vpop.f32.mrb[0].mxu0
        %v2463 = vadd.f32 %v2255, %v2462
        %v2464 = vpop.f32.mrb[0].mxu0
        %2465 = vdwg.mxu0
        %v2466 = vld [vmem:[%s11] sm:$0x1]
        %v2467 = vld [vmem:[%s12] sm:$0x1]
        %2468 = vadd.xlane.f32.xlu0 %v2340
        %v2469 = vpop.xlane.xlu0 %2468
        %2470 = vadd.xlane.f32.xlu0 %v2343
        %v2471 = vpop.xlane.xlu0 %2470
        %2472 = vadd.xlane.f32.xlu0 %v2348
        %v2473 = vpop.xlane.xlu0 %2472
        %2474 = vadd.xlane.f32.xlu0 %v2351
        %v2475 = vpop.xlane.xlu0 %2474
        %2476 = vadd.xlane.f32.xlu0 %v2356
        %v2477 = vpop.xlane.xlu0 %2476
        %2478 = vadd.xlane.f32.xlu0 %v2359
        %v2479 = vpop.xlane.xlu0 %2478
        %2480 = vadd.xlane.f32.xlu0 %v2364
        %v2481 = vpop.xlane.xlu0 %2480
        %2482 = vadd.xlane.f32.xlu0 %v2367
        %v2483 = vpop.xlane.xlu0 %2482
        %2484 = vadd.xlane.f32.xlu0 %v2372
        %v2485 = vpop.xlane.xlu0 %2484
        %2486 = vadd.xlane.f32.xlu0 %v2375
        %v2487 = vpop.xlane.xlu0 %2486
        %2488 = vadd.xlane.f32.xlu0 %v2380
        %v2489 = vpop.xlane.xlu0 %2488
        %2490 = vadd.xlane.f32.xlu0 %v2383
        %v2491 = vpop.xlane.xlu0 %2490
        %2492 = vadd.xlane.f32.xlu0 %v2388
        %v2493 = vpop.xlane.xlu0 %2492
        %2494 = vadd.xlane.f32.xlu0 %v2391
        %v2495 = vpop.xlane.xlu0 %2494
        %2496 = vadd.xlane.f32.xlu0 %v2396
        %v2497 = vpop.xlane.xlu0 %2496
        %2498 = vadd.xlane.f32.xlu0 %v2399
        %v2499 = vpop.xlane.xlu0 %2498
        %2500 = vadd.xlane.f32.xlu0 %v2404
        %v2501 = vpop.xlane.xlu0 %2500
        %2502 = vadd.xlane.f32.xlu0 %v2407
        %v2503 = vpop.xlane.xlu0 %2502
        %2504 = vadd.xlane.f32.xlu0 %v2412
        %v2505 = vpop.xlane.xlu0 %2504
        %2506 = vadd.xlane.f32.xlu0 %v2415
        %v2507 = vpop.xlane.xlu0 %2506
        %2508 = vadd.xlane.f32.xlu0 %v2420
        %v2509 = vpop.xlane.xlu0 %2508
        %2510 = vadd.xlane.f32.xlu0 %v2423
        %v2511 = vpop.xlane.xlu0 %2510
        %2512 = vadd.xlane.f32.xlu0 %v2428
        %v2513 = vpop.xlane.xlu0 %2512
        %2514 = vadd.xlane.f32.xlu0 %v2431
        %v2515 = vpop.xlane.xlu0 %2514
        %2516 = vadd.xlane.f32.xlu0 %v2436
        %v2517 = vpop.xlane.xlu0 %2516
        %2518 = vadd.xlane.f32.xlu0 %v2439
        %v2519 = vpop.xlane.xlu0 %2518
        %2520 = vadd.xlane.f32.xlu0 %v2444
        %v2521 = vpop.xlane.xlu0 %2520
        %2522 = vadd.xlane.f32.xlu0 %v2447
        %v2523 = vpop.xlane.xlu0 %2522
        %2524 = vadd.xlane.f32.xlu0 %v2452
        %v2525 = vpop.xlane.xlu0 %2524
        %2526 = vadd.xlane.f32.xlu0 %v2455
        %v2527 = vpop.xlane.xlu0 %2526
        %2528 = vadd.xlane.f32.xlu0 %v2460
        %v2529 = vpop.xlane.xlu0 %2528
        %2530 = vadd.xlane.f32.xlu0 %v2463
        %v2531 = vpop.xlane.xlu0 %2530
        %v2532 = vmul.f32 %v2340, %v2340
        %v2533 = vmul.f32 %v2343, %v2343
        %v2534 = vmul.f32 %v2348, %v2348
        %v2535 = vmul.f32 %v2351, %v2351
        %v2536 = vmul.f32 %v2356, %v2356
        %v2537 = vmul.f32 %v2359, %v2359
        %v2538 = vmul.f32 %v2364, %v2364
        %v2539 = vmul.f32 %v2367, %v2367
        %v2540 = vmul.f32 %v2372, %v2372
        %v2541 = vmul.f32 %v2375, %v2375
        %v2542 = vmul.f32 %v2380, %v2380
        %v2543 = vmul.f32 %v2383, %v2383
        %v2544 = vmul.f32 %v2388, %v2388
        %v2545 = vmul.f32 %v2391, %v2391
        %v2546 = vmul.f32 %v2396, %v2396
        %v2547 = vmul.f32 %v2399, %v2399
        %v2548 = vmul.f32 %v2404, %v2404
        %v2549 = vmul.f32 %v2407, %v2407
        %v2550 = vmul.f32 %v2412, %v2412
        %v2551 = vmul.f32 %v2415, %v2415
        %v2552 = vmul.f32 %v2420, %v2420
        %v2553 = vmul.f32 %v2423, %v2423
        %v2554 = vmul.f32 %v2428, %v2428
        %v2555 = vmul.f32 %v2431, %v2431
        %v2556 = vmul.f32 %v2436, %v2436
        %v2557 = vmul.f32 %v2439, %v2439
        %v2558 = vmul.f32 %v2444, %v2444
        %v2559 = vmul.f32 %v2447, %v2447
        %v2560 = vmul.f32 %v2452, %v2452
        %v2561 = vmul.f32 %v2455, %v2455
        %v2562 = vmul.f32 %v2460, %v2460
        %v2563 = vmul.f32 %v2463, %v2463
        %2564 = vadd.xlane.f32.xlu0 %v2532
        %v2565 = vpop.xlane.xlu0 %2564
        %2566 = vadd.xlane.f32.xlu0 %v2533
        %v2567 = vpop.xlane.xlu0 %2566
        %2568 = vadd.xlane.f32.xlu0 %v2534
        %v2569 = vpop.xlane.xlu0 %2568
        %2570 = vadd.xlane.f32.xlu0 %v2535
        %v2571 = vpop.xlane.xlu0 %2570
        %2572 = vadd.xlane.f32.xlu0 %v2536
        %v2573 = vpop.xlane.xlu0 %2572
        %2574 = vadd.xlane.f32.xlu0 %v2537
        %v2575 = vpop.xlane.xlu0 %2574
        %2576 = vadd.xlane.f32.xlu0 %v2538
        %v2577 = vpop.xlane.xlu0 %2576
        %2578 = vadd.xlane.f32.xlu0 %v2539
        %v2579 = vpop.xlane.xlu0 %2578
        %2580 = vadd.xlane.f32.xlu0 %v2540
        %v2581 = vpop.xlane.xlu0 %2580
        %2582 = vadd.xlane.f32.xlu0 %v2541
        %v2583 = vpop.xlane.xlu0 %2582
        %2584 = vadd.xlane.f32.xlu0 %v2542
        %v2585 = vpop.xlane.xlu0 %2584
        %2586 = vadd.xlane.f32.xlu0 %v2543
        %v2587 = vpop.xlane.xlu0 %2586
        %2588 = vadd.xlane.f32.xlu0 %v2544
        %v2589 = vpop.xlane.xlu0 %2588
        %2590 = vadd.xlane.f32.xlu0 %v2545
        %v2591 = vpop.xlane.xlu0 %2590
        %2592 = vadd.xlane.f32.xlu0 %v2546
        %v2593 = vpop.xlane.xlu0 %2592
        %2594 = vadd.xlane.f32.xlu0 %v2547
        %v2595 = vpop.xlane.xlu0 %2594
        %2596 = vadd.xlane.f32.xlu0 %v2548
        %v2597 = vpop.xlane.xlu0 %2596
        %2598 = vadd.xlane.f32.xlu0 %v2549
        %v2599 = vpop.xlane.xlu0 %2598
        %2600 = vadd.xlane.f32.xlu0 %v2550
        %v2601 = vpop.xlane.xlu0 %2600
        %2602 = vadd.xlane.f32.xlu0 %v2551
        %v2603 = vpop.xlane.xlu0 %2602
        %2604 = vadd.xlane.f32.xlu0 %v2552
        %v2605 = vpop.xlane.xlu0 %2604
        %2606 = vadd.xlane.f32.xlu0 %v2553
        %v2607 = vpop.xlane.xlu0 %2606
        %2608 = vadd.xlane.f32.xlu0 %v2554
        %v2609 = vpop.xlane.xlu0 %2608
        %2610 = vadd.xlane.f32.xlu0 %v2555
        %v2611 = vpop.xlane.xlu0 %2610
        %2612 = vadd.xlane.f32.xlu0 %v2556
        %v2613 = vpop.xlane.xlu0 %2612
        %2614 = vadd.xlane.f32.xlu0 %v2557
        %v2615 = vpop.xlane.xlu0 %2614
        %2616 = vadd.xlane.f32.xlu0 %v2558
        %v2617 = vpop.xlane.xlu0 %2616
        %2618 = vadd.xlane.f32.xlu0 %v2559
        %v2619 = vpop.xlane.xlu0 %2618
        %2620 = vadd.xlane.f32.xlu0 %v2560
        %v2621 = vpop.xlane.xlu0 %2620
        %2622 = vadd.xlane.f32.xlu0 %v2561
        %v2623 = vpop.xlane.xlu0 %2622
        %2624 = vadd.xlane.f32.xlu0 %v2562
        %v2625 = vpop.xlane.xlu0 %2624
        %2626 = vadd.xlane.f32.xlu0 %v2563
        %v2627 = vpop.xlane.xlu0 %2626
        %v2628 = vmul.f32 %v2469, 0.0078125
        %v2629 = vmul.f32 %v2471, 0.0078125
        %v2630 = vmul.f32 %v2473, 0.0078125
        %v2631 = vmul.f32 %v2475, 0.0078125
        %v2632 = vmul.f32 %v2477, 0.0078125
        %v2633 = vmul.f32 %v2479, 0.0078125
        %v2634 = vmul.f32 %v2481, 0.0078125
        %v2635 = vmul.f32 %v2483, 0.0078125
        %v2636 = vmul.f32 %v2485, 0.0078125
        %v2637 = vmul.f32 %v2487, 0.0078125
        %v2638 = vmul.f32 %v2489, 0.0078125
        %v2639 = vmul.f32 %v2491, 0.0078125
        %v2640 = vmul.f32 %v2493, 0.0078125
        %v2641 = vmul.f32 %v2495, 0.0078125
        %v2642 = vmul.f32 %v2497, 0.0078125
        %v2643 = vmul.f32 %v2499, 0.0078125
        %v2644 = vmul.f32 %v2501, 0.0078125
        %v2645 = vmul.f32 %v2503, 0.0078125
        %v2646 = vmul.f32 %v2505, 0.0078125
        %v2647 = vmul.f32 %v2507, 0.0078125
        %v2648 = vmul.f32 %v2509, 0.0078125
        %v2649 = vmul.f32 %v2511, 0.0078125
        %v2650 = vmul.f32 %v2513, 0.0078125
        %v2651 = vmul.f32 %v2515, 0.0078125
        %v2652 = vmul.f32 %v2517, 0.0078125
        %v2653 = vmul.f32 %v2519, 0.0078125
        %v2654 = vmul.f32 %v2521, 0.0078125
        %v2655 = vmul.f32 %v2523, 0.0078125
        %v2656 = vmul.f32 %v2525, 0.0078125
        %v2657 = vmul.f32 %v2527, 0.0078125
        %v2658 = vmul.f32 %v2529, 0.0078125
        %v2659 = vmul.f32 %v2531, 0.0078125
        %v2660 = vmul.f32 %v2565, 0.0078125
        %v2661 = vmul.f32 %v2567, 0.0078125
        %v2662 = vmul.f32 %v2569, 0.0078125
        %v2663 = vmul.f32 %v2571, 0.0078125
        %v2664 = vmul.f32 %v2573, 0.0078125
        %v2665 = vmul.f32 %v2575, 0.0078125
        %v2666 = vmul.f32 %v2577, 0.0078125
        %v2667 = vmul.f32 %v2579, 0.0078125
        %v2668 = vmul.f32 %v2581, 0.0078125
        %v2669 = vmul.f32 %v2583, 0.0078125
        %v2670 = vmul.f32 %v2585, 0.0078125
        %v2671 = vmul.f32 %v2587, 0.0078125
        %v2672 = vmul.f32 %v2589, 0.0078125
        %v2673 = vmul.f32 %v2591, 0.0078125
        %v2674 = vmul.f32 %v2593, 0.0078125
        %v2675 = vmul.f32 %v2595, 0.0078125
        %v2676 = vmul.f32 %v2597, 0.0078125
        %v2677 = vmul.f32 %v2599, 0.0078125
        %v2678 = vmul.f32 %v2601, 0.0078125
        %v2679 = vmul.f32 %v2603, 0.0078125
        %v2680 = vmul.f32 %v2605, 0.0078125
        %v2681 = vmul.f32 %v2607, 0.0078125
        %v2682 = vmul.f32 %v2609, 0.0078125
        %v2683 = vmul.f32 %v2611, 0.0078125
        %v2684 = vmul.f32 %v2613, 0.0078125
        %v2685 = vmul.f32 %v2615, 0.0078125
        %v2686 = vmul.f32 %v2617, 0.0078125
        %v2687 = vmul.f32 %v2619, 0.0078125
        %v2688 = vmul.f32 %v2621, 0.0078125
        %v2689 = vmul.f32 %v2623, 0.0078125
        %v2690 = vmul.f32 %v2625, 0.0078125
        %v2691 = vmul.f32 %v2627, 0.0078125
        %v2692 = vmul.f32 %v2628, %v2628
        %v2693 = vmul.f32 %v2629, %v2629
        %v2694 = vmul.f32 %v2630, %v2630
        %v2695 = vmul.f32 %v2631, %v2631
        %v2696 = vmul.f32 %v2632, %v2632
        %v2697 = vmul.f32 %v2633, %v2633
        %v2698 = vmul.f32 %v2634, %v2634
        %v2699 = vmul.f32 %v2635, %v2635
        %v2700 = vmul.f32 %v2636, %v2636
        %v2701 = vmul.f32 %v2637, %v2637
        %v2702 = vmul.f32 %v2638, %v2638
        %v2703 = vmul.f32 %v2639, %v2639
        %v2704 = vmul.f32 %v2640, %v2640
        %v2705 = vmul.f32 %v2641, %v2641
        %v2706 = vmul.f32 %v2642, %v2642
        %v2707 = vmul.f32 %v2643, %v2643
        %v2708 = vmul.f32 %v2644, %v2644
        %v2709 = vmul.f32 %v2645, %v2645
        %v2710 = vmul.f32 %v2646, %v2646
        %v2711 = vmul.f32 %v2647, %v2647
        %v2712 = vmul.f32 %v2648, %v2648
        %v2713 = vmul.f32 %v2649, %v2649
        %v2714 = vmul.f32 %v2650, %v2650
        %v2715 = vmul.f32 %v2651, %v2651
        %v2716 = vmul.f32 %v2652, %v2652
        %v2717 = vmul.f32 %v2653, %v2653
        %v2718 = vmul.f32 %v2654, %v2654
        %v2719 = vmul.f32 %v2655, %v2655
        %v2720 = vmul.f32 %v2656, %v2656
        %v2721 = vmul.f32 %v2657, %v2657
        %v2722 = vmul.f32 %v2658, %v2658
        %v2723 = vmul.f32 %v2659, %v2659
        %v2724 = vsub.f32 %v2660, %v2692
        %v2725 = vsub.f32 %v2661, %v2693
        %v2726 = vsub.f32 %v2662, %v2694
        %v2727 = vsub.f32 %v2663, %v2695
        %v2728 = vsub.f32 %v2664, %v2696
        %v2729 = vsub.f32 %v2665, %v2697
        %v2730 = vsub.f32 %v2666, %v2698
        %v2731 = vsub.f32 %v2667, %v2699
        %v2732 = vsub.f32 %v2668, %v2700
        %v2733 = vsub.f32 %v2669, %v2701
        %v2734 = vsub.f32 %v2670, %v2702
        %v2735 = vsub.f32 %v2671, %v2703
        %v2736 = vsub.f32 %v2672, %v2704
        %v2737 = vsub.f32 %v2673, %v2705
        %v2738 = vsub.f32 %v2674, %v2706
        %v2739 = vsub.f32 %v2675, %v2707
        %v2740 = vsub.f32 %v2676, %v2708
        %v2741 = vsub.f32 %v2677, %v2709
        %v2742 = vsub.f32 %v2678, %v2710
        %v2743 = vsub.f32 %v2679, %v2711
        %v2744 = vsub.f32 %v2680, %v2712
        %v2745 = vsub.f32 %v2681, %v2713
        %v2746 = vsub.f32 %v2682, %v2714
        %v2747 = vsub.f32 %v2683, %v2715
        %v2748 = vsub.f32 %v2684, %v2716
        %v2749 = vsub.f32 %v2685, %v2717
        %v2750 = vsub.f32 %v2686, %v2718
        %v2751 = vsub.f32 %v2687, %v2719
        %v2752 = vsub.f32 %v2688, %v2720
        %v2753 = vsub.f32 %v2689, %v2721
        %v2754 = vsub.f32 %v2690, %v2722
        %v2755 = vsub.f32 %v2691, %v2723
        %v2756 = vmax.f32 %v2724, 0.0
        %v2757 = vmax.f32 %v2725, 0.0
        %v2758 = vmax.f32 %v2726, 0.0
        %v2759 = vmax.f32 %v2727, 0.0
        %v2760 = vmax.f32 %v2728, 0.0
        %v2761 = vmax.f32 %v2729, 0.0
        %v2762 = vmax.f32 %v2730, 0.0
        %v2763 = vmax.f32 %v2731, 0.0
        %v2764 = vmax.f32 %v2732, 0.0
        %v2765 = vmax.f32 %v2733, 0.0
        %v2766 = vmax.f32 %v2734, 0.0
        %v2767 = vmax.f32 %v2735, 0.0
        %v2768 = vmax.f32 %v2736, 0.0
        %v2769 = vmax.f32 %v2737, 0.0
        %v2770 = vmax.f32 %v2738, 0.0
        %v2771 = vmax.f32 %v2739, 0.0
        %v2772 = vmax.f32 %v2740, 0.0
        %v2773 = vmax.f32 %v2741, 0.0
        %v2774 = vmax.f32 %v2742, 0.0
        %v2775 = vmax.f32 %v2743, 0.0
        %v2776 = vmax.f32 %v2744, 0.0
        %v2777 = vmax.f32 %v2745, 0.0
        %v2778 = vmax.f32 %v2746, 0.0
        %v2779 = vmax.f32 %v2747, 0.0
        %v2780 = vmax.f32 %v2748, 0.0
        %v2781 = vmax.f32 %v2749, 0.0
        %v2782 = vmax.f32 %v2750, 0.0
        %v2783 = vmax.f32 %v2751, 0.0
        %v2784 = vmax.f32 %v2752, 0.0
        %v2785 = vmax.f32 %v2753, 0.0
        %v2786 = vmax.f32 %v2754, 0.0
        %v2787 = vmax.f32 %v2755, 0.0
        %v2788 = vsub.f32 %v2340, %v2628
        %v2789 = vsub.f32 %v2343, %v2629
        %v2790 = vsub.f32 %v2348, %v2630
        %v2791 = vsub.f32 %v2351, %v2631
        %v2792 = vsub.f32 %v2356, %v2632
        %v2793 = vsub.f32 %v2359, %v2633
        %v2794 = vsub.f32 %v2364, %v2634
        %v2795 = vsub.f32 %v2367, %v2635
        %v2796 = vsub.f32 %v2372, %v2636
        %v2797 = vsub.f32 %v2375, %v2637
        %v2798 = vsub.f32 %v2380, %v2638
        %v2799 = vsub.f32 %v2383, %v2639
        %v2800 = vsub.f32 %v2388, %v2640
        %v2801 = vsub.f32 %v2391, %v2641
        %v2802 = vsub.f32 %v2396, %v2642
        %v2803 = vsub.f32 %v2399, %v2643
        %v2804 = vsub.f32 %v2404, %v2644
        %v2805 = vsub.f32 %v2407, %v2645
        %v2806 = vsub.f32 %v2412, %v2646
        %v2807 = vsub.f32 %v2415, %v2647
        %v2808 = vsub.f32 %v2420, %v2648
        %v2809 = vsub.f32 %v2423, %v2649
        %v2810 = vsub.f32 %v2428, %v2650
        %v2811 = vsub.f32 %v2431, %v2651
        %v2812 = vsub.f32 %v2436, %v2652
        %v2813 = vsub.f32 %v2439, %v2653
        %v2814 = vsub.f32 %v2444, %v2654
        %v2815 = vsub.f32 %v2447, %v2655
        %v2816 = vsub.f32 %v2452, %v2656
        %v2817 = vsub.f32 %v2455, %v2657
        %v2818 = vsub.f32 %v2460, %v2658
        %v2819 = vsub.f32 %v2463, %v2659
        %v2820 = vadd.f32 %v2756, 1e-05
        %v2821 = vadd.f32 %v2757, 1e-05
        %v2822 = vadd.f32 %v2758, 1e-05
        %v2823 = vadd.f32 %v2759, 1e-05
        %v2824 = vadd.f32 %v2760, 1e-05
        %v2825 = vadd.f32 %v2761, 1e-05
        %v2826 = vadd.f32 %v2762, 1e-05
        %v2827 = vadd.f32 %v2763, 1e-05
        %v2828 = vadd.f32 %v2764, 1e-05
        %v2829 = vadd.f32 %v2765, 1e-05
        %v2830 = vadd.f32 %v2766, 1e-05
        %v2831 = vadd.f32 %v2767, 1e-05
        %v2832 = vadd.f32 %v2768, 1e-05
        %v2833 = vadd.f32 %v2769, 1e-05
        %v2834 = vadd.f32 %v2770, 1e-05
        %v2835 = vadd.f32 %v2771, 1e-05
        %v2836 = vadd.f32 %v2772, 1e-05
        %v2837 = vadd.f32 %v2773, 1e-05
        %v2838 = vadd.f32 %v2774, 1e-05
        %v2839 = vadd.f32 %v2775, 1e-05
        %v2840 = vadd.f32 %v2776, 1e-05
        %v2841 = vadd.f32 %v2777, 1e-05
        %v2842 = vadd.f32 %v2778, 1e-05
        %v2843 = vadd.f32 %v2779, 1e-05
        %v2844 = vadd.f32 %v2780, 1e-05
        %v2845 = vadd.f32 %v2781, 1e-05
        %v2846 = vadd.f32 %v2782, 1e-05
        %v2847 = vadd.f32 %v2783, 1e-05
        %v2848 = vadd.f32 %v2784, 1e-05
        %v2849 = vadd.f32 %v2785, 1e-05
        %v2850 = vadd.f32 %v2786, 1e-05
        %v2851 = vadd.f32 %v2787, 1e-05
        %v2852 = vrsqrt.pop %v2820
        %v2853 = vrsqrt.pop %v2821
        %v2854 = vrsqrt.pop %v2822
        %v2855 = vrsqrt.pop %v2823
        %v2856 = vrsqrt.pop %v2824
        %v2857 = vrsqrt.pop %v2825
        %v2858 = vrsqrt.pop %v2826
        %v2859 = vrsqrt.pop %v2827
        %v2860 = vrsqrt.pop %v2828
        %v2861 = vrsqrt.pop %v2829
        %v2862 = vrsqrt.pop %v2830
        %v2863 = vrsqrt.pop %v2831
        %v2864 = vrsqrt.pop %v2832
        %v2865 = vrsqrt.pop %v2833
        %v2866 = vrsqrt.pop %v2834
        %v2867 = vrsqrt.pop %v2835
        %v2868 = vrsqrt.pop %v2836
        %v2869 = vrsqrt.pop %v2837
        %v2870 = vrsqrt.pop %v2838
        %v2871 = vrsqrt.pop %v2839
        %v2872 = vrsqrt.pop %v2840
        %v2873 = vrsqrt.pop %v2841
        %v2874 = vrsqrt.pop %v2842
        %v2875 = vrsqrt.pop %v2843
        %v2876 = vrsqrt.pop %v2844
        %v2877 = vrsqrt.pop %v2845
        %v2878 = vrsqrt.pop %v2846
        %v2879 = vrsqrt.pop %v2847
        %v2880 = vrsqrt.pop %v2848
        %v2881 = vrsqrt.pop %v2849
        %v2882 = vrsqrt.pop %v2850
        %v2883 = vrsqrt.pop %v2851
        %v2884 = vmul.f32 %v2788, %v2852
        %v2885 = vmul.f32 %v2789, %v2853
        %v2886 = vmul.f32 %v2790, %v2854
        %v2887 = vmul.f32 %v2791, %v2855
        %v2888 = vmul.f32 %v2792, %v2856
        %v2889 = vmul.f32 %v2793, %v2857
        %v2890 = vmul.f32 %v2794, %v2858
        %v2891 = vmul.f32 %v2795, %v2859
        %v2892 = vmul.f32 %v2796, %v2860
        %v2893 = vmul.f32 %v2797, %v2861
        %v2894 = vmul.f32 %v2798, %v2862
        %v2895 = vmul.f32 %v2799, %v2863
        %v2896 = vmul.f32 %v2800, %v2864
        %v2897 = vmul.f32 %v2801, %v2865
        %v2898 = vmul.f32 %v2802, %v2866
        %v2899 = vmul.f32 %v2803, %v2867
        %v2900 = vmul.f32 %v2804, %v2868
        %v2901 = vmul.f32 %v2805, %v2869
        %v2902 = vmul.f32 %v2806, %v2870
        %v2903 = vmul.f32 %v2807, %v2871
        %v2904 = vmul.f32 %v2808, %v2872
        %v2905 = vmul.f32 %v2809, %v2873
        %v2906 = vmul.f32 %v2810, %v2874
        %v2907 = vmul.f32 %v2811, %v2875
        %v2908 = vmul.f32 %v2812, %v2876
        %v2909 = vmul.f32 %v2813, %v2877
        %v2910 = vmul.f32 %v2814, %v2878
        %v2911 = vmul.f32 %v2815, %v2879
        %v2912 = vmul.f32 %v2816, %v2880
        %v2913 = vmul.f32 %v2817, %v2881
        %v2914 = vmul.f32 %v2818, %v2882
        %v2915 = vmul.f32 %v2819, %v2883
        %v2917 = vlaneseq
        %v2918 = vshrl.u32 %v2917, 7
        %v2919 = vsub.s32 0, %v2918
        %v2920 = vrot.slane %v2466, %v2919
        %v2922 = vmul.f32 %v2884, %v2920
        %v2923 = vmul.f32 %v2885, %v2920
        %v2924 = vmul.f32 %v2886, %v2920
        %v2925 = vmul.f32 %v2887, %v2920
        %v2926 = vmul.f32 %v2888, %v2920
        %v2927 = vmul.f32 %v2889, %v2920
        %v2928 = vmul.f32 %v2890, %v2920
        %v2929 = vmul.f32 %v2891, %v2920
        %v2930 = vmul.f32 %v2892, %v2920
        %v2931 = vmul.f32 %v2893, %v2920
        %v2932 = vmul.f32 %v2894, %v2920
        %v2933 = vmul.f32 %v2895, %v2920
        %v2934 = vmul.f32 %v2896, %v2920
        %v2935 = vmul.f32 %v2897, %v2920
        %v2936 = vmul.f32 %v2898, %v2920
        %v2937 = vmul.f32 %v2899, %v2920
        %v2938 = vmul.f32 %v2900, %v2920
        %v2939 = vmul.f32 %v2901, %v2920
        %v2940 = vmul.f32 %v2902, %v2920
        %v2941 = vmul.f32 %v2903, %v2920
        %v2942 = vmul.f32 %v2904, %v2920
        %v2943 = vmul.f32 %v2905, %v2920
        %v2944 = vmul.f32 %v2906, %v2920
        %v2945 = vmul.f32 %v2907, %v2920
        %v2946 = vmul.f32 %v2908, %v2920
        %v2947 = vmul.f32 %v2909, %v2920
        %v2948 = vmul.f32 %v2910, %v2920
        %v2949 = vmul.f32 %v2911, %v2920
        %v2950 = vmul.f32 %v2912, %v2920
        %v2951 = vmul.f32 %v2913, %v2920
        %v2952 = vmul.f32 %v2914, %v2920
        %v2953 = vmul.f32 %v2915, %v2920
        %v2955 = vlaneseq
        %v2956 = vshrl.u32 %v2955, 7
        %v2957 = vsub.s32 0, %v2956
        %v2958 = vrot.slane %v2467, %v2957
        %v2960 = vadd.f32 %v2922, %v2958
        %v2961 = vadd.f32 %v2923, %v2958
        %v2962 = vadd.f32 %v2924, %v2958
        %v2963 = vadd.f32 %v2925, %v2958
        %v2964 = vadd.f32 %v2926, %v2958
        %v2965 = vadd.f32 %v2927, %v2958
        %v2966 = vadd.f32 %v2928, %v2958
        %v2967 = vadd.f32 %v2929, %v2958
        %v2968 = vadd.f32 %v2930, %v2958
        %v2969 = vadd.f32 %v2931, %v2958
        %v2970 = vadd.f32 %v2932, %v2958
        %v2971 = vadd.f32 %v2933, %v2958
        %v2972 = vadd.f32 %v2934, %v2958
        %v2973 = vadd.f32 %v2935, %v2958
        %v2974 = vadd.f32 %v2936, %v2958
        %v2975 = vadd.f32 %v2937, %v2958
        %v2976 = vadd.f32 %v2938, %v2958
        %v2977 = vadd.f32 %v2939, %v2958
        %v2978 = vadd.f32 %v2940, %v2958
        %v2979 = vadd.f32 %v2941, %v2958
        %v2980 = vadd.f32 %v2942, %v2958
        %v2981 = vadd.f32 %v2943, %v2958
        %v2982 = vadd.f32 %v2944, %v2958
        %v2983 = vadd.f32 %v2945, %v2958
        %v2984 = vadd.f32 %v2946, %v2958
        %v2985 = vadd.f32 %v2947, %v2958
        %v2986 = vadd.f32 %v2948, %v2958
        %v2987 = vadd.f32 %v2949, %v2958
        %v2988 = vadd.f32 %v2950, %v2958
        %v2989 = vadd.f32 %v2951, %v2958
        %v2990 = vadd.f32 %v2952, %v2958
        %v2991 = vadd.f32 %v2953, %v2958
        %v2992 = vmax.f32 %v2960, 0.0
        %v2993 = vmax.f32 %v2961, 0.0
        %v2994 = vmax.f32 %v2962, 0.0
        %v2995 = vmax.f32 %v2963, 0.0
        %v2996 = vmax.f32 %v2964, 0.0
        %v2997 = vmax.f32 %v2965, 0.0
        %v2998 = vmax.f32 %v2966, 0.0
        %v2999 = vmax.f32 %v2967, 0.0
        %v3000 = vmax.f32 %v2968, 0.0
        %v3001 = vmax.f32 %v2969, 0.0
        %v3002 = vmax.f32 %v2970, 0.0
        %v3003 = vmax.f32 %v2971, 0.0
        %v3004 = vmax.f32 %v2972, 0.0
        %v3005 = vmax.f32 %v2973, 0.0
        %v3006 = vmax.f32 %v2974, 0.0
        %v3007 = vmax.f32 %v2975, 0.0
        %v3008 = vmax.f32 %v2976, 0.0
        %v3009 = vmax.f32 %v2977, 0.0
        %v3010 = vmax.f32 %v2978, 0.0
        %v3011 = vmax.f32 %v2979, 0.0
        %v3012 = vmax.f32 %v2980, 0.0
        %v3013 = vmax.f32 %v2981, 0.0
        %v3014 = vmax.f32 %v2982, 0.0
        %v3015 = vmax.f32 %v2983, 0.0
        %v3016 = vmax.f32 %v2984, 0.0
        %v3017 = vmax.f32 %v2985, 0.0
        %v3018 = vmax.f32 %v2986, 0.0
        %v3019 = vmax.f32 %v2987, 0.0
        %v3020 = vmax.f32 %v2988, 0.0
        %v3021 = vmax.f32 %v2989, 0.0
        %v3022 = vmax.f32 %v2990, 0.0
        %v3023 = vmax.f32 %v2991, 0.0
        %v3024 = vpack.c.bf16 %v2993, %v2992
        %v3025 = vpack.c.bf16 %v2995, %v2994
        %v3026 = vpack.c.bf16 %v2997, %v2996
        %v3027 = vpack.c.bf16 %v2999, %v2998
        %v3028 = vpack.c.bf16 %v3001, %v3000
        %v3029 = vpack.c.bf16 %v3003, %v3002
        %v3030 = vpack.c.bf16 %v3005, %v3004
        %v3031 = vpack.c.bf16 %v3007, %v3006
        %v3032 = vpack.c.bf16 %v3009, %v3008
        %v3033 = vpack.c.bf16 %v3011, %v3010
        %v3034 = vpack.c.bf16 %v3013, %v3012
        %v3035 = vpack.c.bf16 %v3015, %v3014
        %v3036 = vpack.c.bf16 %v3017, %v3016
        %v3037 = vpack.c.bf16 %v3019, %v3018
        %v3038 = vpack.c.bf16 %v3021, %v3020
        %v3039 = vpack.c.bf16 %v3023, %v3022
        %v3040 = vld [vmem:[#allocation10] sm:$0xf]
        %v3041 = vld [vmem:[#allocation10 + $0x4] sm:$0xf]
        %v3042 = vld [vmem:[#allocation10 + $0x8] sm:$0xf]
        %v3043 = vld [vmem:[#allocation10 + $0xc] sm:$0xf]
        %v3044 = vld [vmem:[#allocation10 + $0x10] sm:$0xf]
        %v3045 = vld [vmem:[#allocation10 + $0x14] sm:$0xf]
        %v3046 = vld [vmem:[#allocation10 + $0x18] sm:$0xf]
        %v3047 = vld [vmem:[#allocation10 + $0x1c] sm:$0xf]
        %v3048 = vld [vmem:[#allocation10 + $0x20] sm:$0xf]
        %v3049 = vld [vmem:[#allocation10 + $0x24] sm:$0xf]
        %v3050 = vld [vmem:[#allocation10 + $0x28] sm:$0xf]
        %v3051 = vld [vmem:[#allocation10 + $0x2c] sm:$0xf]
        %v3052 = vld [vmem:[#allocation10 + $0x30] sm:$0xf]
        %v3053 = vld [vmem:[#allocation10 + $0x34] sm:$0xf]
        %v3054 = vld [vmem:[#allocation10 + $0x38] sm:$0xf]
        %v3055 = vld [vmem:[#allocation10 + $0x3c] sm:$0xf]
        %v3056 = vld [vmem:[#allocation10 + $0x40] sm:$0xf]
        %v3057 = vld [vmem:[#allocation10 + $0x44] sm:$0xf]
        %v3058 = vld [vmem:[#allocation10 + $0x48] sm:$0xf]
        %v3059 = vld [vmem:[#allocation10 + $0x4c] sm:$0xf]
        %v3060 = vld [vmem:[#allocation10 + $0x50] sm:$0xf]
        %v3061 = vld [vmem:[#allocation10 + $0x54] sm:$0xf]
        %v3062 = vld [vmem:[#allocation10 + $0x58] sm:$0xf]
        %v3063 = vld [vmem:[#allocation10 + $0x5c] sm:$0xf]
        %v3064 = vld [vmem:[#allocation10 + $0x60] sm:$0xf]
        %v3065 = vld [vmem:[#allocation10 + $0x64] sm:$0xf]
        %v3066 = vld [vmem:[#allocation10 + $0x68] sm:$0xf]
        %v3067 = vld [vmem:[#allocation10 + $0x6c] sm:$0xf]
        %v3068 = vld [vmem:[#allocation10 + $0x70] sm:$0xf]
        %v3069 = vld [vmem:[#allocation10 + $0x74] sm:$0xf]
        %v3070 = vld [vmem:[#allocation10 + $0x78] sm:$0xf]
        %v3071 = vld [vmem:[#allocation10 + $0x7c] sm:$0xf]
        %v3072 = vld [vmem:[%s14] sm:$0x1]
        %v3074 = vlaneseq
        %v3075 = vshrl.u32 %v3074, 7
        %v3076 = vsub.s32 0, %v3075
        %v3077 = vrot.slane %v3072, %v3076
        %v3111 = vunpack.c.l.b16 %v3040
        %v3112 = vunpack.c.l.b16 %v3041
        %v3113 = vunpack.c.l.b16 %v3042
        %v3114 = vunpack.c.l.b16 %v3043
        %v3115 = vunpack.c.l.b16 %v3044
        %v3116 = vunpack.c.l.b16 %v3045
        %v3117 = vunpack.c.l.b16 %v3046
        %v3118 = vunpack.c.l.b16 %v3047
        %v3119 = vunpack.c.l.b16 %v3048
        %v3120 = vunpack.c.l.b16 %v3049
        %v3121 = vunpack.c.l.b16 %v3050
        %v3122 = vunpack.c.l.b16 %v3051
        %v3123 = vunpack.c.l.b16 %v3052
        %v3124 = vunpack.c.l.b16 %v3053
        %v3125 = vunpack.c.l.b16 %v3054
        %v3126 = vunpack.c.l.b16 %v3055
        %v3127 = vunpack.c.l.b16 %v3056
        %v3128 = vunpack.c.l.b16 %v3057
        %v3129 = vunpack.c.l.b16 %v3058
        %v3130 = vunpack.c.l.b16 %v3059
        %v3131 = vunpack.c.l.b16 %v3060
        %v3132 = vunpack.c.l.b16 %v3061
        %v3133 = vunpack.c.l.b16 %v3062
        %v3134 = vunpack.c.l.b16 %v3063
        %v3135 = vunpack.c.l.b16 %v3064
        %v3136 = vunpack.c.l.b16 %v3065
        %v3137 = vunpack.c.l.b16 %v3066
        %v3138 = vunpack.c.l.b16 %v3067
        %v3139 = vunpack.c.l.b16 %v3068
        %v3140 = vunpack.c.l.b16 %v3069
        %v3141 = vunpack.c.l.b16 %v3070
        %v3142 = vunpack.c.l.b16 %v3071
        %v3143 = vpack.c.b16 %v3112, %v3111
        %v3144 = vpack.c.b16 %v3114, %v3113
        %v3145 = vpack.c.b16 %v3116, %v3115
        %v3146 = vpack.c.b16 %v3118, %v3117
        %v3147 = vpack.c.b16 %v3120, %v3119
        %v3148 = vpack.c.b16 %v3122, %v3121
        %v3149 = vpack.c.b16 %v3124, %v3123
        %v3150 = vpack.c.b16 %v3126, %v3125
        %v3151 = vpack.c.b16 %v3128, %v3127
        %v3152 = vpack.c.b16 %v3130, %v3129
        %v3153 = vpack.c.b16 %v3132, %v3131
        %v3154 = vpack.c.b16 %v3134, %v3133
        %v3155 = vpack.c.b16 %v3136, %v3135
        %v3156 = vpack.c.b16 %v3138, %v3137
        %v3157 = vpack.c.b16 %v3140, %v3139
        %v3158 = vpack.c.b16 %v3142, %v3141
        %3175 = vmatprep.subr.bf16.mxu0 0
        %3176 = vmatpush1.bf16.msra.mxu0 %v3143
        %3177 = vmatprep.subr.bf16.mxu0 0
        %3178 = vmatpush1.bf16.msra.mxu0 %v3144
        %3179 = vmatprep.subr.bf16.mxu0 0
        %3180 = vmatpush1.bf16.msra.mxu0 %v3145
        %3181 = vmatprep.subr.bf16.mxu0 0
        %3182 = vmatpush1.bf16.msra.mxu0 %v3146
        %3183 = vmatprep.subr.bf16.mxu0 0
        %3184 = vmatpush1.bf16.msra.mxu0 %v3147
        %3185 = vmatprep.subr.bf16.mxu0 0
        %3186 = vmatpush1.bf16.msra.mxu0 %v3148
        %3187 = vmatprep.subr.bf16.mxu0 0
        %3188 = vmatpush1.bf16.msra.mxu0 %v3149
        %3189 = vmatprep.subr.bf16.mxu0 0
        %3190 = vmatpush1.bf16.msra.mxu0 %v3150
        %3191 = vmatprep.subr.bf16.mxu0 0
        %3192 = vmatpush1.bf16.msra.mxu0 %v3151
        %3193 = vmatprep.subr.bf16.mxu0 0
        %3194 = vmatpush1.bf16.msra.mxu0 %v3152
        %3195 = vmatprep.subr.bf16.mxu0 0
        %3196 = vmatpush1.bf16.msra.mxu0 %v3153
        %3197 = vmatprep.subr.bf16.mxu0 0
        %3198 = vmatpush1.bf16.msra.mxu0 %v3154
        %3199 = vmatprep.subr.bf16.mxu0 0
        %3200 = vmatpush1.bf16.msra.mxu0 %v3155
        %3201 = vmatprep.subr.bf16.mxu0 0
        %3202 = vmatpush1.bf16.msra.mxu0 %v3156
        %3203 = vmatprep.subr.bf16.mxu0 0
        %3204 = vmatpush1.bf16.msra.mxu0 %v3157
        %3205 = vmatprep.subr.bf16.mxu0 0
        %3206 = vmatpush1.bf16.msra.mxu0 %v3158
        %3207 = vmatprep.mubr.bf16.mxu0 %v606
        %3208 = vmatmul.mubr.bf16.gmra.mrb[0].mxu0 %v3024
        %v3209 = vpop.f32.mrb[0].mxu0
        %v3210 = vadd.f32 %v3077, %v3209
        %v3211 = vpop.f32.mrb[0].mxu0
        %v3212 = vpop.f32.mrb[0].mxu0
        %v3213 = vadd.f32 %v3077, %v3212
        %v3214 = vpop.f32.mrb[0].mxu0
        %3215 = vmatprep.mubr.bf16.mxu0 %v607
        %3216 = vmatmul.mubr.bf16.gmra.mrb[0].mxu0 %v3025
        %v3217 = vpop.f32.mrb[0].mxu0
        %v3218 = vadd.f32 %v3077, %v3217
        %v3219 = vpop.f32.mrb[0].mxu0
        %v3220 = vpop.f32.mrb[0].mxu0
        %v3221 = vadd.f32 %v3077, %v3220
        %v3222 = vpop.f32.mrb[0].mxu0
        %3223 = vmatprep.mubr.bf16.mxu0 %v608
        %3224 = vmatmul.mubr.bf16.gmra.mrb[0].mxu0 %v3026
        %v3225 = vpop.f32.mrb[0].mxu0
        %v3226 = vadd.f32 %v3077, %v3225
        %v3227 = vpop.f32.mrb[0].mxu0
        %v3228 = vpop.f32.mrb[0].mxu0
        %v3229 = vadd.f32 %v3077, %v3228
        %v3230 = vpop.f32.mrb[0].mxu0
        %3231 = vmatprep.mubr.bf16.mxu0 %v609
        %3232 = vmatmul.mubr.bf16.gmra.mrb[0].mxu0 %v3027
        %v3233 = vpop.f32.mrb[0].mxu0
        %v3234 = vadd.f32 %v3077, %v3233
        %v3235 = vpop.f32.mrb[0].mxu0
        %v3236 = vpop.f32.mrb[0].mxu0
        %v3237 = vadd.f32 %v3077, %v3236
        %v3238 = vpop.f32.mrb[0].mxu0
        %3239 = vmatprep.mubr.bf16.mxu0 %v610
        %3240 = vmatmul.mubr.bf16.gmra.mrb[0].mxu0 %v3028
        %v3241 = vpop.f32.mrb[0].mxu0
        %v3242 = vadd.f32 %v3077, %v3241
        %v3243 = vpop.f32.mrb[0].mxu0
        %v3244 = vpop.f32.mrb[0].mxu0
        %v3245 = vadd.f32 %v3077, %v3244
        %v3246 = vpop.f32.mrb[0].mxu0
        %3247 = vmatprep.mubr.bf16.mxu0 %v611
        %3248 = vmatmul.mubr.bf16.gmra.mrb[0].mxu0 %v3029
        %v3249 = vpop.f32.mrb[0].mxu0
        %v3250 = vadd.f32 %v3077, %v3249
        %v3251 = vpop.f32.mrb[0].mxu0
        %v3252 = vpop.f32.mrb[0].mxu0
        %v3253 = vadd.f32 %v3077, %v3252
        %v3254 = vpop.f32.mrb[0].mxu0
        %3255 = vmatprep.mubr.bf16.mxu0 %v612
        %3256 = vmatmul.mubr.bf16.gmra.mrb[0].mxu0 %v3030
        %v3257 = vpop.f32.mrb[0].mxu0
        %v3258 = vadd.f32 %v3077, %v3257
        %v3259 = vpop.f32.mrb[0].mxu0
        %v3260 = vpop.f32.mrb[0].mxu0
        %v3261 = vadd.f32 %v3077, %v3260
        %v3262 = vpop.f32.mrb[0].mxu0
        %3263 = vmatprep.mubr.bf16.mxu0 %v613
        %3264 = vmatmul.mubr.bf16.gmra.mrb[0].mxu0 %v3031
        %v3265 = vpop.f32.mrb[0].mxu0
        %v3266 = vadd.f32 %v3077, %v3265
        %v3267 = vpop.f32.mrb[0].mxu0
        %v3268 = vpop.f32.mrb[0].mxu0
        %v3269 = vadd.f32 %v3077, %v3268
        %v3270 = vpop.f32.mrb[0].mxu0
        %3271 = vmatprep.mubr.bf16.mxu0 %v614
        %3272 = vmatmul.mubr.bf16.gmra.mrb[0].mxu0 %v3032
        %v3273 = vpop.f32.mrb[0].mxu0
        %v3274 = vadd.f32 %v3077, %v3273
        %v3275 = vpop.f32.mrb[0].mxu0
        %v3276 = vpop.f32.mrb[0].mxu0
        %v3277 = vadd.f32 %v3077, %v3276
        %v3278 = vpop.f32.mrb[0].mxu0
        %3279 = vmatprep.mubr.bf16.mxu0 %v615
        %3280 = vmatmul.mubr.bf16.gmra.mrb[0].mxu0 %v3033
        %v3281 = vpop.f32.mrb[0].mxu0
        %v3282 = vadd.f32 %v3077, %v3281
        %v3283 = vpop.f32.mrb[0].mxu0
        %v3284 = vpop.f32.mrb[0].mxu0
        %v3285 = vadd.f32 %v3077, %v3284
        %v3286 = vpop.f32.mrb[0].mxu0
        %3287 = vmatprep.mubr.bf16.mxu0 %v616
        %3288 = vmatmul.mubr.bf16.gmra.mrb[0].mxu0 %v3034
        %v3289 = vpop.f32.mrb[0].mxu0
        %v3290 = vadd.f32 %v3077, %v3289
        %v3291 = vpop.f32.mrb[0].mxu0
        %v3292 = vpop.f32.mrb[0].mxu0
        %v3293 = vadd.f32 %v3077, %v3292
        %v3294 = vpop.f32.mrb[0].mxu0
        %3295 = vmatprep.mubr.bf16.mxu0 %v617
        %3296 = vmatmul.mubr.bf16.gmra.mrb[0].mxu0 %v3035
        %v3297 = vpop.f32.mrb[0].mxu0
        %v3298 = vadd.f32 %v3077, %v3297
        %v3299 = vpop.f32.mrb[0].mxu0
        %v3300 = vpop.f32.mrb[0].mxu0
        %v3301 = vadd.f32 %v3077, %v3300
        %v3302 = vpop.f32.mrb[0].mxu0
        %3303 = vmatprep.mubr.bf16.mxu0 %v618
        %3304 = vmatmul.mubr.bf16.gmra.mrb[0].mxu0 %v3036
        %v3305 = vpop.f32.mrb[0].mxu0
        %v3306 = vadd.f32 %v3077, %v3305
        %v3307 = vpop.f32.mrb[0].mxu0
        %v3308 = vpop.f32.mrb[0].mxu0
        %v3309 = vadd.f32 %v3077, %v3308
        %v3310 = vpop.f32.mrb[0].mxu0
        %3311 = vmatprep.mubr.bf16.mxu0 %v619
        %3312 = vmatmul.mubr.bf16.gmra.mrb[0].mxu0 %v3037
        %v3313 = vpop.f32.mrb[0].mxu0
        %v3314 = vadd.f32 %v3077, %v3313
        %v3315 = vpop.f32.mrb[0].mxu0
        %v3316 = vpop.f32.mrb[0].mxu0
        %v3317 = vadd.f32 %v3077, %v3316
        %v3318 = vpop.f32.mrb[0].mxu0
        %3319 = vmatprep.mubr.bf16.mxu0 %v620
        %3320 = vmatmul.mubr.bf16.gmra.mrb[0].mxu0 %v3038
        %v3321 = vpop.f32.mrb[0].mxu0
        %v3322 = vadd.f32 %v3077, %v3321
        %v3323 = vpop.f32.mrb[0].mxu0
        %v3324 = vpop.f32.mrb[0].mxu0
        %v3325 = vadd.f32 %v3077, %v3324
        %v3326 = vpop.f32.mrb[0].mxu0
        %3327 = vmatprep.mubr.bf16.mxu0 %v621
        %3328 = vmatmul.mubr.bf16.gmra.mrb[0].mxu0 %v3039
        %v3329 = vpop.f32.mrb[0].mxu0
        %v3330 = vadd.f32 %v3077, %v3329
        %v3331 = vpop.f32.mrb[0].mxu0
        %v3332 = vpop.f32.mrb[0].mxu0
        %v3333 = vadd.f32 %v3077, %v3332
        %v3334 = vpop.f32.mrb[0].mxu0
        %3335 = vdwg.mxu0
        %3336 = vst [vmem:[%s570] sm:$0xff] %v3210
        %3337 = vst [vmem:[%s570 + $0x8] sm:$0xff] %v3213
        %3338 = vst [vmem:[%s570 + $0x10] sm:$0xff] %v3218
        %3339 = vst [vmem:[%s570 + $0x18] sm:$0xff] %v3221
        %3340 = vst [vmem:[%s570 + $0x20] sm:$0xff] %v3226
        %3341 = vst [vmem:[%s570 + $0x28] sm:$0xff] %v3229
        %3342 = vst [vmem:[%s570 + $0x30] sm:$0xff] %v3234
        %3343 = vst [vmem:[%s570 + $0x38] sm:$0xff] %v3237
        %3344 = vst [vmem:[%s570 + $0x40] sm:$0xff] %v3242
        %3345 = vst [vmem:[%s570 + $0x48] sm:$0xff] %v3245
        %3346 = vst [vmem:[%s570 + $0x50] sm:$0xff] %v3250
        %3347 = vst [vmem:[%s570 + $0x58] sm:$0xff] %v3253
        %3348 = vst [vmem:[%s570 + $0x60] sm:$0xff] %v3258
        %3349 = vst [vmem:[%s570 + $0x68] sm:$0xff] %v3261
        %3350 = vst [vmem:[%s570 + $0x70] sm:$0xff] %v3266
        %3351 = vst [vmem:[%s570 + $0x78] sm:$0xff] %v3269
        %3352 = vst [vmem:[%s570 + $0x80] sm:$0xff] %v3274
        %3353 = vst [vmem:[%s570 + $0x88] sm:$0xff] %v3277
        %3354 = vst [vmem:[%s570 + $0x90] sm:$0xff] %v3282
        %3355 = vst [vmem:[%s570 + $0x98] sm:$0xff] %v3285
        %3356 = vst [vmem:[%s570 + $0xa0] sm:$0xff] %v3290
        %3357 = vst [vmem:[%s570 + $0xa8] sm:$0xff] %v3293
        %3358 = vst [vmem:[%s570 + $0xb0] sm:$0xff] %v3298
        %3359 = vst [vmem:[%s570 + $0xb8] sm:$0xff] %v3301
        %3360 = vst [vmem:[%s570 + $0xc0] sm:$0xff] %v3306
        %3361 = vst [vmem:[%s570 + $0xc8] sm:$0xff] %v3309
        %3362 = vst [vmem:[%s570 + $0xd0] sm:$0xff] %v3314
        %3363 = vst [vmem:[%s570 + $0xd8] sm:$0xff] %v3317
        %3364 = vst [vmem:[%s570 + $0xe0] sm:$0xff] %v3322
        %3365 = vst [vmem:[%s570 + $0xe8] sm:$0xff] %v3325
        %3366 = vst [vmem:[%s570 + $0xf0] sm:$0xff] %v3330
        %3367 = vst [vmem:[%s570 + $0xf8] sm:$0xff] %v3333
        %s3368 = sand.u32 %s362, 1
        %s3369 = scalar_lea.sflag [#allocation4], %s3368
        %s3370 = sand.u32 %s362, 1
        %s3371 = smul.addr %s3370, 256
        %s3372 = scalar_lea.vmem [#allocation11], %s3371
        // Predicated region
        $region101: #{tpu_custom_call.1} parent=79 // pred_check
          %p3373 = pneg %p372
        $region102: #{tpu_custom_call.1} parent=79 // pred_check_branch
          %3375 = sbr.rel (%p3373) target = $region104
        $region103: #{tpu_custom_call.1} parent=79 // pred_region
          %s3376 = smul.u32 32, %s34
          %s3378 = ssub.s32 4096, 4096
          %3379 = vsyncadd %s3369, %s3378
          %s3380 = smul.addr %s3376, 128
          %s3381 = scalar_lea.hbm %s15, %s3380
          %s3382 = sshll.u32 %s3372, 4
          %s3383 = int_to_ptr.vmem [resolvable:$true] %s3382
          %3388 = dma.vmem_to_hbm [thread:$0]  %s3383, 4096, %s3381, %s3369, 128, 128, 8
        $region104: #{tpu_custom_call.1} parent=79 // pred_fallthru
          _
      $region80: #{tpu_custom_call.1} parent=5 // pred_fallthru
        _
      %p3389 = scmp.le.s32.totalorder 2, %s29
      // Predicated region
      $region105: #{tpu_custom_call.1} parent=5 // pred_check
        %p3390 = pneg %p3389
      $region106: #{tpu_custom_call.1} parent=5 // pred_check_branch
        %3392 = sbr.rel (%p3390) target = $region108
      $region107: #{tpu_custom_call.1} parent=5 // pred_region
        %s3393 = ssub.s32 %s29, 2
        // Predicated region
        $region109: #{tpu_custom_call.1} parent=107 // pred_check
          %p3394 = pneg %p378
        $region110: #{tpu_custom_call.1} parent=107 // pred_check_branch
          %3396 = sbr.rel (%p3394) target = $region112
        $region111: #{tpu_custom_call.1} parent=107 // pred_region
          %s3397 = sand.u32 %s363, 1
          %s3398 = scalar_lea.sflag [#allocation4], %s3397
          %s3399 = sand.u32 %s363, 1
          %s3400 = smul.addr %s3399, 256
          %s3401 = scalar_lea.vmem [#allocation11], %s3400
          %3402 = dma.done %s3398, 4096
        $region112: #{tpu_custom_call.1} parent=107 // pred_fallthru
          _
      $region108: #{tpu_custom_call.1} parent=5 // pred_fallthru
        _
    $region6: #{tpu_custom_call.1} parent=1 // loop_footer
      %s33 = sadd.s32 1, %s29
    $region7: #{tpu_custom_call.1} parent=1 // loop_footer_branch
      %28 = sbr.rel target = $region3
    $region8: #{tpu_custom_call.1} parent=1 // loop_exit
      _
    %3403 = vsyncpa [#allocation3], 1
    %s3404 = scalar_lea.sflag [#allocation3], 1
    %3405 = vsyncpa %s3404, 1
    %3406 = vsyncpa [#allocation6], 1
    %3407 = vsyncpa [#allocation9], 1
    %3408 = vsyncpa [#allocation4], 1
    %s3409 = scalar_lea.sflag [#allocation4], 1
    %3410 = vsyncpa %s3409, 1

// kernel: tpu_custom_call.1
$region0: #{tpu_custom_call.1}
  #allocation0 [shape = 'u32[]', space=smem, size = 0x4, offset = 0x4, fixed_abs, tag = 'smem constant byte address 0x4 - core index']
  #allocation1 [shape = 'u32[144,128]{1,0:T(1,128)}', space=vmem, size = 0x12000, scoped, tag = 'internal scratch']
  %s0 = inlined_call_operand.hbm [shape: f32[1024,128], index: 0, kind: input, shape index: {}]
  %s1 = inlined_call_operand.hbm [shape: bf16[128,128], index: 1, kind: input, shape index: {}]
  %s2 = inlined_call_operand.vmem [shape: f32[1,128], index: 2, kind: input, shape index: {}]
  %s3 = inlined_call_operand.vmem [shape: f32[1,128], index: 3, kind: input, shape index: {}]
  %s4 = inlined_call_operand.vmem [shape: f32[1,128], index: 4, kind: input, shape index: {}]
  %s5 = inlined_call_operand.hbm [shape: bf16[128,128], index: 5, kind: input, shape index: {}]
  %s6 = inlined_call_operand.vmem [shape: f32[1,128], index: 6, kind: input, shape index: {}]
  %s7 = inlined_call_operand.vmem [shape: f32[1,128], index: 7, kind: input, shape index: {}]
  %s8 = inlined_call_operand.vmem [shape: f32[1,128], index: 8, kind: input, shape index: {}]
  %s9 = inlined_call_operand.hbm [shape: bf16[128,128], index: 9, kind: input, shape index: {}]
  %s10 = inlined_call_operand.vmem [shape: f32[1,128], index: 10, kind: input, shape index: {}]
  %s11 = inlined_call_operand.vmem [shape: f32[1,128], index: 11, kind: input, shape index: {}]
  %s12 = inlined_call_operand.vmem [shape: f32[1,128], index: 12, kind: input, shape index: {}]
  %s13 = inlined_call_operand.hbm [shape: bf16[256,128], index: 13, kind: input, shape index: {}]
  %s14 = inlined_call_operand.vmem [shape: f32[1,128], index: 14, kind: input, shape index: {}]
  %s15 = inlined_call_operand.hbm [shape: f32[1024,128], index: 15, kind: output, shape index: {}]
  %s16 = sld [smem:[#allocation0]]
  $region113: #{tpu_custom_call.1} parent=0
    _
  %s18 = ssub.s32 1, %s16
  %s19 = scalar_select 0, %s18, %s16
  $region1: #{tpu_custom_call.1} parent=0
    #allocation2 [shape = 'u8[262144]{0}', space=vmem, size = 0x40000, scoped, tag = 'input window, operand 0']
    #allocation3 [shape = 's32[2]{0}', space=sflag, size = 0x8, scoped, tag = 'scoped memory for tpu_custom_call.1']
    #allocation4 [shape = 's32[2]{0}', space=sflag, size = 0x8, scoped, tag = 'scoped memory for tpu_custom_call.1']
    #allocation5 [shape = 'u8[32768]{0}', space=vmem, size = 0x8000, scoped, tag = 'input window, operand 1, single buffered']
    #allocation6 [shape = 's32[1]{0}', space=sflag, size = 0x4, scoped, tag = 'scoped memory for tpu_custom_call.1']
    #allocation7 [shape = 'u8[32768]{0}', space=vmem, size = 0x8000, scoped, tag = 'input window, operand 5, single buffered']
    #allocation8 [shape = 'u8[32768]{0}', space=vmem, size = 0x8000, scoped, tag = 'input window, operand 9, single buffered']
    #allocation9 [shape = 's32[1]{0}', space=sflag, size = 0x4, scoped, tag = 'scoped memory for tpu_custom_call.1']
    #allocation10 [shape = 'u8[65536]{0}', space=vmem, size = 0x10000, scoped, tag = 'input window, operand 13, single buffered']
    #allocation11 [shape = 'u8[262144]{0}', space=vmem, size = 0x40000, scoped, tag = 'output window, operand 0']
    %20 = vsyncpa [#allocation3], 0
    %s21 = scalar_lea.sflag [#allocation3], 1
    %22 = vsyncpa %s21, 0
    %23 = vsyncpa [#allocation6], 0
    %24 = vsyncpa [#allocation9], 0
    %25 = vsyncpa [#allocation4], 0
    %s26 = scalar_lea.sflag [#allocation4], 1
    %27 = vsyncpa %s26, 0
    loop: start=0, step=1, limit=6
    $region2: #{tpu_custom_call.1} parent=1 // loop_pre_header
      _
    $region3: #{tpu_custom_call.1} parent=1 // loop_header
      %s29 = sphi 0, %s33
      %p30 = scmp.ge.s32.totalorder %s29, 6
      %s39 = sphi 0, %s41
      %s42 = sphi 0, %s39
      %s43 = sphi 0, %s42
      %s59 = sphi 0, %s43
      %s63 = sphi 0, %s63
      %s65 = sphi 0, %s63
      %s66 = sphi 0, %s65
      %s80 = sphi 0, %s66
      %s84 = sphi 0, %s84
      %s86 = sphi 0, %s84
      %s87 = sphi 0, %s86
      %s101 = sphi 0, %s87
      %s105 = sphi 0, %s105
      %s107 = sphi 0, %s105
      %s108 = sphi 0, %s107
      %s122 = sphi 0, %s108
      %s126 = sphi 0, %s126
      %s128 = sphi 0, %s126
      %s129 = sphi 0, %s128
      %s143 = sphi 0, %s129
      %s147 = sphi 0, %s147
      %s149 = sphi 0, %s147
      %s150 = sphi 0, %s149
      %s164 = sphi 0, %s150
      %s168 = sphi 0, %s168
      %s170 = sphi 0, %s168
      %s171 = sphi 0, %s170
      %s185 = sphi 0, %s171
      %s189 = sphi 0, %s189
      %s191 = sphi 0, %s189
      %s192 = sphi 0, %s191
      %s206 = sphi 0, %s192
      %s210 = sphi 0, %s210
      %s212 = sphi 0, %s210
      %s213 = sphi 0, %s212
      %s227 = sphi 0, %s213
      %s231 = sphi 0, %s231
      %s233 = sphi 0, %s231
      %s234 = sphi 0, %s233
      %s248 = sphi 0, %s234
      %s252 = sphi 0, %s252
      %s254 = sphi 0, %s252
      %s255 = sphi 0, %s254
      %s269 = sphi 0, %s255
      %s273 = sphi 0, %s273
      %s275 = sphi 0, %s273
      %s276 = sphi 0, %s275
      %s290 = sphi 0, %s276
      %s294 = sphi 0, %s294
      %s296 = sphi 0, %s294
      %s297 = sphi 0, %s296
      %s311 = sphi 0, %s297
      %s315 = sphi 0, %s315
      %s317 = sphi 0, %s315
      %s318 = sphi 0, %s317
      %s332 = sphi 0, %s318
      %s336 = sphi 0, %s336
      %s338 = sphi 0, %s336
      %s339 = sphi 0, %s338
      %s353 = sphi 0, %s339
      %s359 = sphi 0, %s361
      %s362 = sphi 0, %s359
      %s363 = sphi 0, %s362
      %s379 = sphi 0, %s363
    $region4: #{tpu_custom_call.1} parent=1 // loop_header_branch
      %32 = sbr.rel (%p30) target = $region8
    $region5: #{tpu_custom_call.1} parent=1 // loop_body
      %s34 = ssub.s32 %s29, 1
      %s35 = ssub.s32 %s29, 2
      %s36 = sadd.s32 %s29, 1
      %s37 = ssub.s32 %s29, %s36
      %p38 = scmp.eq.s32.totalorder %s37, 0
      %s40 = sadd.s32 %s39, 1
      %s41 = scalar_select %p38, %s39, %s40
      %p44 = pneg %p38
      %p45 = scmp.eq.s32.totalorder %s29, 3
      %p46 = por %p44, %p45
      %p47 = scmp.ne.s32.totalorder %s39, %s42
      %p48 = scmp.eq.s32.totalorder %s29, 0
      %p49 = por %p47, %p48
      %p50 = scmp.ne.s32.totalorder %s39, %s42
      %p51 = scmp.eq.s32.totalorder %s34, 3
      %p52 = por %p50, %p51
      %p53 = scmp.ne.s32.totalorder %s42, %s43
      %p54 = scmp.eq.s32.totalorder %s34, 0
      %p55 = por %p53, %p54
      %p56 = scmp.ne.s32.totalorder %s42, %s43
      %p57 = scmp.eq.s32.totalorder %s35, 3
      %p58 = por %p56, %p57
      %p60 = scmp.ne.s32.totalorder %s43, %s59
      %p61 = scmp.eq.s32.totalorder %s35, 0
      %p62 = por %p60, %p61
      %s64 = sadd.s32 %s63, 1
      %p67 = scmp.eq.s32.totalorder %s29, 3
      %p68 = scmp.ne.s32.totalorder %s63, %s65
      %p69 = scmp.eq.s32.totalorder %s29, 0
      %p70 = por %p68, %p69
      %p71 = scmp.ne.s32.totalorder %s63, %s65
      %p72 = scmp.eq.s32.totalorder %s34, 3
      %p73 = por %p71, %p72
      %p74 = scmp.ne.s32.totalorder %s65, %s66
      %p75 = scmp.eq.s32.totalorder %s34, 0
      %p76 = por %p74, %p75
      %p77 = scmp.ne.s32.totalorder %s65, %s66
      %p78 = scmp.eq.s32.totalorder %s35, 3
      %p79 = por %p77, %p78
      %p81 = scmp.ne.s32.totalorder %s66, %s80
      %p82 = scmp.eq.s32.totalorder %s35, 0
      %p83 = por %p81, %p82
      %s85 = sadd.s32 %s84, 1
      %p88 = scmp.eq.s32.totalorder %s29, 3
      %p89 = scmp.ne.s32.totalorder %s84, %s86
      %p90 = scmp.eq.s32.totalorder %s29, 0
      %p91 = por %p89, %p90
      %p92 = scmp.ne.s32.totalorder %s84, %s86
      %p93 = scmp.eq.s32.totalorder %s34, 3
      %p94 = por %p92, %p93
      %p95 = scmp.ne.s32.totalorder %s86, %s87
      %p96 = scmp.eq.s32.totalorder %s34, 0
      %p97 = por %p95, %p96
      %p98 = scmp.ne.s32.totalorder %s86, %s87
      %p99 = scmp.eq.s32.totalorder %s35, 3
      %p100 = por %p98, %p99
      %p102 = scmp.ne.s32.totalorder %s87, %s101
      %p103 = scmp.eq.s32.totalorder %s35, 0
      %p104 = por %p102, %p103
      %s106 = sadd.s32 %s105, 1
      %p109 = scmp.eq.s32.totalorder %s29, 3
      %p110 = scmp.ne.s32.totalorder %s105, %s107
      %p111 = scmp.eq.s32.totalorder %s29, 0
      %p112 = por %p110, %p111
      %p113 = scmp.ne.s32.totalorder %s105, %s107
      %p114 = scmp.eq.s32.totalorder %s34, 3
      %p115 = por %p113, %p114
      %p116 = scmp.ne.s32.totalorder %s107, %s108
      %p117 = scmp.eq.s32.totalorder %s34, 0
      %p118 = por %p116, %p117
      %p119 = scmp.ne.s32.totalorder %s107, %s108
      %p120 = scmp.eq.s32.totalorder %s35, 3
      %p121 = por %p119, %p120
      %p123 = scmp.ne.s32.totalorder %s108, %s122
      %p124 = scmp.eq.s32.totalorder %s35, 0
      %p125 = por %p123, %p124
      %s127 = sadd.s32 %s126, 1
      %p130 = scmp.eq.s32.totalorder %s29, 3
      %p131 = scmp.ne.s32.totalorder %s126, %s128
      %p132 = scmp.eq.s32.totalorder %s29, 0
      %p133 = por %p131, %p132
      %p134 = scmp.ne.s32.totalorder %s126, %s128
      %p135 = scmp.eq.s32.totalorder %s34, 3
      %p136 = por %p134, %p135
      %p137 = scmp.ne.s32.totalorder %s128, %s129
      %p138 = scmp.eq.s32.totalorder %s34, 0
      %p139 = por %p137, %p138
      %p140 = scmp.ne.s32.totalorder %s128, %s129
      %p141 = scmp.eq.s32.totalorder %s35, 3
      %p142 = por %p140, %p141
      %p144 = scmp.ne.s32.totalorder %s129, %s143
      %p145 = scmp.eq.s32.totalorder %s35, 0
      %p146 = por %p144, %p145
      %s148 = sadd.s32 %s147, 1
      %p151 = scmp.eq.s32.totalorder %s29, 3
      %p152 = scmp.ne.s32.totalorder %s147, %s149
      %p153 = scmp.eq.s32.totalorder %s29, 0
      %p154 = por %p152, %p153
      %p155 = scmp.ne.s32.totalorder %s147, %s149
      %p156 = scmp.eq.s32.totalorder %s34, 3
      %p157 = por %p155, %p156
      %p158 = scmp.ne.s32.totalorder %s149, %s150
      %p159 = scmp.eq.s32.totalorder %s34, 0
      %p160 = por %p158, %p159
      %p161 = scmp.ne.s32.totalorder %s149, %s150
      %p162 = scmp.eq.s32.totalorder %s35, 3
      %p163 = por %p161, %p162
      %p165 = scmp.ne.s32.totalorder %s150, %s164
      %p166 = scmp.eq.s32.totalorder %s35, 0
      %p167 = por %p165, %p166
      %s169 = sadd.s32 %s168, 1
      %p172 = scmp.eq.s32.totalorder %s29, 3
      %p173 = scmp.ne.s32.totalorder %s168, %s170
      %p174 = scmp.eq.s32.totalorder %s29, 0
      %p175 = por %p173, %p174
      %p176 = scmp.ne.s32.totalorder %s168, %s170
      %p177 = scmp.eq.s32.totalorder %s34, 3
      %p178 = por %p176, %p177
      %p179 = scmp.ne.s32.totalorder %s170, %s171
      %p180 = scmp.eq.s32.totalorder %s34, 0
      %p181 = por %p179, %p180
      %p182 = scmp.ne.s32.totalorder %s170, %s171
      %p183 = scmp.eq.s32.totalorder %s35, 3
      %p184 = por %p182, %p183
      %p186 = scmp.ne.s32.totalorder %s171, %s185
      %p187 = scmp.eq.s32.totalorder %s35, 0
      %p188 = por %p186, %p187
      %s190 = sadd.s32 %s189, 1
      %p193 = scmp.eq.s32.totalorder %s29, 3
      %p194 = scmp.ne.s32.totalorder %s189, %s191
      %p195 = scmp.eq.s32.totalorder %s29, 0
      %p196 = por %p194, %p195
      %p197 = scmp.ne.s32.totalorder %s189, %s191
      %p198 = scmp.eq.s32.totalorder %s34, 3
      %p199 = por %p197, %p198
      %p200 = scmp.ne.s32.totalorder %s191, %s192
      %p201 = scmp.eq.s32.totalorder %s34, 0
      %p202 = por %p200, %p201
      %p203 = scmp.ne.s32.totalorder %s191, %s192
      %p204 = scmp.eq.s32.totalorder %s35, 3
      %p205 = por %p203, %p204
      %p207 = scmp.ne.s32.totalorder %s192, %s206
      %p208 = scmp.eq.s32.totalorder %s35, 0
      %p209 = por %p207, %p208
      %s211 = sadd.s32 %s210, 1
      %p214 = scmp.eq.s32.totalorder %s29, 3
      %p215 = scmp.ne.s32.totalorder %s210, %s212
      %p216 = scmp.eq.s32.totalorder %s29, 0
      %p217 = por %p215, %p216
      %p218 = scmp.ne.s32.totalorder %s210, %s212
      %p219 = scmp.eq.s32.totalorder %s34, 3
      %p220 = por %p218, %p219
      %p221 = scmp.ne.s32.totalorder %s212, %s213
      %p222 = scmp.eq.s32.totalorder %s34, 0
      %p223 = por %p221, %p222
      %p224 = scmp.ne.s32.totalorder %s212, %s213
      %p225 = scmp.eq.s32.totalorder %s35, 3
      %p226 = por %p224, %p225
      %p228 = scmp.ne.s32.totalorder %s213, %s227
      %p229 = scmp.eq.s32.totalorder %s35, 0
      %p230 = por %p228, %p229
      %s232 = sadd.s32 %s231, 1
      %p235 = scmp.eq.s32.totalorder %s29, 3
      %p236 = scmp.ne.s32.totalorder %s231, %s233
      %p237 = scmp.eq.s32.totalorder %s29, 0
      %p238 = por %p236, %p237
      %p239 = scmp.ne.s32.totalorder %s231, %s233
      %p240 = scmp.eq.s32.totalorder %s34, 3
      %p241 = por %p239, %p240
      %p242 = scmp.ne.s32.totalorder %s233, %s234
      %p243 = scmp.eq.s32.totalorder %s34, 0
      %p244 = por %p242, %p243
      %p245 = scmp.ne.s32.totalorder %s233, %s234
      %p246 = scmp.eq.s32.totalorder %s35, 3
      %p247 = por %p245, %p246
      %p249 = scmp.ne.s32.totalorder %s234, %s248
      %p250 = scmp.eq.s32.totalorder %s35, 0
      %p251 = por %p249, %p250
      %s253 = sadd.s32 %s252, 1
      %p256 = scmp.eq.s32.totalorder %s29, 3
      %p257 = scmp.ne.s32.totalorder %s252, %s254
      %p258 = scmp.eq.s32.totalorder %s29, 0
      %p259 = por %p257, %p258
      %p260 = scmp.ne.s32.totalorder %s252, %s254
      %p261 = scmp.eq.s32.totalorder %s34, 3
      %p262 = por %p260, %p261
      %p263 = scmp.ne.s32.totalorder %s254, %s255
      %p264 = scmp.eq.s32.totalorder %s34, 0
      %p265 = por %p263, %p264
      %p266 = scmp.ne.s32.totalorder %s254, %s255
      %p267 = scmp.eq.s32.totalorder %s35, 3
      %p268 = por %p266, %p267
      %p270 = scmp.ne.s32.totalorder %s255, %s269
      %p271 = scmp.eq.s32.totalorder %s35, 0
      %p272 = por %p270, %p271
      %s274 = sadd.s32 %s273, 1
      %p277 = scmp.eq.s32.totalorder %s29, 3
      %p278 = scmp.ne.s32.totalorder %s273, %s275
      %p279 = scmp.eq.s32.totalorder %s29, 0
      %p280 = por %p278, %p279
      %p281 = scmp.ne.s32.totalorder %s273, %s275
      %p282 = scmp.eq.s32.totalorder %s34, 3
      %p283 = por %p281, %p282
      %p284 = scmp.ne.s32.totalorder %s275, %s276
      %p285 = scmp.eq.s32.totalorder %s34, 0
      %p286 = por %p284, %p285
      %p287 = scmp.ne.s32.totalorder %s275, %s276
      %p288 = scmp.eq.s32.totalorder %s35, 3
      %p289 = por %p287, %p288
      %p291 = scmp.ne.s32.totalorder %s276, %s290
      %p292 = scmp.eq.s32.totalorder %s35, 0
      %p293 = por %p291, %p292
      %s295 = sadd.s32 %s294, 1
      %p298 = scmp.eq.s32.totalorder %s29, 3
      %p299 = scmp.ne.s32.totalorder %s294, %s296
      %p300 = scmp.eq.s32.totalorder %s29, 0
      %p301 = por %p299, %p300
      %p302 = scmp.ne.s32.totalorder %s294, %s296
      %p303 = scmp.eq.s32.totalorder %s34, 3
      %p304 = por %p302, %p303
      %p305 = scmp.ne.s32.totalorder %s296, %s297
      %p306 = scmp.eq.s32.totalorder %s34, 0
      %p307 = por %p305, %p306
      %p308 = scmp.ne.s32.totalorder %s296, %s297
      %p309 = scmp.eq.s32.totalorder %s35, 3
      %p310 = por %p308, %p309
      %p312 = scmp.ne.s32.totalorder %s297, %s311
      %p313 = scmp.eq.s32.totalorder %s35, 0
      %p314 = por %p312, %p313
      %s316 = sadd.s32 %s315, 1
      %p319 = scmp.eq.s32.totalorder %s29, 3
      %p320 = scmp.ne.s32.totalorder %s315, %s317
      %p321 = scmp.eq.s32.totalorder %s29, 0
      %p322 = por %p320, %p321
      %p323 = scmp.ne.s32.totalorder %s315, %s317
      %p324 = scmp.eq.s32.totalorder %s34, 3
      %p325 = por %p323, %p324
      %p326 = scmp.ne.s32.totalorder %s317, %s318
      %p327 = scmp.eq.s32.totalorder %s34, 0
      %p328 = por %p326, %p327
      %p329 = scmp.ne.s32.totalorder %s317, %s318
      %p330 = scmp.eq.s32.totalorder %s35, 3
      %p331 = por %p329, %p330
      %p333 = scmp.ne.s32.totalorder %s318, %s332
      %p334 = scmp.eq.s32.totalorder %s35, 0
      %p335 = por %p333, %p334
      %s337 = sadd.s32 %s336, 1
      %p340 = scmp.eq.s32.totalorder %s29, 3
      %p341 = scmp.ne.s32.totalorder %s336, %s338
      %p342 = scmp.eq.s32.totalorder %s29, 0
      %p343 = por %p341, %p342
      %p344 = scmp.ne.s32.totalorder %s336, %s338
      %p345 = scmp.eq.s32.totalorder %s34, 3
      %p346 = por %p344, %p345
      %p347 = scmp.ne.s32.totalorder %s338, %s339
      %p348 = scmp.eq.s32.totalorder %s34, 0
      %p349 = por %p347, %p348
      %p350 = scmp.ne.s32.totalorder %s338, %s339
      %p351 = scmp.eq.s32.totalorder %s35, 3
      %p352 = por %p350, %p351
      %p354 = scmp.ne.s32.totalorder %s339, %s353
      %p355 = scmp.eq.s32.totalorder %s35, 0
      %p356 = por %p354, %p355
      %s357 = ssub.s32 %s29, %s36
      %p358 = scmp.eq.s32.totalorder %s357, 0
      %s360 = sadd.s32 %s359, 1
      %s361 = scalar_select %p358, %s359, %s360
      %p364 = pneg %p358
      %p365 = scmp.eq.s32.totalorder %s29, 3
      %p366 = por %p364, %p365
      %p367 = scmp.ne.s32.totalorder %s359, %s362
      %p368 = scmp.eq.s32.totalorder %s29, 0
      %p369 = por %p367, %p368
      %p370 = scmp.ne.s32.totalorder %s359, %s362
      %p371 = scmp.eq.s32.totalorder %s34, 3
      %p372 = por %p370, %p371
      %p373 = scmp.ne.s32.totalorder %s362, %s363
      %p374 = scmp.eq.s32.totalorder %s34, 0
      %p375 = por %p373, %p374
      %p376 = scmp.ne.s32.totalorder %s362, %s363
      %p377 = scmp.eq.s32.totalorder %s35, 3
      %p378 = por %p376, %p377
      %p380 = scmp.ne.s32.totalorder %s363, %s379
      %p381 = scmp.eq.s32.totalorder %s35, 0
      %p382 = por %p380, %p381
      %p383 = scmp.le.s32.totalorder 1, %s29
      %p384 = scmp.lt.s32.totalorder %s29, 5
      %p385 = pnand %p383, %p384
      %p386 = pneg %p385
      // Predicated region
      $region9: #{tpu_custom_call.1} parent=5 // pred_check
        _
      $region10: #{tpu_custom_call.1} parent=5 // pred_check_branch
        %388 = sbr.rel (%p385) target = $region12
      $region11: #{tpu_custom_call.1} parent=5 // pred_region
        %s389 = ssub.s32 %s29, 1
        // Predicated region
        $region13: #{tpu_custom_call.1} parent=11 // pred_check
          %p390 = pneg %p76
        $region14: #{tpu_custom_call.1} parent=11 // pred_check_branch
          %392 = sbr.rel (%p390) target = $region16
        $region15: #{tpu_custom_call.1} parent=11 // pred_region
          %s394 = ssub.s32 1024, 1024
          %395 = vsyncadd [#allocation6], %s394
          %s396 = sshll.u32 [#allocation5], 4
          %s397 = int_to_ptr.vmem [resolvable:$true] %s396
          %402 = dma.hbm_to_vmem [thread:$0]  %s1, 1024, %s397, [#allocation6], 64, 64, 4
        $region16: #{tpu_custom_call.1} parent=11 // pred_fallthru
          _
        // Predicated region
        $region17: #{tpu_custom_call.1} parent=11 // pred_check
          %p403 = pneg %p97
        $region18: #{tpu_custom_call.1} parent=11 // pred_check_branch
          %405 = sbr.rel (%p403) target = $region20
        $region19: #{tpu_custom_call.1} parent=11 // pred_region
          _
        $region20: #{tpu_custom_call.1} parent=11 // pred_fallthru
          _
        // Predicated region
        $region21: #{tpu_custom_call.1} parent=11 // pred_check
          %p406 = pneg %p118
        $region22: #{tpu_custom_call.1} parent=11 // pred_check_branch
          %408 = sbr.rel (%p406) target = $region24
        $region23: #{tpu_custom_call.1} parent=11 // pred_region
          _
        $region24: #{tpu_custom_call.1} parent=11 // pred_fallthru
          _
        // Predicated region
        $region25: #{tpu_custom_call.1} parent=11 // pred_check
          %p409 = pneg %p139
        $region26: #{tpu_custom_call.1} parent=11 // pred_check_branch
          %411 = sbr.rel (%p409) target = $region28
        $region27: #{tpu_custom_call.1} parent=11 // pred_region
          _
        $region28: #{tpu_custom_call.1} parent=11 // pred_fallthru
          _
        // Predicated region
        $region29: #{tpu_custom_call.1} parent=11 // pred_check
          %p412 = pneg %p160
        $region30: #{tpu_custom_call.1} parent=11 // pred_check_branch
          %414 = sbr.rel (%p412) target = $region32
        $region31: #{tpu_custom_call.1} parent=11 // pred_region
          %s416 = ssub.s32 1024, 1024
          %417 = vsyncadd [#allocation6], %s416
          %s418 = sshll.u32 [#allocation7], 4
          %s419 = int_to_ptr.vmem [resolvable:$true] %s418
          %424 = dma.hbm_to_vmem [thread:$0]  %s5, 1024, %s419, [#allocation6], 64, 64, 4
        $region32: #{tpu_custom_call.1} parent=11 // pred_fallthru
          _
        // Predicated region
        $region33: #{tpu_custom_call.1} parent=11 // pred_check
          %p425 = pneg %p181
        $region34: #{tpu_custom_call.1} parent=11 // pred_check_branch
          %427 = sbr.rel (%p425) target = $region36
        $region35: #{tpu_custom_call.1} parent=11 // pred_region
          _
        $region36: #{tpu_custom_call.1} parent=11 // pred_fallthru
          _
        // Predicated region
        $region37: #{tpu_custom_call.1} parent=11 // pred_check
          %p428 = pneg %p202
        $region38: #{tpu_custom_call.1} parent=11 // pred_check_branch
          %430 = sbr.rel (%p428) target = $region40
        $region39: #{tpu_custom_call.1} parent=11 // pred_region
          _
        $region40: #{tpu_custom_call.1} parent=11 // pred_fallthru
          _
        // Predicated region
        $region41: #{tpu_custom_call.1} parent=11 // pred_check
          %p431 = pneg %p223
        $region42: #{tpu_custom_call.1} parent=11 // pred_check_branch
          %433 = sbr.rel (%p431) target = $region44
        $region43: #{tpu_custom_call.1} parent=11 // pred_region
          _
        $region44: #{tpu_custom_call.1} parent=11 // pred_fallthru
          _
        // Predicated region
        $region45: #{tpu_custom_call.1} parent=11 // pred_check
          %p434 = pneg %p244
        $region46: #{tpu_custom_call.1} parent=11 // pred_check_branch
          %436 = sbr.rel (%p434) target = $region48
        $region47: #{tpu_custom_call.1} parent=11 // pred_region
          %s438 = ssub.s32 1024, 1024
          %439 = vsyncadd [#allocation9], %s438
          %s440 = sshll.u32 [#allocation8], 4
          %s441 = int_to_ptr.vmem [resolvable:$true] %s440
          %446 = dma.hbm_to_vmem [thread:$0]  %s9, 1024, %s441, [#allocation9], 64, 64, 4
        $region48: #{tpu_custom_call.1} parent=11 // pred_fallthru
          _
        // Predicated region
        $region49: #{tpu_custom_call.1} parent=11 // pred_check
          %p447 = pneg %p265
        $region50: #{tpu_custom_call.1} parent=11 // pred_check_branch
          %449 = sbr.rel (%p447) target = $region52
        $region51: #{tpu_custom_call.1} parent=11 // pred_region
          _
        $region52: #{tpu_custom_call.1} parent=11 // pred_fallthru
          _
        // Predicated region
        $region53: #{tpu_custom_call.1} parent=11 // pred_check
          %p450 = pneg %p286
        $region54: #{tpu_custom_call.1} parent=11 // pred_check_branch
          %452 = sbr.rel (%p450) target = $region56
        $region55: #{tpu_custom_call.1} parent=11 // pred_region
          _
        $region56: #{tpu_custom_call.1} parent=11 // pred_fallthru
          _
        // Predicated region
        $region57: #{tpu_custom_call.1} parent=11 // pred_check
          %p453 = pneg %p307
        $region58: #{tpu_custom_call.1} parent=11 // pred_check_branch
          %455 = sbr.rel (%p453) target = $region60
        $region59: #{tpu_custom_call.1} parent=11 // pred_region
          _
        $region60: #{tpu_custom_call.1} parent=11 // pred_fallthru
          _
        // Predicated region
        $region61: #{tpu_custom_call.1} parent=11 // pred_check
          %p456 = pneg %p328
        $region62: #{tpu_custom_call.1} parent=11 // pred_check_branch
          %458 = sbr.rel (%p456) target = $region64
        $region63: #{tpu_custom_call.1} parent=11 // pred_region
          %s460 = ssub.s32 2048, 2048
          %461 = vsyncadd [#allocation9], %s460
          %s462 = sshll.u32 [#allocation10], 4
          %s463 = int_to_ptr.vmem [resolvable:$true] %s462
          %468 = dma.hbm_to_vmem [thread:$0]  %s13, 2048, %s463, [#allocation9], 64, 64, 4
        $region64: #{tpu_custom_call.1} parent=11 // pred_fallthru
          _
        // Predicated region
        $region65: #{tpu_custom_call.1} parent=11 // pred_check
          %p469 = pneg %p349
        $region66: #{tpu_custom_call.1} parent=11 // pred_check_branch
          %471 = sbr.rel (%p469) target = $region68
        $region67: #{tpu_custom_call.1} parent=11 // pred_region
          _
        $region68: #{tpu_custom_call.1} parent=11 // pred_fallthru
          _
      $region12: #{tpu_custom_call.1} parent=5 // pred_fallthru
        _
      %p472 = scmp.lt.s32.totalorder %s29, 4
      // Predicated region
      $region69: #{tpu_custom_call.1} parent=5 // pred_check
        %p473 = pneg %p472
      $region70: #{tpu_custom_call.1} parent=5 // pred_check_branch
        %475 = sbr.rel (%p473) target = $region72
      $region71: #{tpu_custom_call.1} parent=5 // pred_region
        // Predicated region
        $region73: #{tpu_custom_call.1} parent=71 // pred_check
          %p476 = pneg %p49
        $region74: #{tpu_custom_call.1} parent=71 // pred_check_branch
          %478 = sbr.rel (%p476) target = $region76
        $region75: #{tpu_custom_call.1} parent=71 // pred_region
          %s479 = sand.u32 %s39, 1
          %s480 = scalar_lea.sflag [#allocation3], %s479
          %s481 = sand.u32 %s39, 1
          %s482 = smul.addr %s481, 256
          %s483 = scalar_lea.vmem [#allocation2], %s482
          %s484 = smul.u32 32, %s29
          %s486 = ssub.s32 4096, 4096
          %487 = vsyncadd %s480, %s486
          %s488 = smul.addr %s484, 128
          %s489 = scalar_lea.hbm %s0, %s488
          %s490 = sshll.u32 %s483, 4
          %s491 = int_to_ptr.vmem [resolvable:$true] %s490
          %496 = dma.hbm_to_vmem [thread:$0]  %s489, 4096, %s491, %s480, 128, 128, 8
        $region76: #{tpu_custom_call.1} parent=71 // pred_fallthru
          _
      $region72: #{tpu_custom_call.1} parent=5 // pred_fallthru
        _
      %p497 = scmp.le.s32.totalorder 1, %s29
      %p498 = scmp.lt.s32.totalorder %s29, 5
      %p499 = pnand %p497, %p498
      %p500 = pneg %p499
      // Predicated region
      $region77: #{tpu_custom_call.1} parent=5 // pred_check
        _
      $region78: #{tpu_custom_call.1} parent=5 // pred_check_branch
        %502 = sbr.rel (%p499) target = $region80
      $region79: #{tpu_custom_call.1} parent=5 // pred_region
        %s503 = ssub.s32 %s29, 1
        %s504 = sand.u32 %s42, 1
        %s505 = scalar_lea.sflag [#allocation3], %s504
        %s506 = sand.u32 %s42, 1
        %s507 = smul.addr %s506, 256
        %s508 = scalar_lea.vmem [#allocation2], %s507
        // Predicated region
        $region81: #{tpu_custom_call.1} parent=79 // pred_check
          %p509 = pneg %p55
        $region82: #{tpu_custom_call.1} parent=79 // pred_check_branch
          %511 = sbr.rel (%p509) target = $region84
        $region83: #{tpu_custom_call.1} parent=79 // pred_region
          %512 = dma.done %s505, 4096
        $region84: #{tpu_custom_call.1} parent=79 // pred_fallthru
          _
        // Predicated region
        $region85: #{tpu_custom_call.1} parent=79 // pred_check
          %p513 = pneg %p76
        $region86: #{tpu_custom_call.1} parent=79 // pred_check_branch
          %515 = sbr.rel (%p513) target = $region88
        $region87: #{tpu_custom_call.1} parent=79 // pred_region
          %516 = dma.done [#allocation6], 1024
        $region88: #{tpu_custom_call.1} parent=79 // pred_fallthru
          _
        // Predicated region
        $region89: #{tpu_custom_call.1} parent=79 // pred_check
          %p517 = pneg %p160
        $region90: #{tpu_custom_call.1} parent=79 // pred_check_branch
          %519 = sbr.rel (%p517) target = $region92
        $region91: #{tpu_custom_call.1} parent=79 // pred_region
          %520 = dma.done [#allocation6], 1024
        $region92: #{tpu_custom_call.1} parent=79 // pred_fallthru
          _
        // Predicated region
        $region93: #{tpu_custom_call.1} parent=79 // pred_check
          %p521 = pneg %p244
        $region94: #{tpu_custom_call.1} parent=79 // pred_check_branch
          %523 = sbr.rel (%p521) target = $region96
        $region95: #{tpu_custom_call.1} parent=79 // pred_region
          %524 = dma.done [#allocation9], 1024
        $region96: #{tpu_custom_call.1} parent=79 // pred_fallthru
          _
        // Predicated region
        $region97: #{tpu_custom_call.1} parent=79 // pred_check
          %p525 = pneg %p328
        $region98: #{tpu_custom_call.1} parent=79 // pred_check_branch
          %527 = sbr.rel (%p525) target = $region100
        $region99: #{tpu_custom_call.1} parent=79 // pred_region
          %528 = dma.done [#allocation9], 2048
        $region100: #{tpu_custom_call.1} parent=79 // pred_fallthru
          _
        %s529 = sand.u32 %s42, 1
        %s530 = scalar_lea.sflag [#allocation3], %s529
        %s531 = sand.u32 %s42, 1
        %s532 = smul.addr %s531, 256
        %s533 = scalar_lea.vmem [#allocation2], %s532
        %p534 = pneg %p55
        %p535 = pneg %p52
        %p536 = pneg %p76
        %p537 = pneg %p73
        %p538 = pneg %p97
        %p539 = pneg %p94
        %p540 = pneg %p118
        %p541 = pneg %p115
        %p542 = pneg %p139
        %p543 = pneg %p136
        %p544 = pneg %p160
        %p545 = pneg %p157
        %p546 = pneg %p181
        %p547 = pneg %p178
        %p548 = pneg %p202
        %p549 = pneg %p199
        %p550 = pneg %p223
        %p551 = pneg %p220
        %p552 = pneg %p244
        %p553 = pneg %p241
        %p554 = pneg %p265
        %p555 = pneg %p262
        %p556 = pneg %p286
        %p557 = pneg %p283
        %p558 = pneg %p307
        %p559 = pneg %p304
        %p560 = pneg %p328
        %p561 = pneg %p325
        %p562 = pneg %p349
        %p563 = pneg %p346
        %p564 = pneg %p375
        %p565 = pneg %p372
        %s566 = sand.u32 %s362, 1
        %s567 = scalar_lea.sflag [#allocation4], %s566
        %s568 = sand.u32 %s362, 1
        %s569 = smul.addr %s568, 256
        %s570 = scalar_lea.vmem [#allocation11], %s569
        %s571 = smul.u32 32, %s34
        %s572 = smul.u32 32, %s34
        %v574 = vld [vmem:[%s508] sm:$0xff]
        %v575 = vld [vmem:[%s508 + $0x8] sm:$0xff]
        %v576 = vld [vmem:[%s508 + $0x10] sm:$0xff]
        %v577 = vld [vmem:[%s508 + $0x18] sm:$0xff]
        %v578 = vld [vmem:[%s508 + $0x20] sm:$0xff]
        %v579 = vld [vmem:[%s508 + $0x28] sm:$0xff]
        %v580 = vld [vmem:[%s508 + $0x30] sm:$0xff]
        %v581 = vld [vmem:[%s508 + $0x38] sm:$0xff]
        %v582 = vld [vmem:[%s508 + $0x40] sm:$0xff]
        %v583 = vld [vmem:[%s508 + $0x48] sm:$0xff]
        %v584 = vld [vmem:[%s508 + $0x50] sm:$0xff]
        %v585 = vld [vmem:[%s508 + $0x58] sm:$0xff]
        %v586 = vld [vmem:[%s508 + $0x60] sm:$0xff]
        %v587 = vld [vmem:[%s508 + $0x68] sm:$0xff]
        %v588 = vld [vmem:[%s508 + $0x70] sm:$0xff]
        %v589 = vld [vmem:[%s508 + $0x78] sm:$0xff]
        %v590 = vld [vmem:[%s508 + $0x80] sm:$0xff]
        %v591 = vld [vmem:[%s508 + $0x88] sm:$0xff]
        %v592 = vld [vmem:[%s508 + $0x90] sm:$0xff]
        %v593 = vld [vmem:[%s508 + $0x98] sm:$0xff]
        %v594 = vld [vmem:[%s508 + $0xa0] sm:$0xff]
        %v595 = vld [vmem:[%s508 + $0xa8] sm:$0xff]
        %v596 = vld [vmem:[%s508 + $0xb0] sm:$0xff]
        %v597 = vld [vmem:[%s508 + $0xb8] sm:$0xff]
        %v598 = vld [vmem:[%s508 + $0xc0] sm:$0xff]
        %v599 = vld [vmem:[%s508 + $0xc8] sm:$0xff]
        %v600 = vld [vmem:[%s508 + $0xd0] sm:$0xff]
        %v601 = vld [vmem:[%s508 + $0xd8] sm:$0xff]
        %v602 = vld [vmem:[%s508 + $0xe0] sm:$0xff]
        %v603 = vld [vmem:[%s508 + $0xe8] sm:$0xff]
        %v604 = vld [vmem:[%s508 + $0xf0] sm:$0xff]
        %v605 = vld [vmem:[%s508 + $0xf8] sm:$0xff]
        %v606 = vpack.c.bf16 %v575, %v574
        %v607 = vpack.c.bf16 %v577, %v576
        %v608 = vpack.c.bf16 %v579, %v578
        %v609 = vpack.c.bf16 %v581, %v580
        %v610 = vpack.c.bf16 %v583, %v582
        %v611 = vpack.c.bf16 %v585, %v584
        %v612 = vpack.c.bf16 %v587, %v586
        %v613 = vpack.c.bf16 %v589, %v588
        %v614 = vpack.c.bf16 %v591, %v590
        %v615 = vpack.c.bf16 %v593, %v592
        %v616 = vpack.c.bf16 %v595, %v594
        %v617 = vpack.c.bf16 %v597, %v596
        %v618 = vpack.c.bf16 %v599, %v598
        %v619 = vpack.c.bf16 %v601, %v600
        %v620 = vpack.c.bf16 %v603, %v602
        %v621 = vpack.c.bf16 %v605, %v604
        %v622 = vld [vmem:[#allocation5] sm:$0xf]
        %v623 = vld [vmem:[#allocation5 + $0x4] sm:$0xf]
        %v624 = vld [vmem:[#allocation5 + $0x8] sm:$0xf]
        %v625 = vld [vmem:[#allocation5 + $0xc] sm:$0xf]
        %v626 = vld [vmem:[#allocation5 + $0x10] sm:$0xf]
        %v627 = vld [vmem:[#allocation5 + $0x14] sm:$0xf]
        %v628 = vld [vmem:[#allocation5 + $0x18] sm:$0xf]
        %v629 = vld [vmem:[#allocation5 + $0x1c] sm:$0xf]
        %v630 = vld [vmem:[#allocation5 + $0x20] sm:$0xf]
        %v631 = vld [vmem:[#allocation5 + $0x24] sm:$0xf]
        %v632 = vld [vmem:[#allocation5 + $0x28] sm:$0xf]
        %v633 = vld [vmem:[#allocation5 + $0x2c] sm:$0xf]
        %v634 = vld [vmem:[#allocation5 + $0x30] sm:$0xf]
        %v635 = vld [vmem:[#allocation5 + $0x34] sm:$0xf]
        %v636 = vld [vmem:[#allocation5 + $0x38] sm:$0xf]
        %v637 = vld [vmem:[#allocation5 + $0x3c] sm:$0xf]
        %v638 = vld [vmem:[%s2] sm:$0x1]
        %v640 = vlaneseq
        %v641 = vshrl.u32 %v640, 7
        %v642 = vsub.s32 0, %v641
        %v643 = vrot.slane %v638, %v642
        %v661 = vunpack.c.l.b16 %v622
        %v662 = vunpack.c.l.b16 %v623
        %v663 = vunpack.c.l.b16 %v624
        %v664 = vunpack.c.l.b16 %v625
        %v665 = vunpack.c.l.b16 %v626
        %v666 = vunpack.c.l.b16 %v627
        %v667 = vunpack.c.l.b16 %v628
        %v668 = vunpack.c.l.b16 %v629
        %v669 = vunpack.c.l.b16 %v630
        %v670 = vunpack.c.l.b16 %v631
        %v671 = vunpack.c.l.b16 %v632
        %v672 = vunpack.c.l.b16 %v633
        %v673 = vunpack.c.l.b16 %v634
        %v674 = vunpack.c.l.b16 %v635
        %v675 = vunpack.c.l.b16 %v636
        %v676 = vunpack.c.l.b16 %v637
        %v677 = vpack.c.b16 %v662, %v661
        %v678 = vpack.c.b16 %v664, %v663
        %v679 = vpack.c.b16 %v666, %v665
        %v680 = vpack.c.b16 %v668, %v667
        %v681 = vpack.c.b16 %v670, %v669
        %v682 = vpack.c.b16 %v672, %v671
        %v683 = vpack.c.b16 %v674, %v673
        %v684 = vpack.c.b16 %v676, %v675
        %693 = vmatprep.subr.bf16.mxu0 0
        %694 = vmatpush1.bf16.msra.mxu0 %v677
        %695 = vmatprep.subr.bf16.mxu0 0
        %696 = vmatpush1.bf16.msra.mxu0 %v678
        %697 = vmatprep.subr.bf16.mxu0 0
        %698 = vmatpush1.bf16.msra.mxu0 %v679
        %699 = vmatprep.subr.bf16.mxu0 0
        %700 = vmatpush1.bf16.msra.mxu0 %v680
        %701 = vmatprep.subr.bf16.mxu0 0
        %702 = vmatpush1.bf16.msra.mxu0 %v681
        %703 = vmatprep.subr.bf16.mxu0 0
        %704 = vmatpush1.bf16.msra.mxu0 %v682
        %705 = vmatprep.subr.bf16.mxu0 0
        %706 = vmatpush1.bf16.msra.mxu0 %v683
        %707 = vmatprep.subr.bf16.mxu0 0
        %708 = vmatpush1.bf16.msra.mxu0 %v684
        %709 = vmatprep.subr.bf16.mxu0 0
        %710 = vmatpush1.bf16.msra.mxu0 0
        %711 = vmatprep.subr.bf16.mxu0 0
        %712 = vmatpush1.bf16.msra.mxu0 0
        %713 = vmatprep.subr.bf16.mxu0 0
        %714 = vmatpush1.bf16.msra.mxu0 0
        %715 = vmatprep.subr.bf16.mxu0 0
        %716 = vmatpush1.bf16.msra.mxu0 0
        %717 = vmatprep.subr.bf16.mxu0 0
        %718 = vmatpush1.bf16.msra.mxu0 0
        %719 = vmatprep.subr.bf16.mxu0 0
        %720 = vmatpush1.bf16.msra.mxu0 0
        %721 = vmatprep.subr.bf16.mxu0 0
        %722 = vmatpush1.bf16.msra.mxu0 0
        %723 = vmatprep.subr.bf16.mxu0 0
        %724 = vmatpush1.bf16.msra.mxu0 0
        %725 = vmatprep.mubr.bf16.mxu0 0
        %726 = vmatmul.mubr.bf16.gmra.mrb[0].mxu0 %v606
        %v727 = vpop.f32.mrb[0].mxu0
        %v728 = vadd.f32 %v643, %v727
        %v729 = vpop.f32.mrb[0].mxu0
        %v730 = vpop.f32.mrb[0].mxu0
        %v731 = vadd.f32 %v643, %v730
        %v732 = vpop.f32.mrb[0].mxu0
        %733 = vmatprep.mubr.bf16.mxu0 0
        %734 = vmatmul.mubr.bf16.gmra.mrb[0].mxu0 %v607
        %v735 = vpop.f32.mrb[0].mxu0
        %v736 = vadd.f32 %v643, %v735
        %v737 = vpop.f32.mrb[0].mxu0
        %v738 = vpop.f32.mrb[0].mxu0
        %v739 = vadd.f32 %v643, %v738
        %v740 = vpop.f32.mrb[0].mxu0
        %741 = vmatprep.mubr.bf16.mxu0 0
        %742 = vmatmul.mubr.bf16.gmra.mrb[0].mxu0 %v608
        %v743 = vpop.f32.mrb[0].mxu0
        %v744 = vadd.f32 %v643, %v743
        %v745 = vpop.f32.mrb[0].mxu0
        %v746 = vpop.f32.mrb[0].mxu0
        %v747 = vadd.f32 %v643, %v746
        %v748 = vpop.f32.mrb[0].mxu0
        %749 = vmatprep.mubr.bf16.mxu0 0
        %750 = vmatmul.mubr.bf16.gmra.mrb[0].mxu0 %v609
        %v751 = vpop.f32.mrb[0].mxu0
        %v752 = vadd.f32 %v643, %v751
        %v753 = vpop.f32.mrb[0].mxu0
        %v754 = vpop.f32.mrb[0].mxu0
        %v755 = vadd.f32 %v643, %v754
        %v756 = vpop.f32.mrb[0].mxu0
        %757 = vmatprep.mubr.bf16.mxu0 0
        %758 = vmatmul.mubr.bf16.gmra.mrb[0].mxu0 %v610
        %v759 = vpop.f32.mrb[0].mxu0
        %v760 = vadd.f32 %v643, %v759
        %v761 = vpop.f32.mrb[0].mxu0
        %v762 = vpop.f32.mrb[0].mxu0
        %v763 = vadd.f32 %v643, %v762
        %v764 = vpop.f32.mrb[0].mxu0
        %765 = vmatprep.mubr.bf16.mxu0 0
        %766 = vmatmul.mubr.bf16.gmra.mrb[0].mxu0 %v611
        %v767 = vpop.f32.mrb[0].mxu0
        %v768 = vadd.f32 %v643, %v767
        %v769 = vpop.f32.mrb[0].mxu0
        %v770 = vpop.f32.mrb[0].mxu0
        %v771 = vadd.f32 %v643, %v770
        %v772 = vpop.f32.mrb[0].mxu0
        %773 = vmatprep.mubr.bf16.mxu0 0
        %774 = vmatmul.mubr.bf16.gmra.mrb[0].mxu0 %v612
        %v775 = vpop.f32.mrb[0].mxu0
        %v776 = vadd.f32 %v643, %v775
        %v777 = vpop.f32.mrb[0].mxu0
        %v778 = vpop.f32.mrb[0].mxu0
        %v779 = vadd.f32 %v643, %v778
        %v780 = vpop.f32.mrb[0].mxu0
        %781 = vmatprep.mubr.bf16.mxu0 0
        %782 = vmatmul.mubr.bf16.gmra.mrb[0].mxu0 %v613
        %v783 = vpop.f32.mrb[0].mxu0
        %v784 = vadd.f32 %v643, %v783
        %v785 = vpop.f32.mrb[0].mxu0
        %v786 = vpop.f32.mrb[0].mxu0
        %v787 = vadd.f32 %v643, %v786
        %v788 = vpop.f32.mrb[0].mxu0
        %789 = vmatprep.mubr.bf16.mxu0 0
        %790 = vmatmul.mubr.bf16.gmra.mrb[0].mxu0 %v614
        %v791 = vpop.f32.mrb[0].mxu0
        %v792 = vadd.f32 %v643, %v791
        %v793 = vpop.f32.mrb[0].mxu0
        %v794 = vpop.f32.mrb[0].mxu0
        %v795 = vadd.f32 %v643, %v794
        %v796 = vpop.f32.mrb[0].mxu0
        %797 = vmatprep.mubr.bf16.mxu0 0
        %798 = vmatmul.mubr.bf16.gmra.mrb[0].mxu0 %v615
        %v799 = vpop.f32.mrb[0].mxu0
        %v800 = vadd.f32 %v643, %v799
        %v801 = vpop.f32.mrb[0].mxu0
        %v802 = vpop.f32.mrb[0].mxu0
        %v803 = vadd.f32 %v643, %v802
        %v804 = vpop.f32.mrb[0].mxu0
        %805 = vmatprep.mubr.bf16.mxu0 0
        %806 = vmatmul.mubr.bf16.gmra.mrb[0].mxu0 %v616
        %v807 = vpop.f32.mrb[0].mxu0
        %v808 = vadd.f32 %v643, %v807
        %v809 = vpop.f32.mrb[0].mxu0
        %v810 = vpop.f32.mrb[0].mxu0
        %v811 = vadd.f32 %v643, %v810
        %v812 = vpop.f32.mrb[0].mxu0
        %813 = vmatprep.mubr.bf16.mxu0 0
        %814 = vmatmul.mubr.bf16.gmra.mrb[0].mxu0 %v617
        %v815 = vpop.f32.mrb[0].mxu0
        %v816 = vadd.f32 %v643, %v815
        %v817 = vpop.f32.mrb[0].mxu0
        %v818 = vpop.f32.mrb[0].mxu0
        %v819 = vadd.f32 %v643, %v818
        %v820 = vpop.f32.mrb[0].mxu0
        %821 = vmatprep.mubr.bf16.mxu0 0
        %822 = vmatmul.mubr.bf16.gmra.mrb[0].mxu0 %v618
        %v823 = vpop.f32.mrb[0].mxu0
        %v824 = vadd.f32 %v643, %v823
        %v825 = vpop.f32.mrb[0].mxu0
        %v826 = vpop.f32.mrb[0].mxu0
        %v827 = vadd.f32 %v643, %v826
        %v828 = vpop.f32.mrb[0].mxu0
        %829 = vmatprep.mubr.bf16.mxu0 0
        %830 = vmatmul.mubr.bf16.gmra.mrb[0].mxu0 %v619
        %v831 = vpop.f32.mrb[0].mxu0
        %v832 = vadd.f32 %v643, %v831
        %v833 = vpop.f32.mrb[0].mxu0
        %v834 = vpop.f32.mrb[0].mxu0
        %v835 = vadd.f32 %v643, %v834
        %v836 = vpop.f32.mrb[0].mxu0
        %837 = vmatprep.mubr.bf16.mxu0 0
        %838 = vmatmul.mubr.bf16.gmra.mrb[0].mxu0 %v620
        %v839 = vpop.f32.mrb[0].mxu0
        %v840 = vadd.f32 %v643, %v839
        %v841 = vpop.f32.mrb[0].mxu0
        %v842 = vpop.f32.mrb[0].mxu0
        %v843 = vadd.f32 %v643, %v842
        %v844 = vpop.f32.mrb[0].mxu0
        %845 = vmatprep.mubr.bf16.mxu0 0
        %846 = vmatmul.mubr.bf16.gmra.mrb[0].mxu0 %v621
        %v847 = vpop.f32.mrb[0].mxu0
        %v848 = vadd.f32 %v643, %v847
        %v849 = vpop.f32.mrb[0].mxu0
        %v850 = vpop.f32.mrb[0].mxu0
        %v851 = vadd.f32 %v643, %v850
        %v852 = vpop.f32.mrb[0].mxu0
        %853 = vdwg.mxu0
        %v854 = vld [vmem:[%s3] sm:$0x1]
        %v855 = vld [vmem:[%s4] sm:$0x1]
        %856 = vadd.xlane.f32.xlu0 %v728
        %v857 = vpop.xlane.xlu0 %856
        %858 = vadd.xlane.f32.xlu0 %v731
        %v859 = vpop.xlane.xlu0 %858
        %860 = vadd.xlane.f32.xlu0 %v736
        %v861 = vpop.xlane.xlu0 %860
        %862 = vadd.xlane.f32.xlu0 %v739
        %v863 = vpop.xlane.xlu0 %862
        %864 = vadd.xlane.f32.xlu0 %v744
        %v865 = vpop.xlane.xlu0 %864
        %866 = vadd.xlane.f32.xlu0 %v747
        %v867 = vpop.xlane.xlu0 %866
        %868 = vadd.xlane.f32.xlu0 %v752
        %v869 = vpop.xlane.xlu0 %868
        %870 = vadd.xlane.f32.xlu0 %v755
        %v871 = vpop.xlane.xlu0 %870
        %872 = vadd.xlane.f32.xlu0 %v760
        %v873 = vpop.xlane.xlu0 %872
        %874 = vadd.xlane.f32.xlu0 %v763
        %v875 = vpop.xlane.xlu0 %874
        %876 = vadd.xlane.f32.xlu0 %v768
        %v877 = vpop.xlane.xlu0 %876
        %878 = vadd.xlane.f32.xlu0 %v771
        %v879 = vpop.xlane.xlu0 %878
        %880 = vadd.xlane.f32.xlu0 %v776
        %v881 = vpop.xlane.xlu0 %880
        %882 = vadd.xlane.f32.xlu0 %v779
        %v883 = vpop.xlane.xlu0 %882
        %884 = vadd.xlane.f32.xlu0 %v784
        %v885 = vpop.xlane.xlu0 %884
        %886 = vadd.xlane.f32.xlu0 %v787
        %v887 = vpop.xlane.xlu0 %886
        %888 = vadd.xlane.f32.xlu0 %v792
        %v889 = vpop.xlane.xlu0 %888
        %890 = vadd.xlane.f32.xlu0 %v795
        %v891 = vpop.xlane.xlu0 %890
        %892 = vadd.xlane.f32.xlu0 %v800
        %v893 = vpop.xlane.xlu0 %892
        %894 = vadd.xlane.f32.xlu0 %v803
        %v895 = vpop.xlane.xlu0 %894
        %896 = vadd.xlane.f32.xlu0 %v808
        %v897 = vpop.xlane.xlu0 %896
        %898 = vadd.xlane.f32.xlu0 %v811
        %v899 = vpop.xlane.xlu0 %898
        %900 = vadd.xlane.f32.xlu0 %v816
        %v901 = vpop.xlane.xlu0 %900
        %902 = vadd.xlane.f32.xlu0 %v819
        %v903 = vpop.xlane.xlu0 %902
        %904 = vadd.xlane.f32.xlu0 %v824
        %v905 = vpop.xlane.xlu0 %904
        %906 = vadd.xlane.f32.xlu0 %v827
        %v907 = vpop.xlane.xlu0 %906
        %908 = vadd.xlane.f32.xlu0 %v832
        %v909 = vpop.xlane.xlu0 %908
        %910 = vadd.xlane.f32.xlu0 %v835
        %v911 = vpop.xlane.xlu0 %910
        %912 = vadd.xlane.f32.xlu0 %v840
        %v913 = vpop.xlane.xlu0 %912
        %914 = vadd.xlane.f32.xlu0 %v843
        %v915 = vpop.xlane.xlu0 %914
        %916 = vadd.xlane.f32.xlu0 %v848
        %v917 = vpop.xlane.xlu0 %916
        %918 = vadd.xlane.f32.xlu0 %v851
        %v919 = vpop.xlane.xlu0 %918
        %v920 = vmul.f32 %v728, %v728
        %v921 = vmul.f32 %v731, %v731
        %v922 = vmul.f32 %v736, %v736
        %v923 = vmul.f32 %v739, %v739
        %v924 = vmul.f32 %v744, %v744
        %v925 = vmul.f32 %v747, %v747
        %v926 = vmul.f32 %v752, %v752
        %v927 = vmul.f32 %v755, %v755
        %v928 = vmul.f32 %v760, %v760
        %v929 = vmul.f32 %v763, %v763
        %v930 = vmul.f32 %v768, %v768
        %v931 = vmul.f32 %v771, %v771
        %v932 = vmul.f32 %v776, %v776
        %v933 = vmul.f32 %v779, %v779
        %v934 = vmul.f32 %v784, %v784
        %v935 = vmul.f32 %v787, %v787
        %v936 = vmul.f32 %v792, %v792
        %v937 = vmul.f32 %v795, %v795
        %v938 = vmul.f32 %v800, %v800
        %v939 = vmul.f32 %v803, %v803
        %v940 = vmul.f32 %v808, %v808
        %v941 = vmul.f32 %v811, %v811
        %v942 = vmul.f32 %v816, %v816
        %v943 = vmul.f32 %v819, %v819
        %v944 = vmul.f32 %v824, %v824
        %v945 = vmul.f32 %v827, %v827
        %v946 = vmul.f32 %v832, %v832
        %v947 = vmul.f32 %v835, %v835
        %v948 = vmul.f32 %v840, %v840
        %v949 = vmul.f32 %v843, %v843
        %v950 = vmul.f32 %v848, %v848
        %v951 = vmul.f32 %v851, %v851
        %952 = vadd.xlane.f32.xlu0 %v920
        %v953 = vpop.xlane.xlu0 %952
        %954 = vadd.xlane.f32.xlu0 %v921
        %v955 = vpop.xlane.xlu0 %954
        %956 = vadd.xlane.f32.xlu0 %v922
        %v957 = vpop.xlane.xlu0 %956
        %958 = vadd.xlane.f32.xlu0 %v923
        %v959 = vpop.xlane.xlu0 %958
        %960 = vadd.xlane.f32.xlu0 %v924
        %v961 = vpop.xlane.xlu0 %960
        %962 = vadd.xlane.f32.xlu0 %v925
        %v963 = vpop.xlane.xlu0 %962
        %964 = vadd.xlane.f32.xlu0 %v926
        %v965 = vpop.xlane.xlu0 %964
        %966 = vadd.xlane.f32.xlu0 %v927
        %v967 = vpop.xlane.xlu0 %966
        %968 = vadd.xlane.f32.xlu0 %v928
        %v969 = vpop.xlane.xlu0 %968
        %970 = vadd.xlane.f32.xlu0 %v929
        %v971 = vpop.xlane.xlu0 %970
        %972 = vadd.xlane.f32.xlu0 %v930
        %v973 = vpop.xlane.xlu0 %972
        %974 = vadd.xlane.f32.xlu0 %v931
        %v975 = vpop.xlane.xlu0 %974
        %976 = vadd.xlane.f32.xlu0 %v932
        %v977 = vpop.xlane.xlu0 %976
        %978 = vadd.xlane.f32.xlu0 %v933
        %v979 = vpop.xlane.xlu0 %978
        %980 = vadd.xlane.f32.xlu0 %v934
        %v981 = vpop.xlane.xlu0 %980
        %982 = vadd.xlane.f32.xlu0 %v935
        %v983 = vpop.xlane.xlu0 %982
        %984 = vadd.xlane.f32.xlu0 %v936
        %v985 = vpop.xlane.xlu0 %984
        %986 = vadd.xlane.f32.xlu0 %v937
        %v987 = vpop.xlane.xlu0 %986
        %988 = vadd.xlane.f32.xlu0 %v938
        %v989 = vpop.xlane.xlu0 %988
        %990 = vadd.xlane.f32.xlu0 %v939
        %v991 = vpop.xlane.xlu0 %990
        %992 = vadd.xlane.f32.xlu0 %v940
        %v993 = vpop.xlane.xlu0 %992
        %994 = vadd.xlane.f32.xlu0 %v941
        %v995 = vpop.xlane.xlu0 %994
        %996 = vadd.xlane.f32.xlu0 %v942
        %v997 = vpop.xlane.xlu0 %996
        %998 = vadd.xlane.f32.xlu0 %v943
        %v999 = vpop.xlane.xlu0 %998
        %1000 = vadd.xlane.f32.xlu0 %v944
        %v1001 = vpop.xlane.xlu0 %1000
        %1002 = vadd.xlane.f32.xlu0 %v945
        %v1003 = vpop.xlane.xlu0 %1002
        %1004 = vadd.xlane.f32.xlu0 %v946
        %v1005 = vpop.xlane.xlu0 %1004
        %1006 = vadd.xlane.f32.xlu0 %v947
        %v1007 = vpop.xlane.xlu0 %1006
        %1008 = vadd.xlane.f32.xlu0 %v948
        %v1009 = vpop.xlane.xlu0 %1008
        %1010 = vadd.xlane.f32.xlu0 %v949
        %v1011 = vpop.xlane.xlu0 %1010
        %1012 = vadd.xlane.f32.xlu0 %v950
        %v1013 = vpop.xlane.xlu0 %1012
        %1014 = vadd.xlane.f32.xlu0 %v951
        %v1015 = vpop.xlane.xlu0 %1014
        %v1016 = vmul.f32 %v857, 0.0078125
        %v1017 = vmul.f32 %v859, 0.0078125
        %v1018 = vmul.f32 %v861, 0.0078125
        %v1019 = vmul.f32 %v863, 0.0078125
        %v1020 = vmul.f32 %v865, 0.0078125
        %v1021 = vmul.f32 %v867, 0.0078125
        %v1022 = vmul.f32 %v869, 0.0078125
        %v1023 = vmul.f32 %v871, 0.0078125
        %v1024 = vmul.f32 %v873, 0.0078125
        %v1025 = vmul.f32 %v875, 0.0078125
        %v1026 = vmul.f32 %v877, 0.0078125
        %v1027 = vmul.f32 %v879, 0.0078125
        %v1028 = vmul.f32 %v881, 0.0078125
        %v1029 = vmul.f32 %v883, 0.0078125
        %v1030 = vmul.f32 %v885, 0.0078125
        %v1031 = vmul.f32 %v887, 0.0078125
        %v1032 = vmul.f32 %v889, 0.0078125
        %v1033 = vmul.f32 %v891, 0.0078125
        %v1034 = vmul.f32 %v893, 0.0078125
        %v1035 = vmul.f32 %v895, 0.0078125
        %v1036 = vmul.f32 %v897, 0.0078125
        %v1037 = vmul.f32 %v899, 0.0078125
        %v1038 = vmul.f32 %v901, 0.0078125
        %v1039 = vmul.f32 %v903, 0.0078125
        %v1040 = vmul.f32 %v905, 0.0078125
        %v1041 = vmul.f32 %v907, 0.0078125
        %v1042 = vmul.f32 %v909, 0.0078125
        %v1043 = vmul.f32 %v911, 0.0078125
        %v1044 = vmul.f32 %v913, 0.0078125
        %v1045 = vmul.f32 %v915, 0.0078125
        %v1046 = vmul.f32 %v917, 0.0078125
        %v1047 = vmul.f32 %v919, 0.0078125
        %v1048 = vmul.f32 %v953, 0.0078125
        %v1049 = vmul.f32 %v955, 0.0078125
        %v1050 = vmul.f32 %v957, 0.0078125
        %v1051 = vmul.f32 %v959, 0.0078125
        %v1052 = vmul.f32 %v961, 0.0078125
        %v1053 = vmul.f32 %v963, 0.0078125
        %v1054 = vmul.f32 %v965, 0.0078125
        %v1055 = vmul.f32 %v967, 0.0078125
        %v1056 = vmul.f32 %v969, 0.0078125
        %v1057 = vmul.f32 %v971, 0.0078125
        %v1058 = vmul.f32 %v973, 0.0078125
        %v1059 = vmul.f32 %v975, 0.0078125
        %v1060 = vmul.f32 %v977, 0.0078125
        %v1061 = vmul.f32 %v979, 0.0078125
        %v1062 = vmul.f32 %v981, 0.0078125
        %v1063 = vmul.f32 %v983, 0.0078125
        %v1064 = vmul.f32 %v985, 0.0078125
        %v1065 = vmul.f32 %v987, 0.0078125
        %v1066 = vmul.f32 %v989, 0.0078125
        %v1067 = vmul.f32 %v991, 0.0078125
        %v1068 = vmul.f32 %v993, 0.0078125
        %v1069 = vmul.f32 %v995, 0.0078125
        %v1070 = vmul.f32 %v997, 0.0078125
        %v1071 = vmul.f32 %v999, 0.0078125
        %v1072 = vmul.f32 %v1001, 0.0078125
        %v1073 = vmul.f32 %v1003, 0.0078125
        %v1074 = vmul.f32 %v1005, 0.0078125
        %v1075 = vmul.f32 %v1007, 0.0078125
        %v1076 = vmul.f32 %v1009, 0.0078125
        %v1077 = vmul.f32 %v1011, 0.0078125
        %v1078 = vmul.f32 %v1013, 0.0078125
        %v1079 = vmul.f32 %v1015, 0.0078125
        %v1080 = vmul.f32 %v1016, %v1016
        %v1081 = vmul.f32 %v1017, %v1017
        %v1082 = vmul.f32 %v1018, %v1018
        %v1083 = vmul.f32 %v1019, %v1019
        %v1084 = vmul.f32 %v1020, %v1020
        %v1085 = vmul.f32 %v1021, %v1021
        %v1086 = vmul.f32 %v1022, %v1022
        %v1087 = vmul.f32 %v1023, %v1023
        %v1088 = vmul.f32 %v1024, %v1024
        %v1089 = vmul.f32 %v1025, %v1025
        %v1090 = vmul.f32 %v1026, %v1026
        %v1091 = vmul.f32 %v1027, %v1027
        %v1092 = vmul.f32 %v1028, %v1028
        %v1093 = vmul.f32 %v1029, %v1029
        %v1094 = vmul.f32 %v1030, %v1030
        %v1095 = vmul.f32 %v1031, %v1031
        %v1096 = vmul.f32 %v1032, %v1032
        %v1097 = vmul.f32 %v1033, %v1033
        %v1098 = vmul.f32 %v1034, %v1034
        %v1099 = vmul.f32 %v1035, %v1035
        %v1100 = vmul.f32 %v1036, %v1036
        %v1101 = vmul.f32 %v1037, %v1037
        %v1102 = vmul.f32 %v1038, %v1038
        %v1103 = vmul.f32 %v1039, %v1039
        %v1104 = vmul.f32 %v1040, %v1040
        %v1105 = vmul.f32 %v1041, %v1041
        %v1106 = vmul.f32 %v1042, %v1042
        %v1107 = vmul.f32 %v1043, %v1043
        %v1108 = vmul.f32 %v1044, %v1044
        %v1109 = vmul.f32 %v1045, %v1045
        %v1110 = vmul.f32 %v1046, %v1046
        %v1111 = vmul.f32 %v1047, %v1047
        %v1112 = vsub.f32 %v1048, %v1080
        %v1113 = vsub.f32 %v1049, %v1081
        %v1114 = vsub.f32 %v1050, %v1082
        %v1115 = vsub.f32 %v1051, %v1083
        %v1116 = vsub.f32 %v1052, %v1084
        %v1117 = vsub.f32 %v1053, %v1085
        %v1118 = vsub.f32 %v1054, %v1086
        %v1119 = vsub.f32 %v1055, %v1087
        %v1120 = vsub.f32 %v1056, %v1088
        %v1121 = vsub.f32 %v1057, %v1089
        %v1122 = vsub.f32 %v1058, %v1090
        %v1123 = vsub.f32 %v1059, %v1091
        %v1124 = vsub.f32 %v1060, %v1092
        %v1125 = vsub.f32 %v1061, %v1093
        %v1126 = vsub.f32 %v1062, %v1094
        %v1127 = vsub.f32 %v1063, %v1095
        %v1128 = vsub.f32 %v1064, %v1096
        %v1129 = vsub.f32 %v1065, %v1097
        %v1130 = vsub.f32 %v1066, %v1098
        %v1131 = vsub.f32 %v1067, %v1099
        %v1132 = vsub.f32 %v1068, %v1100
        %v1133 = vsub.f32 %v1069, %v1101
        %v1134 = vsub.f32 %v1070, %v1102
        %v1135 = vsub.f32 %v1071, %v1103
        %v1136 = vsub.f32 %v1072, %v1104
        %v1137 = vsub.f32 %v1073, %v1105
        %v1138 = vsub.f32 %v1074, %v1106
        %v1139 = vsub.f32 %v1075, %v1107
        %v1140 = vsub.f32 %v1076, %v1108
        %v1141 = vsub.f32 %v1077, %v1109
        %v1142 = vsub.f32 %v1078, %v1110
        %v1143 = vsub.f32 %v1079, %v1111
        %v1144 = vmax.f32 %v1112, 0.0
        %v1145 = vmax.f32 %v1113, 0.0
        %v1146 = vmax.f32 %v1114, 0.0
        %v1147 = vmax.f32 %v1115, 0.0
        %v1148 = vmax.f32 %v1116, 0.0
        %v1149 = vmax.f32 %v1117, 0.0
        %v1150 = vmax.f32 %v1118, 0.0
        %v1151 = vmax.f32 %v1119, 0.0
        %v1152 = vmax.f32 %v1120, 0.0
        %v1153 = vmax.f32 %v1121, 0.0
        %v1154 = vmax.f32 %v1122, 0.0
        %v1155 = vmax.f32 %v1123, 0.0
        %v1156 = vmax.f32 %v1124, 0.0
        %v1157 = vmax.f32 %v1125, 0.0
        %v1158 = vmax.f32 %v1126, 0.0
        %v1159 = vmax.f32 %v1127, 0.0
        %v1160 = vmax.f32 %v1128, 0.0
        %v1161 = vmax.f32 %v1129, 0.0
        %v1162 = vmax.f32 %v1130, 0.0
        %v1163 = vmax.f32 %v1131, 0.0
        %v1164 = vmax.f32 %v1132, 0.0
        %v1165 = vmax.f32 %v1133, 0.0
        %v1166 = vmax.f32 %v1134, 0.0
        %v1167 = vmax.f32 %v1135, 0.0
        %v1168 = vmax.f32 %v1136, 0.0
        %v1169 = vmax.f32 %v1137, 0.0
        %v1170 = vmax.f32 %v1138, 0.0
        %v1171 = vmax.f32 %v1139, 0.0
        %v1172 = vmax.f32 %v1140, 0.0
        %v1173 = vmax.f32 %v1141, 0.0
        %v1174 = vmax.f32 %v1142, 0.0
        %v1175 = vmax.f32 %v1143, 0.0
        %v1176 = vsub.f32 %v728, %v1016
        %v1177 = vsub.f32 %v731, %v1017
        %v1178 = vsub.f32 %v736, %v1018
        %v1179 = vsub.f32 %v739, %v1019
        %v1180 = vsub.f32 %v744, %v1020
        %v1181 = vsub.f32 %v747, %v1021
        %v1182 = vsub.f32 %v752, %v1022
        %v1183 = vsub.f32 %v755, %v1023
        %v1184 = vsub.f32 %v760, %v1024
        %v1185 = vsub.f32 %v763, %v1025
        %v1186 = vsub.f32 %v768, %v1026
        %v1187 = vsub.f32 %v771, %v1027
        %v1188 = vsub.f32 %v776, %v1028
        %v1189 = vsub.f32 %v779, %v1029
        %v1190 = vsub.f32 %v784, %v1030
        %v1191 = vsub.f32 %v787, %v1031
        %v1192 = vsub.f32 %v792, %v1032
        %v1193 = vsub.f32 %v795, %v1033
        %v1194 = vsub.f32 %v800, %v1034
        %v1195 = vsub.f32 %v803, %v1035
        %v1196 = vsub.f32 %v808, %v1036
        %v1197 = vsub.f32 %v811, %v1037
        %v1198 = vsub.f32 %v816, %v1038
        %v1199 = vsub.f32 %v819, %v1039
        %v1200 = vsub.f32 %v824, %v1040
        %v1201 = vsub.f32 %v827, %v1041
        %v1202 = vsub.f32 %v832, %v1042
        %v1203 = vsub.f32 %v835, %v1043
        %v1204 = vsub.f32 %v840, %v1044
        %v1205 = vsub.f32 %v843, %v1045
        %v1206 = vsub.f32 %v848, %v1046
        %v1207 = vsub.f32 %v851, %v1047
        %v1208 = vadd.f32 %v1144, 1e-05
        %v1209 = vadd.f32 %v1145, 1e-05
        %v1210 = vadd.f32 %v1146, 1e-05
        %v1211 = vadd.f32 %v1147, 1e-05
        %v1212 = vadd.f32 %v1148, 1e-05
        %v1213 = vadd.f32 %v1149, 1e-05
        %v1214 = vadd.f32 %v1150, 1e-05
        %v1215 = vadd.f32 %v1151, 1e-05
        %v1216 = vadd.f32 %v1152, 1e-05
        %v1217 = vadd.f32 %v1153, 1e-05
        %v1218 = vadd.f32 %v1154, 1e-05
        %v1219 = vadd.f32 %v1155, 1e-05
        %v1220 = vadd.f32 %v1156, 1e-05
        %v1221 = vadd.f32 %v1157, 1e-05
        %v1222 = vadd.f32 %v1158, 1e-05
        %v1223 = vadd.f32 %v1159, 1e-05
        %v1224 = vadd.f32 %v1160, 1e-05
        %v1225 = vadd.f32 %v1161, 1e-05
        %v1226 = vadd.f32 %v1162, 1e-05
        %v1227 = vadd.f32 %v1163, 1e-05
        %v1228 = vadd.f32 %v1164, 1e-05
        %v1229 = vadd.f32 %v1165, 1e-05
        %v1230 = vadd.f32 %v1166, 1e-05
        %v1231 = vadd.f32 %v1167, 1e-05
        %v1232 = vadd.f32 %v1168, 1e-05
        %v1233 = vadd.f32 %v1169, 1e-05
        %v1234 = vadd.f32 %v1170, 1e-05
        %v1235 = vadd.f32 %v1171, 1e-05
        %v1236 = vadd.f32 %v1172, 1e-05
        %v1237 = vadd.f32 %v1173, 1e-05
        %v1238 = vadd.f32 %v1174, 1e-05
        %v1239 = vadd.f32 %v1175, 1e-05
        %v1240 = vrsqrt.pop %v1208
        %v1241 = vrsqrt.pop %v1209
        %v1242 = vrsqrt.pop %v1210
        %v1243 = vrsqrt.pop %v1211
        %v1244 = vrsqrt.pop %v1212
        %v1245 = vrsqrt.pop %v1213
        %v1246 = vrsqrt.pop %v1214
        %v1247 = vrsqrt.pop %v1215
        %v1248 = vrsqrt.pop %v1216
        %v1249 = vrsqrt.pop %v1217
        %v1250 = vrsqrt.pop %v1218
        %v1251 = vrsqrt.pop %v1219
        %v1252 = vrsqrt.pop %v1220
        %v1253 = vrsqrt.pop %v1221
        %v1254 = vrsqrt.pop %v1222
        %v1255 = vrsqrt.pop %v1223
        %v1256 = vrsqrt.pop %v1224
        %v1257 = vrsqrt.pop %v1225
        %v1258 = vrsqrt.pop %v1226
        %v1259 = vrsqrt.pop %v1227
        %v1260 = vrsqrt.pop %v1228
        %v1261 = vrsqrt.pop %v1229
        %v1262 = vrsqrt.pop %v1230
        %v1263 = vrsqrt.pop %v1231
        %v1264 = vrsqrt.pop %v1232
        %v1265 = vrsqrt.pop %v1233
        %v1266 = vrsqrt.pop %v1234
        %v1267 = vrsqrt.pop %v1235
        %v1268 = vrsqrt.pop %v1236
        %v1269 = vrsqrt.pop %v1237
        %v1270 = vrsqrt.pop %v1238
        %v1271 = vrsqrt.pop %v1239
        %v1272 = vmul.f32 %v1176, %v1240
        %v1273 = vmul.f32 %v1177, %v1241
        %v1274 = vmul.f32 %v1178, %v1242
        %v1275 = vmul.f32 %v1179, %v1243
        %v1276 = vmul.f32 %v1180, %v1244
        %v1277 = vmul.f32 %v1181, %v1245
        %v1278 = vmul.f32 %v1182, %v1246
        %v1279 = vmul.f32 %v1183, %v1247
        %v1280 = vmul.f32 %v1184, %v1248
        %v1281 = vmul.f32 %v1185, %v1249
        %v1282 = vmul.f32 %v1186, %v1250
        %v1283 = vmul.f32 %v1187, %v1251
        %v1284 = vmul.f32 %v1188, %v1252
        %v1285 = vmul.f32 %v1189, %v1253
        %v1286 = vmul.f32 %v1190, %v1254
        %v1287 = vmul.f32 %v1191, %v1255
        %v1288 = vmul.f32 %v1192, %v1256
        %v1289 = vmul.f32 %v1193, %v1257
        %v1290 = vmul.f32 %v1194, %v1258
        %v1291 = vmul.f32 %v1195, %v1259
        %v1292 = vmul.f32 %v1196, %v1260
        %v1293 = vmul.f32 %v1197, %v1261
        %v1294 = vmul.f32 %v1198, %v1262
        %v1295 = vmul.f32 %v1199, %v1263
        %v1296 = vmul.f32 %v1200, %v1264
        %v1297 = vmul.f32 %v1201, %v1265
        %v1298 = vmul.f32 %v1202, %v1266
        %v1299 = vmul.f32 %v1203, %v1267
        %v1300 = vmul.f32 %v1204, %v1268
        %v1301 = vmul.f32 %v1205, %v1269
        %v1302 = vmul.f32 %v1206, %v1270
        %v1303 = vmul.f32 %v1207, %v1271
        %v1305 = vlaneseq
        %v1306 = vshrl.u32 %v1305, 7
        %v1307 = vsub.s32 0, %v1306
        %v1308 = vrot.slane %v854, %v1307
        %v1310 = vmul.f32 %v1272, %v1308
        %v1311 = vmul.f32 %v1273, %v1308
        %v1312 = vmul.f32 %v1274, %v1308
        %v1313 = vmul.f32 %v1275, %v1308
        %v1314 = vmul.f32 %v1276, %v1308
        %v1315 = vmul.f32 %v1277, %v1308
        %v1316 = vmul.f32 %v1278, %v1308
        %v1317 = vmul.f32 %v1279, %v1308
        %v1318 = vmul.f32 %v1280, %v1308
        %v1319 = vmul.f32 %v1281, %v1308
        %v1320 = vmul.f32 %v1282, %v1308
        %v1321 = vmul.f32 %v1283, %v1308
        %v1322 = vmul.f32 %v1284, %v1308
        %v1323 = vmul.f32 %v1285, %v1308
        %v1324 = vmul.f32 %v1286, %v1308
        %v1325 = vmul.f32 %v1287, %v1308
        %v1326 = vmul.f32 %v1288, %v1308
        %v1327 = vmul.f32 %v1289, %v1308
        %v1328 = vmul.f32 %v1290, %v1308
        %v1329 = vmul.f32 %v1291, %v1308
        %v1330 = vmul.f32 %v1292, %v1308
        %v1331 = vmul.f32 %v1293, %v1308
        %v1332 = vmul.f32 %v1294, %v1308
        %v1333 = vmul.f32 %v1295, %v1308
        %v1334 = vmul.f32 %v1296, %v1308
        %v1335 = vmul.f32 %v1297, %v1308
        %v1336 = vmul.f32 %v1298, %v1308
        %v1337 = vmul.f32 %v1299, %v1308
        %v1338 = vmul.f32 %v1300, %v1308
        %v1339 = vmul.f32 %v1301, %v1308
        %v1340 = vmul.f32 %v1302, %v1308
        %v1341 = vmul.f32 %v1303, %v1308
        %v1343 = vlaneseq
        %v1344 = vshrl.u32 %v1343, 7
        %v1345 = vsub.s32 0, %v1344
        %v1346 = vrot.slane %v855, %v1345
        %v1348 = vadd.f32 %v1310, %v1346
        %v1349 = vadd.f32 %v1311, %v1346
        %v1350 = vadd.f32 %v1312, %v1346
        %v1351 = vadd.f32 %v1313, %v1346
        %v1352 = vadd.f32 %v1314, %v1346
        %v1353 = vadd.f32 %v1315, %v1346
        %v1354 = vadd.f32 %v1316, %v1346
        %v1355 = vadd.f32 %v1317, %v1346
        %v1356 = vadd.f32 %v1318, %v1346
        %v1357 = vadd.f32 %v1319, %v1346
        %v1358 = vadd.f32 %v1320, %v1346
        %v1359 = vadd.f32 %v1321, %v1346
        %v1360 = vadd.f32 %v1322, %v1346
        %v1361 = vadd.f32 %v1323, %v1346
        %v1362 = vadd.f32 %v1324, %v1346
        %v1363 = vadd.f32 %v1325, %v1346
        %v1364 = vadd.f32 %v1326, %v1346
        %v1365 = vadd.f32 %v1327, %v1346
        %v1366 = vadd.f32 %v1328, %v1346
        %v1367 = vadd.f32 %v1329, %v1346
        %v1368 = vadd.f32 %v1330, %v1346
        %v1369 = vadd.f32 %v1331, %v1346
        %v1370 = vadd.f32 %v1332, %v1346
        %v1371 = vadd.f32 %v1333, %v1346
        %v1372 = vadd.f32 %v1334, %v1346
        %v1373 = vadd.f32 %v1335, %v1346
        %v1374 = vadd.f32 %v1336, %v1346
        %v1375 = vadd.f32 %v1337, %v1346
        %v1376 = vadd.f32 %v1338, %v1346
        %v1377 = vadd.f32 %v1339, %v1346
        %v1378 = vadd.f32 %v1340, %v1346
        %v1379 = vadd.f32 %v1341, %v1346
        %v1380 = vmax.f32 %v1348, 0.0
        %v1381 = vmax.f32 %v1349, 0.0
        %v1382 = vmax.f32 %v1350, 0.0
        %v1383 = vmax.f32 %v1351, 0.0
        %v1384 = vmax.f32 %v1352, 0.0
        %v1385 = vmax.f32 %v1353, 0.0
        %v1386 = vmax.f32 %v1354, 0.0
        %v1387 = vmax.f32 %v1355, 0.0
        %v1388 = vmax.f32 %v1356, 0.0
        %v1389 = vmax.f32 %v1357, 0.0
        %v1390 = vmax.f32 %v1358, 0.0
        %v1391 = vmax.f32 %v1359, 0.0
        %v1392 = vmax.f32 %v1360, 0.0
        %v1393 = vmax.f32 %v1361, 0.0
        %v1394 = vmax.f32 %v1362, 0.0
        %v1395 = vmax.f32 %v1363, 0.0
        %v1396 = vmax.f32 %v1364, 0.0
        %v1397 = vmax.f32 %v1365, 0.0
        %v1398 = vmax.f32 %v1366, 0.0
        %v1399 = vmax.f32 %v1367, 0.0
        %v1400 = vmax.f32 %v1368, 0.0
        %v1401 = vmax.f32 %v1369, 0.0
        %v1402 = vmax.f32 %v1370, 0.0
        %v1403 = vmax.f32 %v1371, 0.0
        %v1404 = vmax.f32 %v1372, 0.0
        %v1405 = vmax.f32 %v1373, 0.0
        %v1406 = vmax.f32 %v1374, 0.0
        %v1407 = vmax.f32 %v1375, 0.0
        %v1408 = vmax.f32 %v1376, 0.0
        %v1409 = vmax.f32 %v1377, 0.0
        %v1410 = vmax.f32 %v1378, 0.0
        %v1411 = vmax.f32 %v1379, 0.0
        %v1412 = vpack.c.bf16 %v1381, %v1380
        %v1413 = vpack.c.bf16 %v1383, %v1382
        %v1414 = vpack.c.bf16 %v1385, %v1384
        %v1415 = vpack.c.bf16 %v1387, %v1386
        %v1416 = vpack.c.bf16 %v1389, %v1388
        %v1417 = vpack.c.bf16 %v1391, %v1390
        %v1418 = vpack.c.bf16 %v1393, %v1392
        %v1419 = vpack.c.bf16 %v1395, %v1394
        %v1420 = vpack.c.bf16 %v1397, %v1396
        %v1421 = vpack.c.bf16 %v1399, %v1398
        %v1422 = vpack.c.bf16 %v1401, %v1400
        %v1423 = vpack.c.bf16 %v1403, %v1402
        %v1424 = vpack.c.bf16 %v1405, %v1404
        %v1425 = vpack.c.bf16 %v1407, %v1406
        %v1426 = vpack.c.bf16 %v1409, %v1408
        %v1427 = vpack.c.bf16 %v1411, %v1410
        %v1428 = vld [vmem:[#allocation7] sm:$0xf]
        %v1429 = vld [vmem:[#allocation7 + $0x4] sm:$0xf]
        %v1430 = vld [vmem:[#allocation7 + $0x8] sm:$0xf]
        %v1431 = vld [vmem:[#allocation7 + $0xc] sm:$0xf]
        %v1432 = vld [vmem:[#allocation7 + $0x10] sm:$0xf]
        %v1433 = vld [vmem:[#allocation7 + $0x14] sm:$0xf]
        %v1434 = vld [vmem:[#allocation7 + $0x18] sm:$0xf]
        %v1435 = vld [vmem:[#allocation7 + $0x1c] sm:$0xf]
        %v1436 = vld [vmem:[#allocation7 + $0x20] sm:$0xf]
        %v1437 = vld [vmem:[#allocation7 + $0x24] sm:$0xf]
        %v1438 = vld [vmem:[#allocation7 + $0x28] sm:$0xf]
        %v1439 = vld [vmem:[#allocation7 + $0x2c] sm:$0xf]
        %v1440 = vld [vmem:[#allocation7 + $0x30] sm:$0xf]
        %v1441 = vld [vmem:[#allocation7 + $0x34] sm:$0xf]
        %v1442 = vld [vmem:[#allocation7 + $0x38] sm:$0xf]
        %v1443 = vld [vmem:[#allocation7 + $0x3c] sm:$0xf]
        %v1444 = vld [vmem:[%s6] sm:$0x1]
        %v1446 = vlaneseq
        %v1447 = vshrl.u32 %v1446, 7
        %v1448 = vsub.s32 0, %v1447
        %v1449 = vrot.slane %v1444, %v1448
        %v1467 = vunpack.c.l.b16 %v1428
        %v1468 = vunpack.c.l.b16 %v1429
        %v1469 = vunpack.c.l.b16 %v1430
        %v1470 = vunpack.c.l.b16 %v1431
        %v1471 = vunpack.c.l.b16 %v1432
        %v1472 = vunpack.c.l.b16 %v1433
        %v1473 = vunpack.c.l.b16 %v1434
        %v1474 = vunpack.c.l.b16 %v1435
        %v1475 = vunpack.c.l.b16 %v1436
        %v1476 = vunpack.c.l.b16 %v1437
        %v1477 = vunpack.c.l.b16 %v1438
        %v1478 = vunpack.c.l.b16 %v1439
        %v1479 = vunpack.c.l.b16 %v1440
        %v1480 = vunpack.c.l.b16 %v1441
        %v1481 = vunpack.c.l.b16 %v1442
        %v1482 = vunpack.c.l.b16 %v1443
        %v1483 = vpack.c.b16 %v1468, %v1467
        %v1484 = vpack.c.b16 %v1470, %v1469
        %v1485 = vpack.c.b16 %v1472, %v1471
        %v1486 = vpack.c.b16 %v1474, %v1473
        %v1487 = vpack.c.b16 %v1476, %v1475
        %v1488 = vpack.c.b16 %v1478, %v1477
        %v1489 = vpack.c.b16 %v1480, %v1479
        %v1490 = vpack.c.b16 %v1482, %v1481
        %1499 = vmatprep.subr.bf16.mxu0 0
        %1500 = vmatpush1.bf16.msra.mxu0 %v1483
        %1501 = vmatprep.subr.bf16.mxu0 0
        %1502 = vmatpush1.bf16.msra.mxu0 %v1484
        %1503 = vmatprep.subr.bf16.mxu0 0
        %1504 = vmatpush1.bf16.msra.mxu0 %v1485
        %1505 = vmatprep.subr.bf16.mxu0 0
        %1506 = vmatpush1.bf16.msra.mxu0 %v1486
        %1507 = vmatprep.subr.bf16.mxu0 0
        %1508 = vmatpush1.bf16.msra.mxu0 %v1487
        %1509 = vmatprep.subr.bf16.mxu0 0
        %1510 = vmatpush1.bf16.msra.mxu0 %v1488
        %1511 = vmatprep.subr.bf16.mxu0 0
        %1512 = vmatpush1.bf16.msra.mxu0 %v1489
        %1513 = vmatprep.subr.bf16.mxu0 0
        %1514 = vmatpush1.bf16.msra.mxu0 %v1490
        %1515 = vmatprep.subr.bf16.mxu0 0
        %1516 = vmatpush1.bf16.msra.mxu0 0
        %1517 = vmatprep.subr.bf16.mxu0 0
        %1518 = vmatpush1.bf16.msra.mxu0 0
        %1519 = vmatprep.subr.bf16.mxu0 0
        %1520 = vmatpush1.bf16.msra.mxu0 0
        %1521 = vmatprep.subr.bf16.mxu0 0
        %1522 = vmatpush1.bf16.msra.mxu0 0
        %1523 = vmatprep.subr.bf16.mxu0 0
        %1524 = vmatpush1.bf16.msra.mxu0 0
        %1525 = vmatprep.subr.bf16.mxu0 0
        %1526 = vmatpush1.bf16.msra.mxu0 0
        %1527 = vmatprep.subr.bf16.mxu0 0
        %1528 = vmatpush1.bf16.msra.mxu0 0
        %1529 = vmatprep.subr.bf16.mxu0 0
        %1530 = vmatpush1.bf16.msra.mxu0 0
        %1531 = vmatprep.mubr.bf16.mxu0 0
        %1532 = vmatmul.mubr.bf16.gmra.mrb[0].mxu0 %v1412
        %v1533 = vpop.f32.mrb[0].mxu0
        %v1534 = vadd.f32 %v1449, %v1533
        %v1535 = vpop.f32.mrb[0].mxu0
        %v1536 = vpop.f32.mrb[0].mxu0
        %v1537 = vadd.f32 %v1449, %v1536
        %v1538 = vpop.f32.mrb[0].mxu0
        %1539 = vmatprep.mubr.bf16.mxu0 0
        %1540 = vmatmul.mubr.bf16.gmra.mrb[0].mxu0 %v1413
        %v1541 = vpop.f32.mrb[0].mxu0
        %v1542 = vadd.f32 %v1449, %v1541
        %v1543 = vpop.f32.mrb[0].mxu0
        %v1544 = vpop.f32.mrb[0].mxu0
        %v1545 = vadd.f32 %v1449, %v1544
        %v1546 = vpop.f32.mrb[0].mxu0
        %1547 = vmatprep.mubr.bf16.mxu0 0
        %1548 = vmatmul.mubr.bf16.gmra.mrb[0].mxu0 %v1414
        %v1549 = vpop.f32.mrb[0].mxu0
        %v1550 = vadd.f32 %v1449, %v1549
        %v1551 = vpop.f32.mrb[0].mxu0
        %v1552 = vpop.f32.mrb[0].mxu0
        %v1553 = vadd.f32 %v1449, %v1552
        %v1554 = vpop.f32.mrb[0].mxu0
        %1555 = vmatprep.mubr.bf16.mxu0 0
        %1556 = vmatmul.mubr.bf16.gmra.mrb[0].mxu0 %v1415
        %v1557 = vpop.f32.mrb[0].mxu0
        %v1558 = vadd.f32 %v1449, %v1557
        %v1559 = vpop.f32.mrb[0].mxu0
        %v1560 = vpop.f32.mrb[0].mxu0
        %v1561 = vadd.f32 %v1449, %v1560
        %v1562 = vpop.f32.mrb[0].mxu0
        %1563 = vmatprep.mubr.bf16.mxu0 0
        %1564 = vmatmul.mubr.bf16.gmra.mrb[0].mxu0 %v1416
        %v1565 = vpop.f32.mrb[0].mxu0
        %v1566 = vadd.f32 %v1449, %v1565
        %v1567 = vpop.f32.mrb[0].mxu0
        %v1568 = vpop.f32.mrb[0].mxu0
        %v1569 = vadd.f32 %v1449, %v1568
        %v1570 = vpop.f32.mrb[0].mxu0
        %1571 = vmatprep.mubr.bf16.mxu0 0
        %1572 = vmatmul.mubr.bf16.gmra.mrb[0].mxu0 %v1417
        %v1573 = vpop.f32.mrb[0].mxu0
        %v1574 = vadd.f32 %v1449, %v1573
        %v1575 = vpop.f32.mrb[0].mxu0
        %v1576 = vpop.f32.mrb[0].mxu0
        %v1577 = vadd.f32 %v1449, %v1576
        %v1578 = vpop.f32.mrb[0].mxu0
        %1579 = vmatprep.mubr.bf16.mxu0 0
        %1580 = vmatmul.mubr.bf16.gmra.mrb[0].mxu0 %v1418
        %v1581 = vpop.f32.mrb[0].mxu0
        %v1582 = vadd.f32 %v1449, %v1581
        %v1583 = vpop.f32.mrb[0].mxu0
        %v1584 = vpop.f32.mrb[0].mxu0
        %v1585 = vadd.f32 %v1449, %v1584
        %v1586 = vpop.f32.mrb[0].mxu0
        %1587 = vmatprep.mubr.bf16.mxu0 0
        %1588 = vmatmul.mubr.bf16.gmra.mrb[0].mxu0 %v1419
        %v1589 = vpop.f32.mrb[0].mxu0
        %v1590 = vadd.f32 %v1449, %v1589
        %v1591 = vpop.f32.mrb[0].mxu0
        %v1592 = vpop.f32.mrb[0].mxu0
        %v1593 = vadd.f32 %v1449, %v1592
        %v1594 = vpop.f32.mrb[0].mxu0
        %1595 = vmatprep.mubr.bf16.mxu0 0
        %1596 = vmatmul.mubr.bf16.gmra.mrb[0].mxu0 %v1420
        %v1597 = vpop.f32.mrb[0].mxu0
        %v1598 = vadd.f32 %v1449, %v1597
        %v1599 = vpop.f32.mrb[0].mxu0
        %v1600 = vpop.f32.mrb[0].mxu0
        %v1601 = vadd.f32 %v1449, %v1600
        %v1602 = vpop.f32.mrb[0].mxu0
        %1603 = vmatprep.mubr.bf16.mxu0 0
        %1604 = vmatmul.mubr.bf16.gmra.mrb[0].mxu0 %v1421
        %v1605 = vpop.f32.mrb[0].mxu0
        %v1606 = vadd.f32 %v1449, %v1605
        %v1607 = vpop.f32.mrb[0].mxu0
        %v1608 = vpop.f32.mrb[0].mxu0
        %v1609 = vadd.f32 %v1449, %v1608
        %v1610 = vpop.f32.mrb[0].mxu0
        %1611 = vmatprep.mubr.bf16.mxu0 0
        %1612 = vmatmul.mubr.bf16.gmra.mrb[0].mxu0 %v1422
        %v1613 = vpop.f32.mrb[0].mxu0
        %v1614 = vadd.f32 %v1449, %v1613
        %v1615 = vpop.f32.mrb[0].mxu0
        %v1616 = vpop.f32.mrb[0].mxu0
        %v1617 = vadd.f32 %v1449, %v1616
        %v1618 = vpop.f32.mrb[0].mxu0
        %1619 = vmatprep.mubr.bf16.mxu0 0
        %1620 = vmatmul.mubr.bf16.gmra.mrb[0].mxu0 %v1423
        %v1621 = vpop.f32.mrb[0].mxu0
        %v1622 = vadd.f32 %v1449, %v1621
        %v1623 = vpop.f32.mrb[0].mxu0
        %v1624 = vpop.f32.mrb[0].mxu0
        %v1625 = vadd.f32 %v1449, %v1624
        %v1626 = vpop.f32.mrb[0].mxu0
        %1627 = vmatprep.mubr.bf16.mxu0 0
        %1628 = vmatmul.mubr.bf16.gmra.mrb[0].mxu0 %v1424
        %v1629 = vpop.f32.mrb[0].mxu0
        %v1630 = vadd.f32 %v1449, %v1629
        %v1631 = vpop.f32.mrb[0].mxu0
        %v1632 = vpop.f32.mrb[0].mxu0
        %v1633 = vadd.f32 %v1449, %v1632
        %v1634 = vpop.f32.mrb[0].mxu0
        %1635 = vmatprep.mubr.bf16.mxu0 0
        %1636 = vmatmul.mubr.bf16.gmra.mrb[0].mxu0 %v1425
        %v1637 = vpop.f32.mrb[0].mxu0
        %v1638 = vadd.f32 %v1449, %v1637
        %v1639 = vpop.f32.mrb[0].mxu0
        %v1640 = vpop.f32.mrb[0].mxu0
        %v1641 = vadd.f32 %v1449, %v1640
        %v1642 = vpop.f32.mrb[0].mxu0
        %1643 = vmatprep.mubr.bf16.mxu0 0
        %1644 = vmatmul.mubr.bf16.gmra.mrb[0].mxu0 %v1426
        %v1645 = vpop.f32.mrb[0].mxu0
        %v1646 = vadd.f32 %v1449, %v1645
        %v1647 = vpop.f32.mrb[0].mxu0
        %v1648 = vpop.f32.mrb[0].mxu0
        %v1649 = vadd.f32 %v1449, %v1648
        %v1650 = vpop.f32.mrb[0].mxu0
        %1651 = vmatprep.mubr.bf16.mxu0 0
        %1652 = vmatmul.mubr.bf16.gmra.mrb[0].mxu0 %v1427
        %v1653 = vpop.f32.mrb[0].mxu0
        %v1654 = vadd.f32 %v1449, %v1653
        %v1655 = vpop.f32.mrb[0].mxu0
        %v1656 = vpop.f32.mrb[0].mxu0
        %v1657 = vadd.f32 %v1449, %v1656
        %v1658 = vpop.f32.mrb[0].mxu0
        %1659 = vdwg.mxu0
        %v1660 = vld [vmem:[%s7] sm:$0x1]
        %v1661 = vld [vmem:[%s8] sm:$0x1]
        %1662 = vadd.xlane.f32.xlu0 %v1534
        %v1663 = vpop.xlane.xlu0 %1662
        %1664 = vadd.xlane.f32.xlu0 %v1537
        %v1665 = vpop.xlane.xlu0 %1664
        %1666 = vadd.xlane.f32.xlu0 %v1542
        %v1667 = vpop.xlane.xlu0 %1666
        %1668 = vadd.xlane.f32.xlu0 %v1545
        %v1669 = vpop.xlane.xlu0 %1668
        %1670 = vadd.xlane.f32.xlu0 %v1550
        %v1671 = vpop.xlane.xlu0 %1670
        %1672 = vadd.xlane.f32.xlu0 %v1553
        %v1673 = vpop.xlane.xlu0 %1672
        %1674 = vadd.xlane.f32.xlu0 %v1558
        %v1675 = vpop.xlane.xlu0 %1674
        %1676 = vadd.xlane.f32.xlu0 %v1561
        %v1677 = vpop.xlane.xlu0 %1676
        %1678 = vadd.xlane.f32.xlu0 %v1566
        %v1679 = vpop.xlane.xlu0 %1678
        %1680 = vadd.xlane.f32.xlu0 %v1569
        %v1681 = vpop.xlane.xlu0 %1680
        %1682 = vadd.xlane.f32.xlu0 %v1574
        %v1683 = vpop.xlane.xlu0 %1682
        %1684 = vadd.xlane.f32.xlu0 %v1577
        %v1685 = vpop.xlane.xlu0 %1684
        %1686 = vadd.xlane.f32.xlu0 %v1582
        %v1687 = vpop.xlane.xlu0 %1686
        %1688 = vadd.xlane.f32.xlu0 %v1585
        %v1689 = vpop.xlane.xlu0 %1688
        %1690 = vadd.xlane.f32.xlu0 %v1590
        %v1691 = vpop.xlane.xlu0 %1690
        %1692 = vadd.xlane.f32.xlu0 %v1593
        %v1693 = vpop.xlane.xlu0 %1692
        %1694 = vadd.xlane.f32.xlu0 %v1598
        %v1695 = vpop.xlane.xlu0 %1694
        %1696 = vadd.xlane.f32.xlu0 %v1601
        %v1697 = vpop.xlane.xlu0 %1696
        %1698 = vadd.xlane.f32.xlu0 %v1606
        %v1699 = vpop.xlane.xlu0 %1698
        %1700 = vadd.xlane.f32.xlu0 %v1609
        %v1701 = vpop.xlane.xlu0 %1700
        %1702 = vadd.xlane.f32.xlu0 %v1614
        %v1703 = vpop.xlane.xlu0 %1702
        %1704 = vadd.xlane.f32.xlu0 %v1617
        %v1705 = vpop.xlane.xlu0 %1704
        %1706 = vadd.xlane.f32.xlu0 %v1622
        %v1707 = vpop.xlane.xlu0 %1706
        %1708 = vadd.xlane.f32.xlu0 %v1625
        %v1709 = vpop.xlane.xlu0 %1708
        %1710 = vadd.xlane.f32.xlu0 %v1630
        %v1711 = vpop.xlane.xlu0 %1710
        %1712 = vadd.xlane.f32.xlu0 %v1633
        %v1713 = vpop.xlane.xlu0 %1712
        %1714 = vadd.xlane.f32.xlu0 %v1638
        %v1715 = vpop.xlane.xlu0 %1714
        %1716 = vadd.xlane.f32.xlu0 %v1641
        %v1717 = vpop.xlane.xlu0 %1716
        %1718 = vadd.xlane.f32.xlu0 %v1646
        %v1719 = vpop.xlane.xlu0 %1718
        %1720 = vadd.xlane.f32.xlu0 %v1649
        %v1721 = vpop.xlane.xlu0 %1720
        %1722 = vadd.xlane.f32.xlu0 %v1654
        %v1723 = vpop.xlane.xlu0 %1722
        %1724 = vadd.xlane.f32.xlu0 %v1657
        %v1725 = vpop.xlane.xlu0 %1724
        %v1726 = vmul.f32 %v1534, %v1534
        %v1727 = vmul.f32 %v1537, %v1537
        %v1728 = vmul.f32 %v1542, %v1542
        %v1729 = vmul.f32 %v1545, %v1545
        %v1730 = vmul.f32 %v1550, %v1550
        %v1731 = vmul.f32 %v1553, %v1553
        %v1732 = vmul.f32 %v1558, %v1558
        %v1733 = vmul.f32 %v1561, %v1561
        %v1734 = vmul.f32 %v1566, %v1566
        %v1735 = vmul.f32 %v1569, %v1569
        %v1736 = vmul.f32 %v1574, %v1574
        %v1737 = vmul.f32 %v1577, %v1577
        %v1738 = vmul.f32 %v1582, %v1582
        %v1739 = vmul.f32 %v1585, %v1585
        %v1740 = vmul.f32 %v1590, %v1590
        %v1741 = vmul.f32 %v1593, %v1593
        %v1742 = vmul.f32 %v1598, %v1598
        %v1743 = vmul.f32 %v1601, %v1601
        %v1744 = vmul.f32 %v1606, %v1606
        %v1745 = vmul.f32 %v1609, %v1609
        %v1746 = vmul.f32 %v1614, %v1614
        %v1747 = vmul.f32 %v1617, %v1617
        %v1748 = vmul.f32 %v1622, %v1622
        %v1749 = vmul.f32 %v1625, %v1625
        %v1750 = vmul.f32 %v1630, %v1630
        %v1751 = vmul.f32 %v1633, %v1633
        %v1752 = vmul.f32 %v1638, %v1638
        %v1753 = vmul.f32 %v1641, %v1641
        %v1754 = vmul.f32 %v1646, %v1646
        %v1755 = vmul.f32 %v1649, %v1649
        %v1756 = vmul.f32 %v1654, %v1654
        %v1757 = vmul.f32 %v1657, %v1657
        %1758 = vadd.xlane.f32.xlu0 %v1726
        %v1759 = vpop.xlane.xlu0 %1758
        %1760 = vadd.xlane.f32.xlu0 %v1727
        %v1761 = vpop.xlane.xlu0 %1760
        %1762 = vadd.xlane.f32.xlu0 %v1728
        %v1763 = vpop.xlane.xlu0 %1762
        %1764 = vadd.xlane.f32.xlu0 %v1729
        %v1765 = vpop.xlane.xlu0 %1764
        %1766 = vadd.xlane.f32.xlu0 %v1730
        %v1767 = vpop.xlane.xlu0 %1766
        %1768 = vadd.xlane.f32.xlu0 %v1731
        %v1769 = vpop.xlane.xlu0 %1768
        %1770 = vadd.xlane.f32.xlu0 %v1732
        %v1771 = vpop.xlane.xlu0 %1770
        %1772 = vadd.xlane.f32.xlu0 %v1733
        %v1773 = vpop.xlane.xlu0 %1772
        %1774 = vadd.xlane.f32.xlu0 %v1734
        %v1775 = vpop.xlane.xlu0 %1774
        %1776 = vadd.xlane.f32.xlu0 %v1735
        %v1777 = vpop.xlane.xlu0 %1776
        %1778 = vadd.xlane.f32.xlu0 %v1736
        %v1779 = vpop.xlane.xlu0 %1778
        %1780 = vadd.xlane.f32.xlu0 %v1737
        %v1781 = vpop.xlane.xlu0 %1780
        %1782 = vadd.xlane.f32.xlu0 %v1738
        %v1783 = vpop.xlane.xlu0 %1782
        %1784 = vadd.xlane.f32.xlu0 %v1739
        %v1785 = vpop.xlane.xlu0 %1784
        %1786 = vadd.xlane.f32.xlu0 %v1740
        %v1787 = vpop.xlane.xlu0 %1786
        %1788 = vadd.xlane.f32.xlu0 %v1741
        %v1789 = vpop.xlane.xlu0 %1788
        %1790 = vadd.xlane.f32.xlu0 %v1742
        %v1791 = vpop.xlane.xlu0 %1790
        %1792 = vadd.xlane.f32.xlu0 %v1743
        %v1793 = vpop.xlane.xlu0 %1792
        %1794 = vadd.xlane.f32.xlu0 %v1744
        %v1795 = vpop.xlane.xlu0 %1794
        %1796 = vadd.xlane.f32.xlu0 %v1745
        %v1797 = vpop.xlane.xlu0 %1796
        %1798 = vadd.xlane.f32.xlu0 %v1746
        %v1799 = vpop.xlane.xlu0 %1798
        %1800 = vadd.xlane.f32.xlu0 %v1747
        %v1801 = vpop.xlane.xlu0 %1800
        %1802 = vadd.xlane.f32.xlu0 %v1748
        %v1803 = vpop.xlane.xlu0 %1802
        %1804 = vadd.xlane.f32.xlu0 %v1749
        %v1805 = vpop.xlane.xlu0 %1804
        %1806 = vadd.xlane.f32.xlu0 %v1750
        %v1807 = vpop.xlane.xlu0 %1806
        %1808 = vadd.xlane.f32.xlu0 %v1751
        %v1809 = vpop.xlane.xlu0 %1808
        %1810 = vadd.xlane.f32.xlu0 %v1752
        %v1811 = vpop.xlane.xlu0 %1810
        %1812 = vadd.xlane.f32.xlu0 %v1753
        %v1813 = vpop.xlane.xlu0 %1812
        %1814 = vadd.xlane.f32.xlu0 %v1754
        %v1815 = vpop.xlane.xlu0 %1814
        %1816 = vadd.xlane.f32.xlu0 %v1755
        %v1817 = vpop.xlane.xlu0 %1816
        %1818 = vadd.xlane.f32.xlu0 %v1756
        %v1819 = vpop.xlane.xlu0 %1818
        %1820 = vadd.xlane.f32.xlu0 %v1757
        %v1821 = vpop.xlane.xlu0 %1820
        %v1822 = vmul.f32 %v1663, 0.0078125
        %v1823 = vmul.f32 %v1665, 0.0078125
        %v1824 = vmul.f32 %v1667, 0.0078125
        %v1825 = vmul.f32 %v1669, 0.0078125
        %v1826 = vmul.f32 %v1671, 0.0078125
        %v1827 = vmul.f32 %v1673, 0.0078125
        %v1828 = vmul.f32 %v1675, 0.0078125
        %v1829 = vmul.f32 %v1677, 0.0078125
        %v1830 = vmul.f32 %v1679, 0.0078125
        %v1831 = vmul.f32 %v1681, 0.0078125
        %v1832 = vmul.f32 %v1683, 0.0078125
        %v1833 = vmul.f32 %v1685, 0.0078125
        %v1834 = vmul.f32 %v1687, 0.0078125
        %v1835 = vmul.f32 %v1689, 0.0078125
        %v1836 = vmul.f32 %v1691, 0.0078125
        %v1837 = vmul.f32 %v1693, 0.0078125
        %v1838 = vmul.f32 %v1695, 0.0078125
        %v1839 = vmul.f32 %v1697, 0.0078125
        %v1840 = vmul.f32 %v1699, 0.0078125
        %v1841 = vmul.f32 %v1701, 0.0078125
        %v1842 = vmul.f32 %v1703, 0.0078125
        %v1843 = vmul.f32 %v1705, 0.0078125
        %v1844 = vmul.f32 %v1707, 0.0078125
        %v1845 = vmul.f32 %v1709, 0.0078125
        %v1846 = vmul.f32 %v1711, 0.0078125
        %v1847 = vmul.f32 %v1713, 0.0078125
        %v1848 = vmul.f32 %v1715, 0.0078125
        %v1849 = vmul.f32 %v1717, 0.0078125
        %v1850 = vmul.f32 %v1719, 0.0078125
        %v1851 = vmul.f32 %v1721, 0.0078125
        %v1852 = vmul.f32 %v1723, 0.0078125
        %v1853 = vmul.f32 %v1725, 0.0078125
        %v1854 = vmul.f32 %v1759, 0.0078125
        %v1855 = vmul.f32 %v1761, 0.0078125
        %v1856 = vmul.f32 %v1763, 0.0078125
        %v1857 = vmul.f32 %v1765, 0.0078125
        %v1858 = vmul.f32 %v1767, 0.0078125
        %v1859 = vmul.f32 %v1769, 0.0078125
        %v1860 = vmul.f32 %v1771, 0.0078125
        %v1861 = vmul.f32 %v1773, 0.0078125
        %v1862 = vmul.f32 %v1775, 0.0078125
        %v1863 = vmul.f32 %v1777, 0.0078125
        %v1864 = vmul.f32 %v1779, 0.0078125
        %v1865 = vmul.f32 %v1781, 0.0078125
        %v1866 = vmul.f32 %v1783, 0.0078125
        %v1867 = vmul.f32 %v1785, 0.0078125
        %v1868 = vmul.f32 %v1787, 0.0078125
        %v1869 = vmul.f32 %v1789, 0.0078125
        %v1870 = vmul.f32 %v1791, 0.0078125
        %v1871 = vmul.f32 %v1793, 0.0078125
        %v1872 = vmul.f32 %v1795, 0.0078125
        %v1873 = vmul.f32 %v1797, 0.0078125
        %v1874 = vmul.f32 %v1799, 0.0078125
        %v1875 = vmul.f32 %v1801, 0.0078125
        %v1876 = vmul.f32 %v1803, 0.0078125
        %v1877 = vmul.f32 %v1805, 0.0078125
        %v1878 = vmul.f32 %v1807, 0.0078125
        %v1879 = vmul.f32 %v1809, 0.0078125
        %v1880 = vmul.f32 %v1811, 0.0078125
        %v1881 = vmul.f32 %v1813, 0.0078125
        %v1882 = vmul.f32 %v1815, 0.0078125
        %v1883 = vmul.f32 %v1817, 0.0078125
        %v1884 = vmul.f32 %v1819, 0.0078125
        %v1885 = vmul.f32 %v1821, 0.0078125
        %v1886 = vmul.f32 %v1822, %v1822
        %v1887 = vmul.f32 %v1823, %v1823
        %v1888 = vmul.f32 %v1824, %v1824
        %v1889 = vmul.f32 %v1825, %v1825
        %v1890 = vmul.f32 %v1826, %v1826
        %v1891 = vmul.f32 %v1827, %v1827
        %v1892 = vmul.f32 %v1828, %v1828
        %v1893 = vmul.f32 %v1829, %v1829
        %v1894 = vmul.f32 %v1830, %v1830
        %v1895 = vmul.f32 %v1831, %v1831
        %v1896 = vmul.f32 %v1832, %v1832
        %v1897 = vmul.f32 %v1833, %v1833
        %v1898 = vmul.f32 %v1834, %v1834
        %v1899 = vmul.f32 %v1835, %v1835
        %v1900 = vmul.f32 %v1836, %v1836
        %v1901 = vmul.f32 %v1837, %v1837
        %v1902 = vmul.f32 %v1838, %v1838
        %v1903 = vmul.f32 %v1839, %v1839
        %v1904 = vmul.f32 %v1840, %v1840
        %v1905 = vmul.f32 %v1841, %v1841
        %v1906 = vmul.f32 %v1842, %v1842
        %v1907 = vmul.f32 %v1843, %v1843
        %v1908 = vmul.f32 %v1844, %v1844
        %v1909 = vmul.f32 %v1845, %v1845
        %v1910 = vmul.f32 %v1846, %v1846
        %v1911 = vmul.f32 %v1847, %v1847
        %v1912 = vmul.f32 %v1848, %v1848
        %v1913 = vmul.f32 %v1849, %v1849
        %v1914 = vmul.f32 %v1850, %v1850
        %v1915 = vmul.f32 %v1851, %v1851
        %v1916 = vmul.f32 %v1852, %v1852
        %v1917 = vmul.f32 %v1853, %v1853
        %v1918 = vsub.f32 %v1854, %v1886
        %v1919 = vsub.f32 %v1855, %v1887
        %v1920 = vsub.f32 %v1856, %v1888
        %v1921 = vsub.f32 %v1857, %v1889
        %v1922 = vsub.f32 %v1858, %v1890
        %v1923 = vsub.f32 %v1859, %v1891
        %v1924 = vsub.f32 %v1860, %v1892
        %v1925 = vsub.f32 %v1861, %v1893
        %v1926 = vsub.f32 %v1862, %v1894
        %v1927 = vsub.f32 %v1863, %v1895
        %v1928 = vsub.f32 %v1864, %v1896
        %v1929 = vsub.f32 %v1865, %v1897
        %v1930 = vsub.f32 %v1866, %v1898
        %v1931 = vsub.f32 %v1867, %v1899
        %v1932 = vsub.f32 %v1868, %v1900
        %v1933 = vsub.f32 %v1869, %v1901
        %v1934 = vsub.f32 %v1870, %v1902
        %v1935 = vsub.f32 %v1871, %v1903
        %v1936 = vsub.f32 %v1872, %v1904
        %v1937 = vsub.f32 %v1873, %v1905
        %v1938 = vsub.f32 %v1874, %v1906
        %v1939 = vsub.f32 %v1875, %v1907
        %v1940 = vsub.f32 %v1876, %v1908
        %v1941 = vsub.f32 %v1877, %v1909
        %v1942 = vsub.f32 %v1878, %v1910
        %v1943 = vsub.f32 %v1879, %v1911
        %v1944 = vsub.f32 %v1880, %v1912
        %v1945 = vsub.f32 %v1881, %v1913
        %v1946 = vsub.f32 %v1882, %v1914
        %v1947 = vsub.f32 %v1883, %v1915
        %v1948 = vsub.f32 %v1884, %v1916
        %v1949 = vsub.f32 %v1885, %v1917
        %v1950 = vmax.f32 %v1918, 0.0
        %v1951 = vmax.f32 %v1919, 0.0
        %v1952 = vmax.f32 %v1920, 0.0
        %v1953 = vmax.f32 %v1921, 0.0
        %v1954 = vmax.f32 %v1922, 0.0
        %v1955 = vmax.f32 %v1923, 0.0
        %v1956 = vmax.f32 %v1924, 0.0
        %v1957 = vmax.f32 %v1925, 0.0
        %v1958 = vmax.f32 %v1926, 0.0
        %v1959 = vmax.f32 %v1927, 0.0
        %v1960 = vmax.f32 %v1928, 0.0
        %v1961 = vmax.f32 %v1929, 0.0
        %v1962 = vmax.f32 %v1930, 0.0
        %v1963 = vmax.f32 %v1931, 0.0
        %v1964 = vmax.f32 %v1932, 0.0
        %v1965 = vmax.f32 %v1933, 0.0
        %v1966 = vmax.f32 %v1934, 0.0
        %v1967 = vmax.f32 %v1935, 0.0
        %v1968 = vmax.f32 %v1936, 0.0
        %v1969 = vmax.f32 %v1937, 0.0
        %v1970 = vmax.f32 %v1938, 0.0
        %v1971 = vmax.f32 %v1939, 0.0
        %v1972 = vmax.f32 %v1940, 0.0
        %v1973 = vmax.f32 %v1941, 0.0
        %v1974 = vmax.f32 %v1942, 0.0
        %v1975 = vmax.f32 %v1943, 0.0
        %v1976 = vmax.f32 %v1944, 0.0
        %v1977 = vmax.f32 %v1945, 0.0
        %v1978 = vmax.f32 %v1946, 0.0
        %v1979 = vmax.f32 %v1947, 0.0
        %v1980 = vmax.f32 %v1948, 0.0
        %v1981 = vmax.f32 %v1949, 0.0
        %v1982 = vsub.f32 %v1534, %v1822
        %v1983 = vsub.f32 %v1537, %v1823
        %v1984 = vsub.f32 %v1542, %v1824
        %v1985 = vsub.f32 %v1545, %v1825
        %v1986 = vsub.f32 %v1550, %v1826
        %v1987 = vsub.f32 %v1553, %v1827
        %v1988 = vsub.f32 %v1558, %v1828
        %v1989 = vsub.f32 %v1561, %v1829
        %v1990 = vsub.f32 %v1566, %v1830
        %v1991 = vsub.f32 %v1569, %v1831
        %v1992 = vsub.f32 %v1574, %v1832
        %v1993 = vsub.f32 %v1577, %v1833
        %v1994 = vsub.f32 %v1582, %v1834
        %v1995 = vsub.f32 %v1585, %v1835
        %v1996 = vsub.f32 %v1590, %v1836
        %v1997 = vsub.f32 %v1593, %v1837
        %v1998 = vsub.f32 %v1598, %v1838
        %v1999 = vsub.f32 %v1601, %v1839
        %v2000 = vsub.f32 %v1606, %v1840
        %v2001 = vsub.f32 %v1609, %v1841
        %v2002 = vsub.f32 %v1614, %v1842
        %v2003 = vsub.f32 %v1617, %v1843
        %v2004 = vsub.f32 %v1622, %v1844
        %v2005 = vsub.f32 %v1625, %v1845
        %v2006 = vsub.f32 %v1630, %v1846
        %v2007 = vsub.f32 %v1633, %v1847
        %v2008 = vsub.f32 %v1638, %v1848
        %v2009 = vsub.f32 %v1641, %v1849
        %v2010 = vsub.f32 %v1646, %v1850
        %v2011 = vsub.f32 %v1649, %v1851
        %v2012 = vsub.f32 %v1654, %v1852
        %v2013 = vsub.f32 %v1657, %v1853
        %v2014 = vadd.f32 %v1950, 1e-05
        %v2015 = vadd.f32 %v1951, 1e-05
        %v2016 = vadd.f32 %v1952, 1e-05
        %v2017 = vadd.f32 %v1953, 1e-05
        %v2018 = vadd.f32 %v1954, 1e-05
        %v2019 = vadd.f32 %v1955, 1e-05
        %v2020 = vadd.f32 %v1956, 1e-05
        %v2021 = vadd.f32 %v1957, 1e-05
        %v2022 = vadd.f32 %v1958, 1e-05
        %v2023 = vadd.f32 %v1959, 1e-05
        %v2024 = vadd.f32 %v1960, 1e-05
        %v2025 = vadd.f32 %v1961, 1e-05
        %v2026 = vadd.f32 %v1962, 1e-05
        %v2027 = vadd.f32 %v1963, 1e-05
        %v2028 = vadd.f32 %v1964, 1e-05
        %v2029 = vadd.f32 %v1965, 1e-05
        %v2030 = vadd.f32 %v1966, 1e-05
        %v2031 = vadd.f32 %v1967, 1e-05
        %v2032 = vadd.f32 %v1968, 1e-05
        %v2033 = vadd.f32 %v1969, 1e-05
        %v2034 = vadd.f32 %v1970, 1e-05
        %v2035 = vadd.f32 %v1971, 1e-05
        %v2036 = vadd.f32 %v1972, 1e-05
        %v2037 = vadd.f32 %v1973, 1e-05
        %v2038 = vadd.f32 %v1974, 1e-05
        %v2039 = vadd.f32 %v1975, 1e-05
        %v2040 = vadd.f32 %v1976, 1e-05
        %v2041 = vadd.f32 %v1977, 1e-05
        %v2042 = vadd.f32 %v1978, 1e-05
        %v2043 = vadd.f32 %v1979, 1e-05
        %v2044 = vadd.f32 %v1980, 1e-05
        %v2045 = vadd.f32 %v1981, 1e-05
        %v2046 = vrsqrt.pop %v2014
        %v2047 = vrsqrt.pop %v2015
        %v2048 = vrsqrt.pop %v2016
        %v2049 = vrsqrt.pop %v2017
        %v2050 = vrsqrt.pop %v2018
        %v2051 = vrsqrt.pop %v2019
        %v2052 = vrsqrt.pop %v2020
        %v2053 = vrsqrt.pop %v2021
        %v2054 = vrsqrt.pop %v2022
        %v2055 = vrsqrt.pop %v2023
        %v2056 = vrsqrt.pop %v2024
        %v2057 = vrsqrt.pop %v2025
        %v2058 = vrsqrt.pop %v2026
        %v2059 = vrsqrt.pop %v2027
        %v2060 = vrsqrt.pop %v2028
        %v2061 = vrsqrt.pop %v2029
        %v2062 = vrsqrt.pop %v2030
        %v2063 = vrsqrt.pop %v2031
        %v2064 = vrsqrt.pop %v2032
        %v2065 = vrsqrt.pop %v2033
        %v2066 = vrsqrt.pop %v2034
        %v2067 = vrsqrt.pop %v2035
        %v2068 = vrsqrt.pop %v2036
        %v2069 = vrsqrt.pop %v2037
        %v2070 = vrsqrt.pop %v2038
        %v2071 = vrsqrt.pop %v2039
        %v2072 = vrsqrt.pop %v2040
        %v2073 = vrsqrt.pop %v2041
        %v2074 = vrsqrt.pop %v2042
        %v2075 = vrsqrt.pop %v2043
        %v2076 = vrsqrt.pop %v2044
        %v2077 = vrsqrt.pop %v2045
        %v2078 = vmul.f32 %v1982, %v2046
        %v2079 = vmul.f32 %v1983, %v2047
        %v2080 = vmul.f32 %v1984, %v2048
        %v2081 = vmul.f32 %v1985, %v2049
        %v2082 = vmul.f32 %v1986, %v2050
        %v2083 = vmul.f32 %v1987, %v2051
        %v2084 = vmul.f32 %v1988, %v2052
        %v2085 = vmul.f32 %v1989, %v2053
        %v2086 = vmul.f32 %v1990, %v2054
        %v2087 = vmul.f32 %v1991, %v2055
        %v2088 = vmul.f32 %v1992, %v2056
        %v2089 = vmul.f32 %v1993, %v2057
        %v2090 = vmul.f32 %v1994, %v2058
        %v2091 = vmul.f32 %v1995, %v2059
        %v2092 = vmul.f32 %v1996, %v2060
        %v2093 = vmul.f32 %v1997, %v2061
        %v2094 = vmul.f32 %v1998, %v2062
        %v2095 = vmul.f32 %v1999, %v2063
        %v2096 = vmul.f32 %v2000, %v2064
        %v2097 = vmul.f32 %v2001, %v2065
        %v2098 = vmul.f32 %v2002, %v2066
        %v2099 = vmul.f32 %v2003, %v2067
        %v2100 = vmul.f32 %v2004, %v2068
        %v2101 = vmul.f32 %v2005, %v2069
        %v2102 = vmul.f32 %v2006, %v2070
        %v2103 = vmul.f32 %v2007, %v2071
        %v2104 = vmul.f32 %v2008, %v2072
        %v2105 = vmul.f32 %v2009, %v2073
        %v2106 = vmul.f32 %v2010, %v2074
        %v2107 = vmul.f32 %v2011, %v2075
        %v2108 = vmul.f32 %v2012, %v2076
        %v2109 = vmul.f32 %v2013, %v2077
        %v2111 = vlaneseq
        %v2112 = vshrl.u32 %v2111, 7
        %v2113 = vsub.s32 0, %v2112
        %v2114 = vrot.slane %v1660, %v2113
        %v2116 = vmul.f32 %v2078, %v2114
        %v2117 = vmul.f32 %v2079, %v2114
        %v2118 = vmul.f32 %v2080, %v2114
        %v2119 = vmul.f32 %v2081, %v2114
        %v2120 = vmul.f32 %v2082, %v2114
        %v2121 = vmul.f32 %v2083, %v2114
        %v2122 = vmul.f32 %v2084, %v2114
        %v2123 = vmul.f32 %v2085, %v2114
        %v2124 = vmul.f32 %v2086, %v2114
        %v2125 = vmul.f32 %v2087, %v2114
        %v2126 = vmul.f32 %v2088, %v2114
        %v2127 = vmul.f32 %v2089, %v2114
        %v2128 = vmul.f32 %v2090, %v2114
        %v2129 = vmul.f32 %v2091, %v2114
        %v2130 = vmul.f32 %v2092, %v2114
        %v2131 = vmul.f32 %v2093, %v2114
        %v2132 = vmul.f32 %v2094, %v2114
        %v2133 = vmul.f32 %v2095, %v2114
        %v2134 = vmul.f32 %v2096, %v2114
        %v2135 = vmul.f32 %v2097, %v2114
        %v2136 = vmul.f32 %v2098, %v2114
        %v2137 = vmul.f32 %v2099, %v2114
        %v2138 = vmul.f32 %v2100, %v2114
        %v2139 = vmul.f32 %v2101, %v2114
        %v2140 = vmul.f32 %v2102, %v2114
        %v2141 = vmul.f32 %v2103, %v2114
        %v2142 = vmul.f32 %v2104, %v2114
        %v2143 = vmul.f32 %v2105, %v2114
        %v2144 = vmul.f32 %v2106, %v2114
        %v2145 = vmul.f32 %v2107, %v2114
        %v2146 = vmul.f32 %v2108, %v2114
        %v2147 = vmul.f32 %v2109, %v2114
        %v2149 = vlaneseq
        %v2150 = vshrl.u32 %v2149, 7
        %v2151 = vsub.s32 0, %v2150
        %v2152 = vrot.slane %v1661, %v2151
        %v2154 = vadd.f32 %v2116, %v2152
        %v2155 = vadd.f32 %v2117, %v2152
        %v2156 = vadd.f32 %v2118, %v2152
        %v2157 = vadd.f32 %v2119, %v2152
        %v2158 = vadd.f32 %v2120, %v2152
        %v2159 = vadd.f32 %v2121, %v2152
        %v2160 = vadd.f32 %v2122, %v2152
        %v2161 = vadd.f32 %v2123, %v2152
        %v2162 = vadd.f32 %v2124, %v2152
        %v2163 = vadd.f32 %v2125, %v2152
        %v2164 = vadd.f32 %v2126, %v2152
        %v2165 = vadd.f32 %v2127, %v2152
        %v2166 = vadd.f32 %v2128, %v2152
        %v2167 = vadd.f32 %v2129, %v2152
        %v2168 = vadd.f32 %v2130, %v2152
        %v2169 = vadd.f32 %v2131, %v2152
        %v2170 = vadd.f32 %v2132, %v2152
        %v2171 = vadd.f32 %v2133, %v2152
        %v2172 = vadd.f32 %v2134, %v2152
        %v2173 = vadd.f32 %v2135, %v2152
        %v2174 = vadd.f32 %v2136, %v2152
        %v2175 = vadd.f32 %v2137, %v2152
        %v2176 = vadd.f32 %v2138, %v2152
        %v2177 = vadd.f32 %v2139, %v2152
        %v2178 = vadd.f32 %v2140, %v2152
        %v2179 = vadd.f32 %v2141, %v2152
        %v2180 = vadd.f32 %v2142, %v2152
        %v2181 = vadd.f32 %v2143, %v2152
        %v2182 = vadd.f32 %v2144, %v2152
        %v2183 = vadd.f32 %v2145, %v2152
        %v2184 = vadd.f32 %v2146, %v2152
        %v2185 = vadd.f32 %v2147, %v2152
        %v2186 = vmax.f32 %v2154, 0.0
        %v2187 = vmax.f32 %v2155, 0.0
        %v2188 = vmax.f32 %v2156, 0.0
        %v2189 = vmax.f32 %v2157, 0.0
        %v2190 = vmax.f32 %v2158, 0.0
        %v2191 = vmax.f32 %v2159, 0.0
        %v2192 = vmax.f32 %v2160, 0.0
        %v2193 = vmax.f32 %v2161, 0.0
        %v2194 = vmax.f32 %v2162, 0.0
        %v2195 = vmax.f32 %v2163, 0.0
        %v2196 = vmax.f32 %v2164, 0.0
        %v2197 = vmax.f32 %v2165, 0.0
        %v2198 = vmax.f32 %v2166, 0.0
        %v2199 = vmax.f32 %v2167, 0.0
        %v2200 = vmax.f32 %v2168, 0.0
        %v2201 = vmax.f32 %v2169, 0.0
        %v2202 = vmax.f32 %v2170, 0.0
        %v2203 = vmax.f32 %v2171, 0.0
        %v2204 = vmax.f32 %v2172, 0.0
        %v2205 = vmax.f32 %v2173, 0.0
        %v2206 = vmax.f32 %v2174, 0.0
        %v2207 = vmax.f32 %v2175, 0.0
        %v2208 = vmax.f32 %v2176, 0.0
        %v2209 = vmax.f32 %v2177, 0.0
        %v2210 = vmax.f32 %v2178, 0.0
        %v2211 = vmax.f32 %v2179, 0.0
        %v2212 = vmax.f32 %v2180, 0.0
        %v2213 = vmax.f32 %v2181, 0.0
        %v2214 = vmax.f32 %v2182, 0.0
        %v2215 = vmax.f32 %v2183, 0.0
        %v2216 = vmax.f32 %v2184, 0.0
        %v2217 = vmax.f32 %v2185, 0.0
        %v2218 = vpack.c.bf16 %v2187, %v2186
        %v2219 = vpack.c.bf16 %v2189, %v2188
        %v2220 = vpack.c.bf16 %v2191, %v2190
        %v2221 = vpack.c.bf16 %v2193, %v2192
        %v2222 = vpack.c.bf16 %v2195, %v2194
        %v2223 = vpack.c.bf16 %v2197, %v2196
        %v2224 = vpack.c.bf16 %v2199, %v2198
        %v2225 = vpack.c.bf16 %v2201, %v2200
        %v2226 = vpack.c.bf16 %v2203, %v2202
        %v2227 = vpack.c.bf16 %v2205, %v2204
        %v2228 = vpack.c.bf16 %v2207, %v2206
        %v2229 = vpack.c.bf16 %v2209, %v2208
        %v2230 = vpack.c.bf16 %v2211, %v2210
        %v2231 = vpack.c.bf16 %v2213, %v2212
        %v2232 = vpack.c.bf16 %v2215, %v2214
        %v2233 = vpack.c.bf16 %v2217, %v2216
        %v2234 = vld [vmem:[#allocation8] sm:$0xf]
        %v2235 = vld [vmem:[#allocation8 + $0x4] sm:$0xf]
        %v2236 = vld [vmem:[#allocation8 + $0x8] sm:$0xf]
        %v2237 = vld [vmem:[#allocation8 + $0xc] sm:$0xf]
        %v2238 = vld [vmem:[#allocation8 + $0x10] sm:$0xf]
        %v2239 = vld [vmem:[#allocation8 + $0x14] sm:$0xf]
        %v2240 = vld [vmem:[#allocation8 + $0x18] sm:$0xf]
        %v2241 = vld [vmem:[#allocation8 + $0x1c] sm:$0xf]
        %v2242 = vld [vmem:[#allocation8 + $0x20] sm:$0xf]
        %v2243 = vld [vmem:[#allocation8 + $0x24] sm:$0xf]
        %v2244 = vld [vmem:[#allocation8 + $0x28] sm:$0xf]
        %v2245 = vld [vmem:[#allocation8 + $0x2c] sm:$0xf]
        %v2246 = vld [vmem:[#allocation8 + $0x30] sm:$0xf]
        %v2247 = vld [vmem:[#allocation8 + $0x34] sm:$0xf]
        %v2248 = vld [vmem:[#allocation8 + $0x38] sm:$0xf]
        %v2249 = vld [vmem:[#allocation8 + $0x3c] sm:$0xf]
        %v2250 = vld [vmem:[%s10] sm:$0x1]
        %v2252 = vlaneseq
        %v2253 = vshrl.u32 %v2252, 7
        %v2254 = vsub.s32 0, %v2253
        %v2255 = vrot.slane %v2250, %v2254
        %v2273 = vunpack.c.l.b16 %v2234
        %v2274 = vunpack.c.l.b16 %v2235
        %v2275 = vunpack.c.l.b16 %v2236
        %v2276 = vunpack.c.l.b16 %v2237
        %v2277 = vunpack.c.l.b16 %v2238
        %v2278 = vunpack.c.l.b16 %v2239
        %v2279 = vunpack.c.l.b16 %v2240
        %v2280 = vunpack.c.l.b16 %v2241
        %v2281 = vunpack.c.l.b16 %v2242
        %v2282 = vunpack.c.l.b16 %v2243
        %v2283 = vunpack.c.l.b16 %v2244
        %v2284 = vunpack.c.l.b16 %v2245
        %v2285 = vunpack.c.l.b16 %v2246
        %v2286 = vunpack.c.l.b16 %v2247
        %v2287 = vunpack.c.l.b16 %v2248
        %v2288 = vunpack.c.l.b16 %v2249
        %v2289 = vpack.c.b16 %v2274, %v2273
        %v2290 = vpack.c.b16 %v2276, %v2275
        %v2291 = vpack.c.b16 %v2278, %v2277
        %v2292 = vpack.c.b16 %v2280, %v2279
        %v2293 = vpack.c.b16 %v2282, %v2281
        %v2294 = vpack.c.b16 %v2284, %v2283
        %v2295 = vpack.c.b16 %v2286, %v2285
        %v2296 = vpack.c.b16 %v2288, %v2287
        %2305 = vmatprep.subr.bf16.mxu0 0
        %2306 = vmatpush1.bf16.msra.mxu0 %v2289
        %2307 = vmatprep.subr.bf16.mxu0 0
        %2308 = vmatpush1.bf16.msra.mxu0 %v2290
        %2309 = vmatprep.subr.bf16.mxu0 0
        %2310 = vmatpush1.bf16.msra.mxu0 %v2291
        %2311 = vmatprep.subr.bf16.mxu0 0
        %2312 = vmatpush1.bf16.msra.mxu0 %v2292
        %2313 = vmatprep.subr.bf16.mxu0 0
        %2314 = vmatpush1.bf16.msra.mxu0 %v2293
        %2315 = vmatprep.subr.bf16.mxu0 0
        %2316 = vmatpush1.bf16.msra.mxu0 %v2294
        %2317 = vmatprep.subr.bf16.mxu0 0
        %2318 = vmatpush1.bf16.msra.mxu0 %v2295
        %2319 = vmatprep.subr.bf16.mxu0 0
        %2320 = vmatpush1.bf16.msra.mxu0 %v2296
        %2321 = vmatprep.subr.bf16.mxu0 0
        %2322 = vmatpush1.bf16.msra.mxu0 0
        %2323 = vmatprep.subr.bf16.mxu0 0
        %2324 = vmatpush1.bf16.msra.mxu0 0
        %2325 = vmatprep.subr.bf16.mxu0 0
        %2326 = vmatpush1.bf16.msra.mxu0 0
        %2327 = vmatprep.subr.bf16.mxu0 0
        %2328 = vmatpush1.bf16.msra.mxu0 0
        %2329 = vmatprep.subr.bf16.mxu0 0
        %2330 = vmatpush1.bf16.msra.mxu0 0
        %2331 = vmatprep.subr.bf16.mxu0 0
        %2332 = vmatpush1.bf16.msra.mxu0 0
        %2333 = vmatprep.subr.bf16.mxu0 0
        %2334 = vmatpush1.bf16.msra.mxu0 0
        %2335 = vmatprep.subr.bf16.mxu0 0
        %2336 = vmatpush1.bf16.msra.mxu0 0
        %2337 = vmatprep.mubr.bf16.mxu0 0
        %2338 = vmatmul.mubr.bf16.gmra.mrb[0].mxu0 %v2218
        %v2339 = vpop.f32.mrb[0].mxu0
        %v2340 = vadd.f32 %v2255, %v2339
        %v2341 = vpop.f32.mrb[0].mxu0
        %v2342 = vpop.f32.mrb[0].mxu0
        %v2343 = vadd.f32 %v2255, %v2342
        %v2344 = vpop.f32.mrb[0].mxu0
        %2345 = vmatprep.mubr.bf16.mxu0 0
        %2346 = vmatmul.mubr.bf16.gmra.mrb[0].mxu0 %v2219
        %v2347 = vpop.f32.mrb[0].mxu0
        %v2348 = vadd.f32 %v2255, %v2347
        %v2349 = vpop.f32.mrb[0].mxu0
        %v2350 = vpop.f32.mrb[0].mxu0
        %v2351 = vadd.f32 %v2255, %v2350
        %v2352 = vpop.f32.mrb[0].mxu0
        %2353 = vmatprep.mubr.bf16.mxu0 0
        %2354 = vmatmul.mubr.bf16.gmra.mrb[0].mxu0 %v2220
        %v2355 = vpop.f32.mrb[0].mxu0
        %v2356 = vadd.f32 %v2255, %v2355
        %v2357 = vpop.f32.mrb[0].mxu0
        %v2358 = vpop.f32.mrb[0].mxu0
        %v2359 = vadd.f32 %v2255, %v2358
        %v2360 = vpop.f32.mrb[0].mxu0
        %2361 = vmatprep.mubr.bf16.mxu0 0
        %2362 = vmatmul.mubr.bf16.gmra.mrb[0].mxu0 %v2221
        %v2363 = vpop.f32.mrb[0].mxu0
        %v2364 = vadd.f32 %v2255, %v2363
        %v2365 = vpop.f32.mrb[0].mxu0
        %v2366 = vpop.f32.mrb[0].mxu0
        %v2367 = vadd.f32 %v2255, %v2366
        %v2368 = vpop.f32.mrb[0].mxu0
        %2369 = vmatprep.mubr.bf16.mxu0 0
        %2370 = vmatmul.mubr.bf16.gmra.mrb[0].mxu0 %v2222
        %v2371 = vpop.f32.mrb[0].mxu0
        %v2372 = vadd.f32 %v2255, %v2371
        %v2373 = vpop.f32.mrb[0].mxu0
        %v2374 = vpop.f32.mrb[0].mxu0
        %v2375 = vadd.f32 %v2255, %v2374
        %v2376 = vpop.f32.mrb[0].mxu0
        %2377 = vmatprep.mubr.bf16.mxu0 0
        %2378 = vmatmul.mubr.bf16.gmra.mrb[0].mxu0 %v2223
        %v2379 = vpop.f32.mrb[0].mxu0
        %v2380 = vadd.f32 %v2255, %v2379
        %v2381 = vpop.f32.mrb[0].mxu0
        %v2382 = vpop.f32.mrb[0].mxu0
        %v2383 = vadd.f32 %v2255, %v2382
        %v2384 = vpop.f32.mrb[0].mxu0
        %2385 = vmatprep.mubr.bf16.mxu0 0
        %2386 = vmatmul.mubr.bf16.gmra.mrb[0].mxu0 %v2224
        %v2387 = vpop.f32.mrb[0].mxu0
        %v2388 = vadd.f32 %v2255, %v2387
        %v2389 = vpop.f32.mrb[0].mxu0
        %v2390 = vpop.f32.mrb[0].mxu0
        %v2391 = vadd.f32 %v2255, %v2390
        %v2392 = vpop.f32.mrb[0].mxu0
        %2393 = vmatprep.mubr.bf16.mxu0 0
        %2394 = vmatmul.mubr.bf16.gmra.mrb[0].mxu0 %v2225
        %v2395 = vpop.f32.mrb[0].mxu0
        %v2396 = vadd.f32 %v2255, %v2395
        %v2397 = vpop.f32.mrb[0].mxu0
        %v2398 = vpop.f32.mrb[0].mxu0
        %v2399 = vadd.f32 %v2255, %v2398
        %v2400 = vpop.f32.mrb[0].mxu0
        %2401 = vmatprep.mubr.bf16.mxu0 0
        %2402 = vmatmul.mubr.bf16.gmra.mrb[0].mxu0 %v2226
        %v2403 = vpop.f32.mrb[0].mxu0
        %v2404 = vadd.f32 %v2255, %v2403
        %v2405 = vpop.f32.mrb[0].mxu0
        %v2406 = vpop.f32.mrb[0].mxu0
        %v2407 = vadd.f32 %v2255, %v2406
        %v2408 = vpop.f32.mrb[0].mxu0
        %2409 = vmatprep.mubr.bf16.mxu0 0
        %2410 = vmatmul.mubr.bf16.gmra.mrb[0].mxu0 %v2227
        %v2411 = vpop.f32.mrb[0].mxu0
        %v2412 = vadd.f32 %v2255, %v2411
        %v2413 = vpop.f32.mrb[0].mxu0
        %v2414 = vpop.f32.mrb[0].mxu0
        %v2415 = vadd.f32 %v2255, %v2414
        %v2416 = vpop.f32.mrb[0].mxu0
        %2417 = vmatprep.mubr.bf16.mxu0 0
        %2418 = vmatmul.mubr.bf16.gmra.mrb[0].mxu0 %v2228
        %v2419 = vpop.f32.mrb[0].mxu0
        %v2420 = vadd.f32 %v2255, %v2419
        %v2421 = vpop.f32.mrb[0].mxu0
        %v2422 = vpop.f32.mrb[0].mxu0
        %v2423 = vadd.f32 %v2255, %v2422
        %v2424 = vpop.f32.mrb[0].mxu0
        %2425 = vmatprep.mubr.bf16.mxu0 0
        %2426 = vmatmul.mubr.bf16.gmra.mrb[0].mxu0 %v2229
        %v2427 = vpop.f32.mrb[0].mxu0
        %v2428 = vadd.f32 %v2255, %v2427
        %v2429 = vpop.f32.mrb[0].mxu0
        %v2430 = vpop.f32.mrb[0].mxu0
        %v2431 = vadd.f32 %v2255, %v2430
        %v2432 = vpop.f32.mrb[0].mxu0
        %2433 = vmatprep.mubr.bf16.mxu0 0
        %2434 = vmatmul.mubr.bf16.gmra.mrb[0].mxu0 %v2230
        %v2435 = vpop.f32.mrb[0].mxu0
        %v2436 = vadd.f32 %v2255, %v2435
        %v2437 = vpop.f32.mrb[0].mxu0
        %v2438 = vpop.f32.mrb[0].mxu0
        %v2439 = vadd.f32 %v2255, %v2438
        %v2440 = vpop.f32.mrb[0].mxu0
        %2441 = vmatprep.mubr.bf16.mxu0 0
        %2442 = vmatmul.mubr.bf16.gmra.mrb[0].mxu0 %v2231
        %v2443 = vpop.f32.mrb[0].mxu0
        %v2444 = vadd.f32 %v2255, %v2443
        %v2445 = vpop.f32.mrb[0].mxu0
        %v2446 = vpop.f32.mrb[0].mxu0
        %v2447 = vadd.f32 %v2255, %v2446
        %v2448 = vpop.f32.mrb[0].mxu0
        %2449 = vmatprep.mubr.bf16.mxu0 0
        %2450 = vmatmul.mubr.bf16.gmra.mrb[0].mxu0 %v2232
        %v2451 = vpop.f32.mrb[0].mxu0
        %v2452 = vadd.f32 %v2255, %v2451
        %v2453 = vpop.f32.mrb[0].mxu0
        %v2454 = vpop.f32.mrb[0].mxu0
        %v2455 = vadd.f32 %v2255, %v2454
        %v2456 = vpop.f32.mrb[0].mxu0
        %2457 = vmatprep.mubr.bf16.mxu0 0
        %2458 = vmatmul.mubr.bf16.gmra.mrb[0].mxu0 %v2233
        %v2459 = vpop.f32.mrb[0].mxu0
        %v2460 = vadd.f32 %v2255, %v2459
        %v2461 = vpop.f32.mrb[0].mxu0
        %v2462 = vpop.f32.mrb[0].mxu0
        %v2463 = vadd.f32 %v2255, %v2462
        %v2464 = vpop.f32.mrb[0].mxu0
        %2465 = vdwg.mxu0
        %v2466 = vld [vmem:[%s11] sm:$0x1]
        %v2467 = vld [vmem:[%s12] sm:$0x1]
        %2468 = vadd.xlane.f32.xlu0 %v2340
        %v2469 = vpop.xlane.xlu0 %2468
        %2470 = vadd.xlane.f32.xlu0 %v2343
        %v2471 = vpop.xlane.xlu0 %2470
        %2472 = vadd.xlane.f32.xlu0 %v2348
        %v2473 = vpop.xlane.xlu0 %2472
        %2474 = vadd.xlane.f32.xlu0 %v2351
        %v2475 = vpop.xlane.xlu0 %2474
        %2476 = vadd.xlane.f32.xlu0 %v2356
        %v2477 = vpop.xlane.xlu0 %2476
        %2478 = vadd.xlane.f32.xlu0 %v2359
        %v2479 = vpop.xlane.xlu0 %2478
        %2480 = vadd.xlane.f32.xlu0 %v2364
        %v2481 = vpop.xlane.xlu0 %2480
        %2482 = vadd.xlane.f32.xlu0 %v2367
        %v2483 = vpop.xlane.xlu0 %2482
        %2484 = vadd.xlane.f32.xlu0 %v2372
        %v2485 = vpop.xlane.xlu0 %2484
        %2486 = vadd.xlane.f32.xlu0 %v2375
        %v2487 = vpop.xlane.xlu0 %2486
        %2488 = vadd.xlane.f32.xlu0 %v2380
        %v2489 = vpop.xlane.xlu0 %2488
        %2490 = vadd.xlane.f32.xlu0 %v2383
        %v2491 = vpop.xlane.xlu0 %2490
        %2492 = vadd.xlane.f32.xlu0 %v2388
        %v2493 = vpop.xlane.xlu0 %2492
        %2494 = vadd.xlane.f32.xlu0 %v2391
        %v2495 = vpop.xlane.xlu0 %2494
        %2496 = vadd.xlane.f32.xlu0 %v2396
        %v2497 = vpop.xlane.xlu0 %2496
        %2498 = vadd.xlane.f32.xlu0 %v2399
        %v2499 = vpop.xlane.xlu0 %2498
        %2500 = vadd.xlane.f32.xlu0 %v2404
        %v2501 = vpop.xlane.xlu0 %2500
        %2502 = vadd.xlane.f32.xlu0 %v2407
        %v2503 = vpop.xlane.xlu0 %2502
        %2504 = vadd.xlane.f32.xlu0 %v2412
        %v2505 = vpop.xlane.xlu0 %2504
        %2506 = vadd.xlane.f32.xlu0 %v2415
        %v2507 = vpop.xlane.xlu0 %2506
        %2508 = vadd.xlane.f32.xlu0 %v2420
        %v2509 = vpop.xlane.xlu0 %2508
        %2510 = vadd.xlane.f32.xlu0 %v2423
        %v2511 = vpop.xlane.xlu0 %2510
        %2512 = vadd.xlane.f32.xlu0 %v2428
        %v2513 = vpop.xlane.xlu0 %2512
        %2514 = vadd.xlane.f32.xlu0 %v2431
        %v2515 = vpop.xlane.xlu0 %2514
        %2516 = vadd.xlane.f32.xlu0 %v2436
        %v2517 = vpop.xlane.xlu0 %2516
        %2518 = vadd.xlane.f32.xlu0 %v2439
        %v2519 = vpop.xlane.xlu0 %2518
        %2520 = vadd.xlane.f32.xlu0 %v2444
        %v2521 = vpop.xlane.xlu0 %2520
        %2522 = vadd.xlane.f32.xlu0 %v2447
        %v2523 = vpop.xlane.xlu0 %2522
        %2524 = vadd.xlane.f32.xlu0 %v2452
        %v2525 = vpop.xlane.xlu0 %2524
        %2526 = vadd.xlane.f32.xlu0 %v2455
        %v2527 = vpop.xlane.xlu0 %2526
        %2528 = vadd.xlane.f32.xlu0 %v2460
        %v2529 = vpop.xlane.xlu0 %2528
        %2530 = vadd.xlane.f32.xlu0 %v2463
        %v2531 = vpop.xlane.xlu0 %2530
        %v2532 = vmul.f32 %v2340, %v2340
        %v2533 = vmul.f32 %v2343, %v2343
        %v2534 = vmul.f32 %v2348, %v2348
        %v2535 = vmul.f32 %v2351, %v2351
        %v2536 = vmul.f32 %v2356, %v2356
        %v2537 = vmul.f32 %v2359, %v2359
        %v2538 = vmul.f32 %v2364, %v2364
        %v2539 = vmul.f32 %v2367, %v2367
        %v2540 = vmul.f32 %v2372, %v2372
        %v2541 = vmul.f32 %v2375, %v2375
        %v2542 = vmul.f32 %v2380, %v2380
        %v2543 = vmul.f32 %v2383, %v2383
        %v2544 = vmul.f32 %v2388, %v2388
        %v2545 = vmul.f32 %v2391, %v2391
        %v2546 = vmul.f32 %v2396, %v2396
        %v2547 = vmul.f32 %v2399, %v2399
        %v2548 = vmul.f32 %v2404, %v2404
        %v2549 = vmul.f32 %v2407, %v2407
        %v2550 = vmul.f32 %v2412, %v2412
        %v2551 = vmul.f32 %v2415, %v2415
        %v2552 = vmul.f32 %v2420, %v2420
        %v2553 = vmul.f32 %v2423, %v2423
        %v2554 = vmul.f32 %v2428, %v2428
        %v2555 = vmul.f32 %v2431, %v2431
        %v2556 = vmul.f32 %v2436, %v2436
        %v2557 = vmul.f32 %v2439, %v2439
        %v2558 = vmul.f32 %v2444, %v2444
        %v2559 = vmul.f32 %v2447, %v2447
        %v2560 = vmul.f32 %v2452, %v2452
        %v2561 = vmul.f32 %v2455, %v2455
        %v2562 = vmul.f32 %v2460, %v2460
        %v2563 = vmul.f32 %v2463, %v2463
        %2564 = vadd.xlane.f32.xlu0 %v2532
        %v2565 = vpop.xlane.xlu0 %2564
        %2566 = vadd.xlane.f32.xlu0 %v2533
        %v2567 = vpop.xlane.xlu0 %2566
        %2568 = vadd.xlane.f32.xlu0 %v2534
        %v2569 = vpop.xlane.xlu0 %2568
        %2570 = vadd.xlane.f32.xlu0 %v2535
        %v2571 = vpop.xlane.xlu0 %2570
        %2572 = vadd.xlane.f32.xlu0 %v2536
        %v2573 = vpop.xlane.xlu0 %2572
        %2574 = vadd.xlane.f32.xlu0 %v2537
        %v2575 = vpop.xlane.xlu0 %2574
        %2576 = vadd.xlane.f32.xlu0 %v2538
        %v2577 = vpop.xlane.xlu0 %2576
        %2578 = vadd.xlane.f32.xlu0 %v2539
        %v2579 = vpop.xlane.xlu0 %2578
        %2580 = vadd.xlane.f32.xlu0 %v2540
        %v2581 = vpop.xlane.xlu0 %2580
        %2582 = vadd.xlane.f32.xlu0 %v2541
        %v2583 = vpop.xlane.xlu0 %2582
        %2584 = vadd.xlane.f32.xlu0 %v2542
        %v2585 = vpop.xlane.xlu0 %2584
        %2586 = vadd.xlane.f32.xlu0 %v2543
        %v2587 = vpop.xlane.xlu0 %2586
        %2588 = vadd.xlane.f32.xlu0 %v2544
        %v2589 = vpop.xlane.xlu0 %2588
        %2590 = vadd.xlane.f32.xlu0 %v2545
        %v2591 = vpop.xlane.xlu0 %2590
        %2592 = vadd.xlane.f32.xlu0 %v2546
        %v2593 = vpop.xlane.xlu0 %2592
        %2594 = vadd.xlane.f32.xlu0 %v2547
        %v2595 = vpop.xlane.xlu0 %2594
        %2596 = vadd.xlane.f32.xlu0 %v2548
        %v2597 = vpop.xlane.xlu0 %2596
        %2598 = vadd.xlane.f32.xlu0 %v2549
        %v2599 = vpop.xlane.xlu0 %2598
        %2600 = vadd.xlane.f32.xlu0 %v2550
        %v2601 = vpop.xlane.xlu0 %2600
        %2602 = vadd.xlane.f32.xlu0 %v2551
        %v2603 = vpop.xlane.xlu0 %2602
        %2604 = vadd.xlane.f32.xlu0 %v2552
        %v2605 = vpop.xlane.xlu0 %2604
        %2606 = vadd.xlane.f32.xlu0 %v2553
        %v2607 = vpop.xlane.xlu0 %2606
        %2608 = vadd.xlane.f32.xlu0 %v2554
        %v2609 = vpop.xlane.xlu0 %2608
        %2610 = vadd.xlane.f32.xlu0 %v2555
        %v2611 = vpop.xlane.xlu0 %2610
        %2612 = vadd.xlane.f32.xlu0 %v2556
        %v2613 = vpop.xlane.xlu0 %2612
        %2614 = vadd.xlane.f32.xlu0 %v2557
        %v2615 = vpop.xlane.xlu0 %2614
        %2616 = vadd.xlane.f32.xlu0 %v2558
        %v2617 = vpop.xlane.xlu0 %2616
        %2618 = vadd.xlane.f32.xlu0 %v2559
        %v2619 = vpop.xlane.xlu0 %2618
        %2620 = vadd.xlane.f32.xlu0 %v2560
        %v2621 = vpop.xlane.xlu0 %2620
        %2622 = vadd.xlane.f32.xlu0 %v2561
        %v2623 = vpop.xlane.xlu0 %2622
        %2624 = vadd.xlane.f32.xlu0 %v2562
        %v2625 = vpop.xlane.xlu0 %2624
        %2626 = vadd.xlane.f32.xlu0 %v2563
        %v2627 = vpop.xlane.xlu0 %2626
        %v2628 = vmul.f32 %v2469, 0.0078125
        %v2629 = vmul.f32 %v2471, 0.0078125
        %v2630 = vmul.f32 %v2473, 0.0078125
        %v2631 = vmul.f32 %v2475, 0.0078125
        %v2632 = vmul.f32 %v2477, 0.0078125
        %v2633 = vmul.f32 %v2479, 0.0078125
        %v2634 = vmul.f32 %v2481, 0.0078125
        %v2635 = vmul.f32 %v2483, 0.0078125
        %v2636 = vmul.f32 %v2485, 0.0078125
        %v2637 = vmul.f32 %v2487, 0.0078125
        %v2638 = vmul.f32 %v2489, 0.0078125
        %v2639 = vmul.f32 %v2491, 0.0078125
        %v2640 = vmul.f32 %v2493, 0.0078125
        %v2641 = vmul.f32 %v2495, 0.0078125
        %v2642 = vmul.f32 %v2497, 0.0078125
        %v2643 = vmul.f32 %v2499, 0.0078125
        %v2644 = vmul.f32 %v2501, 0.0078125
        %v2645 = vmul.f32 %v2503, 0.0078125
        %v2646 = vmul.f32 %v2505, 0.0078125
        %v2647 = vmul.f32 %v2507, 0.0078125
        %v2648 = vmul.f32 %v2509, 0.0078125
        %v2649 = vmul.f32 %v2511, 0.0078125
        %v2650 = vmul.f32 %v2513, 0.0078125
        %v2651 = vmul.f32 %v2515, 0.0078125
        %v2652 = vmul.f32 %v2517, 0.0078125
        %v2653 = vmul.f32 %v2519, 0.0078125
        %v2654 = vmul.f32 %v2521, 0.0078125
        %v2655 = vmul.f32 %v2523, 0.0078125
        %v2656 = vmul.f32 %v2525, 0.0078125
        %v2657 = vmul.f32 %v2527, 0.0078125
        %v2658 = vmul.f32 %v2529, 0.0078125
        %v2659 = vmul.f32 %v2531, 0.0078125
        %v2660 = vmul.f32 %v2565, 0.0078125
        %v2661 = vmul.f32 %v2567, 0.0078125
        %v2662 = vmul.f32 %v2569, 0.0078125
        %v2663 = vmul.f32 %v2571, 0.0078125
        %v2664 = vmul.f32 %v2573, 0.0078125
        %v2665 = vmul.f32 %v2575, 0.0078125
        %v2666 = vmul.f32 %v2577, 0.0078125
        %v2667 = vmul.f32 %v2579, 0.0078125
        %v2668 = vmul.f32 %v2581, 0.0078125
        %v2669 = vmul.f32 %v2583, 0.0078125
        %v2670 = vmul.f32 %v2585, 0.0078125
        %v2671 = vmul.f32 %v2587, 0.0078125
        %v2672 = vmul.f32 %v2589, 0.0078125
        %v2673 = vmul.f32 %v2591, 0.0078125
        %v2674 = vmul.f32 %v2593, 0.0078125
        %v2675 = vmul.f32 %v2595, 0.0078125
        %v2676 = vmul.f32 %v2597, 0.0078125
        %v2677 = vmul.f32 %v2599, 0.0078125
        %v2678 = vmul.f32 %v2601, 0.0078125
        %v2679 = vmul.f32 %v2603, 0.0078125
        %v2680 = vmul.f32 %v2605, 0.0078125
        %v2681 = vmul.f32 %v2607, 0.0078125
        %v2682 = vmul.f32 %v2609, 0.0078125
        %v2683 = vmul.f32 %v2611, 0.0078125
        %v2684 = vmul.f32 %v2613, 0.0078125
        %v2685 = vmul.f32 %v2615, 0.0078125
        %v2686 = vmul.f32 %v2617, 0.0078125
        %v2687 = vmul.f32 %v2619, 0.0078125
        %v2688 = vmul.f32 %v2621, 0.0078125
        %v2689 = vmul.f32 %v2623, 0.0078125
        %v2690 = vmul.f32 %v2625, 0.0078125
        %v2691 = vmul.f32 %v2627, 0.0078125
        %v2692 = vmul.f32 %v2628, %v2628
        %v2693 = vmul.f32 %v2629, %v2629
        %v2694 = vmul.f32 %v2630, %v2630
        %v2695 = vmul.f32 %v2631, %v2631
        %v2696 = vmul.f32 %v2632, %v2632
        %v2697 = vmul.f32 %v2633, %v2633
        %v2698 = vmul.f32 %v2634, %v2634
        %v2699 = vmul.f32 %v2635, %v2635
        %v2700 = vmul.f32 %v2636, %v2636
        %v2701 = vmul.f32 %v2637, %v2637
        %v2702 = vmul.f32 %v2638, %v2638
        %v2703 = vmul.f32 %v2639, %v2639
        %v2704 = vmul.f32 %v2640, %v2640
        %v2705 = vmul.f32 %v2641, %v2641
        %v2706 = vmul.f32 %v2642, %v2642
        %v2707 = vmul.f32 %v2643, %v2643
        %v2708 = vmul.f32 %v2644, %v2644
        %v2709 = vmul.f32 %v2645, %v2645
        %v2710 = vmul.f32 %v2646, %v2646
        %v2711 = vmul.f32 %v2647, %v2647
        %v2712 = vmul.f32 %v2648, %v2648
        %v2713 = vmul.f32 %v2649, %v2649
        %v2714 = vmul.f32 %v2650, %v2650
        %v2715 = vmul.f32 %v2651, %v2651
        %v2716 = vmul.f32 %v2652, %v2652
        %v2717 = vmul.f32 %v2653, %v2653
        %v2718 = vmul.f32 %v2654, %v2654
        %v2719 = vmul.f32 %v2655, %v2655
        %v2720 = vmul.f32 %v2656, %v2656
        %v2721 = vmul.f32 %v2657, %v2657
        %v2722 = vmul.f32 %v2658, %v2658
        %v2723 = vmul.f32 %v2659, %v2659
        %v2724 = vsub.f32 %v2660, %v2692
        %v2725 = vsub.f32 %v2661, %v2693
        %v2726 = vsub.f32 %v2662, %v2694
        %v2727 = vsub.f32 %v2663, %v2695
        %v2728 = vsub.f32 %v2664, %v2696
        %v2729 = vsub.f32 %v2665, %v2697
        %v2730 = vsub.f32 %v2666, %v2698
        %v2731 = vsub.f32 %v2667, %v2699
        %v2732 = vsub.f32 %v2668, %v2700
        %v2733 = vsub.f32 %v2669, %v2701
        %v2734 = vsub.f32 %v2670, %v2702
        %v2735 = vsub.f32 %v2671, %v2703
        %v2736 = vsub.f32 %v2672, %v2704
        %v2737 = vsub.f32 %v2673, %v2705
        %v2738 = vsub.f32 %v2674, %v2706
        %v2739 = vsub.f32 %v2675, %v2707
        %v2740 = vsub.f32 %v2676, %v2708
        %v2741 = vsub.f32 %v2677, %v2709
        %v2742 = vsub.f32 %v2678, %v2710
        %v2743 = vsub.f32 %v2679, %v2711
        %v2744 = vsub.f32 %v2680, %v2712
        %v2745 = vsub.f32 %v2681, %v2713
        %v2746 = vsub.f32 %v2682, %v2714
        %v2747 = vsub.f32 %v2683, %v2715
        %v2748 = vsub.f32 %v2684, %v2716
        %v2749 = vsub.f32 %v2685, %v2717
        %v2750 = vsub.f32 %v2686, %v2718
        %v2751 = vsub.f32 %v2687, %v2719
        %v2752 = vsub.f32 %v2688, %v2720
        %v2753 = vsub.f32 %v2689, %v2721
        %v2754 = vsub.f32 %v2690, %v2722
        %v2755 = vsub.f32 %v2691, %v2723
        %v2756 = vmax.f32 %v2724, 0.0
        %v2757 = vmax.f32 %v2725, 0.0
        %v2758 = vmax.f32 %v2726, 0.0
        %v2759 = vmax.f32 %v2727, 0.0
        %v2760 = vmax.f32 %v2728, 0.0
        %v2761 = vmax.f32 %v2729, 0.0
        %v2762 = vmax.f32 %v2730, 0.0
        %v2763 = vmax.f32 %v2731, 0.0
        %v2764 = vmax.f32 %v2732, 0.0
        %v2765 = vmax.f32 %v2733, 0.0
        %v2766 = vmax.f32 %v2734, 0.0
        %v2767 = vmax.f32 %v2735, 0.0
        %v2768 = vmax.f32 %v2736, 0.0
        %v2769 = vmax.f32 %v2737, 0.0
        %v2770 = vmax.f32 %v2738, 0.0
        %v2771 = vmax.f32 %v2739, 0.0
        %v2772 = vmax.f32 %v2740, 0.0
        %v2773 = vmax.f32 %v2741, 0.0
        %v2774 = vmax.f32 %v2742, 0.0
        %v2775 = vmax.f32 %v2743, 0.0
        %v2776 = vmax.f32 %v2744, 0.0
        %v2777 = vmax.f32 %v2745, 0.0
        %v2778 = vmax.f32 %v2746, 0.0
        %v2779 = vmax.f32 %v2747, 0.0
        %v2780 = vmax.f32 %v2748, 0.0
        %v2781 = vmax.f32 %v2749, 0.0
        %v2782 = vmax.f32 %v2750, 0.0
        %v2783 = vmax.f32 %v2751, 0.0
        %v2784 = vmax.f32 %v2752, 0.0
        %v2785 = vmax.f32 %v2753, 0.0
        %v2786 = vmax.f32 %v2754, 0.0
        %v2787 = vmax.f32 %v2755, 0.0
        %v2788 = vsub.f32 %v2340, %v2628
        %v2789 = vsub.f32 %v2343, %v2629
        %v2790 = vsub.f32 %v2348, %v2630
        %v2791 = vsub.f32 %v2351, %v2631
        %v2792 = vsub.f32 %v2356, %v2632
        %v2793 = vsub.f32 %v2359, %v2633
        %v2794 = vsub.f32 %v2364, %v2634
        %v2795 = vsub.f32 %v2367, %v2635
        %v2796 = vsub.f32 %v2372, %v2636
        %v2797 = vsub.f32 %v2375, %v2637
        %v2798 = vsub.f32 %v2380, %v2638
        %v2799 = vsub.f32 %v2383, %v2639
        %v2800 = vsub.f32 %v2388, %v2640
        %v2801 = vsub.f32 %v2391, %v2641
        %v2802 = vsub.f32 %v2396, %v2642
        %v2803 = vsub.f32 %v2399, %v2643
        %v2804 = vsub.f32 %v2404, %v2644
        %v2805 = vsub.f32 %v2407, %v2645
        %v2806 = vsub.f32 %v2412, %v2646
        %v2807 = vsub.f32 %v2415, %v2647
        %v2808 = vsub.f32 %v2420, %v2648
        %v2809 = vsub.f32 %v2423, %v2649
        %v2810 = vsub.f32 %v2428, %v2650
        %v2811 = vsub.f32 %v2431, %v2651
        %v2812 = vsub.f32 %v2436, %v2652
        %v2813 = vsub.f32 %v2439, %v2653
        %v2814 = vsub.f32 %v2444, %v2654
        %v2815 = vsub.f32 %v2447, %v2655
        %v2816 = vsub.f32 %v2452, %v2656
        %v2817 = vsub.f32 %v2455, %v2657
        %v2818 = vsub.f32 %v2460, %v2658
        %v2819 = vsub.f32 %v2463, %v2659
        %v2820 = vadd.f32 %v2756, 1e-05
        %v2821 = vadd.f32 %v2757, 1e-05
        %v2822 = vadd.f32 %v2758, 1e-05
        %v2823 = vadd.f32 %v2759, 1e-05
        %v2824 = vadd.f32 %v2760, 1e-05
        %v2825 = vadd.f32 %v2761, 1e-05
        %v2826 = vadd.f32 %v2762, 1e-05
        %v2827 = vadd.f32 %v2763, 1e-05
        %v2828 = vadd.f32 %v2764, 1e-05
        %v2829 = vadd.f32 %v2765, 1e-05
        %v2830 = vadd.f32 %v2766, 1e-05
        %v2831 = vadd.f32 %v2767, 1e-05
        %v2832 = vadd.f32 %v2768, 1e-05
        %v2833 = vadd.f32 %v2769, 1e-05
        %v2834 = vadd.f32 %v2770, 1e-05
        %v2835 = vadd.f32 %v2771, 1e-05
        %v2836 = vadd.f32 %v2772, 1e-05
        %v2837 = vadd.f32 %v2773, 1e-05
        %v2838 = vadd.f32 %v2774, 1e-05
        %v2839 = vadd.f32 %v2775, 1e-05
        %v2840 = vadd.f32 %v2776, 1e-05
        %v2841 = vadd.f32 %v2777, 1e-05
        %v2842 = vadd.f32 %v2778, 1e-05
        %v2843 = vadd.f32 %v2779, 1e-05
        %v2844 = vadd.f32 %v2780, 1e-05
        %v2845 = vadd.f32 %v2781, 1e-05
        %v2846 = vadd.f32 %v2782, 1e-05
        %v2847 = vadd.f32 %v2783, 1e-05
        %v2848 = vadd.f32 %v2784, 1e-05
        %v2849 = vadd.f32 %v2785, 1e-05
        %v2850 = vadd.f32 %v2786, 1e-05
        %v2851 = vadd.f32 %v2787, 1e-05
        %v2852 = vrsqrt.pop %v2820
        %v2853 = vrsqrt.pop %v2821
        %v2854 = vrsqrt.pop %v2822
        %v2855 = vrsqrt.pop %v2823
        %v2856 = vrsqrt.pop %v2824
        %v2857 = vrsqrt.pop %v2825
        %v2858 = vrsqrt.pop %v2826
        %v2859 = vrsqrt.pop %v2827
        %v2860 = vrsqrt.pop %v2828
        %v2861 = vrsqrt.pop %v2829
        %v2862 = vrsqrt.pop %v2830
        %v2863 = vrsqrt.pop %v2831
        %v2864 = vrsqrt.pop %v2832
        %v2865 = vrsqrt.pop %v2833
        %v2866 = vrsqrt.pop %v2834
        %v2867 = vrsqrt.pop %v2835
        %v2868 = vrsqrt.pop %v2836
        %v2869 = vrsqrt.pop %v2837
        %v2870 = vrsqrt.pop %v2838
        %v2871 = vrsqrt.pop %v2839
        %v2872 = vrsqrt.pop %v2840
        %v2873 = vrsqrt.pop %v2841
        %v2874 = vrsqrt.pop %v2842
        %v2875 = vrsqrt.pop %v2843
        %v2876 = vrsqrt.pop %v2844
        %v2877 = vrsqrt.pop %v2845
        %v2878 = vrsqrt.pop %v2846
        %v2879 = vrsqrt.pop %v2847
        %v2880 = vrsqrt.pop %v2848
        %v2881 = vrsqrt.pop %v2849
        %v2882 = vrsqrt.pop %v2850
        %v2883 = vrsqrt.pop %v2851
        %v2884 = vmul.f32 %v2788, %v2852
        %v2885 = vmul.f32 %v2789, %v2853
        %v2886 = vmul.f32 %v2790, %v2854
        %v2887 = vmul.f32 %v2791, %v2855
        %v2888 = vmul.f32 %v2792, %v2856
        %v2889 = vmul.f32 %v2793, %v2857
        %v2890 = vmul.f32 %v2794, %v2858
        %v2891 = vmul.f32 %v2795, %v2859
        %v2892 = vmul.f32 %v2796, %v2860
        %v2893 = vmul.f32 %v2797, %v2861
        %v2894 = vmul.f32 %v2798, %v2862
        %v2895 = vmul.f32 %v2799, %v2863
        %v2896 = vmul.f32 %v2800, %v2864
        %v2897 = vmul.f32 %v2801, %v2865
        %v2898 = vmul.f32 %v2802, %v2866
        %v2899 = vmul.f32 %v2803, %v2867
        %v2900 = vmul.f32 %v2804, %v2868
        %v2901 = vmul.f32 %v2805, %v2869
        %v2902 = vmul.f32 %v2806, %v2870
        %v2903 = vmul.f32 %v2807, %v2871
        %v2904 = vmul.f32 %v2808, %v2872
        %v2905 = vmul.f32 %v2809, %v2873
        %v2906 = vmul.f32 %v2810, %v2874
        %v2907 = vmul.f32 %v2811, %v2875
        %v2908 = vmul.f32 %v2812, %v2876
        %v2909 = vmul.f32 %v2813, %v2877
        %v2910 = vmul.f32 %v2814, %v2878
        %v2911 = vmul.f32 %v2815, %v2879
        %v2912 = vmul.f32 %v2816, %v2880
        %v2913 = vmul.f32 %v2817, %v2881
        %v2914 = vmul.f32 %v2818, %v2882
        %v2915 = vmul.f32 %v2819, %v2883
        %v2917 = vlaneseq
        %v2918 = vshrl.u32 %v2917, 7
        %v2919 = vsub.s32 0, %v2918
        %v2920 = vrot.slane %v2466, %v2919
        %v2922 = vmul.f32 %v2884, %v2920
        %v2923 = vmul.f32 %v2885, %v2920
        %v2924 = vmul.f32 %v2886, %v2920
        %v2925 = vmul.f32 %v2887, %v2920
        %v2926 = vmul.f32 %v2888, %v2920
        %v2927 = vmul.f32 %v2889, %v2920
        %v2928 = vmul.f32 %v2890, %v2920
        %v2929 = vmul.f32 %v2891, %v2920
        %v2930 = vmul.f32 %v2892, %v2920
        %v2931 = vmul.f32 %v2893, %v2920
        %v2932 = vmul.f32 %v2894, %v2920
        %v2933 = vmul.f32 %v2895, %v2920
        %v2934 = vmul.f32 %v2896, %v2920
        %v2935 = vmul.f32 %v2897, %v2920
        %v2936 = vmul.f32 %v2898, %v2920
        %v2937 = vmul.f32 %v2899, %v2920
        %v2938 = vmul.f32 %v2900, %v2920
        %v2939 = vmul.f32 %v2901, %v2920
        %v2940 = vmul.f32 %v2902, %v2920
        %v2941 = vmul.f32 %v2903, %v2920
        %v2942 = vmul.f32 %v2904, %v2920
        %v2943 = vmul.f32 %v2905, %v2920
        %v2944 = vmul.f32 %v2906, %v2920
        %v2945 = vmul.f32 %v2907, %v2920
        %v2946 = vmul.f32 %v2908, %v2920
        %v2947 = vmul.f32 %v2909, %v2920
        %v2948 = vmul.f32 %v2910, %v2920
        %v2949 = vmul.f32 %v2911, %v2920
        %v2950 = vmul.f32 %v2912, %v2920
        %v2951 = vmul.f32 %v2913, %v2920
        %v2952 = vmul.f32 %v2914, %v2920
        %v2953 = vmul.f32 %v2915, %v2920
        %v2955 = vlaneseq
        %v2956 = vshrl.u32 %v2955, 7
        %v2957 = vsub.s32 0, %v2956
        %v2958 = vrot.slane %v2467, %v2957
        %v2960 = vadd.f32 %v2922, %v2958
        %v2961 = vadd.f32 %v2923, %v2958
        %v2962 = vadd.f32 %v2924, %v2958
        %v2963 = vadd.f32 %v2925, %v2958
        %v2964 = vadd.f32 %v2926, %v2958
        %v2965 = vadd.f32 %v2927, %v2958
        %v2966 = vadd.f32 %v2928, %v2958
        %v2967 = vadd.f32 %v2929, %v2958
        %v2968 = vadd.f32 %v2930, %v2958
        %v2969 = vadd.f32 %v2931, %v2958
        %v2970 = vadd.f32 %v2932, %v2958
        %v2971 = vadd.f32 %v2933, %v2958
        %v2972 = vadd.f32 %v2934, %v2958
        %v2973 = vadd.f32 %v2935, %v2958
        %v2974 = vadd.f32 %v2936, %v2958
        %v2975 = vadd.f32 %v2937, %v2958
        %v2976 = vadd.f32 %v2938, %v2958
        %v2977 = vadd.f32 %v2939, %v2958
        %v2978 = vadd.f32 %v2940, %v2958
        %v2979 = vadd.f32 %v2941, %v2958
        %v2980 = vadd.f32 %v2942, %v2958
        %v2981 = vadd.f32 %v2943, %v2958
        %v2982 = vadd.f32 %v2944, %v2958
        %v2983 = vadd.f32 %v2945, %v2958
        %v2984 = vadd.f32 %v2946, %v2958
        %v2985 = vadd.f32 %v2947, %v2958
        %v2986 = vadd.f32 %v2948, %v2958
        %v2987 = vadd.f32 %v2949, %v2958
        %v2988 = vadd.f32 %v2950, %v2958
        %v2989 = vadd.f32 %v2951, %v2958
        %v2990 = vadd.f32 %v2952, %v2958
        %v2991 = vadd.f32 %v2953, %v2958
        %v2992 = vmax.f32 %v2960, 0.0
        %v2993 = vmax.f32 %v2961, 0.0
        %v2994 = vmax.f32 %v2962, 0.0
        %v2995 = vmax.f32 %v2963, 0.0
        %v2996 = vmax.f32 %v2964, 0.0
        %v2997 = vmax.f32 %v2965, 0.0
        %v2998 = vmax.f32 %v2966, 0.0
        %v2999 = vmax.f32 %v2967, 0.0
        %v3000 = vmax.f32 %v2968, 0.0
        %v3001 = vmax.f32 %v2969, 0.0
        %v3002 = vmax.f32 %v2970, 0.0
        %v3003 = vmax.f32 %v2971, 0.0
        %v3004 = vmax.f32 %v2972, 0.0
        %v3005 = vmax.f32 %v2973, 0.0
        %v3006 = vmax.f32 %v2974, 0.0
        %v3007 = vmax.f32 %v2975, 0.0
        %v3008 = vmax.f32 %v2976, 0.0
        %v3009 = vmax.f32 %v2977, 0.0
        %v3010 = vmax.f32 %v2978, 0.0
        %v3011 = vmax.f32 %v2979, 0.0
        %v3012 = vmax.f32 %v2980, 0.0
        %v3013 = vmax.f32 %v2981, 0.0
        %v3014 = vmax.f32 %v2982, 0.0
        %v3015 = vmax.f32 %v2983, 0.0
        %v3016 = vmax.f32 %v2984, 0.0
        %v3017 = vmax.f32 %v2985, 0.0
        %v3018 = vmax.f32 %v2986, 0.0
        %v3019 = vmax.f32 %v2987, 0.0
        %v3020 = vmax.f32 %v2988, 0.0
        %v3021 = vmax.f32 %v2989, 0.0
        %v3022 = vmax.f32 %v2990, 0.0
        %v3023 = vmax.f32 %v2991, 0.0
        %v3024 = vpack.c.bf16 %v2993, %v2992
        %v3025 = vpack.c.bf16 %v2995, %v2994
        %v3026 = vpack.c.bf16 %v2997, %v2996
        %v3027 = vpack.c.bf16 %v2999, %v2998
        %v3028 = vpack.c.bf16 %v3001, %v3000
        %v3029 = vpack.c.bf16 %v3003, %v3002
        %v3030 = vpack.c.bf16 %v3005, %v3004
        %v3031 = vpack.c.bf16 %v3007, %v3006
        %v3032 = vpack.c.bf16 %v3009, %v3008
        %v3033 = vpack.c.bf16 %v3011, %v3010
        %v3034 = vpack.c.bf16 %v3013, %v3012
        %v3035 = vpack.c.bf16 %v3015, %v3014
        %v3036 = vpack.c.bf16 %v3017, %v3016
        %v3037 = vpack.c.bf16 %v3019, %v3018
        %v3038 = vpack.c.bf16 %v3021, %v3020
        %v3039 = vpack.c.bf16 %v3023, %v3022
        %v3040 = vld [vmem:[#allocation10] sm:$0xf]
        %v3041 = vld [vmem:[#allocation10 + $0x4] sm:$0xf]
        %v3042 = vld [vmem:[#allocation10 + $0x8] sm:$0xf]
        %v3043 = vld [vmem:[#allocation10 + $0xc] sm:$0xf]
        %v3044 = vld [vmem:[#allocation10 + $0x10] sm:$0xf]
        %v3045 = vld [vmem:[#allocation10 + $0x14] sm:$0xf]
        %v3046 = vld [vmem:[#allocation10 + $0x18] sm:$0xf]
        %v3047 = vld [vmem:[#allocation10 + $0x1c] sm:$0xf]
        %v3048 = vld [vmem:[#allocation10 + $0x20] sm:$0xf]
        %v3049 = vld [vmem:[#allocation10 + $0x24] sm:$0xf]
        %v3050 = vld [vmem:[#allocation10 + $0x28] sm:$0xf]
        %v3051 = vld [vmem:[#allocation10 + $0x2c] sm:$0xf]
        %v3052 = vld [vmem:[#allocation10 + $0x30] sm:$0xf]
        %v3053 = vld [vmem:[#allocation10 + $0x34] sm:$0xf]
        %v3054 = vld [vmem:[#allocation10 + $0x38] sm:$0xf]
        %v3055 = vld [vmem:[#allocation10 + $0x3c] sm:$0xf]
        %v3056 = vld [vmem:[#allocation10 + $0x40] sm:$0xf]
        %v3057 = vld [vmem:[#allocation10 + $0x44] sm:$0xf]
        %v3058 = vld [vmem:[#allocation10 + $0x48] sm:$0xf]
        %v3059 = vld [vmem:[#allocation10 + $0x4c] sm:$0xf]
        %v3060 = vld [vmem:[#allocation10 + $0x50] sm:$0xf]
        %v3061 = vld [vmem:[#allocation10 + $0x54] sm:$0xf]
        %v3062 = vld [vmem:[#allocation10 + $0x58] sm:$0xf]
        %v3063 = vld [vmem:[#allocation10 + $0x5c] sm:$0xf]
        %v3064 = vld [vmem:[#allocation10 + $0x60] sm:$0xf]
        %v3065 = vld [vmem:[#allocation10 + $0x64] sm:$0xf]
        %v3066 = vld [vmem:[#allocation10 + $0x68] sm:$0xf]
        %v3067 = vld [vmem:[#allocation10 + $0x6c] sm:$0xf]
        %v3068 = vld [vmem:[#allocation10 + $0x70] sm:$0xf]
        %v3069 = vld [vmem:[#allocation10 + $0x74] sm:$0xf]
        %v3070 = vld [vmem:[#allocation10 + $0x78] sm:$0xf]
        %v3071 = vld [vmem:[#allocation10 + $0x7c] sm:$0xf]
        %v3072 = vld [vmem:[%s14] sm:$0x1]
        %v3074 = vlaneseq
        %v3075 = vshrl.u32 %v3074, 7
        %v3076 = vsub.s32 0, %v3075
        %v3077 = vrot.slane %v3072, %v3076
        %v3111 = vunpack.c.l.b16 %v3040
        %v3112 = vunpack.c.l.b16 %v3041
        %v3113 = vunpack.c.l.b16 %v3042
        %v3114 = vunpack.c.l.b16 %v3043
        %v3115 = vunpack.c.l.b16 %v3044
        %v3116 = vunpack.c.l.b16 %v3045
        %v3117 = vunpack.c.l.b16 %v3046
        %v3118 = vunpack.c.l.b16 %v3047
        %v3119 = vunpack.c.l.b16 %v3048
        %v3120 = vunpack.c.l.b16 %v3049
        %v3121 = vunpack.c.l.b16 %v3050
        %v3122 = vunpack.c.l.b16 %v3051
        %v3123 = vunpack.c.l.b16 %v3052
        %v3124 = vunpack.c.l.b16 %v3053
        %v3125 = vunpack.c.l.b16 %v3054
        %v3126 = vunpack.c.l.b16 %v3055
        %v3127 = vunpack.c.l.b16 %v3056
        %v3128 = vunpack.c.l.b16 %v3057
        %v3129 = vunpack.c.l.b16 %v3058
        %v3130 = vunpack.c.l.b16 %v3059
        %v3131 = vunpack.c.l.b16 %v3060
        %v3132 = vunpack.c.l.b16 %v3061
        %v3133 = vunpack.c.l.b16 %v3062
        %v3134 = vunpack.c.l.b16 %v3063
        %v3135 = vunpack.c.l.b16 %v3064
        %v3136 = vunpack.c.l.b16 %v3065
        %v3137 = vunpack.c.l.b16 %v3066
        %v3138 = vunpack.c.l.b16 %v3067
        %v3139 = vunpack.c.l.b16 %v3068
        %v3140 = vunpack.c.l.b16 %v3069
        %v3141 = vunpack.c.l.b16 %v3070
        %v3142 = vunpack.c.l.b16 %v3071
        %v3143 = vpack.c.b16 %v3112, %v3111
        %v3144 = vpack.c.b16 %v3114, %v3113
        %v3145 = vpack.c.b16 %v3116, %v3115
        %v3146 = vpack.c.b16 %v3118, %v3117
        %v3147 = vpack.c.b16 %v3120, %v3119
        %v3148 = vpack.c.b16 %v3122, %v3121
        %v3149 = vpack.c.b16 %v3124, %v3123
        %v3150 = vpack.c.b16 %v3126, %v3125
        %v3151 = vpack.c.b16 %v3128, %v3127
        %v3152 = vpack.c.b16 %v3130, %v3129
        %v3153 = vpack.c.b16 %v3132, %v3131
        %v3154 = vpack.c.b16 %v3134, %v3133
        %v3155 = vpack.c.b16 %v3136, %v3135
        %v3156 = vpack.c.b16 %v3138, %v3137
        %v3157 = vpack.c.b16 %v3140, %v3139
        %v3158 = vpack.c.b16 %v3142, %v3141
        %3175 = vmatprep.subr.bf16.mxu0 0
        %3176 = vmatpush1.bf16.msra.mxu0 %v3143
        %3177 = vmatprep.subr.bf16.mxu0 0
        %3178 = vmatpush1.bf16.msra.mxu0 %v3144
        %3179 = vmatprep.subr.bf16.mxu0 0
        %3180 = vmatpush1.bf16.msra.mxu0 %v3145
        %3181 = vmatprep.subr.bf16.mxu0 0
        %3182 = vmatpush1.bf16.msra.mxu0 %v3146
        %3183 = vmatprep.subr.bf16.mxu0 0
        %3184 = vmatpush1.bf16.msra.mxu0 %v3147
        %3185 = vmatprep.subr.bf16.mxu0 0
        %3186 = vmatpush1.bf16.msra.mxu0 %v3148
        %3187 = vmatprep.subr.bf16.mxu0 0
        %3188 = vmatpush1.bf16.msra.mxu0 %v3149
        %3189 = vmatprep.subr.bf16.mxu0 0
        %3190 = vmatpush1.bf16.msra.mxu0 %v3150
        %3191 = vmatprep.subr.bf16.mxu0 0
        %3192 = vmatpush1.bf16.msra.mxu0 %v3151
        %3193 = vmatprep.subr.bf16.mxu0 0
        %3194 = vmatpush1.bf16.msra.mxu0 %v3152
        %3195 = vmatprep.subr.bf16.mxu0 0
        %3196 = vmatpush1.bf16.msra.mxu0 %v3153
        %3197 = vmatprep.subr.bf16.mxu0 0
        %3198 = vmatpush1.bf16.msra.mxu0 %v3154
        %3199 = vmatprep.subr.bf16.mxu0 0
        %3200 = vmatpush1.bf16.msra.mxu0 %v3155
        %3201 = vmatprep.subr.bf16.mxu0 0
        %3202 = vmatpush1.bf16.msra.mxu0 %v3156
        %3203 = vmatprep.subr.bf16.mxu0 0
        %3204 = vmatpush1.bf16.msra.mxu0 %v3157
        %3205 = vmatprep.subr.bf16.mxu0 0
        %3206 = vmatpush1.bf16.msra.mxu0 %v3158
        %3207 = vmatprep.mubr.bf16.mxu0 %v606
        %3208 = vmatmul.mubr.bf16.gmra.mrb[0].mxu0 %v3024
        %v3209 = vpop.f32.mrb[0].mxu0
        %v3210 = vadd.f32 %v3077, %v3209
        %v3211 = vpop.f32.mrb[0].mxu0
        %v3212 = vpop.f32.mrb[0].mxu0
        %v3213 = vadd.f32 %v3077, %v3212
        %v3214 = vpop.f32.mrb[0].mxu0
        %3215 = vmatprep.mubr.bf16.mxu0 %v607
        %3216 = vmatmul.mubr.bf16.gmra.mrb[0].mxu0 %v3025
        %v3217 = vpop.f32.mrb[0].mxu0
        %v3218 = vadd.f32 %v3077, %v3217
        %v3219 = vpop.f32.mrb[0].mxu0
        %v3220 = vpop.f32.mrb[0].mxu0
        %v3221 = vadd.f32 %v3077, %v3220
        %v3222 = vpop.f32.mrb[0].mxu0
        %3223 = vmatprep.mubr.bf16.mxu0 %v608
        %3224 = vmatmul.mubr.bf16.gmra.mrb[0].mxu0 %v3026
        %v3225 = vpop.f32.mrb[0].mxu0
        %v3226 = vadd.f32 %v3077, %v3225
        %v3227 = vpop.f32.mrb[0].mxu0
        %v3228 = vpop.f32.mrb[0].mxu0
        %v3229 = vadd.f32 %v3077, %v3228
        %v3230 = vpop.f32.mrb[0].mxu0
        %3231 = vmatprep.mubr.bf16.mxu0 %v609
        %3232 = vmatmul.mubr.bf16.gmra.mrb[0].mxu0 %v3027
        %v3233 = vpop.f32.mrb[0].mxu0
        %v3234 = vadd.f32 %v3077, %v3233
        %v3235 = vpop.f32.mrb[0].mxu0
        %v3236 = vpop.f32.mrb[0].mxu0
        %v3237 = vadd.f32 %v3077, %v3236
        %v3238 = vpop.f32.mrb[0].mxu0
        %3239 = vmatprep.mubr.bf16.mxu0 %v610
        %3240 = vmatmul.mubr.bf16.gmra.mrb[0].mxu0 %v3028
        %v3241 = vpop.f32.mrb[0].mxu0
        %v3242 = vadd.f32 %v3077, %v3241
        %v3243 = vpop.f32.mrb[0].mxu0
        %v3244 = vpop.f32.mrb[0].mxu0
        %v3245 = vadd.f32 %v3077, %v3244
        %v3246 = vpop.f32.mrb[0].mxu0
        %3247 = vmatprep.mubr.bf16.mxu0 %v611
        %3248 = vmatmul.mubr.bf16.gmra.mrb[0].mxu0 %v3029
        %v3249 = vpop.f32.mrb[0].mxu0
        %v3250 = vadd.f32 %v3077, %v3249
        %v3251 = vpop.f32.mrb[0].mxu0
        %v3252 = vpop.f32.mrb[0].mxu0
        %v3253 = vadd.f32 %v3077, %v3252
        %v3254 = vpop.f32.mrb[0].mxu0
        %3255 = vmatprep.mubr.bf16.mxu0 %v612
        %3256 = vmatmul.mubr.bf16.gmra.mrb[0].mxu0 %v3030
        %v3257 = vpop.f32.mrb[0].mxu0
        %v3258 = vadd.f32 %v3077, %v3257
        %v3259 = vpop.f32.mrb[0].mxu0
        %v3260 = vpop.f32.mrb[0].mxu0
        %v3261 = vadd.f32 %v3077, %v3260
        %v3262 = vpop.f32.mrb[0].mxu0
        %3263 = vmatprep.mubr.bf16.mxu0 %v613
        %3264 = vmatmul.mubr.bf16.gmra.mrb[0].mxu0 %v3031
        %v3265 = vpop.f32.mrb[0].mxu0
        %v3266 = vadd.f32 %v3077, %v3265
        %v3267 = vpop.f32.mrb[0].mxu0
        %v3268 = vpop.f32.mrb[0].mxu0
        %v3269 = vadd.f32 %v3077, %v3268
        %v3270 = vpop.f32.mrb[0].mxu0
        %3271 = vmatprep.mubr.bf16.mxu0 %v614
        %3272 = vmatmul.mubr.bf16.gmra.mrb[0].mxu0 %v3032
        %v3273 = vpop.f32.mrb[0].mxu0
        %v3274 = vadd.f32 %v3077, %v3273
        %v3275 = vpop.f32.mrb[0].mxu0
        %v3276 = vpop.f32.mrb[0].mxu0
        %v3277 = vadd.f32 %v3077, %v3276
        %v3278 = vpop.f32.mrb[0].mxu0
        %3279 = vmatprep.mubr.bf16.mxu0 %v615
        %3280 = vmatmul.mubr.bf16.gmra.mrb[0].mxu0 %v3033
        %v3281 = vpop.f32.mrb[0].mxu0
        %v3282 = vadd.f32 %v3077, %v3281
        %v3283 = vpop.f32.mrb[0].mxu0
        %v3284 = vpop.f32.mrb[0].mxu0
        %v3285 = vadd.f32 %v3077, %v3284
        %v3286 = vpop.f32.mrb[0].mxu0
        %3287 = vmatprep.mubr.bf16.mxu0 %v616
        %3288 = vmatmul.mubr.bf16.gmra.mrb[0].mxu0 %v3034
        %v3289 = vpop.f32.mrb[0].mxu0
        %v3290 = vadd.f32 %v3077, %v3289
        %v3291 = vpop.f32.mrb[0].mxu0
        %v3292 = vpop.f32.mrb[0].mxu0
        %v3293 = vadd.f32 %v3077, %v3292
        %v3294 = vpop.f32.mrb[0].mxu0
        %3295 = vmatprep.mubr.bf16.mxu0 %v617
        %3296 = vmatmul.mubr.bf16.gmra.mrb[0].mxu0 %v3035
        %v3297 = vpop.f32.mrb[0].mxu0
        %v3298 = vadd.f32 %v3077, %v3297
        %v3299 = vpop.f32.mrb[0].mxu0
        %v3300 = vpop.f32.mrb[0].mxu0
        %v3301 = vadd.f32 %v3077, %v3300
        %v3302 = vpop.f32.mrb[0].mxu0
        %3303 = vmatprep.mubr.bf16.mxu0 %v618
        %3304 = vmatmul.mubr.bf16.gmra.mrb[0].mxu0 %v3036
        %v3305 = vpop.f32.mrb[0].mxu0
        %v3306 = vadd.f32 %v3077, %v3305
        %v3307 = vpop.f32.mrb[0].mxu0
        %v3308 = vpop.f32.mrb[0].mxu0
        %v3309 = vadd.f32 %v3077, %v3308
        %v3310 = vpop.f32.mrb[0].mxu0
        %3311 = vmatprep.mubr.bf16.mxu0 %v619
        %3312 = vmatmul.mubr.bf16.gmra.mrb[0].mxu0 %v3037
        %v3313 = vpop.f32.mrb[0].mxu0
        %v3314 = vadd.f32 %v3077, %v3313
        %v3315 = vpop.f32.mrb[0].mxu0
        %v3316 = vpop.f32.mrb[0].mxu0
        %v3317 = vadd.f32 %v3077, %v3316
        %v3318 = vpop.f32.mrb[0].mxu0
        %3319 = vmatprep.mubr.bf16.mxu0 %v620
        %3320 = vmatmul.mubr.bf16.gmra.mrb[0].mxu0 %v3038
        %v3321 = vpop.f32.mrb[0].mxu0
        %v3322 = vadd.f32 %v3077, %v3321
        %v3323 = vpop.f32.mrb[0].mxu0
        %v3324 = vpop.f32.mrb[0].mxu0
        %v3325 = vadd.f32 %v3077, %v3324
        %v3326 = vpop.f32.mrb[0].mxu0
        %3327 = vmatprep.mubr.bf16.mxu0 %v621
        %3328 = vmatmul.mubr.bf16.gmra.mrb[0].mxu0 %v3039
        %v3329 = vpop.f32.mrb[0].mxu0
        %v3330 = vadd.f32 %v3077, %v3329
        %v3331 = vpop.f32.mrb[0].mxu0
        %v3332 = vpop.f32.mrb[0].mxu0
        %v3333 = vadd.f32 %v3077, %v3332
        %v3334 = vpop.f32.mrb[0].mxu0
        %3335 = vdwg.mxu0
        %3336 = vst [vmem:[%s570] sm:$0xff] %v3210
        %3337 = vst [vmem:[%s570 + $0x8] sm:$0xff] %v3213
        %3338 = vst [vmem:[%s570 + $0x10] sm:$0xff] %v3218
        %3339 = vst [vmem:[%s570 + $0x18] sm:$0xff] %v3221
        %3340 = vst [vmem:[%s570 + $0x20] sm:$0xff] %v3226
        %3341 = vst [vmem:[%s570 + $0x28] sm:$0xff] %v3229
        %3342 = vst [vmem:[%s570 + $0x30] sm:$0xff] %v3234
        %3343 = vst [vmem:[%s570 + $0x38] sm:$0xff] %v3237
        %3344 = vst [vmem:[%s570 + $0x40] sm:$0xff] %v3242
        %3345 = vst [vmem:[%s570 + $0x48] sm:$0xff] %v3245
        %3346 = vst [vmem:[%s570 + $0x50] sm:$0xff] %v3250
        %3347 = vst [vmem:[%s570 + $0x58] sm:$0xff] %v3253
        %3348 = vst [vmem:[%s570 + $0x60] sm:$0xff] %v3258
        %3349 = vst [vmem:[%s570 + $0x68] sm:$0xff] %v3261
        %3350 = vst [vmem:[%s570 + $0x70] sm:$0xff] %v3266
        %3351 = vst [vmem:[%s570 + $0x78] sm:$0xff] %v3269
        %3352 = vst [vmem:[%s570 + $0x80] sm:$0xff] %v3274
        %3353 = vst [vmem:[%s570 + $0x88] sm:$0xff] %v3277
        %3354 = vst [vmem:[%s570 + $0x90] sm:$0xff] %v3282
        %3355 = vst [vmem:[%s570 + $0x98] sm:$0xff] %v3285
        %3356 = vst [vmem:[%s570 + $0xa0] sm:$0xff] %v3290
        %3357 = vst [vmem:[%s570 + $0xa8] sm:$0xff] %v3293
        %3358 = vst [vmem:[%s570 + $0xb0] sm:$0xff] %v3298
        %3359 = vst [vmem:[%s570 + $0xb8] sm:$0xff] %v3301
        %3360 = vst [vmem:[%s570 + $0xc0] sm:$0xff] %v3306
        %3361 = vst [vmem:[%s570 + $0xc8] sm:$0xff] %v3309
        %3362 = vst [vmem:[%s570 + $0xd0] sm:$0xff] %v3314
        %3363 = vst [vmem:[%s570 + $0xd8] sm:$0xff] %v3317
        %3364 = vst [vmem:[%s570 + $0xe0] sm:$0xff] %v3322
        %3365 = vst [vmem:[%s570 + $0xe8] sm:$0xff] %v3325
        %3366 = vst [vmem:[%s570 + $0xf0] sm:$0xff] %v3330
        %3367 = vst [vmem:[%s570 + $0xf8] sm:$0xff] %v3333
        %s3368 = sand.u32 %s362, 1
        %s3369 = scalar_lea.sflag [#allocation4], %s3368
        %s3370 = sand.u32 %s362, 1
        %s3371 = smul.addr %s3370, 256
        %s3372 = scalar_lea.vmem [#allocation11], %s3371
        // Predicated region
        $region101: #{tpu_custom_call.1} parent=79 // pred_check
          %p3373 = pneg %p372
        $region102: #{tpu_custom_call.1} parent=79 // pred_check_branch
          %3375 = sbr.rel (%p3373) target = $region104
        $region103: #{tpu_custom_call.1} parent=79 // pred_region
          %s3376 = smul.u32 32, %s34
          %s3378 = ssub.s32 4096, 4096
          %3379 = vsyncadd %s3369, %s3378
          %s3380 = smul.addr %s3376, 128
          %s3381 = scalar_lea.hbm %s15, %s3380
          %s3382 = sshll.u32 %s3372, 4
          %s3383 = int_to_ptr.vmem [resolvable:$true] %s3382
          %3388 = dma.vmem_to_hbm [thread:$0]  %s3383, 4096, %s3381, %s3369, 128, 128, 8
        $region104: #{tpu_custom_call.1} parent=79 // pred_fallthru
          _
      $region80: #{tpu_custom_call.1} parent=5 // pred_fallthru
        _
      %p3389 = scmp.le.s32.totalorder 2, %s29
      // Predicated region
      $region105: #{tpu_custom_call.1} parent=5 // pred_check
        %p3390 = pneg %p3389
      $region106: #{tpu_custom_call.1} parent=5 // pred_check_branch
        %3392 = sbr.rel (%p3390) target = $region108
      $region107: #{tpu_custom_call.1} parent=5 // pred_region
        %s3393 = ssub.s32 %s29, 2
        // Predicated region
        $region109: #{tpu_custom_call.1} parent=107 // pred_check
          %p3394 = pneg %p378
        $region110: #{tpu_custom_call.1} parent=107 // pred_check_branch
          %3396 = sbr.rel (%p3394) target = $region112
        $region111: #{tpu_custom_call.1} parent=107 // pred_region
          %s3397 = sand.u32 %s363, 1
          %s3398 = scalar_lea.sflag [#allocation4], %s3397
          %s3399 = sand.u32 %s363, 1
          %s3400 = smul.addr %s3399, 256
          %s3401 = scalar_lea.vmem [#allocation11], %s3400
          %3402 = dma.done %s3398, 4096
        $region112: #{tpu_custom_call.1} parent=107 // pred_fallthru
          _
      $region108: #{tpu_custom_call.1} parent=5 // pred_fallthru
        _
    $region6: #{tpu_custom_call.1} parent=1 // loop_footer
      %s33 = sadd.s32 1, %s29
    $region7: #{tpu_custom_call.1} parent=1 // loop_footer_branch
      %28 = sbr.rel target = $region3
    $region8: #{tpu_custom_call.1} parent=1 // loop_exit
      _
    %3403 = vsyncpa [#allocation3], 1
    %s3404 = scalar_lea.sflag [#allocation3], 1
    %3405 = vsyncpa %s3404, 1
    %3406 = vsyncpa [#allocation6], 1
    %3407 = vsyncpa [#allocation9], 1
    %3408 = vsyncpa [#allocation4], 1
    %s3409 = scalar_lea.sflag [#allocation4], 1
    %3410 = vsyncpa %s3409, 1

</llo_original>
